<compile_context>
chip_gen: v7x
topology: tpu7x:2x2x1
jax: 0.10.0
libtpu: 0.0.40
codegen_flags: <defaults>
</compile_context>

<pallas_src>
import numpy as np
import jax
import jax.numpy as jnp
from jax import lax
from jax.experimental import pallas as pl
from jax.experimental.pallas import tpu as pltpu


# Layer table: (name, kind, Cin, Cout, W_in, W_out).  All convs are k=4, s=2,
# p=1, so H/W halve (encoder) or double (decoder).
_LAYERS = (
    ("e1", "conv",  3,  12, 32, 16),
    ("e2", "conv",  12, 24, 16, 8),
    ("e3", "conv",  24, 48, 8,  4),
    ("d1", "tconv", 48, 24, 4,  8),
    ("d2", "tconv", 24, 12, 8,  16),
    ("d3", "tconv", 12, 3,  16, 32),
)

_LANE = 128
_K1P = 128            # lane-padded row width of the 32x32x3 input (32*3=96 -> 128)


def _round_up(x, m):
    return (x + m - 1) // m * m


def _images_per_step(b):
    for nb in (8, 4, 2, 1):
        if nb <= b and b % nb == 0:
            return nb
    return 1


# ---------------------------------------------------------------------------
# One-time weight packing (outside the jit / per-call trace).
# ---------------------------------------------------------------------------
def pack_params(params):
    """Build lane-padded bf16 block-banded, kh-merged weight matrices.

    Conv2d (s=2,p=1):           wb[kh][j*Cin+ci, ow*Cout+co] = w[co,ci,kh,kw],
                                j = 2*ow + kw - 1 (unpadded input column).
      -> merged (4*K, N): rows stacked in kh order 0,1,2,3 to match the
         lane-concatenated LHS [e0 | o0 | e1 | o1].
    ConvTranspose2d (s=2,p=1):  wb[kh][j*Cin+ci, ow*Cout+co] = w[ci,co,kh,kw],
                                ow = 2*j + kw - 1 (output column).
      -> two merged (2*K, N) matrices:
         even output rows: [wb3; wb1] (LHS [xa | xb]),
         odd  output rows: [wb2; wb0] (LHS [xb | xc]).
    Spatial zero padding is handled by zero border rows in the activation
    scratch; padded lanes pair with zero weight K-rows.
    """
    packed = []
    for name, kind, cin, cout, w_in, w_out in _LAYERS:
        w = np.asarray(params[name + "_w"], np.float32)
        b = np.asarray(params[name + "_b"], np.float32)
        kp = _round_up(w_in * cin, _LANE)
        npad = _round_up(w_out * cout, _LANE)
        wb = np.zeros((4, kp, npad), np.float32)
        if kind == "conv":                 # torch Conv2d weight: (Cout, Cin, 4, 4)
            for kh in range(4):
                for ow in range(w_out):
                    for kw in range(4):
                        j = 2 * ow + kw - 1
                        if 0 <= j < w_in:
                            wb[kh, j * cin:(j + 1) * cin,
                               ow * cout:(ow + 1) * cout] = w[:, :, kh, kw].T
            wmats = (wb.reshape(4 * kp, npad),)                       # kh 0,1,2,3
        else:                              # torch ConvTranspose2d weight: (Cin, Cout, 4, 4)
            for kh in range(4):
                for j in range(w_in):
                    for kw in range(4):
                        ow = 2 * j + kw - 1
                        if 0 <= ow < w_out:
                            wb[kh, j * cin:(j + 1) * cin,
                               ow * cout:(ow + 1) * cout] = w[:, :, kh, kw]
            wmats = (np.concatenate([wb[3], wb[1]], axis=0),          # even rows
                     np.concatenate([wb[2], wb[0]], axis=0))          # odd rows
        brow = np.zeros((1, npad), np.float32)
        brow[0, :w_out * cout] = np.tile(b, w_out)
        for m in wmats:
            packed.append(jnp.asarray(m, jnp.bfloat16))   # bf16 MXU operands
        packed.append(jnp.asarray(brow, jnp.float32))     # bias/epilogue stays f32
    return tuple(packed)


def _weight_specs():
    specs = []
    for _, kind, cin, cout, w_in, w_out in _LAYERS:
        kp = _round_up(w_in * cin, _LANE)
        npad = _round_up(w_out * cout, _LANE)
        if kind == "conv":
            specs.append(pl.BlockSpec((4 * kp, npad), lambda i: (0, 0)))
        else:
            specs.append(pl.BlockSpec((2 * kp, npad), lambda i: (0, 0)))
            specs.append(pl.BlockSpec((2 * kp, npad), lambda i: (0, 0)))
        specs.append(pl.BlockSpec((1, npad), lambda i: (0, 0)))
    return specs


# ---------------------------------------------------------------------------
# Fused 6-layer kernel. One grid step == `nb` images stacked along M.
# ---------------------------------------------------------------------------
def _make_kernel(nb):
    f32, bf16 = jnp.float32, jnp.bfloat16

    def kernel(x_ref, w1, b1, w2, b2, w3, b3,
               w4e, w4o, b4, w5e, w5o, b5, w6e, w6o, b6,
               out_ref, s2, s3, s4, s5, s6):
        # Zero ONLY the spatial-padding border rows; interiors are fully
        # overwritten each step.  These exact rows must stay zero:
        #   s2[:,0,0], s2[:,1,8], s3[:,0,0], s3[:,1,4],
        #   s4 rows 0/5, s5 rows 0/9, s6 rows 0/17.
        zrow = jnp.zeros((nb, 1, 256), bf16)
        s2[:, 0, 0:1, :] = zrow
        s2[:, 1, 8:9, :] = zrow
        s3[:, 0, 0:1, :] = zrow
        s3[:, 1, 4:5, :] = zrow
        s4[:, 0:1, :] = zrow
        s4[:, 5:6, :] = zrow
        s5[:, 0:1, :] = zrow
        s5[:, 9:10, :] = zrow
        s6[:, 0:1, :] = zrow
        s6[:, 17:18, :] = zrow

        def conv(e0, o0, e1_, o1, w, brow, h):
            # Stride-2 Conv2d as ONE GEMM: kh-merged weight, lane-concat LHS.
            lhs = jnp.concatenate([e0, o0, e1_, o1], axis=-1).reshape(nb * h, -1)
            acc = jnp.dot(lhs, w[...], preferred_element_type=f32) + brow[...]
            return jnp.maximum(acc, 0.0)

        def tconv(src, we, wo, brow, h):
            # Stride-2 ConvTranspose2d split by OUTPUT row parity (sub-pixel),
            # one GEMM per parity (kernel rows {3,1} / {2,0} pre-merged along K).
            xa = src[:, 0:h, :]
            xb = src[:, 1:h + 1, :]
            xc = src[:, 2:h + 2, :]
            lhs_e = jnp.concatenate([xa, xb], axis=-1).reshape(nb * h, -1)
            lhs_o = jnp.concatenate([xb, xc], axis=-1).reshape(nb * h, -1)
            ye = jnp.dot(lhs_e, we[...], preferred_element_type=f32) + brow[...]
            yo = jnp.dot(lhs_o, wo[...], preferred_element_type=f32) + brow[...]
            return ye, yo

        def interleave(ye, yo, h, n):
            # Bulk row interleave: output rows (2m, 2m+1) = (ye[m], yo[m]).
            return jnp.stack([ye.reshape(nb, h, n), yo.reshape(nb, h, n)],
                             axis=2).reshape(nb, 2 * h, n)

        # ---- encoder ------------------------------------------------------
        # Row-parity split of the zero-padded input, done once on the value.
        xr = x_ref[...].reshape(nb, 17, 2, _K1P)
        ev, od = xr[:, :, 0, :], xr[:, :, 1, :]          # padded rows 0,2,.. / 1,3,..
        y = conv(ev[:, 0:16, :], od[:, 0:16, :],
                 ev[:, 1:17, :], od[:, 1:17, :], w1, b1, 16)        # (nb*16, 256)
        yr = y.astype(bf16).reshape(nb, 8, 2, 256)
        s2[:, 1, 0:8, :] = yr[:, :, 0, :]    # even output rows -> odd-parity padded rows
        s2[:, 0, 1:9, :] = yr[:, :, 1, :]    # odd output rows  -> even-parity padded rows

        y = conv(s2[:, 0, 0:8, :], s2[:, 1, 0:8, :],
                 s2[:, 0, 1:9, :], s2[:, 1, 1:9, :], w2, b2, 8)     # (nb*8, 256)
        yr = y.astype(bf16).reshape(nb, 4, 2, 256)
        s3[:, 1, 0:4, :] = yr[:, :, 0, :]
        s3[:, 0, 1:5, :] = yr[:, :, 1, :]

        y = conv(s3[:, 0, 0:4, :], s3[:, 1, 0:4, :],
                 s3[:, 0, 1:5, :], s3[:, 1, 1:5, :], w3, b3, 4)     # (nb*4, 256)
        s4[:, 1:5, :] = y.astype(bf16).reshape(nb, 4, 256)

        # ---- decoder ------------------------------------------------------
        ye, yo = tconv(s4, w4e, w4o, b4, 4)                         # 4x4  -> 8x8
        s5[:, 1:9, :] = interleave(jnp.maximum(ye, 0.0),
                                   jnp.maximum(yo, 0.0), 4, 256).astype(bf16)

        ye, yo = tconv(s5, w5e, w5o, b5, 8)                         # 8x8  -> 16x16
        s6[:, 1:17, :] = interleave(jnp.maximum(ye, 0.0),
                                    jnp.maximum(yo, 0.0), 8, 256).astype(bf16)

        ye, yo = tconv(s6, w6e, w6o, b6, 16)                        # 16x16 -> 32x32
        out_ref[...] = interleave(jnp.tanh(ye), jnp.tanh(yo), 16, 128)

    return kernel


# ---------------------------------------------------------------------------
# Forward wrappers.
# ---------------------------------------------------------------------------
def forward_pallas(packed, x_nchw):
    b = x_nchw.shape[0]
    nb = _images_per_step(b)
    # One-time layout prep (fuses into a single small XLA kernel): NHWC, rows
    # flattened to (W*C), one zero row top/bottom, lanes padded to 128, bf16.
    x = jnp.transpose(x_nchw, (0, 2, 3, 1)).reshape(b, 32, 32 * 3)
    x = jnp.pad(x, ((0, 0), (1, 1), (0, _K1P - 32 * 3))).astype(jnp.bfloat16)  # (b,34,128)

    out = pl.pallas_call(
        _make_kernel(nb),
        out_shape=jax.ShapeDtypeStruct((b, 32, 128), jnp.float32),
        grid=(b // nb,),
        in_specs=[pl.BlockSpec((nb, 34, _K1P), lambda i: (i, 0, 0))]
                 + _weight_specs(),
        out_specs=pl.BlockSpec((nb, 32, 128), lambda i: (i, 0, 0)),
        scratch_shapes=[
            pltpu.VMEM((nb, 2, 9, 256), jnp.bfloat16),   # e2 input (row-parity split)
            pltpu.VMEM((nb, 2, 5, 256), jnp.bfloat16),   # e3 input
            pltpu.VMEM((nb, 6, 256), jnp.bfloat16),      # d1 input (+zero border rows)
            pltpu.VMEM((nb, 10, 256), jnp.bfloat16),     # d2 input
            pltpu.VMEM((nb, 18, 256), jnp.bfloat16),     # d3 input
        ],
        compiler_params=pltpu.CompilerParams(dimension_semantics=("parallel",)),
    )(x, *packed)

    # Restore NCHW (one-time, fuses into a single small XLA kernel).
    y = out[:, :, :32 * 3].reshape(b, 32, 32, 3)
    return jnp.transpose(y, (0, 3, 1, 2))


def init_params(key):
    ks = jax.random.split(key, 12)

    def w_init(k, shape, fan_in):
        bound = 1.0 / (fan_in ** 0.5)
        return jax.random.uniform(k, shape, jnp.float32, -bound, bound)

    p = {}
    # encoder: Conv2d weights [Cout, Cin, 4, 4]
    p["e1_w"] = w_init(ks[0], (12, 3, 4, 4), 3 * 16);   p["e1_b"] = w_init(ks[1], (12,), 3 * 16)
    p["e2_w"] = w_init(ks[2], (24, 12, 4, 4), 12 * 16); p["e2_b"] = w_init(ks[3], (24,), 12 * 16)
    p["e3_w"] = w_init(ks[4], (48, 24, 4, 4), 24 * 16); p["e3_b"] = w_init(ks[5], (48,), 24 * 16)
    # decoder: ConvTranspose2d weights [Cin, Cout, 4, 4]
    p["d1_w"] = w_init(ks[6], (48, 24, 4, 4), 24 * 16); p["d1_b"] = w_init(ks[7], (24,), 24 * 16)
    p["d2_w"] = w_init(ks[8], (24, 12, 4, 4), 12 * 16); p["d2_b"] = w_init(ks[9], (12,), 12 * 16)
    p["d3_w"] = w_init(ks[10], (12, 3, 4, 4), 3 * 16);  p["d3_b"] = w_init(ks[11], (3,), 3 * 16)
    return p


def forward_reference(params, x_nchw):
    dn = ("NCHW", "OIHW", "NCHW")

    def conv(x, w, b, s, p):
        y = lax.conv_general_dilated(x, w, (s, s), ((p, p), (p, p)), dimension_numbers=dn)
        return y + b[None, :, None, None]

    def tconv(x, w, b, s, p):
        k = w.shape[2]
        w_conv = jnp.transpose(w[:, :, ::-1, ::-1], (1, 0, 2, 3))
        y = lax.conv_general_dilated(
            x, w_conv, (1, 1), ((k - 1 - p, k - 1 - p),) * 2,
            lhs_dilation=(s, s), dimension_numbers=dn)
        return y + b[None, :, None, None]

    x = jax.nn.relu(conv(x_nchw, params["e1_w"], params["e1_b"], 2, 1))
    x = jax.nn.relu(conv(x, params["e2_w"], params["e2_b"], 2, 1))
    x = jax.nn.relu(conv(x, params["e3_w"], params["e3_b"], 2, 1))
    x = jax.nn.relu(tconv(x, params["d1_w"], params["d1_b"], 2, 1))
    x = jax.nn.relu(tconv(x, params["d2_w"], params["d2_b"], 2, 1))
    x = jnp.tanh(tconv(x, params["d3_w"], params["d3_b"], 2, 1))
    return x


if __name__ == "__main__":
    key = jax.random.PRNGKey(0)
    k_x, k_p = jax.random.split(key)
    x = jax.random.normal(k_x, (2, 3, 32, 32), jnp.float32)   # NCHW, like torch
    params = init_params(k_p)
    packed = pack_params(params)        # one-time weight layout, outside the jit

    y = jax.block_until_ready(jax.jit(forward_pallas)(packed, x))
    y_ref = jax.block_until_ready(jax.jit(forward_reference)(params, x))

    assert y.shape == (2, 3, 32, 32), y.shape
    # bf16 MXU operands (f32 accumulation) vs. a pure-f32 XLA reference.
    assert jnp.allclose(y, y_ref, atol=5e-2, rtol=5e-2), float(jnp.max(jnp.abs(y - y_ref)))
    print("KERNEL_OK")
</pallas_src>

<mosaic_0001>
module attributes {stable_mosaic.version = 11 : i64} {
  func.func @kernel(%arg0: i32, %arg1: memref<2x34x128xbf16, #tpu.memory_space<vmem>>, %arg2: memref<512x256xbf16, #tpu.memory_space<vmem>>, %arg3: memref<1x256xf32, #tpu.memory_space<vmem>>, %arg4: memref<1024x256xbf16, #tpu.memory_space<vmem>>, %arg5: memref<1x256xf32, #tpu.memory_space<vmem>>, %arg6: memref<1024x256xbf16, #tpu.memory_space<vmem>>, %arg7: memref<1x256xf32, #tpu.memory_space<vmem>>, %arg8: memref<512x256xbf16, #tpu.memory_space<vmem>>, %arg9: memref<512x256xbf16, #tpu.memory_space<vmem>>, %arg10: memref<1x256xf32, #tpu.memory_space<vmem>>, %arg11: memref<512x256xbf16, #tpu.memory_space<vmem>>, %arg12: memref<512x256xbf16, #tpu.memory_space<vmem>>, %arg13: memref<1x256xf32, #tpu.memory_space<vmem>>, %arg14: memref<512x128xbf16, #tpu.memory_space<vmem>>, %arg15: memref<512x128xbf16, #tpu.memory_space<vmem>>, %arg16: memref<1x128xf32, #tpu.memory_space<vmem>>, %arg17: memref<2x32x128xf32, #tpu.memory_space<vmem>>, %arg18: memref<2x2x9x256xbf16, #tpu.memory_space<vmem>>, %arg19: memref<2x2x5x256xbf16, #tpu.memory_space<vmem>>, %arg20: memref<2x6x256xbf16, #tpu.memory_space<vmem>>, %arg21: memref<2x10x256xbf16, #tpu.memory_space<vmem>>, %arg22: memref<2x18x256xbf16, #tpu.memory_space<vmem>>) attributes {dimension_semantics = [#tpu.dimension_semantics<parallel>], iteration_bounds = array<i64: 1>, scalar_prefetch = 0 : i64, scratch_operands = 5 : i64, tpu.core_type = #tpu.core_type<tc>, window_params = [{transform_indices = @transform_0, window_bounds = array<i64: 2, 34, 128>}, {pipeline_mode = #tpu.pipeline_mode<synchronous>, transform_indices = @transform_1, window_bounds = array<i64: 512, 256>}, {pipeline_mode = #tpu.pipeline_mode<synchronous>, transform_indices = @transform_2, window_bounds = array<i64: 1, 256>}, {pipeline_mode = #tpu.pipeline_mode<synchronous>, transform_indices = @transform_3, window_bounds = array<i64: 1024, 256>}, {pipeline_mode = #tpu.pipeline_mode<synchronous>, transform_indices = @transform_4, window_bounds = array<i64: 1, 256>}, {pipeline_mode = #tpu.pipeline_mode<synchronous>, transform_indices = @transform_5, window_bounds = array<i64: 1024, 256>}, {pipeline_mode = #tpu.pipeline_mode<synchronous>, transform_indices = @transform_6, window_bounds = array<i64: 1, 256>}, {pipeline_mode = #tpu.pipeline_mode<synchronous>, transform_indices = @transform_7, window_bounds = array<i64: 512, 256>}, {pipeline_mode = #tpu.pipeline_mode<synchronous>, transform_indices = @transform_8, window_bounds = array<i64: 512, 256>}, {pipeline_mode = #tpu.pipeline_mode<synchronous>, transform_indices = @transform_9, window_bounds = array<i64: 1, 256>}, {pipeline_mode = #tpu.pipeline_mode<synchronous>, transform_indices = @transform_10, window_bounds = array<i64: 512, 256>}, {pipeline_mode = #tpu.pipeline_mode<synchronous>, transform_indices = @transform_11, window_bounds = array<i64: 512, 256>}, {pipeline_mode = #tpu.pipeline_mode<synchronous>, transform_indices = @transform_12, window_bounds = array<i64: 1, 256>}, {pipeline_mode = #tpu.pipeline_mode<synchronous>, transform_indices = @transform_13, window_bounds = array<i64: 512, 128>}, {pipeline_mode = #tpu.pipeline_mode<synchronous>, transform_indices = @transform_14, window_bounds = array<i64: 512, 128>}, {pipeline_mode = #tpu.pipeline_mode<synchronous>, transform_indices = @transform_15, window_bounds = array<i64: 1, 128>}, {transform_indices = @transform_16, window_bounds = array<i64: 2, 32, 128>}]} {
    %cst = arith.constant 0.000000e+00 : bf16
    %0 = vector.broadcast %cst : bf16 to vector<2x1x256xbf16>
    %c0 = arith.constant 0 : index
    %c0_0 = arith.constant 0 : index
    %c0_1 = arith.constant 0 : index
    %c0_2 = arith.constant 0 : index
    %1 = vector.load %arg18[%c0, %c0_0, %c0_1, %c0_2] : memref<2x2x9x256xbf16, #tpu.memory_space<vmem>>, vector<2x1x1x256xbf16>
    %2 = vector.shape_cast %1 : vector<2x1x1x256xbf16> to vector<2x1x256xbf16>
    %3 = vector.shape_cast %0 : vector<2x1x256xbf16> to vector<2x1x1x256xbf16>
    tpu.vector_store %arg18[%c0, %c0_0, %c0_1, %c0_2], %3 {strides = array<i32>} : memref<2x2x9x256xbf16, #tpu.memory_space<vmem>>, vector<2x1x1x256xbf16>,
    %c0_3 = arith.constant 0 : index
    %c1 = arith.constant 1 : index
    %c8 = arith.constant 8 : index
    %c0_4 = arith.constant 0 : index
    %4 = vector.load %arg18[%c0_3, %c1, %c8, %c0_4] : memref<2x2x9x256xbf16, #tpu.memory_space<vmem>>, vector<2x1x1x256xbf16>
    %5 = vector.shape_cast %4 : vector<2x1x1x256xbf16> to vector<2x1x256xbf16>
    %6 = vector.shape_cast %0 : vector<2x1x256xbf16> to vector<2x1x1x256xbf16>
    tpu.vector_store %arg18[%c0_3, %c1, %c8, %c0_4], %6 {strides = array<i32>} : memref<2x2x9x256xbf16, #tpu.memory_space<vmem>>, vector<2x1x1x256xbf16>,
    %c0_5 = arith.constant 0 : index
    %c0_6 = arith.constant 0 : index
    %c0_7 = arith.constant 0 : index
    %c0_8 = arith.constant 0 : index
    %7 = vector.load %arg19[%c0_5, %c0_6, %c0_7, %c0_8] : memref<2x2x5x256xbf16, #tpu.memory_space<vmem>>, vector<2x1x1x256xbf16>
    %8 = vector.shape_cast %7 : vector<2x1x1x256xbf16> to vector<2x1x256xbf16>
    %9 = vector.shape_cast %0 : vector<2x1x256xbf16> to vector<2x1x1x256xbf16>
    tpu.vector_store %arg19[%c0_5, %c0_6, %c0_7, %c0_8], %9 {strides = array<i32>} : memref<2x2x5x256xbf16, #tpu.memory_space<vmem>>, vector<2x1x1x256xbf16>,
    %c0_9 = arith.constant 0 : index
    %c1_10 = arith.constant 1 : index
    %c4 = arith.constant 4 : index
    %c0_11 = arith.constant 0 : index
    %10 = vector.load %arg19[%c0_9, %c1_10, %c4, %c0_11] : memref<2x2x5x256xbf16, #tpu.memory_space<vmem>>, vector<2x1x1x256xbf16>
    %11 = vector.shape_cast %10 : vector<2x1x1x256xbf16> to vector<2x1x256xbf16>
    %12 = vector.shape_cast %0 : vector<2x1x256xbf16> to vector<2x1x1x256xbf16>
    tpu.vector_store %arg19[%c0_9, %c1_10, %c4, %c0_11], %12 {strides = array<i32>} : memref<2x2x5x256xbf16, #tpu.memory_space<vmem>>, vector<2x1x1x256xbf16>,
    %c0_12 = arith.constant 0 : index
    %c0_13 = arith.constant 0 : index
    %c0_14 = arith.constant 0 : index
    %13 = vector.load %arg20[%c0_12, %c0_13, %c0_14] : memref<2x6x256xbf16, #tpu.memory_space<vmem>>, vector<2x1x256xbf16>
    tpu.vector_store %arg20[%c0_12, %c0_13, %c0_14], %0 {strides = array<i32>} : memref<2x6x256xbf16, #tpu.memory_space<vmem>>, vector<2x1x256xbf16>,
    %c0_15 = arith.constant 0 : index
    %c5 = arith.constant 5 : index
    %c0_16 = arith.constant 0 : index
    %14 = vector.load %arg20[%c0_15, %c5, %c0_16] : memref<2x6x256xbf16, #tpu.memory_space<vmem>>, vector<2x1x256xbf16>
    tpu.vector_store %arg20[%c0_15, %c5, %c0_16], %0 {strides = array<i32>} : memref<2x6x256xbf16, #tpu.memory_space<vmem>>, vector<2x1x256xbf16>,
    %c0_17 = arith.constant 0 : index
    %c0_18 = arith.constant 0 : index
    %c0_19 = arith.constant 0 : index
    %15 = vector.load %arg21[%c0_17, %c0_18, %c0_19] : memref<2x10x256xbf16, #tpu.memory_space<vmem>>, vector<2x1x256xbf16>
    tpu.vector_store %arg21[%c0_17, %c0_18, %c0_19], %0 {strides = array<i32>} : memref<2x10x256xbf16, #tpu.memory_space<vmem>>, vector<2x1x256xbf16>,
    %c0_20 = arith.constant 0 : index
    %c9 = arith.constant 9 : index
    %c0_21 = arith.constant 0 : index
    %16 = vector.load %arg21[%c0_20, %c9, %c0_21] : memref<2x10x256xbf16, #tpu.memory_space<vmem>>, vector<2x1x256xbf16>
    tpu.vector_store %arg21[%c0_20, %c9, %c0_21], %0 {strides = array<i32>} : memref<2x10x256xbf16, #tpu.memory_space<vmem>>, vector<2x1x256xbf16>,
    %c0_22 = arith.constant 0 : index
    %c0_23 = arith.constant 0 : index
    %c0_24 = arith.constant 0 : index
    %17 = vector.load %arg22[%c0_22, %c0_23, %c0_24] : memref<2x18x256xbf16, #tpu.memory_space<vmem>>, vector<2x1x256xbf16>
    tpu.vector_store %arg22[%c0_22, %c0_23, %c0_24], %0 {strides = array<i32>} : memref<2x18x256xbf16, #tpu.memory_space<vmem>>, vector<2x1x256xbf16>,
    %c0_25 = arith.constant 0 : index
    %c17 = arith.constant 17 : index
    %c0_26 = arith.constant 0 : index
    %18 = vector.load %arg22[%c0_25, %c17, %c0_26] : memref<2x18x256xbf16, #tpu.memory_space<vmem>>, vector<2x1x256xbf16>
    tpu.vector_store %arg22[%c0_25, %c17, %c0_26], %0 {strides = array<i32>} : memref<2x18x256xbf16, #tpu.memory_space<vmem>>, vector<2x1x256xbf16>,
    %c0_27 = arith.constant 0 : index
    %c0_28 = arith.constant 0 : index
    %c0_29 = arith.constant 0 : index
    %19 = vector.load %arg1[%c0_27, %c0_28, %c0_29] : memref<2x34x128xbf16, #tpu.memory_space<vmem>>, vector<2x34x128xbf16>
    %20 = vector.shape_cast %19 : vector<2x34x128xbf16> to vector<2x17x2x128xbf16>
    %21 = vector.extract_strided_slice %20 {offsets = [0, 0, 0, 0], sizes = [2, 17, 1, 128], strides = [1, 1, 1, 1]} : vector<2x17x2x128xbf16> to vector<2x17x1x128xbf16>
    %22 = vector.shape_cast %21 : vector<2x17x1x128xbf16> to vector<2x17x128xbf16>
    %23 = vector.extract_strided_slice %20 {offsets = [0, 0, 1, 0], sizes = [2, 17, 1, 128], strides = [1, 1, 1, 1]} : vector<2x17x2x128xbf16> to vector<2x17x1x128xbf16>
    %24 = vector.shape_cast %23 : vector<2x17x1x128xbf16> to vector<2x17x128xbf16>
    %25 = vector.extract_strided_slice %22 {offsets = [0, 0, 0], sizes = [2, 16, 128], strides = [1, 1, 1]} : vector<2x17x128xbf16> to vector<2x16x128xbf16>
    %26 = vector.extract_strided_slice %24 {offsets = [0, 0, 0], sizes = [2, 16, 128], strides = [1, 1, 1]} : vector<2x17x128xbf16> to vector<2x16x128xbf16>
    %27 = vector.extract_strided_slice %22 {offsets = [0, 1, 0], sizes = [2, 16, 128], strides = [1, 1, 1]} : vector<2x17x128xbf16> to vector<2x16x128xbf16>
    %28 = vector.extract_strided_slice %24 {offsets = [0, 1, 0], sizes = [2, 16, 128], strides = [1, 1, 1]} : vector<2x17x128xbf16> to vector<2x16x128xbf16>
    %29 = tpu.concatenate %25, %26, %27, %28 in 2 : vector<2x16x128xbf16>, vector<2x16x128xbf16>, vector<2x16x128xbf16>, vector<2x16x128xbf16> -> vector<2x16x512xbf16>
    %30 = vector.shape_cast %29 : vector<2x16x512xbf16> to vector<32x512xbf16>
    %c0_30 = arith.constant 0 : index
    %c0_31 = arith.constant 0 : index
    %31 = vector.load %arg2[%c0_30, %c0_31] : memref<512x256xbf16, #tpu.memory_space<vmem>>, vector<512x256xbf16>
    %cst_32 = arith.constant dense<0.000000e+00> : vector<32x256xf32>
    %32 = tpu.matmul %30, %31, %cst_32 {dimension_numbers = #tpu.dot_dimension_numbers<[1], [0], [0], [1], [0, 0, 1, 1], [], []>} : vector<32x512xbf16>, vector<512x256xbf16>, vector<32x256xf32> -> vector<32x256xf32>
    %c0_33 = arith.constant 0 : index
    %c0_34 = arith.constant 0 : index
    %33 = vector.load %arg3[%c0_33, %c0_34] : memref<1x256xf32, #tpu.memory_space<vmem>>, vector<1x256xf32>
    %34 = vector.broadcast %33 : vector<1x256xf32> to vector<32x256xf32>
    %35 = arith.addf %32, %34 : vector<32x256xf32>
    %cst_35 = arith.constant 0.000000e+00 : f32
    %36 = vector.broadcast %cst_35 : f32 to vector<32x256xf32>
    %37 = arith.maximumf %35, %36 : vector<32x256xf32>
    %38 = arith.truncf %37 : vector<32x256xf32> to vector<32x256xbf16>
    %39 = vector.shape_cast %38 : vector<32x256xbf16> to vector<2x8x2x256xbf16>
    %40 = vector.extract_strided_slice %39 {offsets = [0, 0, 0, 0], sizes = [2, 8, 1, 256], strides = [1, 1, 1, 1]} : vector<2x8x2x256xbf16> to vector<2x8x1x256xbf16>
    %41 = vector.shape_cast %40 : vector<2x8x1x256xbf16> to vector<2x8x256xbf16>
    %c0_36 = arith.constant 0 : index
    %c1_37 = arith.constant 1 : index
    %c0_38 = arith.constant 0 : index
    %c0_39 = arith.constant 0 : index
    %42 = vector.load %arg18[%c0_36, %c1_37, %c0_38, %c0_39] : memref<2x2x9x256xbf16, #tpu.memory_space<vmem>>, vector<2x1x8x256xbf16>
    %43 = vector.shape_cast %42 : vector<2x1x8x256xbf16> to vector<2x8x256xbf16>
    %44 = vector.shape_cast %41 : vector<2x8x256xbf16> to vector<2x1x8x256xbf16>
    tpu.vector_store %arg18[%c0_36, %c1_37, %c0_38, %c0_39], %44 {strides = array<i32>} : memref<2x2x9x256xbf16, #tpu.memory_space<vmem>>, vector<2x1x8x256xbf16>,
    %45 = vector.extract_strided_slice %39 {offsets = [0, 0, 1, 0], sizes = [2, 8, 1, 256], strides = [1, 1, 1, 1]} : vector<2x8x2x256xbf16> to vector<2x8x1x256xbf16>
    %46 = vector.shape_cast %45 : vector<2x8x1x256xbf16> to vector<2x8x256xbf16>
    %c0_40 = arith.constant 0 : index
    %c0_41 = arith.constant 0 : index
    %c1_42 = arith.constant 1 : index
    %c0_43 = arith.constant 0 : index
    %47 = vector.load %arg18[%c0_40, %c0_41, %c1_42, %c0_43] : memref<2x2x9x256xbf16, #tpu.memory_space<vmem>>, vector<2x1x8x256xbf16>
    %48 = vector.shape_cast %47 : vector<2x1x8x256xbf16> to vector<2x8x256xbf16>
    %49 = vector.shape_cast %46 : vector<2x8x256xbf16> to vector<2x1x8x256xbf16>
    tpu.vector_store %arg18[%c0_40, %c0_41, %c1_42, %c0_43], %49 {strides = array<i32>} : memref<2x2x9x256xbf16, #tpu.memory_space<vmem>>, vector<2x1x8x256xbf16>,
    %c0_44 = arith.constant 0 : index
    %c0_45 = arith.constant 0 : index
    %c0_46 = arith.constant 0 : index
    %c0_47 = arith.constant 0 : index
    %50 = vector.load %arg18[%c0_44, %c0_45, %c0_46, %c0_47] : memref<2x2x9x256xbf16, #tpu.memory_space<vmem>>, vector<2x1x8x256xbf16>
    %51 = vector.shape_cast %50 : vector<2x1x8x256xbf16> to vector<2x8x256xbf16>
    %c0_48 = arith.constant 0 : index
    %c1_49 = arith.constant 1 : index
    %c0_50 = arith.constant 0 : index
    %c0_51 = arith.constant 0 : index
    %52 = vector.load %arg18[%c0_48, %c1_49, %c0_50, %c0_51] : memref<2x2x9x256xbf16, #tpu.memory_space<vmem>>, vector<2x1x8x256xbf16>
    %53 = vector.shape_cast %52 : vector<2x1x8x256xbf16> to vector<2x8x256xbf16>
    %c0_52 = arith.constant 0 : index
    %c0_53 = arith.constant 0 : index
    %c1_54 = arith.constant 1 : index
    %c0_55 = arith.constant 0 : index
    %54 = vector.load %arg18[%c0_52, %c0_53, %c1_54, %c0_55] : memref<2x2x9x256xbf16, #tpu.memory_space<vmem>>, vector<2x1x8x256xbf16>
    %55 = vector.shape_cast %54 : vector<2x1x8x256xbf16> to vector<2x8x256xbf16>
    %c0_56 = arith.constant 0 : index
    %c1_57 = arith.constant 1 : index
    %c1_58 = arith.constant 1 : index
    %c0_59 = arith.constant 0 : index
    %56 = vector.load %arg18[%c0_56, %c1_57, %c1_58, %c0_59] : memref<2x2x9x256xbf16, #tpu.memory_space<vmem>>, vector<2x1x8x256xbf16>
    %57 = vector.shape_cast %56 : vector<2x1x8x256xbf16> to vector<2x8x256xbf16>
    %58 = tpu.concatenate %51, %53, %55, %57 in 2 : vector<2x8x256xbf16>, vector<2x8x256xbf16>, vector<2x8x256xbf16>, vector<2x8x256xbf16> -> vector<2x8x1024xbf16>
    %59 = vector.shape_cast %58 : vector<2x8x1024xbf16> to vector<16x1024xbf16>
    %c0_60 = arith.constant 0 : index
    %c0_61 = arith.constant 0 : index
    %60 = vector.load %arg4[%c0_60, %c0_61] : memref<1024x256xbf16, #tpu.memory_space<vmem>>, vector<1024x256xbf16>
    %cst_62 = arith.constant dense<0.000000e+00> : vector<16x256xf32>
    %61 = tpu.matmul %59, %60, %cst_62 {dimension_numbers = #tpu.dot_dimension_numbers<[1], [0], [0], [1], [0, 0, 1, 1], [], []>} : vector<16x1024xbf16>, vector<1024x256xbf16>, vector<16x256xf32> -> vector<16x256xf32>
    %c0_63 = arith.constant 0 : index
    %c0_64 = arith.constant 0 : index
    %62 = vector.load %arg5[%c0_63, %c0_64] : memref<1x256xf32, #tpu.memory_space<vmem>>, vector<1x256xf32>
    %63 = vector.broadcast %62 : vector<1x256xf32> to vector<16x256xf32>
    %64 = arith.addf %61, %63 : vector<16x256xf32>
    %cst_65 = arith.constant 0.000000e+00 : f32
    %65 = vector.broadcast %cst_65 : f32 to vector<16x256xf32>
    %66 = arith.maximumf %64, %65 : vector<16x256xf32>
    %67 = arith.truncf %66 : vector<16x256xf32> to vector<16x256xbf16>
    %68 = vector.shape_cast %67 : vector<16x256xbf16> to vector<2x4x2x256xbf16>
    %69 = vector.extract_strided_slice %68 {offsets = [0, 0, 0, 0], sizes = [2, 4, 1, 256], strides = [1, 1, 1, 1]} : vector<2x4x2x256xbf16> to vector<2x4x1x256xbf16>
    %70 = vector.shape_cast %69 : vector<2x4x1x256xbf16> to vector<2x4x256xbf16>
    %c0_66 = arith.constant 0 : index
    %c1_67 = arith.constant 1 : index
    %c0_68 = arith.constant 0 : index
    %c0_69 = arith.constant 0 : index
    %71 = vector.load %arg19[%c0_66, %c1_67, %c0_68, %c0_69] : memref<2x2x5x256xbf16, #tpu.memory_space<vmem>>, vector<2x1x4x256xbf16>
    %72 = vector.shape_cast %71 : vector<2x1x4x256xbf16> to vector<2x4x256xbf16>
    %73 = vector.shape_cast %70 : vector<2x4x256xbf16> to vector<2x1x4x256xbf16>
    tpu.vector_store %arg19[%c0_66, %c1_67, %c0_68, %c0_69], %73 {strides = array<i32>} : memref<2x2x5x256xbf16, #tpu.memory_space<vmem>>, vector<2x1x4x256xbf16>,
    %74 = vector.extract_strided_slice %68 {offsets = [0, 0, 1, 0], sizes = [2, 4, 1, 256], strides = [1, 1, 1, 1]} : vector<2x4x2x256xbf16> to vector<2x4x1x256xbf16>
    %75 = vector.shape_cast %74 : vector<2x4x1x256xbf16> to vector<2x4x256xbf16>
    %c0_70 = arith.constant 0 : index
    %c0_71 = arith.constant 0 : index
    %c1_72 = arith.constant 1 : index
    %c0_73 = arith.constant 0 : index
    %76 = vector.load %arg19[%c0_70, %c0_71, %c1_72, %c0_73] : memref<2x2x5x256xbf16, #tpu.memory_space<vmem>>, vector<2x1x4x256xbf16>
    %77 = vector.shape_cast %76 : vector<2x1x4x256xbf16> to vector<2x4x256xbf16>
    %78 = vector.shape_cast %75 : vector<2x4x256xbf16> to vector<2x1x4x256xbf16>
    tpu.vector_store %arg19[%c0_70, %c0_71, %c1_72, %c0_73], %78 {strides = array<i32>} : memref<2x2x5x256xbf16, #tpu.memory_space<vmem>>, vector<2x1x4x256xbf16>,
    %c0_74 = arith.constant 0 : index
    %c0_75 = arith.constant 0 : index
    %c0_76 = arith.constant 0 : index
    %c0_77 = arith.constant 0 : index
    %79 = vector.load %arg19[%c0_74, %c0_75, %c0_76, %c0_77] : memref<2x2x5x256xbf16, #tpu.memory_space<vmem>>, vector<2x1x4x256xbf16>
    %80 = vector.shape_cast %79 : vector<2x1x4x256xbf16> to vector<2x4x256xbf16>
    %c0_78 = arith.constant 0 : index
    %c1_79 = arith.constant 1 : index
    %c0_80 = arith.constant 0 : index
    %c0_81 = arith.constant 0 : index
    %81 = vector.load %arg19[%c0_78, %c1_79, %c0_80, %c0_81] : memref<2x2x5x256xbf16, #tpu.memory_space<vmem>>, vector<2x1x4x256xbf16>
    %82 = vector.shape_cast %81 : vector<2x1x4x256xbf16> to vector<2x4x256xbf16>
    %c0_82 = arith.constant 0 : index
    %c0_83 = arith.constant 0 : index
    %c1_84 = arith.constant 1 : index
    %c0_85 = arith.constant 0 : index
    %83 = vector.load %arg19[%c0_82, %c0_83, %c1_84, %c0_85] : memref<2x2x5x256xbf16, #tpu.memory_space<vmem>>, vector<2x1x4x256xbf16>
    %84 = vector.shape_cast %83 : vector<2x1x4x256xbf16> to vector<2x4x256xbf16>
    %c0_86 = arith.constant 0 : index
    %c1_87 = arith.constant 1 : index
    %c1_88 = arith.constant 1 : index
    %c0_89 = arith.constant 0 : index
    %85 = vector.load %arg19[%c0_86, %c1_87, %c1_88, %c0_89] : memref<2x2x5x256xbf16, #tpu.memory_space<vmem>>, vector<2x1x4x256xbf16>
    %86 = vector.shape_cast %85 : vector<2x1x4x256xbf16> to vector<2x4x256xbf16>
    %87 = tpu.concatenate %80, %82, %84, %86 in 2 : vector<2x4x256xbf16>, vector<2x4x256xbf16>, vector<2x4x256xbf16>, vector<2x4x256xbf16> -> vector<2x4x1024xbf16>
    %88 = vector.shape_cast %87 : vector<2x4x1024xbf16> to vector<8x1024xbf16>
    %c0_90 = arith.constant 0 : index
    %c0_91 = arith.constant 0 : index
    %89 = vector.load %arg6[%c0_90, %c0_91] : memref<1024x256xbf16, #tpu.memory_space<vmem>>, vector<1024x256xbf16>
    %cst_92 = arith.constant dense<0.000000e+00> : vector<8x256xf32>
    %90 = tpu.matmul %88, %89, %cst_92 {dimension_numbers = #tpu.dot_dimension_numbers<[1], [0], [0], [1], [0, 0, 1, 1], [], []>} : vector<8x1024xbf16>, vector<1024x256xbf16>, vector<8x256xf32> -> vector<8x256xf32>
    %c0_93 = arith.constant 0 : index
    %c0_94 = arith.constant 0 : index
    %91 = vector.load %arg7[%c0_93, %c0_94] : memref<1x256xf32, #tpu.memory_space<vmem>>, vector<1x256xf32>
    %92 = vector.broadcast %91 : vector<1x256xf32> to vector<8x256xf32>
    %93 = arith.addf %90, %92 : vector<8x256xf32>
    %cst_95 = arith.constant 0.000000e+00 : f32
    %94 = vector.broadcast %cst_95 : f32 to vector<8x256xf32>
    %95 = arith.maximumf %93, %94 : vector<8x256xf32>
    %96 = arith.truncf %95 : vector<8x256xf32> to vector<8x256xbf16>
    %97 = vector.shape_cast %96 : vector<8x256xbf16> to vector<2x4x256xbf16>
    %c0_96 = arith.constant 0 : index
    %c1_97 = arith.constant 1 : index
    %c0_98 = arith.constant 0 : index
    %98 = vector.load %arg20[%c0_96, %c1_97, %c0_98] : memref<2x6x256xbf16, #tpu.memory_space<vmem>>, vector<2x4x256xbf16>
    tpu.vector_store %arg20[%c0_96, %c1_97, %c0_98], %97 {strides = array<i32>} : memref<2x6x256xbf16, #tpu.memory_space<vmem>>, vector<2x4x256xbf16>,
    %c0_99 = arith.constant 0 : index
    %c0_100 = arith.constant 0 : index
    %c0_101 = arith.constant 0 : index
    %99 = vector.load %arg20[%c0_99, %c0_100, %c0_101] : memref<2x6x256xbf16, #tpu.memory_space<vmem>>, vector<2x4x256xbf16>
    %c0_102 = arith.constant 0 : index
    %c1_103 = arith.constant 1 : index
    %c0_104 = arith.constant 0 : index
    %100 = vector.load %arg20[%c0_102, %c1_103, %c0_104] : memref<2x6x256xbf16, #tpu.memory_space<vmem>>, vector<2x4x256xbf16>
    %c0_105 = arith.constant 0 : index
    %c2 = arith.constant 2 : index
    %c0_106 = arith.constant 0 : index
    %101 = vector.load %arg20[%c0_105, %c2, %c0_106] : memref<2x6x256xbf16, #tpu.memory_space<vmem>>, vector<2x4x256xbf16>
    %102 = tpu.concatenate %99, %100 in 2 : vector<2x4x256xbf16>, vector<2x4x256xbf16> -> vector<2x4x512xbf16>
    %103 = vector.shape_cast %102 : vector<2x4x512xbf16> to vector<8x512xbf16>
    %104 = tpu.concatenate %100, %101 in 2 : vector<2x4x256xbf16>, vector<2x4x256xbf16> -> vector<2x4x512xbf16>
    %105 = vector.shape_cast %104 : vector<2x4x512xbf16> to vector<8x512xbf16>
    %c0_107 = arith.constant 0 : index
    %c0_108 = arith.constant 0 : index
    %106 = vector.load %arg8[%c0_107, %c0_108] : memref<512x256xbf16, #tpu.memory_space<vmem>>, vector<512x256xbf16>
    %cst_109 = arith.constant dense<0.000000e+00> : vector<8x256xf32>
    %107 = tpu.matmul %103, %106, %cst_109 {dimension_numbers = #tpu.dot_dimension_numbers<[1], [0], [0], [1], [0, 0, 1, 1], [], []>} : vector<8x512xbf16>, vector<512x256xbf16>, vector<8x256xf32> -> vector<8x256xf32>
    %c0_110 = arith.constant 0 : index
    %c0_111 = arith.constant 0 : index
    %108 = vector.load %arg10[%c0_110, %c0_111] : memref<1x256xf32, #tpu.memory_space<vmem>>, vector<1x256xf32>
    %109 = vector.broadcast %108 : vector<1x256xf32> to vector<8x256xf32>
    %110 = arith.addf %107, %109 : vector<8x256xf32>
    %c0_112 = arith.constant 0 : index
    %c0_113 = arith.constant 0 : index
    %111 = vector.load %arg9[%c0_112, %c0_113] : memref<512x256xbf16, #tpu.memory_space<vmem>>, vector<512x256xbf16>
    %cst_114 = arith.constant dense<0.000000e+00> : vector<8x256xf32>
    %112 = tpu.matmul %105, %111, %cst_114 {dimension_numbers = #tpu.dot_dimension_numbers<[1], [0], [0], [1], [0, 0, 1, 1], [], []>} : vector<8x512xbf16>, vector<512x256xbf16>, vector<8x256xf32> -> vector<8x256xf32>
    %c0_115 = arith.constant 0 : index
    %c0_116 = arith.constant 0 : index
    %113 = vector.load %arg10[%c0_115, %c0_116] : memref<1x256xf32, #tpu.memory_space<vmem>>, vector<1x256xf32>
    %114 = vector.broadcast %113 : vector<1x256xf32> to vector<8x256xf32>
    %115 = arith.addf %112, %114 : vector<8x256xf32>
    %cst_117 = arith.constant 0.000000e+00 : f32
    %116 = vector.broadcast %cst_117 : f32 to vector<8x256xf32>
    %117 = arith.maximumf %110, %116 : vector<8x256xf32>
    %cst_118 = arith.constant 0.000000e+00 : f32
    %118 = vector.broadcast %cst_118 : f32 to vector<8x256xf32>
    %119 = arith.maximumf %115, %118 : vector<8x256xf32>
    %120 = vector.shape_cast %117 : vector<8x256xf32> to vector<2x4x256xf32>
    %121 = vector.shape_cast %119 : vector<8x256xf32> to vector<2x4x256xf32>
    %122 = vector.shape_cast %120 : vector<2x4x256xf32> to vector<2x4x1x256xf32>
    %123 = vector.shape_cast %121 : vector<2x4x256xf32> to vector<2x4x1x256xf32>
    %124 = tpu.concatenate %122, %123 in 2 : vector<2x4x1x256xf32>, vector<2x4x1x256xf32> -> vector<2x4x2x256xf32>
    %125 = vector.shape_cast %124 : vector<2x4x2x256xf32> to vector<2x8x256xf32>
    %126 = arith.truncf %125 : vector<2x8x256xf32> to vector<2x8x256xbf16>
    %c0_119 = arith.constant 0 : index
    %c1_120 = arith.constant 1 : index
    %c0_121 = arith.constant 0 : index
    %127 = vector.load %arg21[%c0_119, %c1_120, %c0_121] : memref<2x10x256xbf16, #tpu.memory_space<vmem>>, vector<2x8x256xbf16>
    tpu.vector_store %arg21[%c0_119, %c1_120, %c0_121], %126 {strides = array<i32>} : memref<2x10x256xbf16, #tpu.memory_space<vmem>>, vector<2x8x256xbf16>,
    %c0_122 = arith.constant 0 : index
    %c0_123 = arith.constant 0 : index
    %c0_124 = arith.constant 0 : index
    %128 = vector.load %arg21[%c0_122, %c0_123, %c0_124] : memref<2x10x256xbf16, #tpu.memory_space<vmem>>, vector<2x8x256xbf16>
    %c0_125 = arith.constant 0 : index
    %c1_126 = arith.constant 1 : index
    %c0_127 = arith.constant 0 : index
    %129 = vector.load %arg21[%c0_125, %c1_126, %c0_127] : memref<2x10x256xbf16, #tpu.memory_space<vmem>>, vector<2x8x256xbf16>
    %c0_128 = arith.constant 0 : index
    %c2_129 = arith.constant 2 : index
    %c0_130 = arith.constant 0 : index
    %130 = vector.load %arg21[%c0_128, %c2_129, %c0_130] : memref<2x10x256xbf16, #tpu.memory_space<vmem>>, vector<2x8x256xbf16>
    %131 = tpu.concatenate %128, %129 in 2 : vector<2x8x256xbf16>, vector<2x8x256xbf16> -> vector<2x8x512xbf16>
    %132 = vector.shape_cast %131 : vector<2x8x512xbf16> to vector<16x512xbf16>
    %133 = tpu.concatenate %129, %130 in 2 : vector<2x8x256xbf16>, vector<2x8x256xbf16> -> vector<2x8x512xbf16>
    %134 = vector.shape_cast %133 : vector<2x8x512xbf16> to vector<16x512xbf16>
    %c0_131 = arith.constant 0 : index
    %c0_132 = arith.constant 0 : index
    %135 = vector.load %arg11[%c0_131, %c0_132] : memref<512x256xbf16, #tpu.memory_space<vmem>>, vector<512x256xbf16>
    %cst_133 = arith.constant dense<0.000000e+00> : vector<16x256xf32>
    %136 = tpu.matmul %132, %135, %cst_133 {dimension_numbers = #tpu.dot_dimension_numbers<[1], [0], [0], [1], [0, 0, 1, 1], [], []>} : vector<16x512xbf16>, vector<512x256xbf16>, vector<16x256xf32> -> vector<16x256xf32>
    %c0_134 = arith.constant 0 : index
    %c0_135 = arith.constant 0 : index
    %137 = vector.load %arg13[%c0_134, %c0_135] : memref<1x256xf32, #tpu.memory_space<vmem>>, vector<1x256xf32>
    %138 = vector.broadcast %137 : vector<1x256xf32> to vector<16x256xf32>
    %139 = arith.addf %136, %138 : vector<16x256xf32>
    %c0_136 = arith.constant 0 : index
    %c0_137 = arith.constant 0 : index
    %140 = vector.load %arg12[%c0_136, %c0_137] : memref<512x256xbf16, #tpu.memory_space<vmem>>, vector<512x256xbf16>
    %cst_138 = arith.constant dense<0.000000e+00> : vector<16x256xf32>
    %141 = tpu.matmul %134, %140, %cst_138 {dimension_numbers = #tpu.dot_dimension_numbers<[1], [0], [0], [1], [0, 0, 1, 1], [], []>} : vector<16x512xbf16>, vector<512x256xbf16>, vector<16x256xf32> -> vector<16x256xf32>
    %c0_139 = arith.constant 0 : index
    %c0_140 = arith.constant 0 : index
    %142 = vector.load %arg13[%c0_139, %c0_140] : memref<1x256xf32, #tpu.memory_space<vmem>>, vector<1x256xf32>
    %143 = vector.broadcast %142 : vector<1x256xf32> to vector<16x256xf32>
    %144 = arith.addf %141, %143 : vector<16x256xf32>
    %cst_141 = arith.constant 0.000000e+00 : f32
    %145 = vector.broadcast %cst_141 : f32 to vector<16x256xf32>
    %146 = arith.maximumf %139, %145 : vector<16x256xf32>
    %cst_142 = arith.constant 0.000000e+00 : f32
    %147 = vector.broadcast %cst_142 : f32 to vector<16x256xf32>
    %148 = arith.maximumf %144, %147 : vector<16x256xf32>
    %149 = vector.shape_cast %146 : vector<16x256xf32> to vector<2x8x256xf32>
    %150 = vector.shape_cast %148 : vector<16x256xf32> to vector<2x8x256xf32>
    %151 = vector.shape_cast %149 : vector<2x8x256xf32> to vector<2x8x1x256xf32>
    %152 = vector.shape_cast %150 : vector<2x8x256xf32> to vector<2x8x1x256xf32>
    %153 = tpu.concatenate %151, %152 in 2 : vector<2x8x1x256xf32>, vector<2x8x1x256xf32> -> vector<2x8x2x256xf32>
    %154 = vector.shape_cast %153 : vector<2x8x2x256xf32> to vector<2x16x256xf32>
    %155 = arith.truncf %154 : vector<2x16x256xf32> to vector<2x16x256xbf16>
    %c0_143 = arith.constant 0 : index
    %c1_144 = arith.constant 1 : index
    %c0_145 = arith.constant 0 : index
    %156 = vector.load %arg22[%c0_143, %c1_144, %c0_145] : memref<2x18x256xbf16, #tpu.memory_space<vmem>>, vector<2x16x256xbf16>
    tpu.vector_store %arg22[%c0_143, %c1_144, %c0_145], %155 {strides = array<i32>} : memref<2x18x256xbf16, #tpu.memory_space<vmem>>, vector<2x16x256xbf16>,
    %c0_146 = arith.constant 0 : index
    %c0_147 = arith.constant 0 : index
    %c0_148 = arith.constant 0 : index
    %157 = vector.load %arg22[%c0_146, %c0_147, %c0_148] : memref<2x18x256xbf16, #tpu.memory_space<vmem>>, vector<2x16x256xbf16>
    %c0_149 = arith.constant 0 : index
    %c1_150 = arith.constant 1 : index
    %c0_151 = arith.constant 0 : index
    %158 = vector.load %arg22[%c0_149, %c1_150, %c0_151] : memref<2x18x256xbf16, #tpu.memory_space<vmem>>, vector<2x16x256xbf16>
    %c0_152 = arith.constant 0 : index
    %c2_153 = arith.constant 2 : index
    %c0_154 = arith.constant 0 : index
    %159 = vector.load %arg22[%c0_152, %c2_153, %c0_154] : memref<2x18x256xbf16, #tpu.memory_space<vmem>>, vector<2x16x256xbf16>
    %160 = tpu.concatenate %157, %158 in 2 : vector<2x16x256xbf16>, vector<2x16x256xbf16> -> vector<2x16x512xbf16>
    %161 = vector.shape_cast %160 : vector<2x16x512xbf16> to vector<32x512xbf16>
    %162 = tpu.concatenate %158, %159 in 2 : vector<2x16x256xbf16>, vector<2x16x256xbf16> -> vector<2x16x512xbf16>
    %163 = vector.shape_cast %162 : vector<2x16x512xbf16> to vector<32x512xbf16>
    %c0_155 = arith.constant 0 : index
    %c0_156 = arith.constant 0 : index
    %164 = vector.load %arg14[%c0_155, %c0_156] : memref<512x128xbf16, #tpu.memory_space<vmem>>, vector<512x128xbf16>
    %cst_157 = arith.constant dense<0.000000e+00> : vector<32x128xf32>
    %165 = tpu.matmul %161, %164, %cst_157 {dimension_numbers = #tpu.dot_dimension_numbers<[1], [0], [0], [1], [0, 0, 1, 1], [], []>} : vector<32x512xbf16>, vector<512x128xbf16>, vector<32x128xf32> -> vector<32x128xf32>
    %c0_158 = arith.constant 0 : index
    %c0_159 = arith.constant 0 : index
    %166 = vector.load %arg16[%c0_158, %c0_159] : memref<1x128xf32, #tpu.memory_space<vmem>>, vector<1x128xf32>
    %167 = vector.broadcast %166 : vector<1x128xf32> to vector<32x128xf32>
    %168 = arith.addf %165, %167 : vector<32x128xf32>
    %c0_160 = arith.constant 0 : index
    %c0_161 = arith.constant 0 : index
    %169 = vector.load %arg15[%c0_160, %c0_161] : memref<512x128xbf16, #tpu.memory_space<vmem>>, vector<512x128xbf16>
    %cst_162 = arith.constant dense<0.000000e+00> : vector<32x128xf32>
    %170 = tpu.matmul %163, %169, %cst_162 {dimension_numbers = #tpu.dot_dimension_numbers<[1], [0], [0], [1], [0, 0, 1, 1], [], []>} : vector<32x512xbf16>, vector<512x128xbf16>, vector<32x128xf32> -> vector<32x128xf32>
    %c0_163 = arith.constant 0 : index
    %c0_164 = arith.constant 0 : index
    %171 = vector.load %arg16[%c0_163, %c0_164] : memref<1x128xf32, #tpu.memory_space<vmem>>, vector<1x128xf32>
    %172 = vector.broadcast %171 : vector<1x128xf32> to vector<32x128xf32>
    %173 = arith.addf %170, %172 : vector<32x128xf32>
    %174 = math.tanh %168 : vector<32x128xf32>
    %175 = math.tanh %173 : vector<32x128xf32>
    %176 = vector.shape_cast %174 : vector<32x128xf32> to vector<2x16x128xf32>
    %177 = vector.shape_cast %175 : vector<32x128xf32> to vector<2x16x128xf32>
    %178 = vector.shape_cast %176 : vector<2x16x128xf32> to vector<2x16x1x128xf32>
    %179 = vector.shape_cast %177 : vector<2x16x128xf32> to vector<2x16x1x128xf32>
    %180 = tpu.concatenate %178, %179 in 2 : vector<2x16x1x128xf32>, vector<2x16x1x128xf32> -> vector<2x16x2x128xf32>
    %181 = vector.shape_cast %180 : vector<2x16x2x128xf32> to vector<2x32x128xf32>
    %c0_165 = arith.constant 0 : index
    %c0_166 = arith.constant 0 : index
    %c0_167 = arith.constant 0 : index
    %182 = vector.load %arg17[%c0_165, %c0_166, %c0_167] : memref<2x32x128xf32, #tpu.memory_space<vmem>>, vector<2x32x128xf32>
    tpu.vector_store %arg17[%c0_165, %c0_166, %c0_167], %181 {strides = array<i32>} : memref<2x32x128xf32, #tpu.memory_space<vmem>>, vector<2x32x128xf32>,
    return
  }
  func.func @transform_0(%arg0: i32) -> (i32, i32, i32) {
    %c0_i32 = arith.constant 0 : i32
    %c0_i32_0 = arith.constant 0 : i32
    %c0_i32_1 = arith.constant 0 : i32
    return %arg0, %c0_i32, %c0_i32_0 : i32, i32, i32
  }
  func.func @transform_1(%arg0: i32) -> (i32, i32) {
    %c0_i32 = arith.constant 0 : i32
    %c0_i32_0 = arith.constant 0 : i32
    %c0_i32_1 = arith.constant 0 : i32
    return %c0_i32, %c0_i32_0 : i32, i32
  }
  func.func @transform_2(%arg0: i32) -> (i32, i32) {
    %c0_i32 = arith.constant 0 : i32
    %c0_i32_0 = arith.constant 0 : i32
    %c0_i32_1 = arith.constant 0 : i32
    return %c0_i32, %c0_i32_0 : i32, i32
  }
  func.func @transform_3(%arg0: i32) -> (i32, i32) {
    %c0_i32 = arith.constant 0 : i32
    %c0_i32_0 = arith.constant 0 : i32
    %c0_i32_1 = arith.constant 0 : i32
    return %c0_i32, %c0_i32_0 : i32, i32
  }
  func.func @transform_4(%arg0: i32) -> (i32, i32) {
    %c0_i32 = arith.constant 0 : i32
    %c0_i32_0 = arith.constant 0 : i32
    %c0_i32_1 = arith.constant 0 : i32
    return %c0_i32, %c0_i32_0 : i32, i32
  }
  func.func @transform_5(%arg0: i32) -> (i32, i32) {
    %c0_i32 = arith.constant 0 : i32
    %c0_i32_0 = arith.constant 0 : i32
    %c0_i32_1 = arith.constant 0 : i32
    return %c0_i32, %c0_i32_0 : i32, i32
  }
  func.func @transform_6(%arg0: i32) -> (i32, i32) {
    %c0_i32 = arith.constant 0 : i32
    %c0_i32_0 = arith.constant 0 : i32
    %c0_i32_1 = arith.constant 0 : i32
    return %c0_i32, %c0_i32_0 : i32, i32
  }
  func.func @transform_7(%arg0: i32) -> (i32, i32) {
    %c0_i32 = arith.constant 0 : i32
    %c0_i32_0 = arith.constant 0 : i32
    %c0_i32_1 = arith.constant 0 : i32
    return %c0_i32, %c0_i32_0 : i32, i32
  }
  func.func @transform_8(%arg0: i32) -> (i32, i32) {
    %c0_i32 = arith.constant 0 : i32
    %c0_i32_0 = arith.constant 0 : i32
    %c0_i32_1 = arith.constant 0 : i32
    return %c0_i32, %c0_i32_0 : i32, i32
  }
  func.func @transform_9(%arg0: i32) -> (i32, i32) {
    %c0_i32 = arith.constant 0 : i32
    %c0_i32_0 = arith.constant 0 : i32
    %c0_i32_1 = arith.constant 0 : i32
    return %c0_i32, %c0_i32_0 : i32, i32
  }
  func.func @transform_10(%arg0: i32) -> (i32, i32) {
    %c0_i32 = arith.constant 0 : i32
    %c0_i32_0 = arith.constant 0 : i32
    %c0_i32_1 = arith.constant 0 : i32
    return %c0_i32, %c0_i32_0 : i32, i32
  }
  func.func @transform_11(%arg0: i32) -> (i32, i32) {
    %c0_i32 = arith.constant 0 : i32
    %c0_i32_0 = arith.constant 0 : i32
    %c0_i32_1 = arith.constant 0 : i32
    return %c0_i32, %c0_i32_0 : i32, i32
  }
  func.func @transform_12(%arg0: i32) -> (i32, i32) {
    %c0_i32 = arith.constant 0 : i32
    %c0_i32_0 = arith.constant 0 : i32
    %c0_i32_1 = arith.constant 0 : i32
    return %c0_i32, %c0_i32_0 : i32, i32
  }
  func.func @transform_13(%arg0: i32) -> (i32, i32) {
    %c0_i32 = arith.constant 0 : i32
    %c0_i32_0 = arith.constant 0 : i32
    %c0_i32_1 = arith.constant 0 : i32
    return %c0_i32, %c0_i32_0 : i32, i32
  }
  func.func @transform_14(%arg0: i32) -> (i32, i32) {
    %c0_i32 = arith.constant 0 : i32
    %c0_i32_0 = arith.constant 0 : i32
    %c0_i32_1 = arith.constant 0 : i32
    return %c0_i32, %c0_i32_0 : i32, i32
  }
  func.func @transform_15(%arg0: i32) -> (i32, i32) {
    %c0_i32 = arith.constant 0 : i32
    %c0_i32_0 = arith.constant 0 : i32
    %c0_i32_1 = arith.constant 0 : i32
    return %c0_i32, %c0_i32_0 : i32, i32
  }
  func.func @transform_16(%arg0: i32) -> (i32, i32, i32) {
    %c0_i32 = arith.constant 0 : i32
    %c0_i32_0 = arith.constant 0 : i32
    %c0_i32_1 = arith.constant 0 : i32
    return %arg0, %c0_i32, %c0_i32_0 : i32, i32, i32
  }
}

</mosaic_0001>

<llo_original>
// kernel: forward_pallas.1
$region0: #{forward_pallas.1}
  #allocation0 [shape = 'u32[]', space=smem, size = 0x4, offset = 0x4, fixed_abs, tag = 'smem constant byte address 0x4 - core index']
  #allocation1 [shape = 'u32[144,128]{1,0:T(1,128)}', space=vmem, size = 0x12000, scoped, tag = 'internal scratch']
  #allocation2 [shape = 'bf16[2,2,9,256]{3,2,1,0:T(8,128)(2,1)}', space=vmem, size = 0x8000, scoped, tag = 'scratch operand']
  #allocation3 [shape = 'bf16[2,2,5,256]{3,2,1,0:T(8,128)(2,1)}', space=vmem, size = 0x4000, scoped, tag = 'scratch operand']
  #allocation4 [shape = 'bf16[2,6,256]{2,1,0:T(8,128)(2,1)}', space=vmem, size = 0x2000, scoped, tag = 'scratch operand']
  #allocation5 [shape = 'bf16[2,10,256]{2,1,0:T(8,128)(2,1)}', space=vmem, size = 0x4000, scoped, tag = 'scratch operand']
  #allocation6 [shape = 'bf16[2,18,256]{2,1,0:T(8,128)(2,1)}', space=vmem, size = 0x6000, scoped, tag = 'scratch operand']
  %s0 = inlined_call_operand.vmem [shape: bf16[2,34,128], index: 0, kind: input, shape index: {}]
  %s1 = inlined_call_operand.vmem [shape: bf16[512,256], index: 1, kind: input, shape index: {}]
  %s2 = inlined_call_operand.vmem [shape: f32[1,256], index: 2, kind: input, shape index: {}]
  %s3 = inlined_call_operand.hbm [shape: bf16[1024,256], index: 3, kind: input, shape index: {}]
  %s4 = inlined_call_operand.vmem [shape: f32[1,256], index: 4, kind: input, shape index: {}]
  %s5 = inlined_call_operand.hbm [shape: bf16[1024,256], index: 5, kind: input, shape index: {}]
  %s6 = inlined_call_operand.vmem [shape: f32[1,256], index: 6, kind: input, shape index: {}]
  %s7 = inlined_call_operand.hbm [shape: bf16[512,256], index: 7, kind: input, shape index: {}]
  %s8 = inlined_call_operand.hbm [shape: bf16[512,256], index: 8, kind: input, shape index: {}]
  %s9 = inlined_call_operand.vmem [shape: f32[1,256], index: 9, kind: input, shape index: {}]
  %s10 = inlined_call_operand.hbm [shape: bf16[512,256], index: 10, kind: input, shape index: {}]
  %s11 = inlined_call_operand.hbm [shape: bf16[512,256], index: 11, kind: input, shape index: {}]
  %s12 = inlined_call_operand.vmem [shape: f32[1,256], index: 12, kind: input, shape index: {}]
  %s13 = inlined_call_operand.hbm [shape: bf16[512,128], index: 13, kind: input, shape index: {}]
  %s14 = inlined_call_operand.hbm [shape: bf16[512,128], index: 14, kind: input, shape index: {}]
  %s15 = inlined_call_operand.vmem [shape: f32[1,128], index: 15, kind: input, shape index: {}]
  %s16 = inlined_call_operand.vmem [shape: f32[2,32,128], index: 16, kind: output, shape index: {}]
  %s17 = sld [smem:[#allocation0]]
  $region106: #{forward_pallas.1} parent=0
    _
  %s19 = ssub.s32 1, %s17
  %s20 = scalar_select 0, %s19, %s17
  $region1: #{forward_pallas.1} parent=0
    #allocation7 [shape = 'u8[524288]{0}', space=vmem, size = 0x80000, scoped, tag = 'input window, operand 3, single buffered']
    #allocation8 [shape = 's32[1]{0}', space=sflag, size = 0x4, scoped, tag = 'scoped memory for forward_pallas.1']
    #allocation9 [shape = 'u8[524288]{0}', space=vmem, size = 0x80000, scoped, tag = 'input window, operand 5, single buffered']
    #allocation10 [shape = 's32[1]{0}', space=sflag, size = 0x4, scoped, tag = 'scoped memory for forward_pallas.1']
    #allocation11 [shape = 'u8[262144]{0}', space=vmem, size = 0x40000, scoped, tag = 'input window, operand 7, single buffered']
    #allocation12 [shape = 'u8[262144]{0}', space=vmem, size = 0x40000, scoped, tag = 'input window, operand 8, single buffered']
    #allocation13 [shape = 's32[1]{0}', space=sflag, size = 0x4, scoped, tag = 'scoped memory for forward_pallas.1']
    #allocation14 [shape = 'u8[262144]{0}', space=vmem, size = 0x40000, scoped, tag = 'input window, operand 10, single buffered']
    #allocation15 [shape = 'u8[262144]{0}', space=vmem, size = 0x40000, scoped, tag = 'input window, operand 11, single buffered']
    #allocation16 [shape = 's32[1]{0}', space=sflag, size = 0x4, scoped, tag = 'scoped memory for forward_pallas.1']
    #allocation17 [shape = 'u8[131072]{0}', space=vmem, size = 0x20000, scoped, tag = 'input window, operand 13, single buffered']
    #allocation18 [shape = 'u8[131072]{0}', space=vmem, size = 0x20000, scoped, tag = 'input window, operand 14, single buffered']
    #allocation19 [shape = 's32[1]{0}', space=sflag, size = 0x4, scoped, tag = 'scoped memory for forward_pallas.1']
    %21 = vsyncpa [#allocation8], 0
    %22 = vsyncpa [#allocation10], 0
    %23 = vsyncpa [#allocation13], 0
    %24 = vsyncpa [#allocation16], 0
    %25 = vsyncpa [#allocation19], 0
    // Predicated region
    $region2: #{forward_pallas.1} parent=1 // pred_check
      _
    $region3: #{forward_pallas.1} parent=1 // pred_check_branch
      %27 = sbr.rel (0) target = $region5
    $region4: #{forward_pallas.1} parent=1 // pred_region
      _
    $region5: #{forward_pallas.1} parent=1 // pred_fallthru
      _
    // Predicated region
    $region6: #{forward_pallas.1} parent=1 // pred_check
      _
    $region7: #{forward_pallas.1} parent=1 // pred_check_branch
      %29 = sbr.rel (0) target = $region9
    $region8: #{forward_pallas.1} parent=1 // pred_region
      _
    $region9: #{forward_pallas.1} parent=1 // pred_fallthru
      _
    // Predicated region
    $region10: #{forward_pallas.1} parent=1 // pred_check
      _
    $region11: #{forward_pallas.1} parent=1 // pred_check_branch
      %31 = sbr.rel (0) target = $region13
    $region12: #{forward_pallas.1} parent=1 // pred_region
      _
    $region13: #{forward_pallas.1} parent=1 // pred_fallthru
      _
    // Predicated region
    $region14: #{forward_pallas.1} parent=1 // pred_check
      _
    $region15: #{forward_pallas.1} parent=1 // pred_check_branch
      %33 = sbr.rel (0) target = $region17
    $region16: #{forward_pallas.1} parent=1 // pred_region
      %s35 = ssub.s32 16384, 16384
      %36 = vsyncadd [#allocation8], %s35
      %s37 = sshll.u32 [#allocation7], 4
      %s38 = int_to_ptr.vmem [resolvable:$true] %s37
      %43 = dma.hbm_to_vmem [thread:$0]  %s3, 16384, %s38, [#allocation8], 128, 128, 8
    $region17: #{forward_pallas.1} parent=1 // pred_fallthru
      _
    // Predicated region
    $region18: #{forward_pallas.1} parent=1 // pred_check
      _
    $region19: #{forward_pallas.1} parent=1 // pred_check_branch
      %45 = sbr.rel (0) target = $region21
    $region20: #{forward_pallas.1} parent=1 // pred_region
      _
    $region21: #{forward_pallas.1} parent=1 // pred_fallthru
      _
    // Predicated region
    $region22: #{forward_pallas.1} parent=1 // pred_check
      _
    $region23: #{forward_pallas.1} parent=1 // pred_check_branch
      %47 = sbr.rel (0) target = $region25
    $region24: #{forward_pallas.1} parent=1 // pred_region
      %s49 = ssub.s32 16384, 16384
      %50 = vsyncadd [#allocation10], %s49
      %s51 = sshll.u32 [#allocation9], 4
      %s52 = int_to_ptr.vmem [resolvable:$true] %s51
      %57 = dma.hbm_to_vmem [thread:$0]  %s5, 16384, %s52, [#allocation10], 128, 128, 8
    $region25: #{forward_pallas.1} parent=1 // pred_fallthru
      _
    // Predicated region
    $region26: #{forward_pallas.1} parent=1 // pred_check
      _
    $region27: #{forward_pallas.1} parent=1 // pred_check_branch
      %59 = sbr.rel (0) target = $region29
    $region28: #{forward_pallas.1} parent=1 // pred_region
      _
    $region29: #{forward_pallas.1} parent=1 // pred_fallthru
      _
    // Predicated region
    $region30: #{forward_pallas.1} parent=1 // pred_check
      _
    $region31: #{forward_pallas.1} parent=1 // pred_check_branch
      %61 = sbr.rel (0) target = $region33
    $region32: #{forward_pallas.1} parent=1 // pred_region
      %s63 = ssub.s32 8192, 8192
      %64 = vsyncadd [#allocation10], %s63
      %s65 = sshll.u32 [#allocation11], 4
      %s66 = int_to_ptr.vmem [resolvable:$true] %s65
      %71 = dma.hbm_to_vmem [thread:$0]  %s7, 8192, %s66, [#allocation10], 128, 128, 8
    $region33: #{forward_pallas.1} parent=1 // pred_fallthru
      _
    // Predicated region
    $region34: #{forward_pallas.1} parent=1 // pred_check
      _
    $region35: #{forward_pallas.1} parent=1 // pred_check_branch
      %73 = sbr.rel (0) target = $region37
    $region36: #{forward_pallas.1} parent=1 // pred_region
      %s75 = ssub.s32 8192, 8192
      %76 = vsyncadd [#allocation13], %s75
      %s77 = sshll.u32 [#allocation12], 4
      %s78 = int_to_ptr.vmem [resolvable:$true] %s77
      %83 = dma.hbm_to_vmem [thread:$0]  %s8, 8192, %s78, [#allocation13], 128, 128, 8
    $region37: #{forward_pallas.1} parent=1 // pred_fallthru
      _
    // Predicated region
    $region38: #{forward_pallas.1} parent=1 // pred_check
      _
    $region39: #{forward_pallas.1} parent=1 // pred_check_branch
      %85 = sbr.rel (0) target = $region41
    $region40: #{forward_pallas.1} parent=1 // pred_region
      _
    $region41: #{forward_pallas.1} parent=1 // pred_fallthru
      _
    // Predicated region
    $region42: #{forward_pallas.1} parent=1 // pred_check
      _
    $region43: #{forward_pallas.1} parent=1 // pred_check_branch
      %87 = sbr.rel (0) target = $region45
    $region44: #{forward_pallas.1} parent=1 // pred_region
      %s89 = ssub.s32 8192, 8192
      %90 = vsyncadd [#allocation13], %s89
      %s91 = sshll.u32 [#allocation14], 4
      %s92 = int_to_ptr.vmem [resolvable:$true] %s91
      %97 = dma.hbm_to_vmem [thread:$0]  %s10, 8192, %s92, [#allocation13], 128, 128, 8
    $region45: #{forward_pallas.1} parent=1 // pred_fallthru
      _
    // Predicated region
    $region46: #{forward_pallas.1} parent=1 // pred_check
      _
    $region47: #{forward_pallas.1} parent=1 // pred_check_branch
      %99 = sbr.rel (0) target = $region49
    $region48: #{forward_pallas.1} parent=1 // pred_region
      %s101 = ssub.s32 8192, 8192
      %102 = vsyncadd [#allocation16], %s101
      %s103 = sshll.u32 [#allocation15], 4
      %s104 = int_to_ptr.vmem [resolvable:$true] %s103
      %109 = dma.hbm_to_vmem [thread:$0]  %s11, 8192, %s104, [#allocation16], 128, 128, 8
    $region49: #{forward_pallas.1} parent=1 // pred_fallthru
      _
    // Predicated region
    $region50: #{forward_pallas.1} parent=1 // pred_check
      _
    $region51: #{forward_pallas.1} parent=1 // pred_check_branch
      %111 = sbr.rel (0) target = $region53
    $region52: #{forward_pallas.1} parent=1 // pred_region
      _
    $region53: #{forward_pallas.1} parent=1 // pred_fallthru
      _
    // Predicated region
    $region54: #{forward_pallas.1} parent=1 // pred_check
      _
    $region55: #{forward_pallas.1} parent=1 // pred_check_branch
      %113 = sbr.rel (0) target = $region57
    $region56: #{forward_pallas.1} parent=1 // pred_region
      %s115 = ssub.s32 4096, 4096
      %116 = vsyncadd [#allocation16], %s115
      %s117 = sshll.u32 [#allocation17], 4
      %s118 = int_to_ptr.vmem [resolvable:$true] %s117
      %123 = dma.hbm_to_vmem [thread:$0]  %s13, 4096, %s118, [#allocation16], 64, 64, 4
    $region57: #{forward_pallas.1} parent=1 // pred_fallthru
      _
    // Predicated region
    $region58: #{forward_pallas.1} parent=1 // pred_check
      _
    $region59: #{forward_pallas.1} parent=1 // pred_check_branch
      %125 = sbr.rel (0) target = $region61
    $region60: #{forward_pallas.1} parent=1 // pred_region
      %s127 = ssub.s32 4096, 4096
      %128 = vsyncadd [#allocation19], %s127
      %s129 = sshll.u32 [#allocation18], 4
      %s130 = int_to_ptr.vmem [resolvable:$true] %s129
      %135 = dma.hbm_to_vmem [thread:$0]  %s14, 4096, %s130, [#allocation19], 64, 64, 4
    $region61: #{forward_pallas.1} parent=1 // pred_fallthru
      _
    // Predicated region
    $region62: #{forward_pallas.1} parent=1 // pred_check
      _
    $region63: #{forward_pallas.1} parent=1 // pred_check_branch
      %137 = sbr.rel (0) target = $region65
    $region64: #{forward_pallas.1} parent=1 // pred_region
      _
    $region65: #{forward_pallas.1} parent=1 // pred_fallthru
      _
    // Predicated region
    $region66: #{forward_pallas.1} parent=1 // pred_check
      _
    $region67: #{forward_pallas.1} parent=1 // pred_check_branch
      %139 = sbr.rel (0) target = $region69
    $region68: #{forward_pallas.1} parent=1 // pred_region
      %140 = dma.done [#allocation8], 16384
    $region69: #{forward_pallas.1} parent=1 // pred_fallthru
      _
    // Predicated region
    $region70: #{forward_pallas.1} parent=1 // pred_check
      _
    $region71: #{forward_pallas.1} parent=1 // pred_check_branch
      %142 = sbr.rel (0) target = $region73
    $region72: #{forward_pallas.1} parent=1 // pred_region
      %143 = dma.done [#allocation10], 16384
    $region73: #{forward_pallas.1} parent=1 // pred_fallthru
      _
    // Predicated region
    $region74: #{forward_pallas.1} parent=1 // pred_check
      _
    $region75: #{forward_pallas.1} parent=1 // pred_check_branch
      %145 = sbr.rel (0) target = $region77
    $region76: #{forward_pallas.1} parent=1 // pred_region
      %146 = dma.done [#allocation10], 8192
    $region77: #{forward_pallas.1} parent=1 // pred_fallthru
      _
    // Predicated region
    $region78: #{forward_pallas.1} parent=1 // pred_check
      _
    $region79: #{forward_pallas.1} parent=1 // pred_check_branch
      %148 = sbr.rel (0) target = $region81
    $region80: #{forward_pallas.1} parent=1 // pred_region
      %149 = dma.done [#allocation13], 8192
    $region81: #{forward_pallas.1} parent=1 // pred_fallthru
      _
    // Predicated region
    $region82: #{forward_pallas.1} parent=1 // pred_check
      _
    $region83: #{forward_pallas.1} parent=1 // pred_check_branch
      %151 = sbr.rel (0) target = $region85
    $region84: #{forward_pallas.1} parent=1 // pred_region
      %152 = dma.done [#allocation13], 8192
    $region85: #{forward_pallas.1} parent=1 // pred_fallthru
      _
    // Predicated region
    $region86: #{forward_pallas.1} parent=1 // pred_check
      _
    $region87: #{forward_pallas.1} parent=1 // pred_check_branch
      %154 = sbr.rel (0) target = $region89
    $region88: #{forward_pallas.1} parent=1 // pred_region
      %155 = dma.done [#allocation16], 8192
    $region89: #{forward_pallas.1} parent=1 // pred_fallthru
      _
    // Predicated region
    $region90: #{forward_pallas.1} parent=1 // pred_check
      _
    $region91: #{forward_pallas.1} parent=1 // pred_check_branch
      %157 = sbr.rel (0) target = $region93
    $region92: #{forward_pallas.1} parent=1 // pred_region
      %158 = dma.done [#allocation16], 4096
    $region93: #{forward_pallas.1} parent=1 // pred_fallthru
      _
    // Predicated region
    $region94: #{forward_pallas.1} parent=1 // pred_check
      _
    $region95: #{forward_pallas.1} parent=1 // pred_check_branch
      %160 = sbr.rel (0) target = $region97
    $region96: #{forward_pallas.1} parent=1 // pred_region
      %161 = dma.done [#allocation19], 4096
    $region97: #{forward_pallas.1} parent=1 // pred_fallthru
      _
    %vm163 = vcmask 1040384
    %vm164 = vsmask.f32 256
    %vm165 = vmand %vm163, %vm164
    %vm166 = vcmask 1044484
    %vm167 = vsmask.f32 4352
    %vm168 = vmand %vm166, %vm167
    %vm169 = vmor %vm168, %vm165
    %v170 = vld [vmem:[#allocation2] sm:$0x11]
    %v171 = vsel %vm169, 0, %v170
    %172 = vst [vmem:[#allocation2] sm:$0x11] %v171
    %v173 = vld [vmem:[#allocation2 + $0x20] sm:$0x11]
    %v174 = vsel %vm169, 0, %v173
    %175 = vst [vmem:[#allocation2 + $0x20] sm:$0x11] %v174
    %s176 = scalar_lea.vmem [#allocation2], 16
    %v177 = vld [vmem:[%s176 + $0x8] sm:$0x11]
    %v178 = vsel %vm169, 0, %v177
    %179 = vst [vmem:[%s176 + $0x8] sm:$0x11] %v178
    %v180 = vld [vmem:[%s176 + $0x28] sm:$0x11]
    %v181 = vsel %vm169, 0, %v180
    %182 = vst [vmem:[%s176 + $0x28] sm:$0x11] %v181
    %v183 = vld [vmem:[#allocation3] sm:$0x11]
    %v184 = vsel %vm169, 0, %v183
    %185 = vst [vmem:[#allocation3] sm:$0x11] %v184
    %v186 = vld [vmem:[#allocation3 + $0x10] sm:$0x11]
    %v187 = vsel %vm169, 0, %v186
    %188 = vst [vmem:[#allocation3 + $0x10] sm:$0x11] %v187
    %s189 = scalar_lea.vmem [#allocation3], 8
    %vm190 = vcmask 1042434
    %vm191 = vsmask.f32 2304
    %vm192 = vmand %vm190, %vm191
    %vm193 = vcmask 1046534
    %vm194 = vsmask.f32 6400
    %vm195 = vmand %vm193, %vm194
    %vm196 = vmor %vm195, %vm192
    %v197 = vld [vmem:[%s189] sm:$0x44]
    %v198 = vsel %vm196, 0, %v197
    %199 = vst [vmem:[%s189] sm:$0x44] %v198
    %v200 = vld [vmem:[%s189 + $0x10] sm:$0x44]
    %v201 = vsel %vm196, 0, %v200
    %202 = vst [vmem:[%s189 + $0x10] sm:$0x44] %v201
    %v203 = vld [vmem:[#allocation4] sm:$0x11]
    %v204 = vsel %vm169, 0, %v203
    %205 = vst [vmem:[#allocation4] sm:$0x11] %v204
    %v206 = vld [vmem:[#allocation4 + $0x8] sm:$0x11]
    %v207 = vsel %vm169, 0, %v206
    %208 = vst [vmem:[#allocation4 + $0x8] sm:$0x11] %v207
    %vm209 = vsmask.f32 7946
    %vm210 = vmand %vm190, %vm209
    %vm211 = vsmask.f32 7962
    %vm212 = vmand %vm193, %vm211
    %vm213 = vmor %vm212, %vm210
    %v214 = vld [vmem:[#allocation4] sm:$0x44]
    %v215 = vsel %vm213, 0, %v214
    %216 = vst [vmem:[#allocation4] sm:$0x44] %v215
    %v217 = vld [vmem:[#allocation4 + $0x8] sm:$0x44]
    %v218 = vsel %vm213, 0, %v217
    %219 = vst [vmem:[#allocation4 + $0x8] sm:$0x44] %v218
    %v220 = vld [vmem:[#allocation5] sm:$0x11]
    %v221 = vsel %vm169, 0, %v220
    %222 = vst [vmem:[#allocation5] sm:$0x11] %v221
    %v223 = vld [vmem:[#allocation5 + $0x10] sm:$0x11]
    %v224 = vsel %vm169, 0, %v223
    %225 = vst [vmem:[#allocation5 + $0x10] sm:$0x11] %v224
    %vm226 = vsmask.f32 7938
    %vm227 = vmand %vm163, %vm226
    %vm228 = vsmask.f32 7954
    %vm229 = vmand %vm166, %vm228
    %vm230 = vmor %vm229, %vm227
    %v231 = vld [vmem:[#allocation5 + $0x8] sm:$0x11]
    %v232 = vsel %vm230, 0, %v231
    %233 = vst [vmem:[#allocation5 + $0x8] sm:$0x11] %v232
    %v234 = vld [vmem:[#allocation5 + $0x18] sm:$0x11]
    %v235 = vsel %vm230, 0, %v234
    %236 = vst [vmem:[#allocation5 + $0x18] sm:$0x11] %v235
    %v237 = vld [vmem:[#allocation6] sm:$0x11]
    %v238 = vsel %vm169, 0, %v237
    %239 = vst [vmem:[#allocation6] sm:$0x11] %v238
    %v240 = vld [vmem:[#allocation6 + $0x18] sm:$0x11]
    %v241 = vsel %vm169, 0, %v240
    %242 = vst [vmem:[#allocation6 + $0x18] sm:$0x11] %v241
    %v243 = vld [vmem:[#allocation6 + $0x10] sm:$0x11]
    %v244 = vsel %vm230, 0, %v243
    %245 = vst [vmem:[#allocation6 + $0x10] sm:$0x11] %v244
    %v246 = vld [vmem:[#allocation6 + $0x28] sm:$0x11]
    %v247 = vsel %vm230, 0, %v246
    %248 = vst [vmem:[#allocation6 + $0x28] sm:$0x11] %v247
    %v249 = vld [vmem:[%s0] sm:$0xf]
    %v250 = vld [vmem:[%s0 + $0x4] sm:$0xf]
    %v251 = vld [vmem:[%s0 + $0x8] sm:$0xf]
    %v252 = vld [vmem:[%s0 + $0xc] sm:$0xf]
    %v253 = vld [vmem:[%s0 + $0x10] sm:$0x1]
    %v254 = vld [vmem:[%s0 + $0x14] sm:$0xf]
    %v255 = vld [vmem:[%s0 + $0x18] sm:$0xf]
    %v256 = vld [vmem:[%s0 + $0x1c] sm:$0xf]
    %v257 = vld [vmem:[%s0 + $0x20] sm:$0xf]
    %v258 = vld [vmem:[%s0 + $0x24] sm:$0x1]
    %v270 = vunpack.c.l.s4 1966171168
    %v271 = vunpack.c.0.s8 %v270
    %v272 = vlaneseq
    %v273 = vshrl.u32 %v272, 7
    %v274 = vsub.s32 %v271, %v273
    %v275 = vrot.slane %v249, %v274
    %v276 = vcombine.high %v275, %v275
    %v278 = vunpack.c.l.s4 1966171168
    %v279 = vunpack.c.0.s8 %v278
    %v280 = vlaneseq
    %v281 = vshrl.u32 %v280, 7
    %v282 = vsub.s32 %v279, %v281
    %v283 = vrot.slane %v275, %v282
    %v285 = vunpack.c.l.s4 1966171168
    %v286 = vunpack.c.0.s8 %v285
    %v287 = vlaneseq
    %v288 = vshrl.u32 %v287, 7
    %v289 = vsub.s32 %v286, %v288
    %v290 = vrot.slane %v276, %v289
    %v291 = vcombine.high %v283, %v283
    %v292 = vcombine.high %v290, %v290
    %v294 = vunpack.c.l.s4 1966171168
    %v295 = vunpack.c.0.s8 %v294
    %v296 = vlaneseq
    %v297 = vshrl.u32 %v296, 7
    %v298 = vsub.s32 %v295, %v297
    %v299 = vrot.slane %v250, %v298
    %v300 = vcombine.high %v299, %v299
    %v302 = vunpack.c.l.s4 1966171168
    %v303 = vunpack.c.0.s8 %v302
    %v304 = vlaneseq
    %v305 = vshrl.u32 %v304, 7
    %v306 = vsub.s32 %v303, %v305
    %v307 = vrot.slane %v299, %v306
    %v309 = vunpack.c.l.s4 1966171168
    %v310 = vunpack.c.0.s8 %v309
    %v311 = vlaneseq
    %v312 = vshrl.u32 %v311, 7
    %v313 = vsub.s32 %v310, %v312
    %v314 = vrot.slane %v300, %v313
    %v315 = vcombine.high %v307, %v307
    %v316 = vcombine.high %v314, %v314
    %v318 = vunpack.c.l.s4 1966171168
    %v319 = vunpack.c.0.s8 %v318
    %v320 = vlaneseq
    %v321 = vshrl.u32 %v320, 7
    %v322 = vsub.s32 %v319, %v321
    %v323 = vrot.slane %v251, %v322
    %v324 = vcombine.high %v323, %v323
    %v326 = vunpack.c.l.s4 1966171168
    %v327 = vunpack.c.0.s8 %v326
    %v328 = vlaneseq
    %v329 = vshrl.u32 %v328, 7
    %v330 = vsub.s32 %v327, %v329
    %v331 = vrot.slane %v323, %v330
    %v333 = vunpack.c.l.s4 1966171168
    %v334 = vunpack.c.0.s8 %v333
    %v335 = vlaneseq
    %v336 = vshrl.u32 %v335, 7
    %v337 = vsub.s32 %v334, %v336
    %v338 = vrot.slane %v324, %v337
    %v339 = vcombine.high %v331, %v331
    %v340 = vcombine.high %v338, %v338
    %v342 = vunpack.c.l.s4 1966171168
    %v343 = vunpack.c.0.s8 %v342
    %v344 = vlaneseq
    %v345 = vshrl.u32 %v344, 7
    %v346 = vsub.s32 %v343, %v345
    %v347 = vrot.slane %v252, %v346
    %v348 = vcombine.high %v347, %v347
    %v350 = vunpack.c.l.s4 1966171168
    %v351 = vunpack.c.0.s8 %v350
    %v352 = vlaneseq
    %v353 = vshrl.u32 %v352, 7
    %v354 = vsub.s32 %v351, %v353
    %v355 = vrot.slane %v347, %v354
    %v357 = vunpack.c.l.s4 1966171168
    %v358 = vunpack.c.0.s8 %v357
    %v359 = vlaneseq
    %v360 = vshrl.u32 %v359, 7
    %v361 = vsub.s32 %v358, %v360
    %v362 = vrot.slane %v348, %v361
    %v363 = vcombine.high %v355, %v355
    %v364 = vcombine.high %v362, %v362
    %v366 = vunpack.c.l.s4 1966171168
    %v367 = vunpack.c.0.s8 %v366
    %v368 = vlaneseq
    %v369 = vshrl.u32 %v368, 7
    %v370 = vsub.s32 %v367, %v369
    %v371 = vrot.slane %v253, %v370
    %v373 = vunpack.c.l.s4 1966171168
    %v374 = vunpack.c.0.s8 %v373
    %v375 = vlaneseq
    %v376 = vshrl.u32 %v375, 7
    %v377 = vsub.s32 %v374, %v376
    %v378 = vrot.slane %v371, %v377
    %v380 = vunpack.c.l.s4 1966171168
    %v381 = vunpack.c.0.s8 %v380
    %v382 = vlaneseq
    %v383 = vshrl.u32 %v382, 7
    %v384 = vsub.s32 %v381, %v383
    %v385 = vrot.slane %v254, %v384
    %v386 = vcombine.high %v385, %v385
    %v388 = vunpack.c.l.s4 1966171168
    %v389 = vunpack.c.0.s8 %v388
    %v390 = vlaneseq
    %v391 = vshrl.u32 %v390, 7
    %v392 = vsub.s32 %v389, %v391
    %v393 = vrot.slane %v385, %v392
    %v395 = vunpack.c.l.s4 1966171168
    %v396 = vunpack.c.0.s8 %v395
    %v397 = vlaneseq
    %v398 = vshrl.u32 %v397, 7
    %v399 = vsub.s32 %v396, %v398
    %v400 = vrot.slane %v386, %v399
    %v401 = vcombine.high %v393, %v393
    %v402 = vcombine.high %v400, %v400
    %v404 = vunpack.c.l.s4 1966171168
    %v405 = vunpack.c.0.s8 %v404
    %v406 = vlaneseq
    %v407 = vshrl.u32 %v406, 7
    %v408 = vsub.s32 %v405, %v407
    %v409 = vrot.slane %v255, %v408
    %v410 = vcombine.high %v409, %v409
    %v412 = vunpack.c.l.s4 1966171168
    %v413 = vunpack.c.0.s8 %v412
    %v414 = vlaneseq
    %v415 = vshrl.u32 %v414, 7
    %v416 = vsub.s32 %v413, %v415
    %v417 = vrot.slane %v409, %v416
    %v419 = vunpack.c.l.s4 1966171168
    %v420 = vunpack.c.0.s8 %v419
    %v421 = vlaneseq
    %v422 = vshrl.u32 %v421, 7
    %v423 = vsub.s32 %v420, %v422
    %v424 = vrot.slane %v410, %v423
    %v425 = vcombine.high %v417, %v417
    %v426 = vcombine.high %v424, %v424
    %v428 = vunpack.c.l.s4 1966171168
    %v429 = vunpack.c.0.s8 %v428
    %v430 = vlaneseq
    %v431 = vshrl.u32 %v430, 7
    %v432 = vsub.s32 %v429, %v431
    %v433 = vrot.slane %v256, %v432
    %v434 = vcombine.high %v433, %v433
    %v436 = vunpack.c.l.s4 1966171168
    %v437 = vunpack.c.0.s8 %v436
    %v438 = vlaneseq
    %v439 = vshrl.u32 %v438, 7
    %v440 = vsub.s32 %v437, %v439
    %v441 = vrot.slane %v433, %v440
    %v443 = vunpack.c.l.s4 1966171168
    %v444 = vunpack.c.0.s8 %v443
    %v445 = vlaneseq
    %v446 = vshrl.u32 %v445, 7
    %v447 = vsub.s32 %v444, %v446
    %v448 = vrot.slane %v434, %v447
    %v449 = vcombine.high %v441, %v441
    %v450 = vcombine.high %v448, %v448
    %v452 = vunpack.c.l.s4 1966171168
    %v453 = vunpack.c.0.s8 %v452
    %v454 = vlaneseq
    %v455 = vshrl.u32 %v454, 7
    %v456 = vsub.s32 %v453, %v455
    %v457 = vrot.slane %v257, %v456
    %v458 = vcombine.high %v457, %v457
    %v460 = vunpack.c.l.s4 1966171168
    %v461 = vunpack.c.0.s8 %v460
    %v462 = vlaneseq
    %v463 = vshrl.u32 %v462, 7
    %v464 = vsub.s32 %v461, %v463
    %v465 = vrot.slane %v457, %v464
    %v467 = vunpack.c.l.s4 1966171168
    %v468 = vunpack.c.0.s8 %v467
    %v469 = vlaneseq
    %v470 = vshrl.u32 %v469, 7
    %v471 = vsub.s32 %v468, %v470
    %v472 = vrot.slane %v458, %v471
    %v473 = vcombine.high %v465, %v465
    %v474 = vcombine.high %v472, %v472
    %v476 = vunpack.c.l.s4 1966171168
    %v477 = vunpack.c.0.s8 %v476
    %v478 = vlaneseq
    %v479 = vshrl.u32 %v478, 7
    %v480 = vsub.s32 %v477, %v479
    %v481 = vrot.slane %v258, %v480
    %v483 = vunpack.c.l.s4 1966171168
    %v484 = vunpack.c.0.s8 %v483
    %v485 = vlaneseq
    %v486 = vshrl.u32 %v485, 7
    %v487 = vsub.s32 %v484, %v486
    %v488 = vrot.slane %v481, %v487
    %v490 = vunpack.c.l.s4 1966171168
    %v491 = vunpack.c.0.s8 %v490
    %v492 = vlaneseq
    %v493 = vshrl.u32 %v492, 7
    %v494 = vsub.s32 %v491, %v493
    %v495 = vrot.slane %v283, %v494
    %v497 = vunpack.c.l.s4 1966171168
    %v498 = vunpack.c.0.s8 %v497
    %v499 = vlaneseq
    %v500 = vshrl.u32 %v499, 7
    %v501 = vsub.s32 %v498, %v500
    %v502 = vrot.slane %v495, %v501
    %v504 = vunpack.c.l.s4 1966171168
    %v505 = vunpack.c.0.s8 %v504
    %v506 = vlaneseq
    %v507 = vshrl.u32 %v506, 7
    %v508 = vsub.s32 %v505, %v507
    %v509 = vrot.slane %v290, %v508
    %v511 = vunpack.c.l.s4 1966171168
    %v512 = vunpack.c.0.s8 %v511
    %v513 = vlaneseq
    %v514 = vshrl.u32 %v513, 7
    %v515 = vsub.s32 %v512, %v514
    %v516 = vrot.slane %v509, %v515
    %v518 = vunpack.c.l.s4 1966171168
    %v519 = vunpack.c.0.s8 %v518
    %v520 = vlaneseq
    %v521 = vshrl.u32 %v520, 7
    %v522 = vsub.s32 %v519, %v521
    %v523 = vrot.slane %v291, %v522
    %v525 = vunpack.c.l.s4 1966171168
    %v526 = vunpack.c.0.s8 %v525
    %v527 = vlaneseq
    %v528 = vshrl.u32 %v527, 7
    %v529 = vsub.s32 %v526, %v528
    %v530 = vrot.slane %v523, %v529
    %v532 = vunpack.c.l.s4 1966171168
    %v533 = vunpack.c.0.s8 %v532
    %v534 = vlaneseq
    %v535 = vshrl.u32 %v534, 7
    %v536 = vsub.s32 %v533, %v535
    %v537 = vrot.slane %v292, %v536
    %v539 = vunpack.c.l.s4 1966171168
    %v540 = vunpack.c.0.s8 %v539
    %v541 = vlaneseq
    %v542 = vshrl.u32 %v541, 7
    %v543 = vsub.s32 %v540, %v542
    %v544 = vrot.slane %v537, %v543
    %v546 = vunpack.c.l.s4 1966171168
    %v547 = vunpack.c.0.s8 %v546
    %v548 = vlaneseq
    %v549 = vshrl.u32 %v548, 7
    %v550 = vsub.s32 %v547, %v549
    %v551 = vrot.slane %v307, %v550
    %v553 = vunpack.c.l.s4 1966171168
    %v554 = vunpack.c.0.s8 %v553
    %v555 = vlaneseq
    %v556 = vshrl.u32 %v555, 7
    %v557 = vsub.s32 %v554, %v556
    %v558 = vrot.slane %v551, %v557
    %v560 = vunpack.c.l.s4 1966171168
    %v561 = vunpack.c.0.s8 %v560
    %v562 = vlaneseq
    %v563 = vshrl.u32 %v562, 7
    %v564 = vsub.s32 %v561, %v563
    %v565 = vrot.slane %v314, %v564
    %v567 = vunpack.c.l.s4 1966171168
    %v568 = vunpack.c.0.s8 %v567
    %v569 = vlaneseq
    %v570 = vshrl.u32 %v569, 7
    %v571 = vsub.s32 %v568, %v570
    %v572 = vrot.slane %v565, %v571
    %v574 = vunpack.c.l.s4 1966171168
    %v575 = vunpack.c.0.s8 %v574
    %v576 = vlaneseq
    %v577 = vshrl.u32 %v576, 7
    %v578 = vsub.s32 %v575, %v577
    %v579 = vrot.slane %v315, %v578
    %v581 = vunpack.c.l.s4 1966171168
    %v582 = vunpack.c.0.s8 %v581
    %v583 = vlaneseq
    %v584 = vshrl.u32 %v583, 7
    %v585 = vsub.s32 %v582, %v584
    %v586 = vrot.slane %v579, %v585
    %v588 = vunpack.c.l.s4 1966171168
    %v589 = vunpack.c.0.s8 %v588
    %v590 = vlaneseq
    %v591 = vshrl.u32 %v590, 7
    %v592 = vsub.s32 %v589, %v591
    %v593 = vrot.slane %v316, %v592
    %v595 = vunpack.c.l.s4 1966171168
    %v596 = vunpack.c.0.s8 %v595
    %v597 = vlaneseq
    %v598 = vshrl.u32 %v597, 7
    %v599 = vsub.s32 %v596, %v598
    %v600 = vrot.slane %v593, %v599
    %v602 = vunpack.c.l.s4 1966171168
    %v603 = vunpack.c.0.s8 %v602
    %v604 = vlaneseq
    %v605 = vshrl.u32 %v604, 7
    %v606 = vsub.s32 %v603, %v605
    %v607 = vrot.slane %v331, %v606
    %v609 = vunpack.c.l.s4 1966171168
    %v610 = vunpack.c.0.s8 %v609
    %v611 = vlaneseq
    %v612 = vshrl.u32 %v611, 7
    %v613 = vsub.s32 %v610, %v612
    %v614 = vrot.slane %v607, %v613
    %v616 = vunpack.c.l.s4 1966171168
    %v617 = vunpack.c.0.s8 %v616
    %v618 = vlaneseq
    %v619 = vshrl.u32 %v618, 7
    %v620 = vsub.s32 %v617, %v619
    %v621 = vrot.slane %v338, %v620
    %v623 = vunpack.c.l.s4 1966171168
    %v624 = vunpack.c.0.s8 %v623
    %v625 = vlaneseq
    %v626 = vshrl.u32 %v625, 7
    %v627 = vsub.s32 %v624, %v626
    %v628 = vrot.slane %v621, %v627
    %v630 = vunpack.c.l.s4 1966171168
    %v631 = vunpack.c.0.s8 %v630
    %v632 = vlaneseq
    %v633 = vshrl.u32 %v632, 7
    %v634 = vsub.s32 %v631, %v633
    %v635 = vrot.slane %v339, %v634
    %v637 = vunpack.c.l.s4 1966171168
    %v638 = vunpack.c.0.s8 %v637
    %v639 = vlaneseq
    %v640 = vshrl.u32 %v639, 7
    %v641 = vsub.s32 %v638, %v640
    %v642 = vrot.slane %v635, %v641
    %v644 = vunpack.c.l.s4 1966171168
    %v645 = vunpack.c.0.s8 %v644
    %v646 = vlaneseq
    %v647 = vshrl.u32 %v646, 7
    %v648 = vsub.s32 %v645, %v647
    %v649 = vrot.slane %v340, %v648
    %v651 = vunpack.c.l.s4 1966171168
    %v652 = vunpack.c.0.s8 %v651
    %v653 = vlaneseq
    %v654 = vshrl.u32 %v653, 7
    %v655 = vsub.s32 %v652, %v654
    %v656 = vrot.slane %v649, %v655
    %v658 = vunpack.c.l.s4 1966171168
    %v659 = vunpack.c.0.s8 %v658
    %v660 = vlaneseq
    %v661 = vshrl.u32 %v660, 7
    %v662 = vsub.s32 %v659, %v661
    %v663 = vrot.slane %v355, %v662
    %v665 = vunpack.c.l.s4 1966171168
    %v666 = vunpack.c.0.s8 %v665
    %v667 = vlaneseq
    %v668 = vshrl.u32 %v667, 7
    %v669 = vsub.s32 %v666, %v668
    %v670 = vrot.slane %v663, %v669
    %v672 = vunpack.c.l.s4 1966171168
    %v673 = vunpack.c.0.s8 %v672
    %v674 = vlaneseq
    %v675 = vshrl.u32 %v674, 7
    %v676 = vsub.s32 %v673, %v675
    %v677 = vrot.slane %v362, %v676
    %v679 = vunpack.c.l.s4 1966171168
    %v680 = vunpack.c.0.s8 %v679
    %v681 = vlaneseq
    %v682 = vshrl.u32 %v681, 7
    %v683 = vsub.s32 %v680, %v682
    %v684 = vrot.slane %v677, %v683
    %v686 = vunpack.c.l.s4 1966171168
    %v687 = vunpack.c.0.s8 %v686
    %v688 = vlaneseq
    %v689 = vshrl.u32 %v688, 7
    %v690 = vsub.s32 %v687, %v689
    %v691 = vrot.slane %v363, %v690
    %v693 = vunpack.c.l.s4 1966171168
    %v694 = vunpack.c.0.s8 %v693
    %v695 = vlaneseq
    %v696 = vshrl.u32 %v695, 7
    %v697 = vsub.s32 %v694, %v696
    %v698 = vrot.slane %v691, %v697
    %v700 = vunpack.c.l.s4 1966171168
    %v701 = vunpack.c.0.s8 %v700
    %v702 = vlaneseq
    %v703 = vshrl.u32 %v702, 7
    %v704 = vsub.s32 %v701, %v703
    %v705 = vrot.slane %v364, %v704
    %v707 = vunpack.c.l.s4 1966171168
    %v708 = vunpack.c.0.s8 %v707
    %v709 = vlaneseq
    %v710 = vshrl.u32 %v709, 7
    %v711 = vsub.s32 %v708, %v710
    %v712 = vrot.slane %v705, %v711
    %v714 = vunpack.c.l.s4 1966171168
    %v715 = vunpack.c.0.s8 %v714
    %v716 = vlaneseq
    %v717 = vshrl.u32 %v716, 7
    %v718 = vsub.s32 %v715, %v717
    %v719 = vrot.slane %v393, %v718
    %v721 = vunpack.c.l.s4 1966171168
    %v722 = vunpack.c.0.s8 %v721
    %v723 = vlaneseq
    %v724 = vshrl.u32 %v723, 7
    %v725 = vsub.s32 %v722, %v724
    %v726 = vrot.slane %v719, %v725
    %v728 = vunpack.c.l.s4 1966171168
    %v729 = vunpack.c.0.s8 %v728
    %v730 = vlaneseq
    %v731 = vshrl.u32 %v730, 7
    %v732 = vsub.s32 %v729, %v731
    %v733 = vrot.slane %v400, %v732
    %v735 = vunpack.c.l.s4 1966171168
    %v736 = vunpack.c.0.s8 %v735
    %v737 = vlaneseq
    %v738 = vshrl.u32 %v737, 7
    %v739 = vsub.s32 %v736, %v738
    %v740 = vrot.slane %v733, %v739
    %v742 = vunpack.c.l.s4 1966171168
    %v743 = vunpack.c.0.s8 %v742
    %v744 = vlaneseq
    %v745 = vshrl.u32 %v744, 7
    %v746 = vsub.s32 %v743, %v745
    %v747 = vrot.slane %v401, %v746
    %v749 = vunpack.c.l.s4 1966171168
    %v750 = vunpack.c.0.s8 %v749
    %v751 = vlaneseq
    %v752 = vshrl.u32 %v751, 7
    %v753 = vsub.s32 %v750, %v752
    %v754 = vrot.slane %v747, %v753
    %v756 = vunpack.c.l.s4 1966171168
    %v757 = vunpack.c.0.s8 %v756
    %v758 = vlaneseq
    %v759 = vshrl.u32 %v758, 7
    %v760 = vsub.s32 %v757, %v759
    %v761 = vrot.slane %v402, %v760
    %v763 = vunpack.c.l.s4 1966171168
    %v764 = vunpack.c.0.s8 %v763
    %v765 = vlaneseq
    %v766 = vshrl.u32 %v765, 7
    %v767 = vsub.s32 %v764, %v766
    %v768 = vrot.slane %v761, %v767
    %v770 = vunpack.c.l.s4 1966171168
    %v771 = vunpack.c.0.s8 %v770
    %v772 = vlaneseq
    %v773 = vshrl.u32 %v772, 7
    %v774 = vsub.s32 %v771, %v773
    %v775 = vrot.slane %v417, %v774
    %v777 = vunpack.c.l.s4 1966171168
    %v778 = vunpack.c.0.s8 %v777
    %v779 = vlaneseq
    %v780 = vshrl.u32 %v779, 7
    %v781 = vsub.s32 %v778, %v780
    %v782 = vrot.slane %v775, %v781
    %v784 = vunpack.c.l.s4 1966171168
    %v785 = vunpack.c.0.s8 %v784
    %v786 = vlaneseq
    %v787 = vshrl.u32 %v786, 7
    %v788 = vsub.s32 %v785, %v787
    %v789 = vrot.slane %v424, %v788
    %v791 = vunpack.c.l.s4 1966171168
    %v792 = vunpack.c.0.s8 %v791
    %v793 = vlaneseq
    %v794 = vshrl.u32 %v793, 7
    %v795 = vsub.s32 %v792, %v794
    %v796 = vrot.slane %v789, %v795
    %v798 = vunpack.c.l.s4 1966171168
    %v799 = vunpack.c.0.s8 %v798
    %v800 = vlaneseq
    %v801 = vshrl.u32 %v800, 7
    %v802 = vsub.s32 %v799, %v801
    %v803 = vrot.slane %v425, %v802
    %v805 = vunpack.c.l.s4 1966171168
    %v806 = vunpack.c.0.s8 %v805
    %v807 = vlaneseq
    %v808 = vshrl.u32 %v807, 7
    %v809 = vsub.s32 %v806, %v808
    %v810 = vrot.slane %v803, %v809
    %v812 = vunpack.c.l.s4 1966171168
    %v813 = vunpack.c.0.s8 %v812
    %v814 = vlaneseq
    %v815 = vshrl.u32 %v814, 7
    %v816 = vsub.s32 %v813, %v815
    %v817 = vrot.slane %v426, %v816
    %v819 = vunpack.c.l.s4 1966171168
    %v820 = vunpack.c.0.s8 %v819
    %v821 = vlaneseq
    %v822 = vshrl.u32 %v821, 7
    %v823 = vsub.s32 %v820, %v822
    %v824 = vrot.slane %v817, %v823
    %v826 = vunpack.c.l.s4 1966171168
    %v827 = vunpack.c.0.s8 %v826
    %v828 = vlaneseq
    %v829 = vshrl.u32 %v828, 7
    %v830 = vsub.s32 %v827, %v829
    %v831 = vrot.slane %v441, %v830
    %v833 = vunpack.c.l.s4 1966171168
    %v834 = vunpack.c.0.s8 %v833
    %v835 = vlaneseq
    %v836 = vshrl.u32 %v835, 7
    %v837 = vsub.s32 %v834, %v836
    %v838 = vrot.slane %v831, %v837
    %v840 = vunpack.c.l.s4 1966171168
    %v841 = vunpack.c.0.s8 %v840
    %v842 = vlaneseq
    %v843 = vshrl.u32 %v842, 7
    %v844 = vsub.s32 %v841, %v843
    %v845 = vrot.slane %v448, %v844
    %v847 = vunpack.c.l.s4 1966171168
    %v848 = vunpack.c.0.s8 %v847
    %v849 = vlaneseq
    %v850 = vshrl.u32 %v849, 7
    %v851 = vsub.s32 %v848, %v850
    %v852 = vrot.slane %v845, %v851
    %v854 = vunpack.c.l.s4 1966171168
    %v855 = vunpack.c.0.s8 %v854
    %v856 = vlaneseq
    %v857 = vshrl.u32 %v856, 7
    %v858 = vsub.s32 %v855, %v857
    %v859 = vrot.slane %v449, %v858
    %v861 = vunpack.c.l.s4 1966171168
    %v862 = vunpack.c.0.s8 %v861
    %v863 = vlaneseq
    %v864 = vshrl.u32 %v863, 7
    %v865 = vsub.s32 %v862, %v864
    %v866 = vrot.slane %v859, %v865
    %v868 = vunpack.c.l.s4 1966171168
    %v869 = vunpack.c.0.s8 %v868
    %v870 = vlaneseq
    %v871 = vshrl.u32 %v870, 7
    %v872 = vsub.s32 %v869, %v871
    %v873 = vrot.slane %v450, %v872
    %v875 = vunpack.c.l.s4 1966171168
    %v876 = vunpack.c.0.s8 %v875
    %v877 = vlaneseq
    %v878 = vshrl.u32 %v877, 7
    %v879 = vsub.s32 %v876, %v878
    %v880 = vrot.slane %v873, %v879
    %v882 = vunpack.c.l.s4 1966171168
    %v883 = vunpack.c.0.s8 %v882
    %v884 = vlaneseq
    %v885 = vshrl.u32 %v884, 7
    %v886 = vsub.s32 %v883, %v885
    %v887 = vrot.slane %v465, %v886
    %v889 = vunpack.c.l.s4 1966171168
    %v890 = vunpack.c.0.s8 %v889
    %v891 = vlaneseq
    %v892 = vshrl.u32 %v891, 7
    %v893 = vsub.s32 %v890, %v892
    %v894 = vrot.slane %v887, %v893
    %v896 = vunpack.c.l.s4 1966171168
    %v897 = vunpack.c.0.s8 %v896
    %v898 = vlaneseq
    %v899 = vshrl.u32 %v898, 7
    %v900 = vsub.s32 %v897, %v899
    %v901 = vrot.slane %v472, %v900
    %v903 = vunpack.c.l.s4 1966171168
    %v904 = vunpack.c.0.s8 %v903
    %v905 = vlaneseq
    %v906 = vshrl.u32 %v905, 7
    %v907 = vsub.s32 %v904, %v906
    %v908 = vrot.slane %v901, %v907
    %v910 = vunpack.c.l.s4 1966171168
    %v911 = vunpack.c.0.s8 %v910
    %v912 = vlaneseq
    %v913 = vshrl.u32 %v912, 7
    %v914 = vsub.s32 %v911, %v913
    %v915 = vrot.slane %v473, %v914
    %v917 = vunpack.c.l.s4 1966171168
    %v918 = vunpack.c.0.s8 %v917
    %v919 = vlaneseq
    %v920 = vshrl.u32 %v919, 7
    %v921 = vsub.s32 %v918, %v920
    %v922 = vrot.slane %v915, %v921
    %v924 = vunpack.c.l.s4 1966171168
    %v925 = vunpack.c.0.s8 %v924
    %v926 = vlaneseq
    %v927 = vshrl.u32 %v926, 7
    %v928 = vsub.s32 %v925, %v927
    %v929 = vrot.slane %v474, %v928
    %v931 = vunpack.c.l.s4 1966171168
    %v932 = vunpack.c.0.s8 %v931
    %v933 = vlaneseq
    %v934 = vshrl.u32 %v933, 7
    %v935 = vsub.s32 %v932, %v934
    %v936 = vrot.slane %v929, %v935
    %v937 = vunpack.c.l.b16 %v502
    %v938 = vunpack.c.l.b16 %v516
    %v939 = vunpack.c.l.b16 %v530
    %v940 = vunpack.c.l.b16 %v544
    %v941 = vunpack.c.l.b16 %v558
    %v942 = vunpack.c.l.b16 %v572
    %v943 = vunpack.c.l.b16 %v586
    %v944 = vunpack.c.l.b16 %v600
    %v945 = vunpack.c.l.b16 %v614
    %v946 = vunpack.c.l.b16 %v628
    %v947 = vunpack.c.l.b16 %v642
    %v948 = vunpack.c.l.b16 %v656
    %v949 = vunpack.c.l.b16 %v670
    %v950 = vunpack.c.l.b16 %v684
    %v951 = vunpack.c.l.b16 %v698
    %v952 = vunpack.c.l.b16 %v712
    %v953 = vunpack.c.l.b16 %v726
    %v954 = vunpack.c.l.b16 %v740
    %v955 = vunpack.c.l.b16 %v754
    %v956 = vunpack.c.l.b16 %v768
    %v957 = vunpack.c.l.b16 %v782
    %v958 = vunpack.c.l.b16 %v796
    %v959 = vunpack.c.l.b16 %v810
    %v960 = vunpack.c.l.b16 %v824
    %v961 = vunpack.c.l.b16 %v838
    %v962 = vunpack.c.l.b16 %v852
    %v963 = vunpack.c.l.b16 %v866
    %v964 = vunpack.c.l.b16 %v880
    %v965 = vunpack.c.l.b16 %v894
    %v966 = vunpack.c.l.b16 %v908
    %v967 = vunpack.c.l.b16 %v922
    %v968 = vunpack.c.l.b16 %v936
    %v969 = vrot.slane %v938, 7
    %vm970 = vcmask 1041409
    %v971 = vsel %vm970, %v969, %v937
    %v972 = vrot.slane %v939, 6
    %vm973 = vcmask 1042434
    %v974 = vsel %vm973, %v972, %v971
    %v975 = vrot.slane %v940, 5
    %vm976 = vcmask 1043459
    %v977 = vsel %vm976, %v975, %v974
    %v978 = vrot.slane %v941, 4
    %vm979 = vcmask 1044484
    %v980 = vsel %vm979, %v978, %v977
    %v981 = vrot.slane %v942, 3
    %vm982 = vcmask 1045509
    %v983 = vsel %vm982, %v981, %v980
    %v984 = vrot.slane %v943, 2
    %vm985 = vcmask 1046534
    %v986 = vsel %vm985, %v984, %v983
    %v987 = vrot.slane %v944, 1
    %vm988 = vcmask 1047559
    %v989 = vsel %vm988, %v987, %v986
    %v990 = vrot.slane %v946, 7
    %v991 = vsel %vm970, %v990, %v945
    %v992 = vrot.slane %v947, 6
    %v993 = vsel %vm973, %v992, %v991
    %v994 = vrot.slane %v948, 5
    %v995 = vsel %vm976, %v994, %v993
    %v996 = vrot.slane %v949, 4
    %v997 = vsel %vm979, %v996, %v995
    %v998 = vrot.slane %v950, 3
    %v999 = vsel %vm982, %v998, %v997
    %v1000 = vrot.slane %v951, 2
    %v1001 = vsel %vm985, %v1000, %v999
    %v1002 = vrot.slane %v952, 1
    %v1003 = vsel %vm988, %v1002, %v1001
    %v1004 = vrot.slane %v954, 7
    %v1005 = vsel %vm970, %v1004, %v953
    %v1006 = vrot.slane %v955, 6
    %v1007 = vsel %vm973, %v1006, %v1005
    %v1008 = vrot.slane %v956, 5
    %v1009 = vsel %vm976, %v1008, %v1007
    %v1010 = vrot.slane %v957, 4
    %v1011 = vsel %vm979, %v1010, %v1009
    %v1012 = vrot.slane %v958, 3
    %v1013 = vsel %vm982, %v1012, %v1011
    %v1014 = vrot.slane %v959, 2
    %v1015 = vsel %vm985, %v1014, %v1013
    %v1016 = vrot.slane %v960, 1
    %v1017 = vsel %vm988, %v1016, %v1015
    %v1018 = vrot.slane %v962, 7
    %v1019 = vsel %vm970, %v1018, %v961
    %v1020 = vrot.slane %v963, 6
    %v1021 = vsel %vm973, %v1020, %v1019
    %v1022 = vrot.slane %v964, 5
    %v1023 = vsel %vm976, %v1022, %v1021
    %v1024 = vrot.slane %v965, 4
    %v1025 = vsel %vm979, %v1024, %v1023
    %v1026 = vrot.slane %v966, 3
    %v1027 = vsel %vm982, %v1026, %v1025
    %v1028 = vrot.slane %v967, 2
    %v1029 = vsel %vm985, %v1028, %v1027
    %v1030 = vrot.slane %v968, 1
    %v1031 = vsel %vm988, %v1030, %v1029
    %v1032 = vpack.c.b16 %v1003, %v989
    %v1033 = vpack.c.b16 %v1031, %v1017
    %v1036 = vrot.slane %v937, 1
    %v1037 = vsel %vm970, %v938, %v1036
    %v1038 = vrot.slane %v939, 7
    %v1039 = vsel %vm973, %v1038, %v1037
    %v1040 = vrot.slane %v940, 6
    %v1041 = vsel %vm976, %v1040, %v1039
    %v1042 = vrot.slane %v941, 5
    %v1043 = vsel %vm979, %v1042, %v1041
    %v1044 = vrot.slane %v942, 4
    %v1045 = vsel %vm982, %v1044, %v1043
    %v1046 = vrot.slane %v943, 3
    %v1047 = vsel %vm985, %v1046, %v1045
    %v1048 = vrot.slane %v944, 2
    %v1049 = vsel %vm988, %v1048, %v1047
    %v1050 = vrot.slane %v945, 1
    %v1051 = vsel %vm970, %v946, %v1050
    %v1052 = vrot.slane %v947, 7
    %v1053 = vsel %vm973, %v1052, %v1051
    %v1054 = vrot.slane %v948, 6
    %v1055 = vsel %vm976, %v1054, %v1053
    %v1056 = vrot.slane %v949, 5
    %v1057 = vsel %vm979, %v1056, %v1055
    %v1058 = vrot.slane %v950, 4
    %v1059 = vsel %vm982, %v1058, %v1057
    %v1060 = vrot.slane %v951, 3
    %v1061 = vsel %vm985, %v1060, %v1059
    %v1062 = vrot.slane %v952, 2
    %v1063 = vsel %vm988, %v1062, %v1061
    %v1064 = vrot.slane %v953, 1
    %v1065 = vsel %vm970, %v954, %v1064
    %v1066 = vrot.slane %v955, 7
    %v1067 = vsel %vm973, %v1066, %v1065
    %v1068 = vrot.slane %v956, 6
    %v1069 = vsel %vm976, %v1068, %v1067
    %v1070 = vrot.slane %v957, 5
    %v1071 = vsel %vm979, %v1070, %v1069
    %v1072 = vrot.slane %v958, 4
    %v1073 = vsel %vm982, %v1072, %v1071
    %v1074 = vrot.slane %v959, 3
    %v1075 = vsel %vm985, %v1074, %v1073
    %v1076 = vrot.slane %v960, 2
    %v1077 = vsel %vm988, %v1076, %v1075
    %v1078 = vrot.slane %v961, 1
    %v1079 = vsel %vm970, %v962, %v1078
    %v1080 = vrot.slane %v963, 7
    %v1081 = vsel %vm973, %v1080, %v1079
    %v1082 = vrot.slane %v964, 6
    %v1083 = vsel %vm976, %v1082, %v1081
    %v1084 = vrot.slane %v965, 5
    %v1085 = vsel %vm979, %v1084, %v1083
    %v1086 = vrot.slane %v966, 4
    %v1087 = vsel %vm982, %v1086, %v1085
    %v1088 = vrot.slane %v967, 3
    %v1089 = vsel %vm985, %v1088, %v1087
    %v1090 = vrot.slane %v968, 2
    %v1091 = vsel %vm988, %v1090, %v1089
    %v1092 = vpack.c.b16 %v1063, %v1049
    %v1093 = vpack.c.b16 %v1091, %v1077
    %v1097 = vunpack.c.l.s4 1966171168
    %v1098 = vunpack.c.0.s8 %v1097
    %v1099 = vlaneseq
    %v1100 = vshrl.u32 %v1099, 7
    %v1101 = vsub.s32 %v1098, %v1100
    %v1102 = vrot.slane %v378, %v1101
    %v1104 = vunpack.c.l.s4 1966171168
    %v1105 = vunpack.c.0.s8 %v1104
    %v1106 = vlaneseq
    %v1107 = vshrl.u32 %v1106, 7
    %v1108 = vsub.s32 %v1105, %v1107
    %v1109 = vrot.slane %v1102, %v1108
    %v1111 = vunpack.c.l.s4 1966171168
    %v1112 = vunpack.c.0.s8 %v1111
    %v1113 = vlaneseq
    %v1114 = vshrl.u32 %v1113, 7
    %v1115 = vsub.s32 %v1112, %v1114
    %v1116 = vrot.slane %v488, %v1115
    %v1118 = vunpack.c.l.s4 1966171168
    %v1119 = vunpack.c.0.s8 %v1118
    %v1120 = vlaneseq
    %v1121 = vshrl.u32 %v1120, 7
    %v1122 = vsub.s32 %v1119, %v1121
    %v1123 = vrot.slane %v1116, %v1122
    %v1124 = vunpack.c.l.b16 %v1109
    %v1125 = vunpack.c.l.b16 %v1123
    %v1126 = vsel %vm970, %v1038, %v938
    %v1127 = vsel %vm973, %v1040, %v1126
    %v1128 = vsel %vm976, %v1042, %v1127
    %v1129 = vsel %vm979, %v1044, %v1128
    %v1130 = vsel %vm982, %v1046, %v1129
    %v1131 = vsel %vm985, %v1048, %v1130
    %v1132 = vsel %vm988, %v1050, %v1131
    %v1133 = vsel %vm970, %v1052, %v946
    %v1134 = vsel %vm973, %v1054, %v1133
    %v1135 = vsel %vm976, %v1056, %v1134
    %v1136 = vsel %vm979, %v1058, %v1135
    %v1137 = vsel %vm982, %v1060, %v1136
    %v1138 = vsel %vm985, %v1062, %v1137
    %v1139 = vrot.slane %v1124, 1
    %v1140 = vsel %vm988, %v1139, %v1138
    %v1141 = vsel %vm970, %v1066, %v954
    %v1142 = vsel %vm973, %v1068, %v1141
    %v1143 = vsel %vm976, %v1070, %v1142
    %v1144 = vsel %vm979, %v1072, %v1143
    %v1145 = vsel %vm982, %v1074, %v1144
    %v1146 = vsel %vm985, %v1076, %v1145
    %v1147 = vsel %vm988, %v1078, %v1146
    %v1148 = vsel %vm970, %v1080, %v962
    %v1149 = vsel %vm973, %v1082, %v1148
    %v1150 = vsel %vm976, %v1084, %v1149
    %v1151 = vsel %vm979, %v1086, %v1150
    %v1152 = vsel %vm982, %v1088, %v1151
    %v1153 = vsel %vm985, %v1090, %v1152
    %v1154 = vrot.slane %v1125, 1
    %v1155 = vsel %vm988, %v1154, %v1153
    %v1156 = vpack.c.b16 %v1140, %v1132
    %v1157 = vpack.c.b16 %v1155, %v1147
    %v1160 = vrot.slane %v938, 1
    %v1161 = vsel %vm970, %v939, %v1160
    %v1162 = vrot.slane %v940, 7
    %v1163 = vsel %vm973, %v1162, %v1161
    %v1164 = vrot.slane %v941, 6
    %v1165 = vsel %vm976, %v1164, %v1163
    %v1166 = vrot.slane %v942, 5
    %v1167 = vsel %vm979, %v1166, %v1165
    %v1168 = vrot.slane %v943, 4
    %v1169 = vsel %vm982, %v1168, %v1167
    %v1170 = vrot.slane %v944, 3
    %v1171 = vsel %vm985, %v1170, %v1169
    %v1172 = vrot.slane %v945, 2
    %v1173 = vsel %vm988, %v1172, %v1171
    %v1174 = vrot.slane %v946, 1
    %v1175 = vsel %vm970, %v947, %v1174
    %v1176 = vrot.slane %v948, 7
    %v1177 = vsel %vm973, %v1176, %v1175
    %v1178 = vrot.slane %v949, 6
    %v1179 = vsel %vm976, %v1178, %v1177
    %v1180 = vrot.slane %v950, 5
    %v1181 = vsel %vm979, %v1180, %v1179
    %v1182 = vrot.slane %v951, 4
    %v1183 = vsel %vm982, %v1182, %v1181
    %v1184 = vrot.slane %v952, 3
    %v1185 = vsel %vm985, %v1184, %v1183
    %v1186 = vrot.slane %v1124, 2
    %v1187 = vsel %vm988, %v1186, %v1185
    %v1188 = vrot.slane %v954, 1
    %v1189 = vsel %vm970, %v955, %v1188
    %v1190 = vrot.slane %v956, 7
    %v1191 = vsel %vm973, %v1190, %v1189
    %v1192 = vrot.slane %v957, 6
    %v1193 = vsel %vm976, %v1192, %v1191
    %v1194 = vrot.slane %v958, 5
    %v1195 = vsel %vm979, %v1194, %v1193
    %v1196 = vrot.slane %v959, 4
    %v1197 = vsel %vm982, %v1196, %v1195
    %v1198 = vrot.slane %v960, 3
    %v1199 = vsel %vm985, %v1198, %v1197
    %v1200 = vrot.slane %v961, 2
    %v1201 = vsel %vm988, %v1200, %v1199
    %v1202 = vrot.slane %v962, 1
    %v1203 = vsel %vm970, %v963, %v1202
    %v1204 = vrot.slane %v964, 7
    %v1205 = vsel %vm973, %v1204, %v1203
    %v1206 = vrot.slane %v965, 6
    %v1207 = vsel %vm976, %v1206, %v1205
    %v1208 = vrot.slane %v966, 5
    %v1209 = vsel %vm979, %v1208, %v1207
    %v1210 = vrot.slane %v967, 4
    %v1211 = vsel %vm982, %v1210, %v1209
    %v1212 = vrot.slane %v968, 3
    %v1213 = vsel %vm985, %v1212, %v1211
    %v1214 = vrot.slane %v1125, 2
    %v1215 = vsel %vm988, %v1214, %v1213
    %v1216 = vpack.c.b16 %v1187, %v1173
    %v1217 = vpack.c.b16 %v1215, %v1201
    %v1220 = vld [vmem:[%s1] sm:$0xff]
    %v1221 = vld [vmem:[%s1 + $0x8] sm:$0xff]
    %v1222 = vld [vmem:[%s1 + $0x10] sm:$0xff]
    %v1223 = vld [vmem:[%s1 + $0x18] sm:$0xff]
    %v1224 = vld [vmem:[%s1 + $0x20] sm:$0xff]
    %v1225 = vld [vmem:[%s1 + $0x28] sm:$0xff]
    %v1226 = vld [vmem:[%s1 + $0x30] sm:$0xff]
    %v1227 = vld [vmem:[%s1 + $0x38] sm:$0xff]
    %v1228 = vld [vmem:[%s1 + $0x40] sm:$0xff]
    %v1229 = vld [vmem:[%s1 + $0x48] sm:$0xff]
    %v1230 = vld [vmem:[%s1 + $0x50] sm:$0xff]
    %v1231 = vld [vmem:[%s1 + $0x58] sm:$0xff]
    %v1232 = vld [vmem:[%s1 + $0x60] sm:$0xff]
    %v1233 = vld [vmem:[%s1 + $0x68] sm:$0xff]
    %v1234 = vld [vmem:[%s1 + $0x70] sm:$0xff]
    %v1235 = vld [vmem:[%s1 + $0x78] sm:$0xff]
    %v1236 = vld [vmem:[%s1 + $0x80] sm:$0xff]
    %v1237 = vld [vmem:[%s1 + $0x88] sm:$0xff]
    %v1238 = vld [vmem:[%s1 + $0x90] sm:$0xff]
    %v1239 = vld [vmem:[%s1 + $0x98] sm:$0xff]
    %v1240 = vld [vmem:[%s1 + $0xa0] sm:$0xff]
    %v1241 = vld [vmem:[%s1 + $0xa8] sm:$0xff]
    %v1242 = vld [vmem:[%s1 + $0xb0] sm:$0xff]
    %v1243 = vld [vmem:[%s1 + $0xb8] sm:$0xff]
    %v1244 = vld [vmem:[%s1 + $0xc0] sm:$0xff]
    %v1245 = vld [vmem:[%s1 + $0xc8] sm:$0xff]
    %v1246 = vld [vmem:[%s1 + $0xd0] sm:$0xff]
    %v1247 = vld [vmem:[%s1 + $0xd8] sm:$0xff]
    %v1248 = vld [vmem:[%s1 + $0xe0] sm:$0xff]
    %v1249 = vld [vmem:[%s1 + $0xe8] sm:$0xff]
    %v1250 = vld [vmem:[%s1 + $0xf0] sm:$0xff]
    %v1251 = vld [vmem:[%s1 + $0xf8] sm:$0xff]
    %v1252 = vld [vmem:[%s1 + $0x100] sm:$0xff]
    %v1253 = vld [vmem:[%s1 + $0x108] sm:$0xff]
    %v1254 = vld [vmem:[%s1 + $0x110] sm:$0xff]
    %v1255 = vld [vmem:[%s1 + $0x118] sm:$0xff]
    %v1256 = vld [vmem:[%s1 + $0x120] sm:$0xff]
    %v1257 = vld [vmem:[%s1 + $0x128] sm:$0xff]
    %v1258 = vld [vmem:[%s1 + $0x130] sm:$0xff]
    %v1259 = vld [vmem:[%s1 + $0x138] sm:$0xff]
    %v1260 = vld [vmem:[%s1 + $0x140] sm:$0xff]
    %v1261 = vld [vmem:[%s1 + $0x148] sm:$0xff]
    %v1262 = vld [vmem:[%s1 + $0x150] sm:$0xff]
    %v1263 = vld [vmem:[%s1 + $0x158] sm:$0xff]
    %v1264 = vld [vmem:[%s1 + $0x160] sm:$0xff]
    %v1265 = vld [vmem:[%s1 + $0x168] sm:$0xff]
    %v1266 = vld [vmem:[%s1 + $0x170] sm:$0xff]
    %v1267 = vld [vmem:[%s1 + $0x178] sm:$0xff]
    %v1268 = vld [vmem:[%s1 + $0x180] sm:$0xff]
    %v1269 = vld [vmem:[%s1 + $0x188] sm:$0xff]
    %v1270 = vld [vmem:[%s1 + $0x190] sm:$0xff]
    %v1271 = vld [vmem:[%s1 + $0x198] sm:$0xff]
    %v1272 = vld [vmem:[%s1 + $0x1a0] sm:$0xff]
    %v1273 = vld [vmem:[%s1 + $0x1a8] sm:$0xff]
    %v1274 = vld [vmem:[%s1 + $0x1b0] sm:$0xff]
    %v1275 = vld [vmem:[%s1 + $0x1b8] sm:$0xff]
    %v1276 = vld [vmem:[%s1 + $0x1c0] sm:$0xff]
    %v1277 = vld [vmem:[%s1 + $0x1c8] sm:$0xff]
    %v1278 = vld [vmem:[%s1 + $0x1d0] sm:$0xff]
    %v1279 = vld [vmem:[%s1 + $0x1d8] sm:$0xff]
    %v1280 = vld [vmem:[%s1 + $0x1e0] sm:$0xff]
    %v1281 = vld [vmem:[%s1 + $0x1e8] sm:$0xff]
    %v1282 = vld [vmem:[%s1 + $0x1f0] sm:$0xff]
    %v1283 = vld [vmem:[%s1 + $0x1f8] sm:$0xff]
    %v1284 = vld [vmem:[%s2] sm:$0x3]
    %v1286 = vlaneseq
    %v1287 = vshrl.u32 %v1286, 7
    %v1288 = vsub.s32 0, %v1287
    %v1289 = vrot.slane %v1284, %v1288
    %v1290 = vlaneseq
    %v1291 = vshrl.u32 %v1290, 7
    %v1292 = vsub.s32 1, %v1291
    %v1293 = vrot.slane %v1284, %v1292
    %v1360 = vunpack.c.l.b16 %v1220
    %v1361 = vunpack.c.h.b16 %v1220
    %v1362 = vunpack.c.l.b16 %v1221
    %v1363 = vunpack.c.h.b16 %v1221
    %v1364 = vunpack.c.l.b16 %v1222
    %v1365 = vunpack.c.h.b16 %v1222
    %v1366 = vunpack.c.l.b16 %v1223
    %v1367 = vunpack.c.h.b16 %v1223
    %v1368 = vunpack.c.l.b16 %v1224
    %v1369 = vunpack.c.h.b16 %v1224
    %v1370 = vunpack.c.l.b16 %v1225
    %v1371 = vunpack.c.h.b16 %v1225
    %v1372 = vunpack.c.l.b16 %v1226
    %v1373 = vunpack.c.h.b16 %v1226
    %v1374 = vunpack.c.l.b16 %v1227
    %v1375 = vunpack.c.h.b16 %v1227
    %v1376 = vunpack.c.l.b16 %v1228
    %v1377 = vunpack.c.h.b16 %v1228
    %v1378 = vunpack.c.l.b16 %v1229
    %v1379 = vunpack.c.h.b16 %v1229
    %v1380 = vunpack.c.l.b16 %v1230
    %v1381 = vunpack.c.h.b16 %v1230
    %v1382 = vunpack.c.l.b16 %v1231
    %v1383 = vunpack.c.h.b16 %v1231
    %v1384 = vunpack.c.l.b16 %v1232
    %v1385 = vunpack.c.h.b16 %v1232
    %v1386 = vunpack.c.l.b16 %v1233
    %v1387 = vunpack.c.h.b16 %v1233
    %v1388 = vunpack.c.l.b16 %v1234
    %v1389 = vunpack.c.h.b16 %v1234
    %v1390 = vunpack.c.l.b16 %v1235
    %v1391 = vunpack.c.h.b16 %v1235
    %v1392 = vunpack.c.l.b16 %v1236
    %v1393 = vunpack.c.h.b16 %v1236
    %v1394 = vunpack.c.l.b16 %v1237
    %v1395 = vunpack.c.h.b16 %v1237
    %v1396 = vunpack.c.l.b16 %v1238
    %v1397 = vunpack.c.h.b16 %v1238
    %v1398 = vunpack.c.l.b16 %v1239
    %v1399 = vunpack.c.h.b16 %v1239
    %v1400 = vunpack.c.l.b16 %v1240
    %v1401 = vunpack.c.h.b16 %v1240
    %v1402 = vunpack.c.l.b16 %v1241
    %v1403 = vunpack.c.h.b16 %v1241
    %v1404 = vunpack.c.l.b16 %v1242
    %v1405 = vunpack.c.h.b16 %v1242
    %v1406 = vunpack.c.l.b16 %v1243
    %v1407 = vunpack.c.h.b16 %v1243
    %v1408 = vunpack.c.l.b16 %v1244
    %v1409 = vunpack.c.h.b16 %v1244
    %v1410 = vunpack.c.l.b16 %v1245
    %v1411 = vunpack.c.h.b16 %v1245
    %v1412 = vunpack.c.l.b16 %v1246
    %v1413 = vunpack.c.h.b16 %v1246
    %v1414 = vunpack.c.l.b16 %v1247
    %v1415 = vunpack.c.h.b16 %v1247
    %v1416 = vunpack.c.l.b16 %v1248
    %v1417 = vunpack.c.h.b16 %v1248
    %v1418 = vunpack.c.l.b16 %v1249
    %v1419 = vunpack.c.h.b16 %v1249
    %v1420 = vunpack.c.l.b16 %v1250
    %v1421 = vunpack.c.h.b16 %v1250
    %v1422 = vunpack.c.l.b16 %v1251
    %v1423 = vunpack.c.h.b16 %v1251
    %v1424 = vunpack.c.l.b16 %v1252
    %v1425 = vunpack.c.h.b16 %v1252
    %v1426 = vunpack.c.l.b16 %v1253
    %v1427 = vunpack.c.h.b16 %v1253
    %v1428 = vunpack.c.l.b16 %v1254
    %v1429 = vunpack.c.h.b16 %v1254
    %v1430 = vunpack.c.l.b16 %v1255
    %v1431 = vunpack.c.h.b16 %v1255
    %v1432 = vunpack.c.l.b16 %v1256
    %v1433 = vunpack.c.h.b16 %v1256
    %v1434 = vunpack.c.l.b16 %v1257
    %v1435 = vunpack.c.h.b16 %v1257
    %v1436 = vunpack.c.l.b16 %v1258
    %v1437 = vunpack.c.h.b16 %v1258
    %v1438 = vunpack.c.l.b16 %v1259
    %v1439 = vunpack.c.h.b16 %v1259
    %v1440 = vunpack.c.l.b16 %v1260
    %v1441 = vunpack.c.h.b16 %v1260
    %v1442 = vunpack.c.l.b16 %v1261
    %v1443 = vunpack.c.h.b16 %v1261
    %v1444 = vunpack.c.l.b16 %v1262
    %v1445 = vunpack.c.h.b16 %v1262
    %v1446 = vunpack.c.l.b16 %v1263
    %v1447 = vunpack.c.h.b16 %v1263
    %v1448 = vunpack.c.l.b16 %v1264
    %v1449 = vunpack.c.h.b16 %v1264
    %v1450 = vunpack.c.l.b16 %v1265
    %v1451 = vunpack.c.h.b16 %v1265
    %v1452 = vunpack.c.l.b16 %v1266
    %v1453 = vunpack.c.h.b16 %v1266
    %v1454 = vunpack.c.l.b16 %v1267
    %v1455 = vunpack.c.h.b16 %v1267
    %v1456 = vunpack.c.l.b16 %v1268
    %v1457 = vunpack.c.h.b16 %v1268
    %v1458 = vunpack.c.l.b16 %v1269
    %v1459 = vunpack.c.h.b16 %v1269
    %v1460 = vunpack.c.l.b16 %v1270
    %v1461 = vunpack.c.h.b16 %v1270
    %v1462 = vunpack.c.l.b16 %v1271
    %v1463 = vunpack.c.h.b16 %v1271
    %v1464 = vunpack.c.l.b16 %v1272
    %v1465 = vunpack.c.h.b16 %v1272
    %v1466 = vunpack.c.l.b16 %v1273
    %v1467 = vunpack.c.h.b16 %v1273
    %v1468 = vunpack.c.l.b16 %v1274
    %v1469 = vunpack.c.h.b16 %v1274
    %v1470 = vunpack.c.l.b16 %v1275
    %v1471 = vunpack.c.h.b16 %v1275
    %v1472 = vunpack.c.l.b16 %v1276
    %v1473 = vunpack.c.h.b16 %v1276
    %v1474 = vunpack.c.l.b16 %v1277
    %v1475 = vunpack.c.h.b16 %v1277
    %v1476 = vunpack.c.l.b16 %v1278
    %v1477 = vunpack.c.h.b16 %v1278
    %v1478 = vunpack.c.l.b16 %v1279
    %v1479 = vunpack.c.h.b16 %v1279
    %v1480 = vunpack.c.l.b16 %v1280
    %v1481 = vunpack.c.h.b16 %v1280
    %v1482 = vunpack.c.l.b16 %v1281
    %v1483 = vunpack.c.h.b16 %v1281
    %v1484 = vunpack.c.l.b16 %v1282
    %v1485 = vunpack.c.h.b16 %v1282
    %v1486 = vunpack.c.l.b16 %v1283
    %v1487 = vunpack.c.h.b16 %v1283
    %v1488 = vpack.c.b16 %v1362, %v1360
    %v1489 = vpack.c.b16 %v1363, %v1361
    %v1490 = vpack.c.b16 %v1366, %v1364
    %v1491 = vpack.c.b16 %v1367, %v1365
    %v1492 = vpack.c.b16 %v1370, %v1368
    %v1493 = vpack.c.b16 %v1371, %v1369
    %v1494 = vpack.c.b16 %v1374, %v1372
    %v1495 = vpack.c.b16 %v1375, %v1373
    %v1496 = vpack.c.b16 %v1378, %v1376
    %v1497 = vpack.c.b16 %v1379, %v1377
    %v1498 = vpack.c.b16 %v1382, %v1380
    %v1499 = vpack.c.b16 %v1383, %v1381
    %v1500 = vpack.c.b16 %v1386, %v1384
    %v1501 = vpack.c.b16 %v1387, %v1385
    %v1502 = vpack.c.b16 %v1390, %v1388
    %v1503 = vpack.c.b16 %v1391, %v1389
    %v1504 = vpack.c.b16 %v1394, %v1392
    %v1505 = vpack.c.b16 %v1395, %v1393
    %v1506 = vpack.c.b16 %v1398, %v1396
    %v1507 = vpack.c.b16 %v1399, %v1397
    %v1508 = vpack.c.b16 %v1402, %v1400
    %v1509 = vpack.c.b16 %v1403, %v1401
    %v1510 = vpack.c.b16 %v1406, %v1404
    %v1511 = vpack.c.b16 %v1407, %v1405
    %v1512 = vpack.c.b16 %v1410, %v1408
    %v1513 = vpack.c.b16 %v1411, %v1409
    %v1514 = vpack.c.b16 %v1414, %v1412
    %v1515 = vpack.c.b16 %v1415, %v1413
    %v1516 = vpack.c.b16 %v1418, %v1416
    %v1517 = vpack.c.b16 %v1419, %v1417
    %v1518 = vpack.c.b16 %v1422, %v1420
    %v1519 = vpack.c.b16 %v1423, %v1421
    %v1520 = vpack.c.b16 %v1426, %v1424
    %v1521 = vpack.c.b16 %v1427, %v1425
    %v1522 = vpack.c.b16 %v1430, %v1428
    %v1523 = vpack.c.b16 %v1431, %v1429
    %v1524 = vpack.c.b16 %v1434, %v1432
    %v1525 = vpack.c.b16 %v1435, %v1433
    %v1526 = vpack.c.b16 %v1438, %v1436
    %v1527 = vpack.c.b16 %v1439, %v1437
    %v1528 = vpack.c.b16 %v1442, %v1440
    %v1529 = vpack.c.b16 %v1443, %v1441
    %v1530 = vpack.c.b16 %v1446, %v1444
    %v1531 = vpack.c.b16 %v1447, %v1445
    %v1532 = vpack.c.b16 %v1450, %v1448
    %v1533 = vpack.c.b16 %v1451, %v1449
    %v1534 = vpack.c.b16 %v1454, %v1452
    %v1535 = vpack.c.b16 %v1455, %v1453
    %v1536 = vpack.c.b16 %v1458, %v1456
    %v1537 = vpack.c.b16 %v1459, %v1457
    %v1538 = vpack.c.b16 %v1462, %v1460
    %v1539 = vpack.c.b16 %v1463, %v1461
    %v1540 = vpack.c.b16 %v1466, %v1464
    %v1541 = vpack.c.b16 %v1467, %v1465
    %v1542 = vpack.c.b16 %v1470, %v1468
    %v1543 = vpack.c.b16 %v1471, %v1469
    %v1544 = vpack.c.b16 %v1474, %v1472
    %v1545 = vpack.c.b16 %v1475, %v1473
    %v1546 = vpack.c.b16 %v1478, %v1476
    %v1547 = vpack.c.b16 %v1479, %v1477
    %v1548 = vpack.c.b16 %v1482, %v1480
    %v1549 = vpack.c.b16 %v1483, %v1481
    %v1550 = vpack.c.b16 %v1486, %v1484
    %v1551 = vpack.c.b16 %v1487, %v1485
    %1616 = vmatprep.subr.bf16.mxu0 %v1489
    %1617 = vmatpush1.bf16.msra.mxu0 %v1488
    %1618 = vmatprep.subr.bf16.mxu0 %v1491
    %1619 = vmatpush1.bf16.msra.mxu0 %v1490
    %1620 = vmatprep.subr.bf16.mxu0 %v1493
    %1621 = vmatpush1.bf16.msra.mxu0 %v1492
    %1622 = vmatprep.subr.bf16.mxu0 %v1495
    %1623 = vmatpush1.bf16.msra.mxu0 %v1494
    %1624 = vmatprep.subr.bf16.mxu0 %v1497
    %1625 = vmatpush1.bf16.msra.mxu0 %v1496
    %1626 = vmatprep.subr.bf16.mxu0 %v1499
    %1627 = vmatpush1.bf16.msra.mxu0 %v1498
    %1628 = vmatprep.subr.bf16.mxu0 %v1501
    %1629 = vmatpush1.bf16.msra.mxu0 %v1500
    %1630 = vmatprep.subr.bf16.mxu0 %v1503
    %1631 = vmatpush1.bf16.msra.mxu0 %v1502
    %1632 = vmatprep.subr.bf16.mxu0 %v1505
    %1633 = vmatpush1.bf16.msra.mxu0 %v1504
    %1634 = vmatprep.subr.bf16.mxu0 %v1507
    %1635 = vmatpush1.bf16.msra.mxu0 %v1506
    %1636 = vmatprep.subr.bf16.mxu0 %v1509
    %1637 = vmatpush1.bf16.msra.mxu0 %v1508
    %1638 = vmatprep.subr.bf16.mxu0 %v1511
    %1639 = vmatpush1.bf16.msra.mxu0 %v1510
    %1640 = vmatprep.subr.bf16.mxu0 %v1513
    %1641 = vmatpush1.bf16.msra.mxu0 %v1512
    %1642 = vmatprep.subr.bf16.mxu0 %v1515
    %1643 = vmatpush1.bf16.msra.mxu0 %v1514
    %1644 = vmatprep.subr.bf16.mxu0 %v1517
    %1645 = vmatpush1.bf16.msra.mxu0 %v1516
    %1646 = vmatprep.subr.bf16.mxu0 %v1519
    %1647 = vmatpush1.bf16.msra.mxu0 %v1518
    %1648 = vmatprep.mubr.bf16.mxu0 %v1092
    %1649 = vmatmul.mubr.bf16.gmra.mrb[0].mxu0 %v1032
    %v1650 = vpop.f32.mrb[0].mxu0
    %v1651 = vadd.f32 %v1289, %v1650
    %v1652 = vpop.f32.mrb[0].mxu0
    %v1653 = vadd.f32 %v1293, %v1652
    %v1654 = vpop.f32.mrb[0].mxu0
    %v1655 = vadd.f32 %v1289, %v1654
    %v1656 = vpop.f32.mrb[0].mxu0
    %v1657 = vadd.f32 %v1293, %v1656
    %1658 = vmatprep.mubr.bf16.mxu0 %v1093
    %1659 = vmatmul.mubr.bf16.gmra.mrb[0].mxu0 %v1033
    %v1660 = vpop.f32.mrb[0].mxu0
    %v1661 = vadd.f32 %v1289, %v1660
    %v1662 = vpop.f32.mrb[0].mxu0
    %v1663 = vadd.f32 %v1293, %v1662
    %v1664 = vpop.f32.mrb[0].mxu0
    %v1665 = vadd.f32 %v1289, %v1664
    %v1666 = vpop.f32.mrb[0].mxu0
    %v1667 = vadd.f32 %v1293, %v1666
    %1668 = vdwg.mxu0
    %1669 = vmatprep.subr.bf16.mxu0 %v1521
    %1670 = vmatpush1.bf16.msra.mxu0 %v1520
    %1671 = vmatprep.subr.bf16.mxu0 %v1523
    %1672 = vmatpush1.bf16.msra.mxu0 %v1522
    %1673 = vmatprep.subr.bf16.mxu0 %v1525
    %1674 = vmatpush1.bf16.msra.mxu0 %v1524
    %1675 = vmatprep.subr.bf16.mxu0 %v1527
    %1676 = vmatpush1.bf16.msra.mxu0 %v1526
    %1677 = vmatprep.subr.bf16.mxu0 %v1529
    %1678 = vmatpush1.bf16.msra.mxu0 %v1528
    %1679 = vmatprep.subr.bf16.mxu0 %v1531
    %1680 = vmatpush1.bf16.msra.mxu0 %v1530
    %1681 = vmatprep.subr.bf16.mxu0 %v1533
    %1682 = vmatpush1.bf16.msra.mxu0 %v1532
    %1683 = vmatprep.subr.bf16.mxu0 %v1535
    %1684 = vmatpush1.bf16.msra.mxu0 %v1534
    %1685 = vmatprep.subr.bf16.mxu0 %v1537
    %1686 = vmatpush1.bf16.msra.mxu0 %v1536
    %1687 = vmatprep.subr.bf16.mxu0 %v1539
    %1688 = vmatpush1.bf16.msra.mxu0 %v1538
    %1689 = vmatprep.subr.bf16.mxu0 %v1541
    %1690 = vmatpush1.bf16.msra.mxu0 %v1540
    %1691 = vmatprep.subr.bf16.mxu0 %v1543
    %1692 = vmatpush1.bf16.msra.mxu0 %v1542
    %1693 = vmatprep.subr.bf16.mxu0 %v1545
    %1694 = vmatpush1.bf16.msra.mxu0 %v1544
    %1695 = vmatprep.subr.bf16.mxu0 %v1547
    %1696 = vmatpush1.bf16.msra.mxu0 %v1546
    %1697 = vmatprep.subr.bf16.mxu0 %v1549
    %1698 = vmatpush1.bf16.msra.mxu0 %v1548
    %1699 = vmatprep.subr.bf16.mxu0 %v1551
    %1700 = vmatpush1.bf16.msra.mxu0 %v1550
    %1701 = vmatprep.mubr.bf16.mxu0 %v1216
    %1702 = vmatmul.mubr.bf16.gmra.mrb[0].mxu0 %v1156
    %v1703 = vpop.f32.mrb[0].mxu0
    %v1704 = vadd.f32 %v1651, %v1703
    %v1705 = vpop.f32.mrb[0].mxu0
    %v1706 = vadd.f32 %v1653, %v1705
    %v1707 = vpop.f32.mrb[0].mxu0
    %v1708 = vadd.f32 %v1655, %v1707
    %v1709 = vpop.f32.mrb[0].mxu0
    %v1710 = vadd.f32 %v1657, %v1709
    %1711 = vmatprep.mubr.bf16.mxu0 %v1217
    %1712 = vmatmul.mubr.bf16.gmra.mrb[0].mxu0 %v1157
    %v1713 = vpop.f32.mrb[0].mxu0
    %v1714 = vadd.f32 %v1661, %v1713
    %v1715 = vpop.f32.mrb[0].mxu0
    %v1716 = vadd.f32 %v1663, %v1715
    %v1717 = vpop.f32.mrb[0].mxu0
    %v1718 = vadd.f32 %v1665, %v1717
    %v1719 = vpop.f32.mrb[0].mxu0
    %v1720 = vadd.f32 %v1667, %v1719
    %1721 = vdwg.mxu0
    %v1722 = vmax.f32 %v1704, 0.0
    %v1723 = vmax.f32 %v1706, 0.0
    %v1724 = vmax.f32 %v1708, 0.0
    %v1725 = vmax.f32 %v1710, 0.0
    %v1726 = vmax.f32 %v1714, 0.0
    %v1727 = vmax.f32 %v1716, 0.0
    %v1728 = vmax.f32 %v1718, 0.0
    %v1729 = vmax.f32 %v1720, 0.0
    %v1730 = vpack.c.bf16 %v1724, %v1722
    %v1731 = vpack.c.bf16 %v1725, %v1723
    %v1732 = vpack.c.bf16 %v1728, %v1726
    %v1733 = vpack.c.bf16 %v1729, %v1727
    %v1738 = vcombine.low %v1730, %v1731
    %v1739 = vcombine.high %v1730, %v1731
    %v1741 = vunpack.c.l.s4 1966171168
    %v1742 = vunpack.c.0.s8 %v1741
    %v1743 = vlaneseq
    %v1744 = vshrl.u32 %v1743, 7
    %v1745 = vsub.s32 %v1742, %v1744
    %v1746 = vrot.slane %v1738, %v1745
    %v1748 = vunpack.c.l.s4 1966171168
    %v1749 = vunpack.c.0.s8 %v1748
    %v1750 = vlaneseq
    %v1751 = vshrl.u32 %v1750, 7
    %v1752 = vsub.s32 %v1749, %v1751
    %v1753 = vrot.slane %v1739, %v1752
    %v1754 = vcombine.high %v1746, %v1746
    %v1755 = vcombine.high %v1753, %v1753
    %v1757 = vunpack.c.l.s4 1966171168
    %v1758 = vunpack.c.0.s8 %v1757
    %v1759 = vlaneseq
    %v1760 = vshrl.u32 %v1759, 7
    %v1761 = vsub.s32 %v1758, %v1760
    %v1762 = vrot.slane %v1746, %v1761
    %v1764 = vunpack.c.l.s4 1966171168
    %v1765 = vunpack.c.0.s8 %v1764
    %v1766 = vlaneseq
    %v1767 = vshrl.u32 %v1766, 7
    %v1768 = vsub.s32 %v1765, %v1767
    %v1769 = vrot.slane %v1753, %v1768
    %v1771 = vunpack.c.l.s4 1966171168
    %v1772 = vunpack.c.0.s8 %v1771
    %v1773 = vlaneseq
    %v1774 = vshrl.u32 %v1773, 7
    %v1775 = vsub.s32 %v1772, %v1774
    %v1776 = vrot.slane %v1754, %v1775
    %v1778 = vunpack.c.l.s4 1966171168
    %v1779 = vunpack.c.0.s8 %v1778
    %v1780 = vlaneseq
    %v1781 = vshrl.u32 %v1780, 7
    %v1782 = vsub.s32 %v1779, %v1781
    %v1783 = vrot.slane %v1755, %v1782
    %v1784 = vcombine.high %v1762, %v1762
    %v1785 = vcombine.high %v1769, %v1769
    %v1786 = vcombine.high %v1776, %v1776
    %v1787 = vcombine.high %v1783, %v1783
    %v1788 = vcombine.low %v1732, %v1733
    %v1789 = vcombine.high %v1732, %v1733
    %v1791 = vunpack.c.l.s4 1966171168
    %v1792 = vunpack.c.0.s8 %v1791
    %v1793 = vlaneseq
    %v1794 = vshrl.u32 %v1793, 7
    %v1795 = vsub.s32 %v1792, %v1794
    %v1796 = vrot.slane %v1788, %v1795
    %v1798 = vunpack.c.l.s4 1966171168
    %v1799 = vunpack.c.0.s8 %v1798
    %v1800 = vlaneseq
    %v1801 = vshrl.u32 %v1800, 7
    %v1802 = vsub.s32 %v1799, %v1801
    %v1803 = vrot.slane %v1789, %v1802
    %v1804 = vcombine.high %v1796, %v1796
    %v1805 = vcombine.high %v1803, %v1803
    %v1807 = vunpack.c.l.s4 1966171168
    %v1808 = vunpack.c.0.s8 %v1807
    %v1809 = vlaneseq
    %v1810 = vshrl.u32 %v1809, 7
    %v1811 = vsub.s32 %v1808, %v1810
    %v1812 = vrot.slane %v1796, %v1811
    %v1814 = vunpack.c.l.s4 1966171168
    %v1815 = vunpack.c.0.s8 %v1814
    %v1816 = vlaneseq
    %v1817 = vshrl.u32 %v1816, 7
    %v1818 = vsub.s32 %v1815, %v1817
    %v1819 = vrot.slane %v1803, %v1818
    %v1821 = vunpack.c.l.s4 1966171168
    %v1822 = vunpack.c.0.s8 %v1821
    %v1823 = vlaneseq
    %v1824 = vshrl.u32 %v1823, 7
    %v1825 = vsub.s32 %v1822, %v1824
    %v1826 = vrot.slane %v1804, %v1825
    %v1828 = vunpack.c.l.s4 1966171168
    %v1829 = vunpack.c.0.s8 %v1828
    %v1830 = vlaneseq
    %v1831 = vshrl.u32 %v1830, 7
    %v1832 = vsub.s32 %v1829, %v1831
    %v1833 = vrot.slane %v1805, %v1832
    %v1834 = vcombine.high %v1812, %v1812
    %v1835 = vcombine.high %v1819, %v1819
    %v1836 = vcombine.high %v1826, %v1826
    %v1837 = vcombine.high %v1833, %v1833
    %v1839 = vunpack.c.l.s4 1935823168
    %v1840 = vunpack.c.0.s8 %v1839
    %v1841 = vlaneseq
    %v1842 = vshrl.u32 %v1841, 7
    %v1843 = vsub.s32 %v1840, %v1842
    %v1844 = vrot.slane %v1762, %v1843
    %v1846 = vunpack.c.l.s4 1935823168
    %v1847 = vunpack.c.0.s8 %v1846
    %v1848 = vlaneseq
    %v1849 = vshrl.u32 %v1848, 7
    %v1850 = vsub.s32 %v1847, %v1849
    %v1851 = vrot.slane %v1844, %v1850
    %v1853 = vunpack.c.l.s4 1935823168
    %v1854 = vunpack.c.0.s8 %v1853
    %v1855 = vlaneseq
    %v1856 = vshrl.u32 %v1855, 7
    %v1857 = vsub.s32 %v1854, %v1856
    %v1858 = vrot.slane %v1776, %v1857
    %v1860 = vunpack.c.l.s4 1935823168
    %v1861 = vunpack.c.0.s8 %v1860
    %v1862 = vlaneseq
    %v1863 = vshrl.u32 %v1862, 7
    %v1864 = vsub.s32 %v1861, %v1863
    %v1865 = vrot.slane %v1858, %v1864
    %v1867 = vunpack.c.l.s4 1935823168
    %v1868 = vunpack.c.0.s8 %v1867
    %v1869 = vlaneseq
    %v1870 = vshrl.u32 %v1869, 7
    %v1871 = vsub.s32 %v1868, %v1870
    %v1872 = vrot.slane %v1784, %v1871
    %v1874 = vunpack.c.l.s4 1935823168
    %v1875 = vunpack.c.0.s8 %v1874
    %v1876 = vlaneseq
    %v1877 = vshrl.u32 %v1876, 7
    %v1878 = vsub.s32 %v1875, %v1877
    %v1879 = vrot.slane %v1872, %v1878
    %v1881 = vunpack.c.l.s4 1935823168
    %v1882 = vunpack.c.0.s8 %v1881
    %v1883 = vlaneseq
    %v1884 = vshrl.u32 %v1883, 7
    %v1885 = vsub.s32 %v1882, %v1884
    %v1886 = vrot.slane %v1786, %v1885
    %v1888 = vunpack.c.l.s4 1935823168
    %v1889 = vunpack.c.0.s8 %v1888
    %v1890 = vlaneseq
    %v1891 = vshrl.u32 %v1890, 7
    %v1892 = vsub.s32 %v1889, %v1891
    %v1893 = vrot.slane %v1886, %v1892
    %v1895 = vunpack.c.l.s4 1935823168
    %v1896 = vunpack.c.0.s8 %v1895
    %v1897 = vlaneseq
    %v1898 = vshrl.u32 %v1897, 7
    %v1899 = vsub.s32 %v1896, %v1898
    %v1900 = vrot.slane %v1769, %v1899
    %v1902 = vunpack.c.l.s4 1935823168
    %v1903 = vunpack.c.0.s8 %v1902
    %v1904 = vlaneseq
    %v1905 = vshrl.u32 %v1904, 7
    %v1906 = vsub.s32 %v1903, %v1905
    %v1907 = vrot.slane %v1900, %v1906
    %v1909 = vunpack.c.l.s4 1935823168
    %v1910 = vunpack.c.0.s8 %v1909
    %v1911 = vlaneseq
    %v1912 = vshrl.u32 %v1911, 7
    %v1913 = vsub.s32 %v1910, %v1912
    %v1914 = vrot.slane %v1783, %v1913
    %v1916 = vunpack.c.l.s4 1935823168
    %v1917 = vunpack.c.0.s8 %v1916
    %v1918 = vlaneseq
    %v1919 = vshrl.u32 %v1918, 7
    %v1920 = vsub.s32 %v1917, %v1919
    %v1921 = vrot.slane %v1914, %v1920
    %v1923 = vunpack.c.l.s4 1935823168
    %v1924 = vunpack.c.0.s8 %v1923
    %v1925 = vlaneseq
    %v1926 = vshrl.u32 %v1925, 7
    %v1927 = vsub.s32 %v1924, %v1926
    %v1928 = vrot.slane %v1785, %v1927
    %v1930 = vunpack.c.l.s4 1935823168
    %v1931 = vunpack.c.0.s8 %v1930
    %v1932 = vlaneseq
    %v1933 = vshrl.u32 %v1932, 7
    %v1934 = vsub.s32 %v1931, %v1933
    %v1935 = vrot.slane %v1928, %v1934
    %v1937 = vunpack.c.l.s4 1935823168
    %v1938 = vunpack.c.0.s8 %v1937
    %v1939 = vlaneseq
    %v1940 = vshrl.u32 %v1939, 7
    %v1941 = vsub.s32 %v1938, %v1940
    %v1942 = vrot.slane %v1787, %v1941
    %v1944 = vunpack.c.l.s4 1935823168
    %v1945 = vunpack.c.0.s8 %v1944
    %v1946 = vlaneseq
    %v1947 = vshrl.u32 %v1946, 7
    %v1948 = vsub.s32 %v1945, %v1947
    %v1949 = vrot.slane %v1942, %v1948
    %v1951 = vunpack.c.l.s4 1935823168
    %v1952 = vunpack.c.0.s8 %v1951
    %v1953 = vlaneseq
    %v1954 = vshrl.u32 %v1953, 7
    %v1955 = vsub.s32 %v1952, %v1954
    %v1956 = vrot.slane %v1812, %v1955
    %v1958 = vunpack.c.l.s4 1935823168
    %v1959 = vunpack.c.0.s8 %v1958
    %v1960 = vlaneseq
    %v1961 = vshrl.u32 %v1960, 7
    %v1962 = vsub.s32 %v1959, %v1961
    %v1963 = vrot.slane %v1956, %v1962
    %v1965 = vunpack.c.l.s4 1935823168
    %v1966 = vunpack.c.0.s8 %v1965
    %v1967 = vlaneseq
    %v1968 = vshrl.u32 %v1967, 7
    %v1969 = vsub.s32 %v1966, %v1968
    %v1970 = vrot.slane %v1826, %v1969
    %v1972 = vunpack.c.l.s4 1935823168
    %v1973 = vunpack.c.0.s8 %v1972
    %v1974 = vlaneseq
    %v1975 = vshrl.u32 %v1974, 7
    %v1976 = vsub.s32 %v1973, %v1975
    %v1977 = vrot.slane %v1970, %v1976
    %v1979 = vunpack.c.l.s4 1935823168
    %v1980 = vunpack.c.0.s8 %v1979
    %v1981 = vlaneseq
    %v1982 = vshrl.u32 %v1981, 7
    %v1983 = vsub.s32 %v1980, %v1982
    %v1984 = vrot.slane %v1834, %v1983
    %v1986 = vunpack.c.l.s4 1935823168
    %v1987 = vunpack.c.0.s8 %v1986
    %v1988 = vlaneseq
    %v1989 = vshrl.u32 %v1988, 7
    %v1990 = vsub.s32 %v1987, %v1989
    %v1991 = vrot.slane %v1984, %v1990
    %v1993 = vunpack.c.l.s4 1935823168
    %v1994 = vunpack.c.0.s8 %v1993
    %v1995 = vlaneseq
    %v1996 = vshrl.u32 %v1995, 7
    %v1997 = vsub.s32 %v1994, %v1996
    %v1998 = vrot.slane %v1836, %v1997
    %v2000 = vunpack.c.l.s4 1935823168
    %v2001 = vunpack.c.0.s8 %v2000
    %v2002 = vlaneseq
    %v2003 = vshrl.u32 %v2002, 7
    %v2004 = vsub.s32 %v2001, %v2003
    %v2005 = vrot.slane %v1998, %v2004
    %v2007 = vunpack.c.l.s4 1935823168
    %v2008 = vunpack.c.0.s8 %v2007
    %v2009 = vlaneseq
    %v2010 = vshrl.u32 %v2009, 7
    %v2011 = vsub.s32 %v2008, %v2010
    %v2012 = vrot.slane %v1819, %v2011
    %v2014 = vunpack.c.l.s4 1935823168
    %v2015 = vunpack.c.0.s8 %v2014
    %v2016 = vlaneseq
    %v2017 = vshrl.u32 %v2016, 7
    %v2018 = vsub.s32 %v2015, %v2017
    %v2019 = vrot.slane %v2012, %v2018
    %v2021 = vunpack.c.l.s4 1935823168
    %v2022 = vunpack.c.0.s8 %v2021
    %v2023 = vlaneseq
    %v2024 = vshrl.u32 %v2023, 7
    %v2025 = vsub.s32 %v2022, %v2024
    %v2026 = vrot.slane %v1833, %v2025
    %v2028 = vunpack.c.l.s4 1935823168
    %v2029 = vunpack.c.0.s8 %v2028
    %v2030 = vlaneseq
    %v2031 = vshrl.u32 %v2030, 7
    %v2032 = vsub.s32 %v2029, %v2031
    %v2033 = vrot.slane %v2026, %v2032
    %v2035 = vunpack.c.l.s4 1935823168
    %v2036 = vunpack.c.0.s8 %v2035
    %v2037 = vlaneseq
    %v2038 = vshrl.u32 %v2037, 7
    %v2039 = vsub.s32 %v2036, %v2038
    %v2040 = vrot.slane %v1835, %v2039
    %v2042 = vunpack.c.l.s4 1935823168
    %v2043 = vunpack.c.0.s8 %v2042
    %v2044 = vlaneseq
    %v2045 = vshrl.u32 %v2044, 7
    %v2046 = vsub.s32 %v2043, %v2045
    %v2047 = vrot.slane %v2040, %v2046
    %v2049 = vunpack.c.l.s4 1935823168
    %v2050 = vunpack.c.0.s8 %v2049
    %v2051 = vlaneseq
    %v2052 = vshrl.u32 %v2051, 7
    %v2053 = vsub.s32 %v2050, %v2052
    %v2054 = vrot.slane %v1837, %v2053
    %v2056 = vunpack.c.l.s4 1935823168
    %v2057 = vunpack.c.0.s8 %v2056
    %v2058 = vlaneseq
    %v2059 = vshrl.u32 %v2058, 7
    %v2060 = vsub.s32 %v2057, %v2059
    %v2061 = vrot.slane %v2054, %v2060
    %v2062 = vunpack.c.l.b16 %v1851
    %v2063 = vunpack.c.h.b16 %v1851
    %v2064 = vunpack.c.l.b16 %v1865
    %v2065 = vunpack.c.h.b16 %v1865
    %v2066 = vunpack.c.l.b16 %v1879
    %v2067 = vunpack.c.h.b16 %v1879
    %v2068 = vunpack.c.l.b16 %v1893
    %v2069 = vunpack.c.h.b16 %v1893
    %v2070 = vunpack.c.l.b16 %v1907
    %v2071 = vunpack.c.h.b16 %v1907
    %v2072 = vunpack.c.l.b16 %v1921
    %v2073 = vunpack.c.h.b16 %v1921
    %v2074 = vunpack.c.l.b16 %v1935
    %v2075 = vunpack.c.h.b16 %v1935
    %v2076 = vunpack.c.l.b16 %v1949
    %v2077 = vunpack.c.h.b16 %v1949
    %v2078 = vunpack.c.l.b16 %v1963
    %v2079 = vunpack.c.h.b16 %v1963
    %v2080 = vunpack.c.l.b16 %v1977
    %v2081 = vunpack.c.h.b16 %v1977
    %v2082 = vunpack.c.l.b16 %v1991
    %v2083 = vunpack.c.h.b16 %v1991
    %v2084 = vunpack.c.l.b16 %v2005
    %v2085 = vunpack.c.h.b16 %v2005
    %v2086 = vunpack.c.l.b16 %v2019
    %v2087 = vunpack.c.h.b16 %v2019
    %v2088 = vunpack.c.l.b16 %v2033
    %v2089 = vunpack.c.h.b16 %v2033
    %v2090 = vunpack.c.l.b16 %v2047
    %v2091 = vunpack.c.h.b16 %v2047
    %v2092 = vunpack.c.l.b16 %v2061
    %v2093 = vunpack.c.h.b16 %v2061
    %v2094 = vrot.slane %v2064, 7
    %v2095 = vsel %vm970, %v2094, %v2062
    %v2096 = vrot.slane %v2066, 6
    %v2097 = vsel %vm973, %v2096, %v2095
    %v2098 = vrot.slane %v2068, 5
    %v2099 = vsel %vm976, %v2098, %v2097
    %v2100 = vrot.slane %v2070, 4
    %v2101 = vsel %vm979, %v2100, %v2099
    %v2102 = vrot.slane %v2072, 3
    %v2103 = vsel %vm982, %v2102, %v2101
    %v2104 = vrot.slane %v2074, 2
    %v2105 = vsel %vm985, %v2104, %v2103
    %v2106 = vrot.slane %v2076, 1
    %v2107 = vsel %vm988, %v2106, %v2105
    %v2108 = vrot.slane %v2065, 7
    %v2109 = vsel %vm970, %v2108, %v2063
    %v2110 = vrot.slane %v2067, 6
    %v2111 = vsel %vm973, %v2110, %v2109
    %v2112 = vrot.slane %v2069, 5
    %v2113 = vsel %vm976, %v2112, %v2111
    %v2114 = vrot.slane %v2071, 4
    %v2115 = vsel %vm979, %v2114, %v2113
    %v2116 = vrot.slane %v2073, 3
    %v2117 = vsel %vm982, %v2116, %v2115
    %v2118 = vrot.slane %v2075, 2
    %v2119 = vsel %vm985, %v2118, %v2117
    %v2120 = vrot.slane %v2077, 1
    %v2121 = vsel %vm988, %v2120, %v2119
    %v2122 = vrot.slane %v2080, 7
    %v2123 = vsel %vm970, %v2122, %v2078
    %v2124 = vrot.slane %v2082, 6
    %v2125 = vsel %vm973, %v2124, %v2123
    %v2126 = vrot.slane %v2084, 5
    %v2127 = vsel %vm976, %v2126, %v2125
    %v2128 = vrot.slane %v2086, 4
    %v2129 = vsel %vm979, %v2128, %v2127
    %v2130 = vrot.slane %v2088, 3
    %v2131 = vsel %vm982, %v2130, %v2129
    %v2132 = vrot.slane %v2090, 2
    %v2133 = vsel %vm985, %v2132, %v2131
    %v2134 = vrot.slane %v2092, 1
    %v2135 = vsel %vm988, %v2134, %v2133
    %v2136 = vrot.slane %v2081, 7
    %v2137 = vsel %vm970, %v2136, %v2079
    %v2138 = vrot.slane %v2083, 6
    %v2139 = vsel %vm973, %v2138, %v2137
    %v2140 = vrot.slane %v2085, 5
    %v2141 = vsel %vm976, %v2140, %v2139
    %v2142 = vrot.slane %v2087, 4
    %v2143 = vsel %vm979, %v2142, %v2141
    %v2144 = vrot.slane %v2089, 3
    %v2145 = vsel %vm982, %v2144, %v2143
    %v2146 = vrot.slane %v2091, 2
    %v2147 = vsel %vm985, %v2146, %v2145
    %v2148 = vrot.slane %v2093, 1
    %v2149 = vsel %vm988, %v2148, %v2147
    %v2150 = vpack.c.b16 %v2121, %v2107
    %v2151 = vpack.c.b16 %v2149, %v2135
    %2154 = vst [vmem:[%s176] sm:$0xff] %v2150
    %2155 = vst [vmem:[%s176 + $0x20] sm:$0xff] %v2151
    %v2156 = vsel %vm973, %v2094, %v2062
    %v2157 = vsel %vm976, %v2096, %v2156
    %v2158 = vsel %vm979, %v2098, %v2157
    %v2159 = vsel %vm982, %v2100, %v2158
    %v2160 = vsel %vm985, %v2102, %v2159
    %v2161 = vsel %vm988, %v2104, %v2160
    %v2162 = vsel %vm973, %v2108, %v2063
    %v2163 = vsel %vm976, %v2110, %v2162
    %v2164 = vsel %vm979, %v2112, %v2163
    %v2165 = vsel %vm982, %v2114, %v2164
    %v2166 = vsel %vm985, %v2116, %v2165
    %v2167 = vsel %vm988, %v2118, %v2166
    %v2168 = vsel %vm973, %v2122, %v2078
    %v2169 = vsel %vm976, %v2124, %v2168
    %v2170 = vsel %vm979, %v2126, %v2169
    %v2171 = vsel %vm982, %v2128, %v2170
    %v2172 = vsel %vm985, %v2130, %v2171
    %v2173 = vsel %vm988, %v2132, %v2172
    %v2174 = vsel %vm973, %v2136, %v2079
    %v2175 = vsel %vm976, %v2138, %v2174
    %v2176 = vsel %vm979, %v2140, %v2175
    %v2177 = vsel %vm982, %v2142, %v2176
    %v2178 = vsel %vm985, %v2144, %v2177
    %v2179 = vsel %vm988, %v2146, %v2178
    %v2180 = vpack.c.b16 %v2167, %v2161
    %v2181 = vpack.c.b16 %v2120, %v2106
    %v2182 = vpack.c.b16 %v2179, %v2173
    %v2183 = vpack.c.b16 %v2148, %v2134
    %vm2188 = vcmask 1043456
    %vm2189 = vmand %vm2188, %vm226
    %vm2190 = vcmask 1047556
    %vm2191 = vmand %vm2190, %vm228
    %vm2192 = vmor %vm2191, %vm2189
    %v2193 = vld [vmem:[#allocation2] sm:$0xff]
    %v2194 = vsel %vm2192, %v2180, %v2193
    %2195 = vst [vmem:[#allocation2] sm:$0xff] %v2194
    %v2196 = vld [vmem:[#allocation2 + $0x8] sm:$0x11]
    %v2197 = vsel %vm169, %v2181, %v2196
    %2198 = vst [vmem:[#allocation2 + $0x8] sm:$0x11] %v2197
    %v2199 = vld [vmem:[#allocation2 + $0x20] sm:$0xff]
    %v2200 = vsel %vm2192, %v2182, %v2199
    %2201 = vst [vmem:[#allocation2 + $0x20] sm:$0xff] %v2200
    %v2202 = vld [vmem:[#allocation2 + $0x28] sm:$0x11]
    %v2203 = vsel %vm169, %v2183, %v2202
    %2204 = vst [vmem:[#allocation2 + $0x28] sm:$0x11] %v2203
    %v2205 = vld [vmem:[#allocation2] sm:$0xff]
    %v2206 = vld [vmem:[#allocation2 + $0x20] sm:$0xff]
    %v2207 = vld [vmem:[%s176] sm:$0xff]
    %v2208 = vld [vmem:[%s176 + $0x20] sm:$0xff]
    %v2209 = vld [vmem:[#allocation2 + $0x8] sm:$0x11]
    %v2210 = vld [vmem:[#allocation2 + $0x28] sm:$0x11]
    %v2211 = vld [vmem:[%s176 + $0x8] sm:$0x11]
    %v2212 = vld [vmem:[%s176 + $0x28] sm:$0x11]
    %v2215 = vunpack.c.l.b16 %v2205
    %v2216 = vunpack.c.h.b16 %v2205
    %v2217 = vunpack.c.l.b16 %v2206
    %v2218 = vunpack.c.h.b16 %v2206
    %v2221 = vunpack.c.l.b16 %v2207
    %v2222 = vunpack.c.h.b16 %v2207
    %v2223 = vunpack.c.l.b16 %v2208
    %v2224 = vunpack.c.h.b16 %v2208
    %v2227 = vunpack.c.l.b16 %v2209
    %v2228 = vunpack.c.h.b16 %v2209
    %v2229 = vunpack.c.l.b16 %v2210
    %v2230 = vunpack.c.h.b16 %v2210
    %v2231 = vpack.c.b16 %v2227, %v2215
    %v2232 = vpack.c.b16 %v2228, %v2216
    %v2233 = vpack.c.b16 %v2229, %v2217
    %v2234 = vpack.c.b16 %v2230, %v2218
    %v2236 = vshrl.u32 %v2231, 16
    %v2238 = vshll.u32 %v2231, 16
    %v2240 = vrot.slane %v2238, 1
    %v2241 = vor.u32 %v2236, %v2240
    %v2243 = vshrl.u32 %v2232, 16
    %v2245 = vshll.u32 %v2232, 16
    %v2247 = vrot.slane %v2245, 1
    %v2248 = vor.u32 %v2243, %v2247
    %v2250 = vshrl.u32 %v2233, 16
    %v2252 = vshll.u32 %v2233, 16
    %v2254 = vrot.slane %v2252, 1
    %v2255 = vor.u32 %v2250, %v2254
    %v2257 = vshrl.u32 %v2234, 16
    %v2259 = vshll.u32 %v2234, 16
    %v2261 = vrot.slane %v2259, 1
    %v2262 = vor.u32 %v2257, %v2261
    %v2265 = vunpack.c.l.b16 %v2211
    %v2266 = vunpack.c.h.b16 %v2211
    %v2267 = vunpack.c.l.b16 %v2212
    %v2268 = vunpack.c.h.b16 %v2212
    %v2269 = vpack.c.b16 %v2265, %v2221
    %v2270 = vpack.c.b16 %v2266, %v2222
    %v2271 = vpack.c.b16 %v2267, %v2223
    %v2272 = vpack.c.b16 %v2268, %v2224
    %v2274 = vshrl.u32 %v2269, 16
    %v2276 = vshll.u32 %v2269, 16
    %v2278 = vrot.slane %v2276, 1
    %v2279 = vor.u32 %v2274, %v2278
    %v2281 = vshrl.u32 %v2270, 16
    %v2283 = vshll.u32 %v2270, 16
    %v2285 = vrot.slane %v2283, 1
    %v2286 = vor.u32 %v2281, %v2285
    %v2288 = vshrl.u32 %v2271, 16
    %v2290 = vshll.u32 %v2271, 16
    %v2292 = vrot.slane %v2290, 1
    %v2293 = vor.u32 %v2288, %v2292
    %v2295 = vshrl.u32 %v2272, 16
    %v2297 = vshll.u32 %v2272, 16
    %v2299 = vrot.slane %v2297, 1
    %v2300 = vor.u32 %v2295, %v2299
    %v2301 = vunpack.c.l.b16 %v2241
    %v2302 = vunpack.c.l.b16 %v2248
    %v2303 = vunpack.c.l.b16 %v2279
    %v2304 = vunpack.c.l.b16 %v2286
    %v2305 = vunpack.c.l.b16 %v2255
    %v2306 = vunpack.c.l.b16 %v2262
    %v2307 = vunpack.c.l.b16 %v2293
    %v2308 = vunpack.c.l.b16 %v2300
    %v2309 = vld [vmem:[#allocation7] sm:$0xff]
    %v2310 = vld [vmem:[#allocation7 + $0x8] sm:$0xff]
    %v2311 = vld [vmem:[#allocation7 + $0x10] sm:$0xff]
    %v2312 = vld [vmem:[#allocation7 + $0x18] sm:$0xff]
    %v2313 = vld [vmem:[#allocation7 + $0x20] sm:$0xff]
    %v2314 = vld [vmem:[#allocation7 + $0x28] sm:$0xff]
    %v2315 = vld [vmem:[#allocation7 + $0x30] sm:$0xff]
    %v2316 = vld [vmem:[#allocation7 + $0x38] sm:$0xff]
    %v2317 = vld [vmem:[#allocation7 + $0x40] sm:$0xff]
    %v2318 = vld [vmem:[#allocation7 + $0x48] sm:$0xff]
    %v2319 = vld [vmem:[#allocation7 + $0x50] sm:$0xff]
    %v2320 = vld [vmem:[#allocation7 + $0x58] sm:$0xff]
    %v2321 = vld [vmem:[#allocation7 + $0x60] sm:$0xff]
    %v2322 = vld [vmem:[#allocation7 + $0x68] sm:$0xff]
    %v2323 = vld [vmem:[#allocation7 + $0x70] sm:$0xff]
    %v2324 = vld [vmem:[#allocation7 + $0x78] sm:$0xff]
    %v2325 = vld [vmem:[#allocation7 + $0x80] sm:$0xff]
    %v2326 = vld [vmem:[#allocation7 + $0x88] sm:$0xff]
    %v2327 = vld [vmem:[#allocation7 + $0x90] sm:$0xff]
    %v2328 = vld [vmem:[#allocation7 + $0x98] sm:$0xff]
    %v2329 = vld [vmem:[#allocation7 + $0xa0] sm:$0xff]
    %v2330 = vld [vmem:[#allocation7 + $0xa8] sm:$0xff]
    %v2331 = vld [vmem:[#allocation7 + $0xb0] sm:$0xff]
    %v2332 = vld [vmem:[#allocation7 + $0xb8] sm:$0xff]
    %v2333 = vld [vmem:[#allocation7 + $0xc0] sm:$0xff]
    %v2334 = vld [vmem:[#allocation7 + $0xc8] sm:$0xff]
    %v2335 = vld [vmem:[#allocation7 + $0xd0] sm:$0xff]
    %v2336 = vld [vmem:[#allocation7 + $0xd8] sm:$0xff]
    %v2337 = vld [vmem:[#allocation7 + $0xe0] sm:$0xff]
    %v2338 = vld [vmem:[#allocation7 + $0xe8] sm:$0xff]
    %v2339 = vld [vmem:[#allocation7 + $0xf0] sm:$0xff]
    %v2340 = vld [vmem:[#allocation7 + $0xf8] sm:$0xff]
    %v2341 = vld [vmem:[#allocation7 + $0x100] sm:$0xff]
    %v2342 = vld [vmem:[#allocation7 + $0x108] sm:$0xff]
    %v2343 = vld [vmem:[#allocation7 + $0x110] sm:$0xff]
    %v2344 = vld [vmem:[#allocation7 + $0x118] sm:$0xff]
    %v2345 = vld [vmem:[#allocation7 + $0x120] sm:$0xff]
    %v2346 = vld [vmem:[#allocation7 + $0x128] sm:$0xff]
    %v2347 = vld [vmem:[#allocation7 + $0x130] sm:$0xff]
    %v2348 = vld [vmem:[#allocation7 + $0x138] sm:$0xff]
    %v2349 = vld [vmem:[#allocation7 + $0x140] sm:$0xff]
    %v2350 = vld [vmem:[#allocation7 + $0x148] sm:$0xff]
    %v2351 = vld [vmem:[#allocation7 + $0x150] sm:$0xff]
    %v2352 = vld [vmem:[#allocation7 + $0x158] sm:$0xff]
    %v2353 = vld [vmem:[#allocation7 + $0x160] sm:$0xff]
    %v2354 = vld [vmem:[#allocation7 + $0x168] sm:$0xff]
    %v2355 = vld [vmem:[#allocation7 + $0x170] sm:$0xff]
    %v2356 = vld [vmem:[#allocation7 + $0x178] sm:$0xff]
    %v2357 = vld [vmem:[#allocation7 + $0x180] sm:$0xff]
    %v2358 = vld [vmem:[#allocation7 + $0x188] sm:$0xff]
    %v2359 = vld [vmem:[#allocation7 + $0x190] sm:$0xff]
    %v2360 = vld [vmem:[#allocation7 + $0x198] sm:$0xff]
    %v2361 = vld [vmem:[#allocation7 + $0x1a0] sm:$0xff]
    %v2362 = vld [vmem:[#allocation7 + $0x1a8] sm:$0xff]
    %v2363 = vld [vmem:[#allocation7 + $0x1b0] sm:$0xff]
    %v2364 = vld [vmem:[#allocation7 + $0x1b8] sm:$0xff]
    %v2365 = vld [vmem:[#allocation7 + $0x1c0] sm:$0xff]
    %v2366 = vld [vmem:[#allocation7 + $0x1c8] sm:$0xff]
    %v2367 = vld [vmem:[#allocation7 + $0x1d0] sm:$0xff]
    %v2368 = vld [vmem:[#allocation7 + $0x1d8] sm:$0xff]
    %v2369 = vld [vmem:[#allocation7 + $0x1e0] sm:$0xff]
    %v2370 = vld [vmem:[#allocation7 + $0x1e8] sm:$0xff]
    %v2371 = vld [vmem:[#allocation7 + $0x1f0] sm:$0xff]
    %v2372 = vld [vmem:[#allocation7 + $0x1f8] sm:$0xff]
    %v2373 = vld [vmem:[#allocation7 + $0x200] sm:$0xff]
    %v2374 = vld [vmem:[#allocation7 + $0x208] sm:$0xff]
    %v2375 = vld [vmem:[#allocation7 + $0x210] sm:$0xff]
    %v2376 = vld [vmem:[#allocation7 + $0x218] sm:$0xff]
    %v2377 = vld [vmem:[#allocation7 + $0x220] sm:$0xff]
    %v2378 = vld [vmem:[#allocation7 + $0x228] sm:$0xff]
    %v2379 = vld [vmem:[#allocation7 + $0x230] sm:$0xff]
    %v2380 = vld [vmem:[#allocation7 + $0x238] sm:$0xff]
    %v2381 = vld [vmem:[#allocation7 + $0x240] sm:$0xff]
    %v2382 = vld [vmem:[#allocation7 + $0x248] sm:$0xff]
    %v2383 = vld [vmem:[#allocation7 + $0x250] sm:$0xff]
    %v2384 = vld [vmem:[#allocation7 + $0x258] sm:$0xff]
    %v2385 = vld [vmem:[#allocation7 + $0x260] sm:$0xff]
    %v2386 = vld [vmem:[#allocation7 + $0x268] sm:$0xff]
    %v2387 = vld [vmem:[#allocation7 + $0x270] sm:$0xff]
    %v2388 = vld [vmem:[#allocation7 + $0x278] sm:$0xff]
    %v2389 = vld [vmem:[#allocation7 + $0x280] sm:$0xff]
    %v2390 = vld [vmem:[#allocation7 + $0x288] sm:$0xff]
    %v2391 = vld [vmem:[#allocation7 + $0x290] sm:$0xff]
    %v2392 = vld [vmem:[#allocation7 + $0x298] sm:$0xff]
    %v2393 = vld [vmem:[#allocation7 + $0x2a0] sm:$0xff]
    %v2394 = vld [vmem:[#allocation7 + $0x2a8] sm:$0xff]
    %v2395 = vld [vmem:[#allocation7 + $0x2b0] sm:$0xff]
    %v2396 = vld [vmem:[#allocation7 + $0x2b8] sm:$0xff]
    %v2397 = vld [vmem:[#allocation7 + $0x2c0] sm:$0xff]
    %v2398 = vld [vmem:[#allocation7 + $0x2c8] sm:$0xff]
    %v2399 = vld [vmem:[#allocation7 + $0x2d0] sm:$0xff]
    %v2400 = vld [vmem:[#allocation7 + $0x2d8] sm:$0xff]
    %v2401 = vld [vmem:[#allocation7 + $0x2e0] sm:$0xff]
    %v2402 = vld [vmem:[#allocation7 + $0x2e8] sm:$0xff]
    %v2403 = vld [vmem:[#allocation7 + $0x2f0] sm:$0xff]
    %v2404 = vld [vmem:[#allocation7 + $0x2f8] sm:$0xff]
    %v2405 = vld [vmem:[#allocation7 + $0x300] sm:$0xff]
    %v2406 = vld [vmem:[#allocation7 + $0x308] sm:$0xff]
    %v2407 = vld [vmem:[#allocation7 + $0x310] sm:$0xff]
    %v2408 = vld [vmem:[#allocation7 + $0x318] sm:$0xff]
    %v2409 = vld [vmem:[#allocation7 + $0x320] sm:$0xff]
    %v2410 = vld [vmem:[#allocation7 + $0x328] sm:$0xff]
    %v2411 = vld [vmem:[#allocation7 + $0x330] sm:$0xff]
    %v2412 = vld [vmem:[#allocation7 + $0x338] sm:$0xff]
    %v2413 = vld [vmem:[#allocation7 + $0x340] sm:$0xff]
    %v2414 = vld [vmem:[#allocation7 + $0x348] sm:$0xff]
    %v2415 = vld [vmem:[#allocation7 + $0x350] sm:$0xff]
    %v2416 = vld [vmem:[#allocation7 + $0x358] sm:$0xff]
    %v2417 = vld [vmem:[#allocation7 + $0x360] sm:$0xff]
    %v2418 = vld [vmem:[#allocation7 + $0x368] sm:$0xff]
    %v2419 = vld [vmem:[#allocation7 + $0x370] sm:$0xff]
    %v2420 = vld [vmem:[#allocation7 + $0x378] sm:$0xff]
    %v2421 = vld [vmem:[#allocation7 + $0x380] sm:$0xff]
    %v2422 = vld [vmem:[#allocation7 + $0x388] sm:$0xff]
    %v2423 = vld [vmem:[#allocation7 + $0x390] sm:$0xff]
    %v2424 = vld [vmem:[#allocation7 + $0x398] sm:$0xff]
    %v2425 = vld [vmem:[#allocation7 + $0x3a0] sm:$0xff]
    %v2426 = vld [vmem:[#allocation7 + $0x3a8] sm:$0xff]
    %v2427 = vld [vmem:[#allocation7 + $0x3b0] sm:$0xff]
    %v2428 = vld [vmem:[#allocation7 + $0x3b8] sm:$0xff]
    %v2429 = vld [vmem:[#allocation7 + $0x3c0] sm:$0xff]
    %v2430 = vld [vmem:[#allocation7 + $0x3c8] sm:$0xff]
    %v2431 = vld [vmem:[#allocation7 + $0x3d0] sm:$0xff]
    %v2432 = vld [vmem:[#allocation7 + $0x3d8] sm:$0xff]
    %v2433 = vld [vmem:[#allocation7 + $0x3e0] sm:$0xff]
    %v2434 = vld [vmem:[#allocation7 + $0x3e8] sm:$0xff]
    %v2435 = vld [vmem:[#allocation7 + $0x3f0] sm:$0xff]
    %v2436 = vld [vmem:[#allocation7 + $0x3f8] sm:$0xff]
    %v2437 = vld [vmem:[%s4] sm:$0x3]
    %v2439 = vlaneseq
    %v2440 = vshrl.u32 %v2439, 7
    %v2441 = vsub.s32 0, %v2440
    %v2442 = vrot.slane %v2437, %v2441
    %v2443 = vlaneseq
    %v2444 = vshrl.u32 %v2443, 7
    %v2445 = vsub.s32 1, %v2444
    %v2446 = vrot.slane %v2437, %v2445
    %v2449 = vpack.c.b16 %v2217, %v2215
    %v2450 = vpack.c.b16 %v2218, %v2216
    %v2451 = vpack.c.b16 %v2223, %v2221
    %v2452 = vpack.c.b16 %v2224, %v2222
    %v2453 = vpack.c.b16 %v2305, %v2301
    %v2454 = vpack.c.b16 %v2306, %v2302
    %v2455 = vpack.c.b16 %v2307, %v2303
    %v2456 = vpack.c.b16 %v2308, %v2304
    %v2593 = vunpack.c.l.b16 %v2309
    %v2594 = vunpack.c.h.b16 %v2309
    %v2595 = vunpack.c.l.b16 %v2310
    %v2596 = vunpack.c.h.b16 %v2310
    %v2597 = vunpack.c.l.b16 %v2311
    %v2598 = vunpack.c.h.b16 %v2311
    %v2599 = vunpack.c.l.b16 %v2312
    %v2600 = vunpack.c.h.b16 %v2312
    %v2601 = vunpack.c.l.b16 %v2313
    %v2602 = vunpack.c.h.b16 %v2313
    %v2603 = vunpack.c.l.b16 %v2314
    %v2604 = vunpack.c.h.b16 %v2314
    %v2605 = vunpack.c.l.b16 %v2315
    %v2606 = vunpack.c.h.b16 %v2315
    %v2607 = vunpack.c.l.b16 %v2316
    %v2608 = vunpack.c.h.b16 %v2316
    %v2609 = vunpack.c.l.b16 %v2317
    %v2610 = vunpack.c.h.b16 %v2317
    %v2611 = vunpack.c.l.b16 %v2318
    %v2612 = vunpack.c.h.b16 %v2318
    %v2613 = vunpack.c.l.b16 %v2319
    %v2614 = vunpack.c.h.b16 %v2319
    %v2615 = vunpack.c.l.b16 %v2320
    %v2616 = vunpack.c.h.b16 %v2320
    %v2617 = vunpack.c.l.b16 %v2321
    %v2618 = vunpack.c.h.b16 %v2321
    %v2619 = vunpack.c.l.b16 %v2322
    %v2620 = vunpack.c.h.b16 %v2322
    %v2621 = vunpack.c.l.b16 %v2323
    %v2622 = vunpack.c.h.b16 %v2323
    %v2623 = vunpack.c.l.b16 %v2324
    %v2624 = vunpack.c.h.b16 %v2324
    %v2625 = vunpack.c.l.b16 %v2325
    %v2626 = vunpack.c.h.b16 %v2325
    %v2627 = vunpack.c.l.b16 %v2326
    %v2628 = vunpack.c.h.b16 %v2326
    %v2629 = vunpack.c.l.b16 %v2327
    %v2630 = vunpack.c.h.b16 %v2327
    %v2631 = vunpack.c.l.b16 %v2328
    %v2632 = vunpack.c.h.b16 %v2328
    %v2633 = vunpack.c.l.b16 %v2329
    %v2634 = vunpack.c.h.b16 %v2329
    %v2635 = vunpack.c.l.b16 %v2330
    %v2636 = vunpack.c.h.b16 %v2330
    %v2637 = vunpack.c.l.b16 %v2331
    %v2638 = vunpack.c.h.b16 %v2331
    %v2639 = vunpack.c.l.b16 %v2332
    %v2640 = vunpack.c.h.b16 %v2332
    %v2641 = vunpack.c.l.b16 %v2333
    %v2642 = vunpack.c.h.b16 %v2333
    %v2643 = vunpack.c.l.b16 %v2334
    %v2644 = vunpack.c.h.b16 %v2334
    %v2645 = vunpack.c.l.b16 %v2335
    %v2646 = vunpack.c.h.b16 %v2335
    %v2647 = vunpack.c.l.b16 %v2336
    %v2648 = vunpack.c.h.b16 %v2336
    %v2649 = vunpack.c.l.b16 %v2337
    %v2650 = vunpack.c.h.b16 %v2337
    %v2651 = vunpack.c.l.b16 %v2338
    %v2652 = vunpack.c.h.b16 %v2338
    %v2653 = vunpack.c.l.b16 %v2339
    %v2654 = vunpack.c.h.b16 %v2339
    %v2655 = vunpack.c.l.b16 %v2340
    %v2656 = vunpack.c.h.b16 %v2340
    %v2657 = vunpack.c.l.b16 %v2341
    %v2658 = vunpack.c.h.b16 %v2341
    %v2659 = vunpack.c.l.b16 %v2342
    %v2660 = vunpack.c.h.b16 %v2342
    %v2661 = vunpack.c.l.b16 %v2343
    %v2662 = vunpack.c.h.b16 %v2343
    %v2663 = vunpack.c.l.b16 %v2344
    %v2664 = vunpack.c.h.b16 %v2344
    %v2665 = vunpack.c.l.b16 %v2345
    %v2666 = vunpack.c.h.b16 %v2345
    %v2667 = vunpack.c.l.b16 %v2346
    %v2668 = vunpack.c.h.b16 %v2346
    %v2669 = vunpack.c.l.b16 %v2347
    %v2670 = vunpack.c.h.b16 %v2347
    %v2671 = vunpack.c.l.b16 %v2348
    %v2672 = vunpack.c.h.b16 %v2348
    %v2673 = vunpack.c.l.b16 %v2349
    %v2674 = vunpack.c.h.b16 %v2349
    %v2675 = vunpack.c.l.b16 %v2350
    %v2676 = vunpack.c.h.b16 %v2350
    %v2677 = vunpack.c.l.b16 %v2351
    %v2678 = vunpack.c.h.b16 %v2351
    %v2679 = vunpack.c.l.b16 %v2352
    %v2680 = vunpack.c.h.b16 %v2352
    %v2681 = vunpack.c.l.b16 %v2353
    %v2682 = vunpack.c.h.b16 %v2353
    %v2683 = vunpack.c.l.b16 %v2354
    %v2684 = vunpack.c.h.b16 %v2354
    %v2685 = vunpack.c.l.b16 %v2355
    %v2686 = vunpack.c.h.b16 %v2355
    %v2687 = vunpack.c.l.b16 %v2356
    %v2688 = vunpack.c.h.b16 %v2356
    %v2689 = vunpack.c.l.b16 %v2357
    %v2690 = vunpack.c.h.b16 %v2357
    %v2691 = vunpack.c.l.b16 %v2358
    %v2692 = vunpack.c.h.b16 %v2358
    %v2693 = vunpack.c.l.b16 %v2359
    %v2694 = vunpack.c.h.b16 %v2359
    %v2695 = vunpack.c.l.b16 %v2360
    %v2696 = vunpack.c.h.b16 %v2360
    %v2697 = vunpack.c.l.b16 %v2361
    %v2698 = vunpack.c.h.b16 %v2361
    %v2699 = vunpack.c.l.b16 %v2362
    %v2700 = vunpack.c.h.b16 %v2362
    %v2701 = vunpack.c.l.b16 %v2363
    %v2702 = vunpack.c.h.b16 %v2363
    %v2703 = vunpack.c.l.b16 %v2364
    %v2704 = vunpack.c.h.b16 %v2364
    %v2705 = vunpack.c.l.b16 %v2365
    %v2706 = vunpack.c.h.b16 %v2365
    %v2707 = vunpack.c.l.b16 %v2366
    %v2708 = vunpack.c.h.b16 %v2366
    %v2709 = vunpack.c.l.b16 %v2367
    %v2710 = vunpack.c.h.b16 %v2367
    %v2711 = vunpack.c.l.b16 %v2368
    %v2712 = vunpack.c.h.b16 %v2368
    %v2713 = vunpack.c.l.b16 %v2369
    %v2714 = vunpack.c.h.b16 %v2369
    %v2715 = vunpack.c.l.b16 %v2370
    %v2716 = vunpack.c.h.b16 %v2370
    %v2717 = vunpack.c.l.b16 %v2371
    %v2718 = vunpack.c.h.b16 %v2371
    %v2719 = vunpack.c.l.b16 %v2372
    %v2720 = vunpack.c.h.b16 %v2372
    %v2721 = vunpack.c.l.b16 %v2373
    %v2722 = vunpack.c.h.b16 %v2373
    %v2723 = vunpack.c.l.b16 %v2374
    %v2724 = vunpack.c.h.b16 %v2374
    %v2725 = vunpack.c.l.b16 %v2375
    %v2726 = vunpack.c.h.b16 %v2375
    %v2727 = vunpack.c.l.b16 %v2376
    %v2728 = vunpack.c.h.b16 %v2376
    %v2729 = vunpack.c.l.b16 %v2377
    %v2730 = vunpack.c.h.b16 %v2377
    %v2731 = vunpack.c.l.b16 %v2378
    %v2732 = vunpack.c.h.b16 %v2378
    %v2733 = vunpack.c.l.b16 %v2379
    %v2734 = vunpack.c.h.b16 %v2379
    %v2735 = vunpack.c.l.b16 %v2380
    %v2736 = vunpack.c.h.b16 %v2380
    %v2737 = vunpack.c.l.b16 %v2381
    %v2738 = vunpack.c.h.b16 %v2381
    %v2739 = vunpack.c.l.b16 %v2382
    %v2740 = vunpack.c.h.b16 %v2382
    %v2741 = vunpack.c.l.b16 %v2383
    %v2742 = vunpack.c.h.b16 %v2383
    %v2743 = vunpack.c.l.b16 %v2384
    %v2744 = vunpack.c.h.b16 %v2384
    %v2745 = vunpack.c.l.b16 %v2385
    %v2746 = vunpack.c.h.b16 %v2385
    %v2747 = vunpack.c.l.b16 %v2386
    %v2748 = vunpack.c.h.b16 %v2386
    %v2749 = vunpack.c.l.b16 %v2387
    %v2750 = vunpack.c.h.b16 %v2387
    %v2751 = vunpack.c.l.b16 %v2388
    %v2752 = vunpack.c.h.b16 %v2388
    %v2753 = vunpack.c.l.b16 %v2389
    %v2754 = vunpack.c.h.b16 %v2389
    %v2755 = vunpack.c.l.b16 %v2390
    %v2756 = vunpack.c.h.b16 %v2390
    %v2757 = vunpack.c.l.b16 %v2391
    %v2758 = vunpack.c.h.b16 %v2391
    %v2759 = vunpack.c.l.b16 %v2392
    %v2760 = vunpack.c.h.b16 %v2392
    %v2761 = vunpack.c.l.b16 %v2393
    %v2762 = vunpack.c.h.b16 %v2393
    %v2763 = vunpack.c.l.b16 %v2394
    %v2764 = vunpack.c.h.b16 %v2394
    %v2765 = vunpack.c.l.b16 %v2395
    %v2766 = vunpack.c.h.b16 %v2395
    %v2767 = vunpack.c.l.b16 %v2396
    %v2768 = vunpack.c.h.b16 %v2396
    %v2769 = vunpack.c.l.b16 %v2397
    %v2770 = vunpack.c.h.b16 %v2397
    %v2771 = vunpack.c.l.b16 %v2398
    %v2772 = vunpack.c.h.b16 %v2398
    %v2773 = vunpack.c.l.b16 %v2399
    %v2774 = vunpack.c.h.b16 %v2399
    %v2775 = vunpack.c.l.b16 %v2400
    %v2776 = vunpack.c.h.b16 %v2400
    %v2777 = vunpack.c.l.b16 %v2401
    %v2778 = vunpack.c.h.b16 %v2401
    %v2779 = vunpack.c.l.b16 %v2402
    %v2780 = vunpack.c.h.b16 %v2402
    %v2781 = vunpack.c.l.b16 %v2403
    %v2782 = vunpack.c.h.b16 %v2403
    %v2783 = vunpack.c.l.b16 %v2404
    %v2784 = vunpack.c.h.b16 %v2404
    %v2785 = vunpack.c.l.b16 %v2405
    %v2786 = vunpack.c.h.b16 %v2405
    %v2787 = vunpack.c.l.b16 %v2406
    %v2788 = vunpack.c.h.b16 %v2406
    %v2789 = vunpack.c.l.b16 %v2407
    %v2790 = vunpack.c.h.b16 %v2407
    %v2791 = vunpack.c.l.b16 %v2408
    %v2792 = vunpack.c.h.b16 %v2408
    %v2793 = vunpack.c.l.b16 %v2409
    %v2794 = vunpack.c.h.b16 %v2409
    %v2795 = vunpack.c.l.b16 %v2410
    %v2796 = vunpack.c.h.b16 %v2410
    %v2797 = vunpack.c.l.b16 %v2411
    %v2798 = vunpack.c.h.b16 %v2411
    %v2799 = vunpack.c.l.b16 %v2412
    %v2800 = vunpack.c.h.b16 %v2412
    %v2801 = vunpack.c.l.b16 %v2413
    %v2802 = vunpack.c.h.b16 %v2413
    %v2803 = vunpack.c.l.b16 %v2414
    %v2804 = vunpack.c.h.b16 %v2414
    %v2805 = vunpack.c.l.b16 %v2415
    %v2806 = vunpack.c.h.b16 %v2415
    %v2807 = vunpack.c.l.b16 %v2416
    %v2808 = vunpack.c.h.b16 %v2416
    %v2809 = vunpack.c.l.b16 %v2417
    %v2810 = vunpack.c.h.b16 %v2417
    %v2811 = vunpack.c.l.b16 %v2418
    %v2812 = vunpack.c.h.b16 %v2418
    %v2813 = vunpack.c.l.b16 %v2419
    %v2814 = vunpack.c.h.b16 %v2419
    %v2815 = vunpack.c.l.b16 %v2420
    %v2816 = vunpack.c.h.b16 %v2420
    %v2817 = vunpack.c.l.b16 %v2421
    %v2818 = vunpack.c.h.b16 %v2421
    %v2819 = vunpack.c.l.b16 %v2422
    %v2820 = vunpack.c.h.b16 %v2422
    %v2821 = vunpack.c.l.b16 %v2423
    %v2822 = vunpack.c.h.b16 %v2423
    %v2823 = vunpack.c.l.b16 %v2424
    %v2824 = vunpack.c.h.b16 %v2424
    %v2825 = vunpack.c.l.b16 %v2425
    %v2826 = vunpack.c.h.b16 %v2425
    %v2827 = vunpack.c.l.b16 %v2426
    %v2828 = vunpack.c.h.b16 %v2426
    %v2829 = vunpack.c.l.b16 %v2427
    %v2830 = vunpack.c.h.b16 %v2427
    %v2831 = vunpack.c.l.b16 %v2428
    %v2832 = vunpack.c.h.b16 %v2428
    %v2833 = vunpack.c.l.b16 %v2429
    %v2834 = vunpack.c.h.b16 %v2429
    %v2835 = vunpack.c.l.b16 %v2430
    %v2836 = vunpack.c.h.b16 %v2430
    %v2837 = vunpack.c.l.b16 %v2431
    %v2838 = vunpack.c.h.b16 %v2431
    %v2839 = vunpack.c.l.b16 %v2432
    %v2840 = vunpack.c.h.b16 %v2432
    %v2841 = vunpack.c.l.b16 %v2433
    %v2842 = vunpack.c.h.b16 %v2433
    %v2843 = vunpack.c.l.b16 %v2434
    %v2844 = vunpack.c.h.b16 %v2434
    %v2845 = vunpack.c.l.b16 %v2435
    %v2846 = vunpack.c.h.b16 %v2435
    %v2847 = vunpack.c.l.b16 %v2436
    %v2848 = vunpack.c.h.b16 %v2436
    %v2849 = vpack.c.b16 %v2595, %v2593
    %v2850 = vpack.c.b16 %v2596, %v2594
    %v2851 = vpack.c.b16 %v2599, %v2597
    %v2852 = vpack.c.b16 %v2600, %v2598
    %v2853 = vpack.c.b16 %v2603, %v2601
    %v2854 = vpack.c.b16 %v2604, %v2602
    %v2855 = vpack.c.b16 %v2607, %v2605
    %v2856 = vpack.c.b16 %v2608, %v2606
    %v2857 = vpack.c.b16 %v2611, %v2609
    %v2858 = vpack.c.b16 %v2612, %v2610
    %v2859 = vpack.c.b16 %v2615, %v2613
    %v2860 = vpack.c.b16 %v2616, %v2614
    %v2861 = vpack.c.b16 %v2619, %v2617
    %v2862 = vpack.c.b16 %v2620, %v2618
    %v2863 = vpack.c.b16 %v2623, %v2621
    %v2864 = vpack.c.b16 %v2624, %v2622
    %v2865 = vpack.c.b16 %v2627, %v2625
    %v2866 = vpack.c.b16 %v2628, %v2626
    %v2867 = vpack.c.b16 %v2631, %v2629
    %v2868 = vpack.c.b16 %v2632, %v2630
    %v2869 = vpack.c.b16 %v2635, %v2633
    %v2870 = vpack.c.b16 %v2636, %v2634
    %v2871 = vpack.c.b16 %v2639, %v2637
    %v2872 = vpack.c.b16 %v2640, %v2638
    %v2873 = vpack.c.b16 %v2643, %v2641
    %v2874 = vpack.c.b16 %v2644, %v2642
    %v2875 = vpack.c.b16 %v2647, %v2645
    %v2876 = vpack.c.b16 %v2648, %v2646
    %v2877 = vpack.c.b16 %v2651, %v2649
    %v2878 = vpack.c.b16 %v2652, %v2650
    %v2879 = vpack.c.b16 %v2655, %v2653
    %v2880 = vpack.c.b16 %v2656, %v2654
    %v2881 = vpack.c.b16 %v2659, %v2657
    %v2882 = vpack.c.b16 %v2660, %v2658
    %v2883 = vpack.c.b16 %v2663, %v2661
    %v2884 = vpack.c.b16 %v2664, %v2662
    %v2885 = vpack.c.b16 %v2667, %v2665
    %v2886 = vpack.c.b16 %v2668, %v2666
    %v2887 = vpack.c.b16 %v2671, %v2669
    %v2888 = vpack.c.b16 %v2672, %v2670
    %v2889 = vpack.c.b16 %v2675, %v2673
    %v2890 = vpack.c.b16 %v2676, %v2674
    %v2891 = vpack.c.b16 %v2679, %v2677
    %v2892 = vpack.c.b16 %v2680, %v2678
    %v2893 = vpack.c.b16 %v2683, %v2681
    %v2894 = vpack.c.b16 %v2684, %v2682
    %v2895 = vpack.c.b16 %v2687, %v2685
    %v2896 = vpack.c.b16 %v2688, %v2686
    %v2897 = vpack.c.b16 %v2691, %v2689
    %v2898 = vpack.c.b16 %v2692, %v2690
    %v2899 = vpack.c.b16 %v2695, %v2693
    %v2900 = vpack.c.b16 %v2696, %v2694
    %v2901 = vpack.c.b16 %v2699, %v2697
    %v2902 = vpack.c.b16 %v2700, %v2698
    %v2903 = vpack.c.b16 %v2703, %v2701
    %v2904 = vpack.c.b16 %v2704, %v2702
    %v2905 = vpack.c.b16 %v2707, %v2705
    %v2906 = vpack.c.b16 %v2708, %v2706
    %v2907 = vpack.c.b16 %v2711, %v2709
    %v2908 = vpack.c.b16 %v2712, %v2710
    %v2909 = vpack.c.b16 %v2715, %v2713
    %v2910 = vpack.c.b16 %v2716, %v2714
    %v2911 = vpack.c.b16 %v2719, %v2717
    %v2912 = vpack.c.b16 %v2720, %v2718
    %v2913 = vpack.c.b16 %v2723, %v2721
    %v2914 = vpack.c.b16 %v2724, %v2722
    %v2915 = vpack.c.b16 %v2727, %v2725
    %v2916 = vpack.c.b16 %v2728, %v2726
    %v2917 = vpack.c.b16 %v2731, %v2729
    %v2918 = vpack.c.b16 %v2732, %v2730
    %v2919 = vpack.c.b16 %v2735, %v2733
    %v2920 = vpack.c.b16 %v2736, %v2734
    %v2921 = vpack.c.b16 %v2739, %v2737
    %v2922 = vpack.c.b16 %v2740, %v2738
    %v2923 = vpack.c.b16 %v2743, %v2741
    %v2924 = vpack.c.b16 %v2744, %v2742
    %v2925 = vpack.c.b16 %v2747, %v2745
    %v2926 = vpack.c.b16 %v2748, %v2746
    %v2927 = vpack.c.b16 %v2751, %v2749
    %v2928 = vpack.c.b16 %v2752, %v2750
    %v2929 = vpack.c.b16 %v2755, %v2753
    %v2930 = vpack.c.b16 %v2756, %v2754
    %v2931 = vpack.c.b16 %v2759, %v2757
    %v2932 = vpack.c.b16 %v2760, %v2758
    %v2933 = vpack.c.b16 %v2763, %v2761
    %v2934 = vpack.c.b16 %v2764, %v2762
    %v2935 = vpack.c.b16 %v2767, %v2765
    %v2936 = vpack.c.b16 %v2768, %v2766
    %v2937 = vpack.c.b16 %v2771, %v2769
    %v2938 = vpack.c.b16 %v2772, %v2770
    %v2939 = vpack.c.b16 %v2775, %v2773
    %v2940 = vpack.c.b16 %v2776, %v2774
    %v2941 = vpack.c.b16 %v2779, %v2777
    %v2942 = vpack.c.b16 %v2780, %v2778
    %v2943 = vpack.c.b16 %v2783, %v2781
    %v2944 = vpack.c.b16 %v2784, %v2782
    %v2945 = vpack.c.b16 %v2787, %v2785
    %v2946 = vpack.c.b16 %v2788, %v2786
    %v2947 = vpack.c.b16 %v2791, %v2789
    %v2948 = vpack.c.b16 %v2792, %v2790
    %v2949 = vpack.c.b16 %v2795, %v2793
    %v2950 = vpack.c.b16 %v2796, %v2794
    %v2951 = vpack.c.b16 %v2799, %v2797
    %v2952 = vpack.c.b16 %v2800, %v2798
    %v2953 = vpack.c.b16 %v2803, %v2801
    %v2954 = vpack.c.b16 %v2804, %v2802
    %v2955 = vpack.c.b16 %v2807, %v2805
    %v2956 = vpack.c.b16 %v2808, %v2806
    %v2957 = vpack.c.b16 %v2811, %v2809
    %v2958 = vpack.c.b16 %v2812, %v2810
    %v2959 = vpack.c.b16 %v2815, %v2813
    %v2960 = vpack.c.b16 %v2816, %v2814
    %v2961 = vpack.c.b16 %v2819, %v2817
    %v2962 = vpack.c.b16 %v2820, %v2818
    %v2963 = vpack.c.b16 %v2823, %v2821
    %v2964 = vpack.c.b16 %v2824, %v2822
    %v2965 = vpack.c.b16 %v2827, %v2825
    %v2966 = vpack.c.b16 %v2828, %v2826
    %v2967 = vpack.c.b16 %v2831, %v2829
    %v2968 = vpack.c.b16 %v2832, %v2830
    %v2969 = vpack.c.b16 %v2835, %v2833
    %v2970 = vpack.c.b16 %v2836, %v2834
    %v2971 = vpack.c.b16 %v2839, %v2837
    %v2972 = vpack.c.b16 %v2840, %v2838
    %v2973 = vpack.c.b16 %v2843, %v2841
    %v2974 = vpack.c.b16 %v2844, %v2842
    %v2975 = vpack.c.b16 %v2847, %v2845
    %v2976 = vpack.c.b16 %v2848, %v2846
    %3105 = vmatprep.subr.bf16.mxu0 %v2850
    %3106 = vmatpush1.bf16.msra.mxu0 %v2849
    %3107 = vmatprep.subr.bf16.mxu0 %v2852
    %3108 = vmatpush1.bf16.msra.mxu0 %v2851
    %3109 = vmatprep.subr.bf16.mxu0 %v2854
    %3110 = vmatpush1.bf16.msra.mxu0 %v2853
    %3111 = vmatprep.subr.bf16.mxu0 %v2856
    %3112 = vmatpush1.bf16.msra.mxu0 %v2855
    %3113 = vmatprep.subr.bf16.mxu0 %v2858
    %3114 = vmatpush1.bf16.msra.mxu0 %v2857
    %3115 = vmatprep.subr.bf16.mxu0 %v2860
    %3116 = vmatpush1.bf16.msra.mxu0 %v2859
    %3117 = vmatprep.subr.bf16.mxu0 %v2862
    %3118 = vmatpush1.bf16.msra.mxu0 %v2861
    %3119 = vmatprep.subr.bf16.mxu0 %v2864
    %3120 = vmatpush1.bf16.msra.mxu0 %v2863
    %3121 = vmatprep.subr.bf16.mxu0 %v2866
    %3122 = vmatpush1.bf16.msra.mxu0 %v2865
    %3123 = vmatprep.subr.bf16.mxu0 %v2868
    %3124 = vmatpush1.bf16.msra.mxu0 %v2867
    %3125 = vmatprep.subr.bf16.mxu0 %v2870
    %3126 = vmatpush1.bf16.msra.mxu0 %v2869
    %3127 = vmatprep.subr.bf16.mxu0 %v2872
    %3128 = vmatpush1.bf16.msra.mxu0 %v2871
    %3129 = vmatprep.subr.bf16.mxu0 %v2874
    %3130 = vmatpush1.bf16.msra.mxu0 %v2873
    %3131 = vmatprep.subr.bf16.mxu0 %v2876
    %3132 = vmatpush1.bf16.msra.mxu0 %v2875
    %3133 = vmatprep.subr.bf16.mxu0 %v2878
    %3134 = vmatpush1.bf16.msra.mxu0 %v2877
    %3135 = vmatprep.subr.bf16.mxu0 %v2880
    %3136 = vmatpush1.bf16.msra.mxu0 %v2879
    %3137 = vmatprep.mubr.bf16.mxu0 %v2450
    %3138 = vmatmul.mubr.bf16.gmra.mrb[0].mxu0 %v2449
    %v3139 = vpop.f32.mrb[0].mxu0
    %v3140 = vadd.f32 %v2442, %v3139
    %v3141 = vpop.f32.mrb[0].mxu0
    %v3142 = vadd.f32 %v2446, %v3141
    %v3143 = vpop.f32.mrb[0].mxu0
    %v3144 = vadd.f32 %v2442, %v3143
    %v3145 = vpop.f32.mrb[0].mxu0
    %v3146 = vadd.f32 %v2446, %v3145
    %3147 = vdwg.mxu0
    %3148 = vmatprep.subr.bf16.mxu0 %v2882
    %3149 = vmatpush1.bf16.msra.mxu0 %v2881
    %3150 = vmatprep.subr.bf16.mxu0 %v2884
    %3151 = vmatpush1.bf16.msra.mxu0 %v2883
    %3152 = vmatprep.subr.bf16.mxu0 %v2886
    %3153 = vmatpush1.bf16.msra.mxu0 %v2885
    %3154 = vmatprep.subr.bf16.mxu0 %v2888
    %3155 = vmatpush1.bf16.msra.mxu0 %v2887
    %3156 = vmatprep.subr.bf16.mxu0 %v2890
    %3157 = vmatpush1.bf16.msra.mxu0 %v2889
    %3158 = vmatprep.subr.bf16.mxu0 %v2892
    %3159 = vmatpush1.bf16.msra.mxu0 %v2891
    %3160 = vmatprep.subr.bf16.mxu0 %v2894
    %3161 = vmatpush1.bf16.msra.mxu0 %v2893
    %3162 = vmatprep.subr.bf16.mxu0 %v2896
    %3163 = vmatpush1.bf16.msra.mxu0 %v2895
    %3164 = vmatprep.subr.bf16.mxu0 %v2898
    %3165 = vmatpush1.bf16.msra.mxu0 %v2897
    %3166 = vmatprep.subr.bf16.mxu0 %v2900
    %3167 = vmatpush1.bf16.msra.mxu0 %v2899
    %3168 = vmatprep.subr.bf16.mxu0 %v2902
    %3169 = vmatpush1.bf16.msra.mxu0 %v2901
    %3170 = vmatprep.subr.bf16.mxu0 %v2904
    %3171 = vmatpush1.bf16.msra.mxu0 %v2903
    %3172 = vmatprep.subr.bf16.mxu0 %v2906
    %3173 = vmatpush1.bf16.msra.mxu0 %v2905
    %3174 = vmatprep.subr.bf16.mxu0 %v2908
    %3175 = vmatpush1.bf16.msra.mxu0 %v2907
    %3176 = vmatprep.subr.bf16.mxu0 %v2910
    %3177 = vmatpush1.bf16.msra.mxu0 %v2909
    %3178 = vmatprep.subr.bf16.mxu0 %v2912
    %3179 = vmatpush1.bf16.msra.mxu0 %v2911
    %3180 = vmatprep.mubr.bf16.mxu0 %v2452
    %3181 = vmatmul.mubr.bf16.gmra.mrb[0].mxu0 %v2451
    %v3182 = vpop.f32.mrb[0].mxu0
    %v3183 = vadd.f32 %v3140, %v3182
    %v3184 = vpop.f32.mrb[0].mxu0
    %v3185 = vadd.f32 %v3142, %v3184
    %v3186 = vpop.f32.mrb[0].mxu0
    %v3187 = vadd.f32 %v3144, %v3186
    %v3188 = vpop.f32.mrb[0].mxu0
    %v3189 = vadd.f32 %v3146, %v3188
    %3190 = vdwg.mxu0
    %3191 = vmatprep.subr.bf16.mxu0 %v2914
    %3192 = vmatpush1.bf16.msra.mxu0 %v2913
    %3193 = vmatprep.subr.bf16.mxu0 %v2916
    %3194 = vmatpush1.bf16.msra.mxu0 %v2915
    %3195 = vmatprep.subr.bf16.mxu0 %v2918
    %3196 = vmatpush1.bf16.msra.mxu0 %v2917
    %3197 = vmatprep.subr.bf16.mxu0 %v2920
    %3198 = vmatpush1.bf16.msra.mxu0 %v2919
    %3199 = vmatprep.subr.bf16.mxu0 %v2922
    %3200 = vmatpush1.bf16.msra.mxu0 %v2921
    %3201 = vmatprep.subr.bf16.mxu0 %v2924
    %3202 = vmatpush1.bf16.msra.mxu0 %v2923
    %3203 = vmatprep.subr.bf16.mxu0 %v2926
    %3204 = vmatpush1.bf16.msra.mxu0 %v2925
    %3205 = vmatprep.subr.bf16.mxu0 %v2928
    %3206 = vmatpush1.bf16.msra.mxu0 %v2927
    %3207 = vmatprep.subr.bf16.mxu0 %v2930
    %3208 = vmatpush1.bf16.msra.mxu0 %v2929
    %3209 = vmatprep.subr.bf16.mxu0 %v2932
    %3210 = vmatpush1.bf16.msra.mxu0 %v2931
    %3211 = vmatprep.subr.bf16.mxu0 %v2934
    %3212 = vmatpush1.bf16.msra.mxu0 %v2933
    %3213 = vmatprep.subr.bf16.mxu0 %v2936
    %3214 = vmatpush1.bf16.msra.mxu0 %v2935
    %3215 = vmatprep.subr.bf16.mxu0 %v2938
    %3216 = vmatpush1.bf16.msra.mxu0 %v2937
    %3217 = vmatprep.subr.bf16.mxu0 %v2940
    %3218 = vmatpush1.bf16.msra.mxu0 %v2939
    %3219 = vmatprep.subr.bf16.mxu0 %v2942
    %3220 = vmatpush1.bf16.msra.mxu0 %v2941
    %3221 = vmatprep.subr.bf16.mxu0 %v2944
    %3222 = vmatpush1.bf16.msra.mxu0 %v2943
    %3223 = vmatprep.mubr.bf16.mxu0 %v2454
    %3224 = vmatmul.mubr.bf16.gmra.mrb[0].mxu0 %v2453
    %v3225 = vpop.f32.mrb[0].mxu0
    %v3226 = vadd.f32 %v3183, %v3225
    %v3227 = vpop.f32.mrb[0].mxu0
    %v3228 = vadd.f32 %v3185, %v3227
    %v3229 = vpop.f32.mrb[0].mxu0
    %v3230 = vadd.f32 %v3187, %v3229
    %v3231 = vpop.f32.mrb[0].mxu0
    %v3232 = vadd.f32 %v3189, %v3231
    %3233 = vdwg.mxu0
    %3234 = vmatprep.subr.bf16.mxu0 %v2946
    %3235 = vmatpush1.bf16.msra.mxu0 %v2945
    %3236 = vmatprep.subr.bf16.mxu0 %v2948
    %3237 = vmatpush1.bf16.msra.mxu0 %v2947
    %3238 = vmatprep.subr.bf16.mxu0 %v2950
    %3239 = vmatpush1.bf16.msra.mxu0 %v2949
    %3240 = vmatprep.subr.bf16.mxu0 %v2952
    %3241 = vmatpush1.bf16.msra.mxu0 %v2951
    %3242 = vmatprep.subr.bf16.mxu0 %v2954
    %3243 = vmatpush1.bf16.msra.mxu0 %v2953
    %3244 = vmatprep.subr.bf16.mxu0 %v2956
    %3245 = vmatpush1.bf16.msra.mxu0 %v2955
    %3246 = vmatprep.subr.bf16.mxu0 %v2958
    %3247 = vmatpush1.bf16.msra.mxu0 %v2957
    %3248 = vmatprep.subr.bf16.mxu0 %v2960
    %3249 = vmatpush1.bf16.msra.mxu0 %v2959
    %3250 = vmatprep.subr.bf16.mxu0 %v2962
    %3251 = vmatpush1.bf16.msra.mxu0 %v2961
    %3252 = vmatprep.subr.bf16.mxu0 %v2964
    %3253 = vmatpush1.bf16.msra.mxu0 %v2963
    %3254 = vmatprep.subr.bf16.mxu0 %v2966
    %3255 = vmatpush1.bf16.msra.mxu0 %v2965
    %3256 = vmatprep.subr.bf16.mxu0 %v2968
    %3257 = vmatpush1.bf16.msra.mxu0 %v2967
    %3258 = vmatprep.subr.bf16.mxu0 %v2970
    %3259 = vmatpush1.bf16.msra.mxu0 %v2969
    %3260 = vmatprep.subr.bf16.mxu0 %v2972
    %3261 = vmatpush1.bf16.msra.mxu0 %v2971
    %3262 = vmatprep.subr.bf16.mxu0 %v2974
    %3263 = vmatpush1.bf16.msra.mxu0 %v2973
    %3264 = vmatprep.subr.bf16.mxu0 %v2976
    %3265 = vmatpush1.bf16.msra.mxu0 %v2975
    %3266 = vmatprep.mubr.bf16.mxu0 %v2456
    %3267 = vmatmul.mubr.bf16.gmra.mrb[0].mxu0 %v2455
    %v3268 = vpop.f32.mrb[0].mxu0
    %v3269 = vadd.f32 %v3226, %v3268
    %v3270 = vpop.f32.mrb[0].mxu0
    %v3271 = vadd.f32 %v3228, %v3270
    %v3272 = vpop.f32.mrb[0].mxu0
    %v3273 = vadd.f32 %v3230, %v3272
    %v3274 = vpop.f32.mrb[0].mxu0
    %v3275 = vadd.f32 %v3232, %v3274
    %3276 = vdwg.mxu0
    %v3277 = vmax.f32 %v3269, 0.0
    %v3278 = vmax.f32 %v3271, 0.0
    %v3279 = vmax.f32 %v3273, 0.0
    %v3280 = vmax.f32 %v3275, 0.0
    %v3281 = vpack.c.bf16 %v3279, %v3277
    %v3282 = vpack.c.bf16 %v3280, %v3278
    %v3285 = vcombine.low %v3281, %v3282
    %v3286 = vcombine.high %v3281, %v3282
    %v3288 = vunpack.c.l.s4 1966171168
    %v3289 = vunpack.c.0.s8 %v3288
    %v3290 = vlaneseq
    %v3291 = vshrl.u32 %v3290, 7
    %v3292 = vsub.s32 %v3289, %v3291
    %v3293 = vrot.slane %v3285, %v3292
    %v3295 = vunpack.c.l.s4 1966171168
    %v3296 = vunpack.c.0.s8 %v3295
    %v3297 = vlaneseq
    %v3298 = vshrl.u32 %v3297, 7
    %v3299 = vsub.s32 %v3296, %v3298
    %v3300 = vrot.slane %v3286, %v3299
    %v3301 = vcombine.high %v3293, %v3293
    %v3302 = vcombine.high %v3300, %v3300
    %v3304 = vunpack.c.l.s4 1966171168
    %v3305 = vunpack.c.0.s8 %v3304
    %v3306 = vlaneseq
    %v3307 = vshrl.u32 %v3306, 7
    %v3308 = vsub.s32 %v3305, %v3307
    %v3309 = vrot.slane %v3293, %v3308
    %v3311 = vunpack.c.l.s4 1966171168
    %v3312 = vunpack.c.0.s8 %v3311
    %v3313 = vlaneseq
    %v3314 = vshrl.u32 %v3313, 7
    %v3315 = vsub.s32 %v3312, %v3314
    %v3316 = vrot.slane %v3300, %v3315
    %v3318 = vunpack.c.l.s4 1966171168
    %v3319 = vunpack.c.0.s8 %v3318
    %v3320 = vlaneseq
    %v3321 = vshrl.u32 %v3320, 7
    %v3322 = vsub.s32 %v3319, %v3321
    %v3323 = vrot.slane %v3301, %v3322
    %v3325 = vunpack.c.l.s4 1966171168
    %v3326 = vunpack.c.0.s8 %v3325
    %v3327 = vlaneseq
    %v3328 = vshrl.u32 %v3327, 7
    %v3329 = vsub.s32 %v3326, %v3328
    %v3330 = vrot.slane %v3302, %v3329
    %v3331 = vcombine.high %v3309, %v3309
    %v3332 = vcombine.high %v3316, %v3316
    %v3333 = vcombine.high %v3323, %v3323
    %v3334 = vcombine.high %v3330, %v3330
    %v3336 = vunpack.c.l.s4 1935823168
    %v3337 = vunpack.c.0.s8 %v3336
    %v3338 = vlaneseq
    %v3339 = vshrl.u32 %v3338, 7
    %v3340 = vsub.s32 %v3337, %v3339
    %v3341 = vrot.slane %v3309, %v3340
    %v3343 = vunpack.c.l.s4 1935823168
    %v3344 = vunpack.c.0.s8 %v3343
    %v3345 = vlaneseq
    %v3346 = vshrl.u32 %v3345, 7
    %v3347 = vsub.s32 %v3344, %v3346
    %v3348 = vrot.slane %v3341, %v3347
    %v3350 = vunpack.c.l.s4 1935823168
    %v3351 = vunpack.c.0.s8 %v3350
    %v3352 = vlaneseq
    %v3353 = vshrl.u32 %v3352, 7
    %v3354 = vsub.s32 %v3351, %v3353
    %v3355 = vrot.slane %v3323, %v3354
    %v3357 = vunpack.c.l.s4 1935823168
    %v3358 = vunpack.c.0.s8 %v3357
    %v3359 = vlaneseq
    %v3360 = vshrl.u32 %v3359, 7
    %v3361 = vsub.s32 %v3358, %v3360
    %v3362 = vrot.slane %v3355, %v3361
    %v3364 = vunpack.c.l.s4 1935823168
    %v3365 = vunpack.c.0.s8 %v3364
    %v3366 = vlaneseq
    %v3367 = vshrl.u32 %v3366, 7
    %v3368 = vsub.s32 %v3365, %v3367
    %v3369 = vrot.slane %v3331, %v3368
    %v3371 = vunpack.c.l.s4 1935823168
    %v3372 = vunpack.c.0.s8 %v3371
    %v3373 = vlaneseq
    %v3374 = vshrl.u32 %v3373, 7
    %v3375 = vsub.s32 %v3372, %v3374
    %v3376 = vrot.slane %v3369, %v3375
    %v3378 = vunpack.c.l.s4 1935823168
    %v3379 = vunpack.c.0.s8 %v3378
    %v3380 = vlaneseq
    %v3381 = vshrl.u32 %v3380, 7
    %v3382 = vsub.s32 %v3379, %v3381
    %v3383 = vrot.slane %v3333, %v3382
    %v3385 = vunpack.c.l.s4 1935823168
    %v3386 = vunpack.c.0.s8 %v3385
    %v3387 = vlaneseq
    %v3388 = vshrl.u32 %v3387, 7
    %v3389 = vsub.s32 %v3386, %v3388
    %v3390 = vrot.slane %v3383, %v3389
    %v3392 = vunpack.c.l.s4 1935823168
    %v3393 = vunpack.c.0.s8 %v3392
    %v3394 = vlaneseq
    %v3395 = vshrl.u32 %v3394, 7
    %v3396 = vsub.s32 %v3393, %v3395
    %v3397 = vrot.slane %v3316, %v3396
    %v3399 = vunpack.c.l.s4 1935823168
    %v3400 = vunpack.c.0.s8 %v3399
    %v3401 = vlaneseq
    %v3402 = vshrl.u32 %v3401, 7
    %v3403 = vsub.s32 %v3400, %v3402
    %v3404 = vrot.slane %v3397, %v3403
    %v3406 = vunpack.c.l.s4 1935823168
    %v3407 = vunpack.c.0.s8 %v3406
    %v3408 = vlaneseq
    %v3409 = vshrl.u32 %v3408, 7
    %v3410 = vsub.s32 %v3407, %v3409
    %v3411 = vrot.slane %v3330, %v3410
    %v3413 = vunpack.c.l.s4 1935823168
    %v3414 = vunpack.c.0.s8 %v3413
    %v3415 = vlaneseq
    %v3416 = vshrl.u32 %v3415, 7
    %v3417 = vsub.s32 %v3414, %v3416
    %v3418 = vrot.slane %v3411, %v3417
    %v3420 = vunpack.c.l.s4 1935823168
    %v3421 = vunpack.c.0.s8 %v3420
    %v3422 = vlaneseq
    %v3423 = vshrl.u32 %v3422, 7
    %v3424 = vsub.s32 %v3421, %v3423
    %v3425 = vrot.slane %v3332, %v3424
    %v3427 = vunpack.c.l.s4 1935823168
    %v3428 = vunpack.c.0.s8 %v3427
    %v3429 = vlaneseq
    %v3430 = vshrl.u32 %v3429, 7
    %v3431 = vsub.s32 %v3428, %v3430
    %v3432 = vrot.slane %v3425, %v3431
    %v3434 = vunpack.c.l.s4 1935823168
    %v3435 = vunpack.c.0.s8 %v3434
    %v3436 = vlaneseq
    %v3437 = vshrl.u32 %v3436, 7
    %v3438 = vsub.s32 %v3435, %v3437
    %v3439 = vrot.slane %v3334, %v3438
    %v3441 = vunpack.c.l.s4 1935823168
    %v3442 = vunpack.c.0.s8 %v3441
    %v3443 = vlaneseq
    %v3444 = vshrl.u32 %v3443, 7
    %v3445 = vsub.s32 %v3442, %v3444
    %v3446 = vrot.slane %v3439, %v3445
    %v3447 = vunpack.c.l.b16 %v3348
    %v3448 = vunpack.c.h.b16 %v3348
    %v3449 = vunpack.c.l.b16 %v3362
    %v3450 = vunpack.c.h.b16 %v3362
    %v3451 = vunpack.c.l.b16 %v3376
    %v3452 = vunpack.c.h.b16 %v3376
    %v3453 = vunpack.c.l.b16 %v3390
    %v3454 = vunpack.c.h.b16 %v3390
    %v3455 = vunpack.c.l.b16 %v3404
    %v3456 = vunpack.c.h.b16 %v3404
    %v3457 = vunpack.c.l.b16 %v3418
    %v3458 = vunpack.c.h.b16 %v3418
    %v3459 = vunpack.c.l.b16 %v3432
    %v3460 = vunpack.c.h.b16 %v3432
    %v3461 = vunpack.c.l.b16 %v3446
    %v3462 = vunpack.c.h.b16 %v3446
    %v3463 = vrot.slane %v3449, 7
    %v3464 = vsel %vm970, %v3463, %v3447
    %v3465 = vrot.slane %v3451, 6
    %v3466 = vsel %vm973, %v3465, %v3464
    %v3467 = vrot.slane %v3453, 5
    %v3468 = vsel %vm976, %v3467, %v3466
    %v3469 = vrot.slane %v3450, 7
    %v3470 = vsel %vm970, %v3469, %v3448
    %v3471 = vrot.slane %v3452, 6
    %v3472 = vsel %vm973, %v3471, %v3470
    %v3473 = vrot.slane %v3454, 5
    %v3474 = vsel %vm976, %v3473, %v3472
    %v3475 = vrot.slane %v3457, 7
    %v3476 = vsel %vm970, %v3475, %v3455
    %v3477 = vrot.slane %v3459, 6
    %v3478 = vsel %vm973, %v3477, %v3476
    %v3479 = vrot.slane %v3461, 5
    %v3480 = vsel %vm976, %v3479, %v3478
    %v3481 = vrot.slane %v3458, 7
    %v3482 = vsel %vm970, %v3481, %v3456
    %v3483 = vrot.slane %v3460, 6
    %v3484 = vsel %vm973, %v3483, %v3482
    %v3485 = vrot.slane %v3462, 5
    %v3486 = vsel %vm976, %v3485, %v3484
    %v3487 = vpack.c.b16 %v3474, %v3468
    %v3488 = vpack.c.b16 %v3486, %v3480
    %3491 = vst [vmem:[%s189] sm:$0x33] %v3487
    %3492 = vst [vmem:[%s189 + $0x10] sm:$0x33] %v3488
    %v3493 = vsel %vm973, %v3463, %v3447
    %v3494 = vsel %vm976, %v3465, %v3493
    %v3495 = vsel %vm979, %v3467, %v3494
    %v3496 = vsel %vm973, %v3469, %v3448
    %v3497 = vsel %vm976, %v3471, %v3496
    %v3498 = vsel %vm979, %v3473, %v3497
    %v3499 = vsel %vm973, %v3475, %v3455
    %v3500 = vsel %vm976, %v3477, %v3499
    %v3501 = vsel %vm979, %v3479, %v3500
    %v3502 = vsel %vm973, %v3481, %v3456
    %v3503 = vsel %vm976, %v3483, %v3502
    %v3504 = vsel %vm979, %v3485, %v3503
    %v3505 = vpack.c.b16 %v3498, %v3495
    %v3506 = vpack.c.b16 %v3504, %v3501
    %vm3509 = vcmask 1042432
    %vm3510 = vsmask.f32 2306
    %vm3511 = vmand %vm3509, %vm3510
    %vm3512 = vcmask 1046532
    %vm3513 = vsmask.f32 6418
    %vm3514 = vmand %vm3512, %vm3513
    %vm3515 = vmor %vm3514, %vm3511
    %v3516 = vld [vmem:[#allocation3] sm:$0x77]
    %v3517 = vsel %vm3515, %v3505, %v3516
    %3518 = vst [vmem:[#allocation3] sm:$0x77] %v3517
    %v3519 = vld [vmem:[#allocation3 + $0x10] sm:$0x77]
    %v3520 = vsel %vm3515, %v3506, %v3519
    %3521 = vst [vmem:[#allocation3 + $0x10] sm:$0x77] %v3520
    %v3522 = vld [vmem:[#allocation3] sm:$0x33]
    %v3523 = vld [vmem:[#allocation3 + $0x10] sm:$0x33]
    %v3524 = vld [vmem:[%s189] sm:$0x33]
    %v3525 = vld [vmem:[%s189 + $0x10] sm:$0x33]
    %v3526 = vld [vmem:[#allocation3] sm:$0x77]
    %v3527 = vld [vmem:[#allocation3 + $0x10] sm:$0x77]
    %v3528 = vld [vmem:[%s189] sm:$0x77]
    %v3529 = vld [vmem:[%s189 + $0x10] sm:$0x77]
    %v3532 = vunpack.c.l.b16 %v3522
    %v3533 = vunpack.c.h.b16 %v3522
    %v3534 = vunpack.c.l.b16 %v3523
    %v3535 = vunpack.c.h.b16 %v3523
    %v3536 = vpack.c.b16 %v3532, %v3532
    %v3537 = vpack.c.b16 %v3533, %v3533
    %v3538 = vpack.c.b16 %v3534, %v3534
    %v3539 = vpack.c.b16 %v3535, %v3535
    %v3542 = vunpack.c.l.b16 %v3524
    %v3543 = vunpack.c.h.b16 %v3524
    %v3544 = vunpack.c.l.b16 %v3525
    %v3545 = vunpack.c.h.b16 %v3525
    %v3546 = vpack.c.b16 %v3542, %v3542
    %v3547 = vpack.c.b16 %v3543, %v3543
    %v3548 = vpack.c.b16 %v3544, %v3544
    %v3549 = vpack.c.b16 %v3545, %v3545
    %v3552 = vunpack.c.l.b16 %v3526
    %v3553 = vunpack.c.h.b16 %v3526
    %v3554 = vunpack.c.l.b16 %v3527
    %v3555 = vunpack.c.h.b16 %v3527
    %v3556 = vpack.c.b16 %v3552, %v3552
    %v3557 = vpack.c.b16 %v3553, %v3553
    %v3558 = vpack.c.b16 %v3554, %v3554
    %v3559 = vpack.c.b16 %v3555, %v3555
    %v3561 = vshrl.u32 %v3556, 16
    %v3563 = vshll.u32 %v3556, 16
    %v3565 = vrot.slane %v3563, 1
    %v3566 = vor.u32 %v3561, %v3565
    %v3568 = vshrl.u32 %v3557, 16
    %v3570 = vshll.u32 %v3557, 16
    %v3572 = vrot.slane %v3570, 1
    %v3573 = vor.u32 %v3568, %v3572
    %v3575 = vshrl.u32 %v3558, 16
    %v3577 = vshll.u32 %v3558, 16
    %v3579 = vrot.slane %v3577, 1
    %v3580 = vor.u32 %v3575, %v3579
    %v3582 = vshrl.u32 %v3559, 16
    %v3584 = vshll.u32 %v3559, 16
    %v3586 = vrot.slane %v3584, 1
    %v3587 = vor.u32 %v3582, %v3586
    %v3590 = vunpack.c.l.b16 %v3528
    %v3591 = vunpack.c.h.b16 %v3528
    %v3592 = vunpack.c.l.b16 %v3529
    %v3593 = vunpack.c.h.b16 %v3529
    %v3594 = vpack.c.b16 %v3590, %v3590
    %v3595 = vpack.c.b16 %v3591, %v3591
    %v3596 = vpack.c.b16 %v3592, %v3592
    %v3597 = vpack.c.b16 %v3593, %v3593
    %v3599 = vshrl.u32 %v3594, 16
    %v3601 = vshll.u32 %v3594, 16
    %v3603 = vrot.slane %v3601, 1
    %v3604 = vor.u32 %v3599, %v3603
    %v3606 = vshrl.u32 %v3595, 16
    %v3608 = vshll.u32 %v3595, 16
    %v3610 = vrot.slane %v3608, 1
    %v3611 = vor.u32 %v3606, %v3610
    %v3613 = vshrl.u32 %v3596, 16
    %v3615 = vshll.u32 %v3596, 16
    %v3617 = vrot.slane %v3615, 1
    %v3618 = vor.u32 %v3613, %v3617
    %v3620 = vshrl.u32 %v3597, 16
    %v3622 = vshll.u32 %v3597, 16
    %v3624 = vrot.slane %v3622, 1
    %v3625 = vor.u32 %v3620, %v3624
    %v3626 = vcombine.low %v3536, %v3537
    %v3627 = vcombine.low %v3546, %v3547
    %v3629 = vunpack.c.l.s4 1983009808
    %v3630 = vunpack.c.0.s8 %v3629
    %v3631 = vlaneseq
    %v3632 = vshrl.u32 %v3631, 7
    %v3633 = vsub.s32 %v3630, %v3632
    %v3634 = vrot.slane %v3626, %v3633
    %v3636 = vunpack.c.l.s4 1983009808
    %v3637 = vunpack.c.0.s8 %v3636
    %v3638 = vlaneseq
    %v3639 = vshrl.u32 %v3638, 7
    %v3640 = vsub.s32 %v3637, %v3639
    %v3641 = vrot.slane %v3627, %v3640
    %v3642 = vcombine.low %v3634, %v3641
    %v3643 = vcombine.low %v3566, %v3573
    %v3644 = vcombine.low %v3604, %v3611
    %v3646 = vunpack.c.l.s4 1983009808
    %v3647 = vunpack.c.0.s8 %v3646
    %v3648 = vlaneseq
    %v3649 = vshrl.u32 %v3648, 7
    %v3650 = vsub.s32 %v3647, %v3649
    %v3651 = vrot.slane %v3643, %v3650
    %v3653 = vunpack.c.l.s4 1983009808
    %v3654 = vunpack.c.0.s8 %v3653
    %v3655 = vlaneseq
    %v3656 = vshrl.u32 %v3655, 7
    %v3657 = vsub.s32 %v3654, %v3656
    %v3658 = vrot.slane %v3644, %v3657
    %v3659 = vcombine.low %v3651, %v3658
    %v3660 = vcombine.low %v3538, %v3539
    %v3661 = vcombine.low %v3548, %v3549
    %v3663 = vunpack.c.l.s4 1983009808
    %v3664 = vunpack.c.0.s8 %v3663
    %v3665 = vlaneseq
    %v3666 = vshrl.u32 %v3665, 7
    %v3667 = vsub.s32 %v3664, %v3666
    %v3668 = vrot.slane %v3660, %v3667
    %v3670 = vunpack.c.l.s4 1983009808
    %v3671 = vunpack.c.0.s8 %v3670
    %v3672 = vlaneseq
    %v3673 = vshrl.u32 %v3672, 7
    %v3674 = vsub.s32 %v3671, %v3673
    %v3675 = vrot.slane %v3661, %v3674
    %v3676 = vcombine.low %v3668, %v3675
    %v3677 = vcombine.low %v3580, %v3587
    %v3678 = vcombine.low %v3618, %v3625
    %v3680 = vunpack.c.l.s4 1983009808
    %v3681 = vunpack.c.0.s8 %v3680
    %v3682 = vlaneseq
    %v3683 = vshrl.u32 %v3682, 7
    %v3684 = vsub.s32 %v3681, %v3683
    %v3685 = vrot.slane %v3677, %v3684
    %v3687 = vunpack.c.l.s4 1983009808
    %v3688 = vunpack.c.0.s8 %v3687
    %v3689 = vlaneseq
    %v3690 = vshrl.u32 %v3689, 7
    %v3691 = vsub.s32 %v3688, %v3690
    %v3692 = vrot.slane %v3678, %v3691
    %v3693 = vcombine.low %v3685, %v3692
    %v3694 = vld [vmem:[#allocation9] sm:$0xff]
    %v3695 = vld [vmem:[#allocation9 + $0x8] sm:$0xff]
    %v3696 = vld [vmem:[#allocation9 + $0x10] sm:$0xff]
    %v3697 = vld [vmem:[#allocation9 + $0x18] sm:$0xff]
    %v3698 = vld [vmem:[#allocation9 + $0x20] sm:$0xff]
    %v3699 = vld [vmem:[#allocation9 + $0x28] sm:$0xff]
    %v3700 = vld [vmem:[#allocation9 + $0x30] sm:$0xff]
    %v3701 = vld [vmem:[#allocation9 + $0x38] sm:$0xff]
    %v3702 = vld [vmem:[#allocation9 + $0x40] sm:$0xff]
    %v3703 = vld [vmem:[#allocation9 + $0x48] sm:$0xff]
    %v3704 = vld [vmem:[#allocation9 + $0x50] sm:$0xff]
    %v3705 = vld [vmem:[#allocation9 + $0x58] sm:$0xff]
    %v3706 = vld [vmem:[#allocation9 + $0x60] sm:$0xff]
    %v3707 = vld [vmem:[#allocation9 + $0x68] sm:$0xff]
    %v3708 = vld [vmem:[#allocation9 + $0x70] sm:$0xff]
    %v3709 = vld [vmem:[#allocation9 + $0x78] sm:$0xff]
    %v3710 = vld [vmem:[#allocation9 + $0x80] sm:$0xff]
    %v3711 = vld [vmem:[#allocation9 + $0x88] sm:$0xff]
    %v3712 = vld [vmem:[#allocation9 + $0x90] sm:$0xff]
    %v3713 = vld [vmem:[#allocation9 + $0x98] sm:$0xff]
    %v3714 = vld [vmem:[#allocation9 + $0xa0] sm:$0xff]
    %v3715 = vld [vmem:[#allocation9 + $0xa8] sm:$0xff]
    %v3716 = vld [vmem:[#allocation9 + $0xb0] sm:$0xff]
    %v3717 = vld [vmem:[#allocation9 + $0xb8] sm:$0xff]
    %v3718 = vld [vmem:[#allocation9 + $0xc0] sm:$0xff]
    %v3719 = vld [vmem:[#allocation9 + $0xc8] sm:$0xff]
    %v3720 = vld [vmem:[#allocation9 + $0xd0] sm:$0xff]
    %v3721 = vld [vmem:[#allocation9 + $0xd8] sm:$0xff]
    %v3722 = vld [vmem:[#allocation9 + $0xe0] sm:$0xff]
    %v3723 = vld [vmem:[#allocation9 + $0xe8] sm:$0xff]
    %v3724 = vld [vmem:[#allocation9 + $0xf0] sm:$0xff]
    %v3725 = vld [vmem:[#allocation9 + $0xf8] sm:$0xff]
    %v3726 = vld [vmem:[#allocation9 + $0x100] sm:$0xff]
    %v3727 = vld [vmem:[#allocation9 + $0x108] sm:$0xff]
    %v3728 = vld [vmem:[#allocation9 + $0x110] sm:$0xff]
    %v3729 = vld [vmem:[#allocation9 + $0x118] sm:$0xff]
    %v3730 = vld [vmem:[#allocation9 + $0x120] sm:$0xff]
    %v3731 = vld [vmem:[#allocation9 + $0x128] sm:$0xff]
    %v3732 = vld [vmem:[#allocation9 + $0x130] sm:$0xff]
    %v3733 = vld [vmem:[#allocation9 + $0x138] sm:$0xff]
    %v3734 = vld [vmem:[#allocation9 + $0x140] sm:$0xff]
    %v3735 = vld [vmem:[#allocation9 + $0x148] sm:$0xff]
    %v3736 = vld [vmem:[#allocation9 + $0x150] sm:$0xff]
    %v3737 = vld [vmem:[#allocation9 + $0x158] sm:$0xff]
    %v3738 = vld [vmem:[#allocation9 + $0x160] sm:$0xff]
    %v3739 = vld [vmem:[#allocation9 + $0x168] sm:$0xff]
    %v3740 = vld [vmem:[#allocation9 + $0x170] sm:$0xff]
    %v3741 = vld [vmem:[#allocation9 + $0x178] sm:$0xff]
    %v3742 = vld [vmem:[#allocation9 + $0x180] sm:$0xff]
    %v3743 = vld [vmem:[#allocation9 + $0x188] sm:$0xff]
    %v3744 = vld [vmem:[#allocation9 + $0x190] sm:$0xff]
    %v3745 = vld [vmem:[#allocation9 + $0x198] sm:$0xff]
    %v3746 = vld [vmem:[#allocation9 + $0x1a0] sm:$0xff]
    %v3747 = vld [vmem:[#allocation9 + $0x1a8] sm:$0xff]
    %v3748 = vld [vmem:[#allocation9 + $0x1b0] sm:$0xff]
    %v3749 = vld [vmem:[#allocation9 + $0x1b8] sm:$0xff]
    %v3750 = vld [vmem:[#allocation9 + $0x1c0] sm:$0xff]
    %v3751 = vld [vmem:[#allocation9 + $0x1c8] sm:$0xff]
    %v3752 = vld [vmem:[#allocation9 + $0x1d0] sm:$0xff]
    %v3753 = vld [vmem:[#allocation9 + $0x1d8] sm:$0xff]
    %v3754 = vld [vmem:[#allocation9 + $0x1e0] sm:$0xff]
    %v3755 = vld [vmem:[#allocation9 + $0x1e8] sm:$0xff]
    %v3756 = vld [vmem:[#allocation9 + $0x1f0] sm:$0xff]
    %v3757 = vld [vmem:[#allocation9 + $0x1f8] sm:$0xff]
    %v3758 = vld [vmem:[#allocation9 + $0x200] sm:$0xff]
    %v3759 = vld [vmem:[#allocation9 + $0x208] sm:$0xff]
    %v3760 = vld [vmem:[#allocation9 + $0x210] sm:$0xff]
    %v3761 = vld [vmem:[#allocation9 + $0x218] sm:$0xff]
    %v3762 = vld [vmem:[#allocation9 + $0x220] sm:$0xff]
    %v3763 = vld [vmem:[#allocation9 + $0x228] sm:$0xff]
    %v3764 = vld [vmem:[#allocation9 + $0x230] sm:$0xff]
    %v3765 = vld [vmem:[#allocation9 + $0x238] sm:$0xff]
    %v3766 = vld [vmem:[#allocation9 + $0x240] sm:$0xff]
    %v3767 = vld [vmem:[#allocation9 + $0x248] sm:$0xff]
    %v3768 = vld [vmem:[#allocation9 + $0x250] sm:$0xff]
    %v3769 = vld [vmem:[#allocation9 + $0x258] sm:$0xff]
    %v3770 = vld [vmem:[#allocation9 + $0x260] sm:$0xff]
    %v3771 = vld [vmem:[#allocation9 + $0x268] sm:$0xff]
    %v3772 = vld [vmem:[#allocation9 + $0x270] sm:$0xff]
    %v3773 = vld [vmem:[#allocation9 + $0x278] sm:$0xff]
    %v3774 = vld [vmem:[#allocation9 + $0x280] sm:$0xff]
    %v3775 = vld [vmem:[#allocation9 + $0x288] sm:$0xff]
    %v3776 = vld [vmem:[#allocation9 + $0x290] sm:$0xff]
    %v3777 = vld [vmem:[#allocation9 + $0x298] sm:$0xff]
    %v3778 = vld [vmem:[#allocation9 + $0x2a0] sm:$0xff]
    %v3779 = vld [vmem:[#allocation9 + $0x2a8] sm:$0xff]
    %v3780 = vld [vmem:[#allocation9 + $0x2b0] sm:$0xff]
    %v3781 = vld [vmem:[#allocation9 + $0x2b8] sm:$0xff]
    %v3782 = vld [vmem:[#allocation9 + $0x2c0] sm:$0xff]
    %v3783 = vld [vmem:[#allocation9 + $0x2c8] sm:$0xff]
    %v3784 = vld [vmem:[#allocation9 + $0x2d0] sm:$0xff]
    %v3785 = vld [vmem:[#allocation9 + $0x2d8] sm:$0xff]
    %v3786 = vld [vmem:[#allocation9 + $0x2e0] sm:$0xff]
    %v3787 = vld [vmem:[#allocation9 + $0x2e8] sm:$0xff]
    %v3788 = vld [vmem:[#allocation9 + $0x2f0] sm:$0xff]
    %v3789 = vld [vmem:[#allocation9 + $0x2f8] sm:$0xff]
    %v3790 = vld [vmem:[#allocation9 + $0x300] sm:$0xff]
    %v3791 = vld [vmem:[#allocation9 + $0x308] sm:$0xff]
    %v3792 = vld [vmem:[#allocation9 + $0x310] sm:$0xff]
    %v3793 = vld [vmem:[#allocation9 + $0x318] sm:$0xff]
    %v3794 = vld [vmem:[#allocation9 + $0x320] sm:$0xff]
    %v3795 = vld [vmem:[#allocation9 + $0x328] sm:$0xff]
    %v3796 = vld [vmem:[#allocation9 + $0x330] sm:$0xff]
    %v3797 = vld [vmem:[#allocation9 + $0x338] sm:$0xff]
    %v3798 = vld [vmem:[#allocation9 + $0x340] sm:$0xff]
    %v3799 = vld [vmem:[#allocation9 + $0x348] sm:$0xff]
    %v3800 = vld [vmem:[#allocation9 + $0x350] sm:$0xff]
    %v3801 = vld [vmem:[#allocation9 + $0x358] sm:$0xff]
    %v3802 = vld [vmem:[#allocation9 + $0x360] sm:$0xff]
    %v3803 = vld [vmem:[#allocation9 + $0x368] sm:$0xff]
    %v3804 = vld [vmem:[#allocation9 + $0x370] sm:$0xff]
    %v3805 = vld [vmem:[#allocation9 + $0x378] sm:$0xff]
    %v3806 = vld [vmem:[#allocation9 + $0x380] sm:$0xff]
    %v3807 = vld [vmem:[#allocation9 + $0x388] sm:$0xff]
    %v3808 = vld [vmem:[#allocation9 + $0x390] sm:$0xff]
    %v3809 = vld [vmem:[#allocation9 + $0x398] sm:$0xff]
    %v3810 = vld [vmem:[#allocation9 + $0x3a0] sm:$0xff]
    %v3811 = vld [vmem:[#allocation9 + $0x3a8] sm:$0xff]
    %v3812 = vld [vmem:[#allocation9 + $0x3b0] sm:$0xff]
    %v3813 = vld [vmem:[#allocation9 + $0x3b8] sm:$0xff]
    %v3814 = vld [vmem:[#allocation9 + $0x3c0] sm:$0xff]
    %v3815 = vld [vmem:[#allocation9 + $0x3c8] sm:$0xff]
    %v3816 = vld [vmem:[#allocation9 + $0x3d0] sm:$0xff]
    %v3817 = vld [vmem:[#allocation9 + $0x3d8] sm:$0xff]
    %v3818 = vld [vmem:[#allocation9 + $0x3e0] sm:$0xff]
    %v3819 = vld [vmem:[#allocation9 + $0x3e8] sm:$0xff]
    %v3820 = vld [vmem:[#allocation9 + $0x3f0] sm:$0xff]
    %v3821 = vld [vmem:[#allocation9 + $0x3f8] sm:$0xff]
    %v3822 = vld [vmem:[%s6] sm:$0x3]
    %v3824 = vlaneseq
    %v3825 = vshrl.u32 %v3824, 7
    %v3826 = vsub.s32 0, %v3825
    %v3827 = vrot.slane %v3822, %v3826
    %v3828 = vlaneseq
    %v3829 = vshrl.u32 %v3828, 7
    %v3830 = vsub.s32 1, %v3829
    %v3831 = vrot.slane %v3822, %v3830
    %v3834 = vcombine.low %v3642, %v3676
    %v3835 = vcombine.high %v3642, %v3676
    %v3837 = vunpack.c.l.s4 1983009808
    %v3838 = vunpack.c.0.s8 %v3837
    %v3839 = vlaneseq
    %v3840 = vshrl.u32 %v3839, 7
    %v3841 = vsub.s32 %v3838, %v3840
    %v3842 = vrot.slane %v3834, %v3841
    %v3844 = vunpack.c.l.s4 1983009808
    %v3845 = vunpack.c.0.s8 %v3844
    %v3846 = vlaneseq
    %v3847 = vshrl.u32 %v3846, 7
    %v3848 = vsub.s32 %v3845, %v3847
    %v3849 = vrot.slane %v3835, %v3848
    %v3850 = vcombine.high %v3842, %v3842
    %v3851 = vcombine.high %v3849, %v3849
    %v3852 = vcombine.low %v3659, %v3693
    %v3853 = vcombine.high %v3659, %v3693
    %v3855 = vunpack.c.l.s4 1983009808
    %v3856 = vunpack.c.0.s8 %v3855
    %v3857 = vlaneseq
    %v3858 = vshrl.u32 %v3857, 7
    %v3859 = vsub.s32 %v3856, %v3858
    %v3860 = vrot.slane %v3852, %v3859
    %v3862 = vunpack.c.l.s4 1983009808
    %v3863 = vunpack.c.0.s8 %v3862
    %v3864 = vlaneseq
    %v3865 = vshrl.u32 %v3864, 7
    %v3866 = vsub.s32 %v3863, %v3865
    %v3867 = vrot.slane %v3853, %v3866
    %v3868 = vcombine.high %v3860, %v3860
    %v3869 = vcombine.high %v3867, %v3867
    %v4006 = vunpack.c.l.b16 %v3694
    %v4007 = vunpack.c.h.b16 %v3694
    %v4008 = vunpack.c.l.b16 %v3695
    %v4009 = vunpack.c.h.b16 %v3695
    %v4010 = vunpack.c.l.b16 %v3696
    %v4011 = vunpack.c.h.b16 %v3696
    %v4012 = vunpack.c.l.b16 %v3697
    %v4013 = vunpack.c.h.b16 %v3697
    %v4014 = vunpack.c.l.b16 %v3698
    %v4015 = vunpack.c.h.b16 %v3698
    %v4016 = vunpack.c.l.b16 %v3699
    %v4017 = vunpack.c.h.b16 %v3699
    %v4018 = vunpack.c.l.b16 %v3700
    %v4019 = vunpack.c.h.b16 %v3700
    %v4020 = vunpack.c.l.b16 %v3701
    %v4021 = vunpack.c.h.b16 %v3701
    %v4022 = vunpack.c.l.b16 %v3702
    %v4023 = vunpack.c.h.b16 %v3702
    %v4024 = vunpack.c.l.b16 %v3703
    %v4025 = vunpack.c.h.b16 %v3703
    %v4026 = vunpack.c.l.b16 %v3704
    %v4027 = vunpack.c.h.b16 %v3704
    %v4028 = vunpack.c.l.b16 %v3705
    %v4029 = vunpack.c.h.b16 %v3705
    %v4030 = vunpack.c.l.b16 %v3706
    %v4031 = vunpack.c.h.b16 %v3706
    %v4032 = vunpack.c.l.b16 %v3707
    %v4033 = vunpack.c.h.b16 %v3707
    %v4034 = vunpack.c.l.b16 %v3708
    %v4035 = vunpack.c.h.b16 %v3708
    %v4036 = vunpack.c.l.b16 %v3709
    %v4037 = vunpack.c.h.b16 %v3709
    %v4038 = vunpack.c.l.b16 %v3710
    %v4039 = vunpack.c.h.b16 %v3710
    %v4040 = vunpack.c.l.b16 %v3711
    %v4041 = vunpack.c.h.b16 %v3711
    %v4042 = vunpack.c.l.b16 %v3712
    %v4043 = vunpack.c.h.b16 %v3712
    %v4044 = vunpack.c.l.b16 %v3713
    %v4045 = vunpack.c.h.b16 %v3713
    %v4046 = vunpack.c.l.b16 %v3714
    %v4047 = vunpack.c.h.b16 %v3714
    %v4048 = vunpack.c.l.b16 %v3715
    %v4049 = vunpack.c.h.b16 %v3715
    %v4050 = vunpack.c.l.b16 %v3716
    %v4051 = vunpack.c.h.b16 %v3716
    %v4052 = vunpack.c.l.b16 %v3717
    %v4053 = vunpack.c.h.b16 %v3717
    %v4054 = vunpack.c.l.b16 %v3718
    %v4055 = vunpack.c.h.b16 %v3718
    %v4056 = vunpack.c.l.b16 %v3719
    %v4057 = vunpack.c.h.b16 %v3719
    %v4058 = vunpack.c.l.b16 %v3720
    %v4059 = vunpack.c.h.b16 %v3720
    %v4060 = vunpack.c.l.b16 %v3721
    %v4061 = vunpack.c.h.b16 %v3721
    %v4062 = vunpack.c.l.b16 %v3722
    %v4063 = vunpack.c.h.b16 %v3722
    %v4064 = vunpack.c.l.b16 %v3723
    %v4065 = vunpack.c.h.b16 %v3723
    %v4066 = vunpack.c.l.b16 %v3724
    %v4067 = vunpack.c.h.b16 %v3724
    %v4068 = vunpack.c.l.b16 %v3725
    %v4069 = vunpack.c.h.b16 %v3725
    %v4070 = vunpack.c.l.b16 %v3726
    %v4071 = vunpack.c.h.b16 %v3726
    %v4072 = vunpack.c.l.b16 %v3727
    %v4073 = vunpack.c.h.b16 %v3727
    %v4074 = vunpack.c.l.b16 %v3728
    %v4075 = vunpack.c.h.b16 %v3728
    %v4076 = vunpack.c.l.b16 %v3729
    %v4077 = vunpack.c.h.b16 %v3729
    %v4078 = vunpack.c.l.b16 %v3730
    %v4079 = vunpack.c.h.b16 %v3730
    %v4080 = vunpack.c.l.b16 %v3731
    %v4081 = vunpack.c.h.b16 %v3731
    %v4082 = vunpack.c.l.b16 %v3732
    %v4083 = vunpack.c.h.b16 %v3732
    %v4084 = vunpack.c.l.b16 %v3733
    %v4085 = vunpack.c.h.b16 %v3733
    %v4086 = vunpack.c.l.b16 %v3734
    %v4087 = vunpack.c.h.b16 %v3734
    %v4088 = vunpack.c.l.b16 %v3735
    %v4089 = vunpack.c.h.b16 %v3735
    %v4090 = vunpack.c.l.b16 %v3736
    %v4091 = vunpack.c.h.b16 %v3736
    %v4092 = vunpack.c.l.b16 %v3737
    %v4093 = vunpack.c.h.b16 %v3737
    %v4094 = vunpack.c.l.b16 %v3738
    %v4095 = vunpack.c.h.b16 %v3738
    %v4096 = vunpack.c.l.b16 %v3739
    %v4097 = vunpack.c.h.b16 %v3739
    %v4098 = vunpack.c.l.b16 %v3740
    %v4099 = vunpack.c.h.b16 %v3740
    %v4100 = vunpack.c.l.b16 %v3741
    %v4101 = vunpack.c.h.b16 %v3741
    %v4102 = vunpack.c.l.b16 %v3742
    %v4103 = vunpack.c.h.b16 %v3742
    %v4104 = vunpack.c.l.b16 %v3743
    %v4105 = vunpack.c.h.b16 %v3743
    %v4106 = vunpack.c.l.b16 %v3744
    %v4107 = vunpack.c.h.b16 %v3744
    %v4108 = vunpack.c.l.b16 %v3745
    %v4109 = vunpack.c.h.b16 %v3745
    %v4110 = vunpack.c.l.b16 %v3746
    %v4111 = vunpack.c.h.b16 %v3746
    %v4112 = vunpack.c.l.b16 %v3747
    %v4113 = vunpack.c.h.b16 %v3747
    %v4114 = vunpack.c.l.b16 %v3748
    %v4115 = vunpack.c.h.b16 %v3748
    %v4116 = vunpack.c.l.b16 %v3749
    %v4117 = vunpack.c.h.b16 %v3749
    %v4118 = vunpack.c.l.b16 %v3750
    %v4119 = vunpack.c.h.b16 %v3750
    %v4120 = vunpack.c.l.b16 %v3751
    %v4121 = vunpack.c.h.b16 %v3751
    %v4122 = vunpack.c.l.b16 %v3752
    %v4123 = vunpack.c.h.b16 %v3752
    %v4124 = vunpack.c.l.b16 %v3753
    %v4125 = vunpack.c.h.b16 %v3753
    %v4126 = vunpack.c.l.b16 %v3754
    %v4127 = vunpack.c.h.b16 %v3754
    %v4128 = vunpack.c.l.b16 %v3755
    %v4129 = vunpack.c.h.b16 %v3755
    %v4130 = vunpack.c.l.b16 %v3756
    %v4131 = vunpack.c.h.b16 %v3756
    %v4132 = vunpack.c.l.b16 %v3757
    %v4133 = vunpack.c.h.b16 %v3757
    %v4134 = vunpack.c.l.b16 %v3758
    %v4135 = vunpack.c.h.b16 %v3758
    %v4136 = vunpack.c.l.b16 %v3759
    %v4137 = vunpack.c.h.b16 %v3759
    %v4138 = vunpack.c.l.b16 %v3760
    %v4139 = vunpack.c.h.b16 %v3760
    %v4140 = vunpack.c.l.b16 %v3761
    %v4141 = vunpack.c.h.b16 %v3761
    %v4142 = vunpack.c.l.b16 %v3762
    %v4143 = vunpack.c.h.b16 %v3762
    %v4144 = vunpack.c.l.b16 %v3763
    %v4145 = vunpack.c.h.b16 %v3763
    %v4146 = vunpack.c.l.b16 %v3764
    %v4147 = vunpack.c.h.b16 %v3764
    %v4148 = vunpack.c.l.b16 %v3765
    %v4149 = vunpack.c.h.b16 %v3765
    %v4150 = vunpack.c.l.b16 %v3766
    %v4151 = vunpack.c.h.b16 %v3766
    %v4152 = vunpack.c.l.b16 %v3767
    %v4153 = vunpack.c.h.b16 %v3767
    %v4154 = vunpack.c.l.b16 %v3768
    %v4155 = vunpack.c.h.b16 %v3768
    %v4156 = vunpack.c.l.b16 %v3769
    %v4157 = vunpack.c.h.b16 %v3769
    %v4158 = vunpack.c.l.b16 %v3770
    %v4159 = vunpack.c.h.b16 %v3770
    %v4160 = vunpack.c.l.b16 %v3771
    %v4161 = vunpack.c.h.b16 %v3771
    %v4162 = vunpack.c.l.b16 %v3772
    %v4163 = vunpack.c.h.b16 %v3772
    %v4164 = vunpack.c.l.b16 %v3773
    %v4165 = vunpack.c.h.b16 %v3773
    %v4166 = vunpack.c.l.b16 %v3774
    %v4167 = vunpack.c.h.b16 %v3774
    %v4168 = vunpack.c.l.b16 %v3775
    %v4169 = vunpack.c.h.b16 %v3775
    %v4170 = vunpack.c.l.b16 %v3776
    %v4171 = vunpack.c.h.b16 %v3776
    %v4172 = vunpack.c.l.b16 %v3777
    %v4173 = vunpack.c.h.b16 %v3777
    %v4174 = vunpack.c.l.b16 %v3778
    %v4175 = vunpack.c.h.b16 %v3778
    %v4176 = vunpack.c.l.b16 %v3779
    %v4177 = vunpack.c.h.b16 %v3779
    %v4178 = vunpack.c.l.b16 %v3780
    %v4179 = vunpack.c.h.b16 %v3780
    %v4180 = vunpack.c.l.b16 %v3781
    %v4181 = vunpack.c.h.b16 %v3781
    %v4182 = vunpack.c.l.b16 %v3782
    %v4183 = vunpack.c.h.b16 %v3782
    %v4184 = vunpack.c.l.b16 %v3783
    %v4185 = vunpack.c.h.b16 %v3783
    %v4186 = vunpack.c.l.b16 %v3784
    %v4187 = vunpack.c.h.b16 %v3784
    %v4188 = vunpack.c.l.b16 %v3785
    %v4189 = vunpack.c.h.b16 %v3785
    %v4190 = vunpack.c.l.b16 %v3786
    %v4191 = vunpack.c.h.b16 %v3786
    %v4192 = vunpack.c.l.b16 %v3787
    %v4193 = vunpack.c.h.b16 %v3787
    %v4194 = vunpack.c.l.b16 %v3788
    %v4195 = vunpack.c.h.b16 %v3788
    %v4196 = vunpack.c.l.b16 %v3789
    %v4197 = vunpack.c.h.b16 %v3789
    %v4198 = vunpack.c.l.b16 %v3790
    %v4199 = vunpack.c.h.b16 %v3790
    %v4200 = vunpack.c.l.b16 %v3791
    %v4201 = vunpack.c.h.b16 %v3791
    %v4202 = vunpack.c.l.b16 %v3792
    %v4203 = vunpack.c.h.b16 %v3792
    %v4204 = vunpack.c.l.b16 %v3793
    %v4205 = vunpack.c.h.b16 %v3793
    %v4206 = vunpack.c.l.b16 %v3794
    %v4207 = vunpack.c.h.b16 %v3794
    %v4208 = vunpack.c.l.b16 %v3795
    %v4209 = vunpack.c.h.b16 %v3795
    %v4210 = vunpack.c.l.b16 %v3796
    %v4211 = vunpack.c.h.b16 %v3796
    %v4212 = vunpack.c.l.b16 %v3797
    %v4213 = vunpack.c.h.b16 %v3797
    %v4214 = vunpack.c.l.b16 %v3798
    %v4215 = vunpack.c.h.b16 %v3798
    %v4216 = vunpack.c.l.b16 %v3799
    %v4217 = vunpack.c.h.b16 %v3799
    %v4218 = vunpack.c.l.b16 %v3800
    %v4219 = vunpack.c.h.b16 %v3800
    %v4220 = vunpack.c.l.b16 %v3801
    %v4221 = vunpack.c.h.b16 %v3801
    %v4222 = vunpack.c.l.b16 %v3802
    %v4223 = vunpack.c.h.b16 %v3802
    %v4224 = vunpack.c.l.b16 %v3803
    %v4225 = vunpack.c.h.b16 %v3803
    %v4226 = vunpack.c.l.b16 %v3804
    %v4227 = vunpack.c.h.b16 %v3804
    %v4228 = vunpack.c.l.b16 %v3805
    %v4229 = vunpack.c.h.b16 %v3805
    %v4230 = vunpack.c.l.b16 %v3806
    %v4231 = vunpack.c.h.b16 %v3806
    %v4232 = vunpack.c.l.b16 %v3807
    %v4233 = vunpack.c.h.b16 %v3807
    %v4234 = vunpack.c.l.b16 %v3808
    %v4235 = vunpack.c.h.b16 %v3808
    %v4236 = vunpack.c.l.b16 %v3809
    %v4237 = vunpack.c.h.b16 %v3809
    %v4238 = vunpack.c.l.b16 %v3810
    %v4239 = vunpack.c.h.b16 %v3810
    %v4240 = vunpack.c.l.b16 %v3811
    %v4241 = vunpack.c.h.b16 %v3811
    %v4242 = vunpack.c.l.b16 %v3812
    %v4243 = vunpack.c.h.b16 %v3812
    %v4244 = vunpack.c.l.b16 %v3813
    %v4245 = vunpack.c.h.b16 %v3813
    %v4246 = vunpack.c.l.b16 %v3814
    %v4247 = vunpack.c.h.b16 %v3814
    %v4248 = vunpack.c.l.b16 %v3815
    %v4249 = vunpack.c.h.b16 %v3815
    %v4250 = vunpack.c.l.b16 %v3816
    %v4251 = vunpack.c.h.b16 %v3816
    %v4252 = vunpack.c.l.b16 %v3817
    %v4253 = vunpack.c.h.b16 %v3817
    %v4254 = vunpack.c.l.b16 %v3818
    %v4255 = vunpack.c.h.b16 %v3818
    %v4256 = vunpack.c.l.b16 %v3819
    %v4257 = vunpack.c.h.b16 %v3819
    %v4258 = vunpack.c.l.b16 %v3820
    %v4259 = vunpack.c.h.b16 %v3820
    %v4260 = vunpack.c.l.b16 %v3821
    %v4261 = vunpack.c.h.b16 %v3821
    %v4262 = vpack.c.b16 %v4008, %v4006
    %v4263 = vpack.c.b16 %v4009, %v4007
    %v4264 = vpack.c.b16 %v4012, %v4010
    %v4265 = vpack.c.b16 %v4013, %v4011
    %v4266 = vpack.c.b16 %v4016, %v4014
    %v4267 = vpack.c.b16 %v4017, %v4015
    %v4268 = vpack.c.b16 %v4020, %v4018
    %v4269 = vpack.c.b16 %v4021, %v4019
    %v4270 = vpack.c.b16 %v4024, %v4022
    %v4271 = vpack.c.b16 %v4025, %v4023
    %v4272 = vpack.c.b16 %v4028, %v4026
    %v4273 = vpack.c.b16 %v4029, %v4027
    %v4274 = vpack.c.b16 %v4032, %v4030
    %v4275 = vpack.c.b16 %v4033, %v4031
    %v4276 = vpack.c.b16 %v4036, %v4034
    %v4277 = vpack.c.b16 %v4037, %v4035
    %v4278 = vpack.c.b16 %v4040, %v4038
    %v4279 = vpack.c.b16 %v4041, %v4039
    %v4280 = vpack.c.b16 %v4044, %v4042
    %v4281 = vpack.c.b16 %v4045, %v4043
    %v4282 = vpack.c.b16 %v4048, %v4046
    %v4283 = vpack.c.b16 %v4049, %v4047
    %v4284 = vpack.c.b16 %v4052, %v4050
    %v4285 = vpack.c.b16 %v4053, %v4051
    %v4286 = vpack.c.b16 %v4056, %v4054
    %v4287 = vpack.c.b16 %v4057, %v4055
    %v4288 = vpack.c.b16 %v4060, %v4058
    %v4289 = vpack.c.b16 %v4061, %v4059
    %v4290 = vpack.c.b16 %v4064, %v4062
    %v4291 = vpack.c.b16 %v4065, %v4063
    %v4292 = vpack.c.b16 %v4068, %v4066
    %v4293 = vpack.c.b16 %v4069, %v4067
    %v4294 = vpack.c.b16 %v4072, %v4070
    %v4295 = vpack.c.b16 %v4073, %v4071
    %v4296 = vpack.c.b16 %v4076, %v4074
    %v4297 = vpack.c.b16 %v4077, %v4075
    %v4298 = vpack.c.b16 %v4080, %v4078
    %v4299 = vpack.c.b16 %v4081, %v4079
    %v4300 = vpack.c.b16 %v4084, %v4082
    %v4301 = vpack.c.b16 %v4085, %v4083
    %v4302 = vpack.c.b16 %v4088, %v4086
    %v4303 = vpack.c.b16 %v4089, %v4087
    %v4304 = vpack.c.b16 %v4092, %v4090
    %v4305 = vpack.c.b16 %v4093, %v4091
    %v4306 = vpack.c.b16 %v4096, %v4094
    %v4307 = vpack.c.b16 %v4097, %v4095
    %v4308 = vpack.c.b16 %v4100, %v4098
    %v4309 = vpack.c.b16 %v4101, %v4099
    %v4310 = vpack.c.b16 %v4104, %v4102
    %v4311 = vpack.c.b16 %v4105, %v4103
    %v4312 = vpack.c.b16 %v4108, %v4106
    %v4313 = vpack.c.b16 %v4109, %v4107
    %v4314 = vpack.c.b16 %v4112, %v4110
    %v4315 = vpack.c.b16 %v4113, %v4111
    %v4316 = vpack.c.b16 %v4116, %v4114
    %v4317 = vpack.c.b16 %v4117, %v4115
    %v4318 = vpack.c.b16 %v4120, %v4118
    %v4319 = vpack.c.b16 %v4121, %v4119
    %v4320 = vpack.c.b16 %v4124, %v4122
    %v4321 = vpack.c.b16 %v4125, %v4123
    %v4322 = vpack.c.b16 %v4128, %v4126
    %v4323 = vpack.c.b16 %v4129, %v4127
    %v4324 = vpack.c.b16 %v4132, %v4130
    %v4325 = vpack.c.b16 %v4133, %v4131
    %v4326 = vpack.c.b16 %v4136, %v4134
    %v4327 = vpack.c.b16 %v4137, %v4135
    %v4328 = vpack.c.b16 %v4140, %v4138
    %v4329 = vpack.c.b16 %v4141, %v4139
    %v4330 = vpack.c.b16 %v4144, %v4142
    %v4331 = vpack.c.b16 %v4145, %v4143
    %v4332 = vpack.c.b16 %v4148, %v4146
    %v4333 = vpack.c.b16 %v4149, %v4147
    %v4334 = vpack.c.b16 %v4152, %v4150
    %v4335 = vpack.c.b16 %v4153, %v4151
    %v4336 = vpack.c.b16 %v4156, %v4154
    %v4337 = vpack.c.b16 %v4157, %v4155
    %v4338 = vpack.c.b16 %v4160, %v4158
    %v4339 = vpack.c.b16 %v4161, %v4159
    %v4340 = vpack.c.b16 %v4164, %v4162
    %v4341 = vpack.c.b16 %v4165, %v4163
    %v4342 = vpack.c.b16 %v4168, %v4166
    %v4343 = vpack.c.b16 %v4169, %v4167
    %v4344 = vpack.c.b16 %v4172, %v4170
    %v4345 = vpack.c.b16 %v4173, %v4171
    %v4346 = vpack.c.b16 %v4176, %v4174
    %v4347 = vpack.c.b16 %v4177, %v4175
    %v4348 = vpack.c.b16 %v4180, %v4178
    %v4349 = vpack.c.b16 %v4181, %v4179
    %v4350 = vpack.c.b16 %v4184, %v4182
    %v4351 = vpack.c.b16 %v4185, %v4183
    %v4352 = vpack.c.b16 %v4188, %v4186
    %v4353 = vpack.c.b16 %v4189, %v4187
    %v4354 = vpack.c.b16 %v4192, %v4190
    %v4355 = vpack.c.b16 %v4193, %v4191
    %v4356 = vpack.c.b16 %v4196, %v4194
    %v4357 = vpack.c.b16 %v4197, %v4195
    %v4358 = vpack.c.b16 %v4200, %v4198
    %v4359 = vpack.c.b16 %v4201, %v4199
    %v4360 = vpack.c.b16 %v4204, %v4202
    %v4361 = vpack.c.b16 %v4205, %v4203
    %v4362 = vpack.c.b16 %v4208, %v4206
    %v4363 = vpack.c.b16 %v4209, %v4207
    %v4364 = vpack.c.b16 %v4212, %v4210
    %v4365 = vpack.c.b16 %v4213, %v4211
    %v4366 = vpack.c.b16 %v4216, %v4214
    %v4367 = vpack.c.b16 %v4217, %v4215
    %v4368 = vpack.c.b16 %v4220, %v4218
    %v4369 = vpack.c.b16 %v4221, %v4219
    %v4370 = vpack.c.b16 %v4224, %v4222
    %v4371 = vpack.c.b16 %v4225, %v4223
    %v4372 = vpack.c.b16 %v4228, %v4226
    %v4373 = vpack.c.b16 %v4229, %v4227
    %v4374 = vpack.c.b16 %v4232, %v4230
    %v4375 = vpack.c.b16 %v4233, %v4231
    %v4376 = vpack.c.b16 %v4236, %v4234
    %v4377 = vpack.c.b16 %v4237, %v4235
    %v4378 = vpack.c.b16 %v4240, %v4238
    %v4379 = vpack.c.b16 %v4241, %v4239
    %v4380 = vpack.c.b16 %v4244, %v4242
    %v4381 = vpack.c.b16 %v4245, %v4243
    %v4382 = vpack.c.b16 %v4248, %v4246
    %v4383 = vpack.c.b16 %v4249, %v4247
    %v4384 = vpack.c.b16 %v4252, %v4250
    %v4385 = vpack.c.b16 %v4253, %v4251
    %v4386 = vpack.c.b16 %v4256, %v4254
    %v4387 = vpack.c.b16 %v4257, %v4255
    %v4388 = vpack.c.b16 %v4260, %v4258
    %v4389 = vpack.c.b16 %v4261, %v4259
    %4518 = vmatprep.subr.bf16.mxu0 %v4263
    %4519 = vmatpush1.bf16.msra.mxu0 %v4262
    %4520 = vmatprep.subr.bf16.mxu0 %v4265
    %4521 = vmatpush1.bf16.msra.mxu0 %v4264
    %4522 = vmatprep.subr.bf16.mxu0 %v4267
    %4523 = vmatpush1.bf16.msra.mxu0 %v4266
    %4524 = vmatprep.subr.bf16.mxu0 %v4269
    %4525 = vmatpush1.bf16.msra.mxu0 %v4268
    %4526 = vmatprep.subr.bf16.mxu0 %v4271
    %4527 = vmatpush1.bf16.msra.mxu0 %v4270
    %4528 = vmatprep.subr.bf16.mxu0 %v4273
    %4529 = vmatpush1.bf16.msra.mxu0 %v4272
    %4530 = vmatprep.subr.bf16.mxu0 %v4275
    %4531 = vmatpush1.bf16.msra.mxu0 %v4274
    %4532 = vmatprep.subr.bf16.mxu0 %v4277
    %4533 = vmatpush1.bf16.msra.mxu0 %v4276
    %4534 = vmatprep.subr.bf16.mxu0 %v4279
    %4535 = vmatpush1.bf16.msra.mxu0 %v4278
    %4536 = vmatprep.subr.bf16.mxu0 %v4281
    %4537 = vmatpush1.bf16.msra.mxu0 %v4280
    %4538 = vmatprep.subr.bf16.mxu0 %v4283
    %4539 = vmatpush1.bf16.msra.mxu0 %v4282
    %4540 = vmatprep.subr.bf16.mxu0 %v4285
    %4541 = vmatpush1.bf16.msra.mxu0 %v4284
    %4542 = vmatprep.subr.bf16.mxu0 %v4287
    %4543 = vmatpush1.bf16.msra.mxu0 %v4286
    %4544 = vmatprep.subr.bf16.mxu0 %v4289
    %4545 = vmatpush1.bf16.msra.mxu0 %v4288
    %4546 = vmatprep.subr.bf16.mxu0 %v4291
    %4547 = vmatpush1.bf16.msra.mxu0 %v4290
    %4548 = vmatprep.subr.bf16.mxu0 %v4293
    %4549 = vmatpush1.bf16.msra.mxu0 %v4292
    %4550 = vmatprep.mubr.bf16.mxu0 %v3850
    %4551 = vmatmul.mubr.bf16.gmra.mrb[0].mxu0 %v3842
    %v4552 = vpop.f32.mrb[0].mxu0
    %v4553 = vadd.f32 %v3827, %v4552
    %v4554 = vpop.f32.mrb[0].mxu0
    %v4555 = vadd.f32 %v3831, %v4554
    %v4556 = vpop.f32.mrb[0].mxu0
    %v4557 = vpop.f32.mrb[0].mxu0
    %4558 = vdwg.mxu0
    %4559 = vmatprep.subr.bf16.mxu0 %v4295
    %4560 = vmatpush1.bf16.msra.mxu0 %v4294
    %4561 = vmatprep.subr.bf16.mxu0 %v4297
    %4562 = vmatpush1.bf16.msra.mxu0 %v4296
    %4563 = vmatprep.subr.bf16.mxu0 %v4299
    %4564 = vmatpush1.bf16.msra.mxu0 %v4298
    %4565 = vmatprep.subr.bf16.mxu0 %v4301
    %4566 = vmatpush1.bf16.msra.mxu0 %v4300
    %4567 = vmatprep.subr.bf16.mxu0 %v4303
    %4568 = vmatpush1.bf16.msra.mxu0 %v4302
    %4569 = vmatprep.subr.bf16.mxu0 %v4305
    %4570 = vmatpush1.bf16.msra.mxu0 %v4304
    %4571 = vmatprep.subr.bf16.mxu0 %v4307
    %4572 = vmatpush1.bf16.msra.mxu0 %v4306
    %4573 = vmatprep.subr.bf16.mxu0 %v4309
    %4574 = vmatpush1.bf16.msra.mxu0 %v4308
    %4575 = vmatprep.subr.bf16.mxu0 %v4311
    %4576 = vmatpush1.bf16.msra.mxu0 %v4310
    %4577 = vmatprep.subr.bf16.mxu0 %v4313
    %4578 = vmatpush1.bf16.msra.mxu0 %v4312
    %4579 = vmatprep.subr.bf16.mxu0 %v4315
    %4580 = vmatpush1.bf16.msra.mxu0 %v4314
    %4581 = vmatprep.subr.bf16.mxu0 %v4317
    %4582 = vmatpush1.bf16.msra.mxu0 %v4316
    %4583 = vmatprep.subr.bf16.mxu0 %v4319
    %4584 = vmatpush1.bf16.msra.mxu0 %v4318
    %4585 = vmatprep.subr.bf16.mxu0 %v4321
    %4586 = vmatpush1.bf16.msra.mxu0 %v4320
    %4587 = vmatprep.subr.bf16.mxu0 %v4323
    %4588 = vmatpush1.bf16.msra.mxu0 %v4322
    %4589 = vmatprep.subr.bf16.mxu0 %v4325
    %4590 = vmatpush1.bf16.msra.mxu0 %v4324
    %4591 = vmatprep.mubr.bf16.mxu0 %v3851
    %4592 = vmatmul.mubr.bf16.gmra.mrb[0].mxu0 %v3849
    %v4593 = vpop.f32.mrb[0].mxu0
    %v4594 = vadd.f32 %v4553, %v4593
    %v4595 = vpop.f32.mrb[0].mxu0
    %v4596 = vadd.f32 %v4555, %v4595
    %v4597 = vpop.f32.mrb[0].mxu0
    %v4598 = vpop.f32.mrb[0].mxu0
    %4599 = vdwg.mxu0
    %4600 = vmatprep.subr.bf16.mxu0 %v4327
    %4601 = vmatpush1.bf16.msra.mxu0 %v4326
    %4602 = vmatprep.subr.bf16.mxu0 %v4329
    %4603 = vmatpush1.bf16.msra.mxu0 %v4328
    %4604 = vmatprep.subr.bf16.mxu0 %v4331
    %4605 = vmatpush1.bf16.msra.mxu0 %v4330
    %4606 = vmatprep.subr.bf16.mxu0 %v4333
    %4607 = vmatpush1.bf16.msra.mxu0 %v4332
    %4608 = vmatprep.subr.bf16.mxu0 %v4335
    %4609 = vmatpush1.bf16.msra.mxu0 %v4334
    %4610 = vmatprep.subr.bf16.mxu0 %v4337
    %4611 = vmatpush1.bf16.msra.mxu0 %v4336
    %4612 = vmatprep.subr.bf16.mxu0 %v4339
    %4613 = vmatpush1.bf16.msra.mxu0 %v4338
    %4614 = vmatprep.subr.bf16.mxu0 %v4341
    %4615 = vmatpush1.bf16.msra.mxu0 %v4340
    %4616 = vmatprep.subr.bf16.mxu0 %v4343
    %4617 = vmatpush1.bf16.msra.mxu0 %v4342
    %4618 = vmatprep.subr.bf16.mxu0 %v4345
    %4619 = vmatpush1.bf16.msra.mxu0 %v4344
    %4620 = vmatprep.subr.bf16.mxu0 %v4347
    %4621 = vmatpush1.bf16.msra.mxu0 %v4346
    %4622 = vmatprep.subr.bf16.mxu0 %v4349
    %4623 = vmatpush1.bf16.msra.mxu0 %v4348
    %4624 = vmatprep.subr.bf16.mxu0 %v4351
    %4625 = vmatpush1.bf16.msra.mxu0 %v4350
    %4626 = vmatprep.subr.bf16.mxu0 %v4353
    %4627 = vmatpush1.bf16.msra.mxu0 %v4352
    %4628 = vmatprep.subr.bf16.mxu0 %v4355
    %4629 = vmatpush1.bf16.msra.mxu0 %v4354
    %4630 = vmatprep.subr.bf16.mxu0 %v4357
    %4631 = vmatpush1.bf16.msra.mxu0 %v4356
    %4632 = vmatprep.mubr.bf16.mxu0 %v3868
    %4633 = vmatmul.mubr.bf16.gmra.mrb[0].mxu0 %v3860
    %v4634 = vpop.f32.mrb[0].mxu0
    %v4635 = vadd.f32 %v4594, %v4634
    %v4636 = vpop.f32.mrb[0].mxu0
    %v4637 = vadd.f32 %v4596, %v4636
    %v4638 = vpop.f32.mrb[0].mxu0
    %v4639 = vpop.f32.mrb[0].mxu0
    %4640 = vdwg.mxu0
    %4641 = vmatprep.subr.bf16.mxu0 %v4359
    %4642 = vmatpush1.bf16.msra.mxu0 %v4358
    %4643 = vmatprep.subr.bf16.mxu0 %v4361
    %4644 = vmatpush1.bf16.msra.mxu0 %v4360
    %4645 = vmatprep.subr.bf16.mxu0 %v4363
    %4646 = vmatpush1.bf16.msra.mxu0 %v4362
    %4647 = vmatprep.subr.bf16.mxu0 %v4365
    %4648 = vmatpush1.bf16.msra.mxu0 %v4364
    %4649 = vmatprep.subr.bf16.mxu0 %v4367
    %4650 = vmatpush1.bf16.msra.mxu0 %v4366
    %4651 = vmatprep.subr.bf16.mxu0 %v4369
    %4652 = vmatpush1.bf16.msra.mxu0 %v4368
    %4653 = vmatprep.subr.bf16.mxu0 %v4371
    %4654 = vmatpush1.bf16.msra.mxu0 %v4370
    %4655 = vmatprep.subr.bf16.mxu0 %v4373
    %4656 = vmatpush1.bf16.msra.mxu0 %v4372
    %4657 = vmatprep.subr.bf16.mxu0 %v4375
    %4658 = vmatpush1.bf16.msra.mxu0 %v4374
    %4659 = vmatprep.subr.bf16.mxu0 %v4377
    %4660 = vmatpush1.bf16.msra.mxu0 %v4376
    %4661 = vmatprep.subr.bf16.mxu0 %v4379
    %4662 = vmatpush1.bf16.msra.mxu0 %v4378
    %4663 = vmatprep.subr.bf16.mxu0 %v4381
    %4664 = vmatpush1.bf16.msra.mxu0 %v4380
    %4665 = vmatprep.subr.bf16.mxu0 %v4383
    %4666 = vmatpush1.bf16.msra.mxu0 %v4382
    %4667 = vmatprep.subr.bf16.mxu0 %v4385
    %4668 = vmatpush1.bf16.msra.mxu0 %v4384
    %4669 = vmatprep.subr.bf16.mxu0 %v4387
    %4670 = vmatpush1.bf16.msra.mxu0 %v4386
    %4671 = vmatprep.subr.bf16.mxu0 %v4389
    %4672 = vmatpush1.bf16.msra.mxu0 %v4388
    %4673 = vmatprep.mubr.bf16.mxu0 %v3869
    %4674 = vmatmul.mubr.bf16.gmra.mrb[0].mxu0 %v3867
    %v4675 = vpop.f32.mrb[0].mxu0
    %v4676 = vadd.f32 %v4635, %v4675
    %v4677 = vpop.f32.mrb[0].mxu0
    %v4678 = vadd.f32 %v4637, %v4677
    %v4679 = vpop.f32.mrb[0].mxu0
    %v4680 = vpop.f32.mrb[0].mxu0
    %4681 = vdwg.mxu0
    %v4682 = vmax.f32 %v4676, 0.0
    %v4683 = vmax.f32 %v4678, 0.0
    %v4684 = vpack.c.bf16 %v4682, %v4682
    %v4685 = vpack.c.bf16 %v4683, %v4683
    %v4688 = vcombine.low %v4684, %v4685
    %v4690 = vunpack.c.l.s4 1983009808
    %v4691 = vunpack.c.0.s8 %v4690
    %v4692 = vlaneseq
    %v4693 = vshrl.u32 %v4692, 7
    %v4694 = vsub.s32 %v4691, %v4693
    %v4695 = vrot.slane %v4688, %v4694
    %v4696 = vcombine.high %v4695, %v4695
    %v4698 = vunpack.c.l.s4 1983009808
    %v4699 = vunpack.c.0.s8 %v4698
    %v4700 = vlaneseq
    %v4701 = vshrl.u32 %v4700, 7
    %v4702 = vsub.s32 %v4699, %v4701
    %v4703 = vrot.slane %v4695, %v4702
    %v4705 = vunpack.c.l.s4 1983009808
    %v4706 = vunpack.c.0.s8 %v4705
    %v4707 = vlaneseq
    %v4708 = vshrl.u32 %v4707, 7
    %v4709 = vsub.s32 %v4706, %v4708
    %v4710 = vrot.slane %v4696, %v4709
    %v4712 = vshrl.u32 %v4703, 16
    %v4714 = vrot.slane %v4712, 7
    %v4715 = vshll.u32 %v4703, 16
    %v4717 = vor.u32 %v4714, %v4715
    %v4719 = vshrl.u32 %v4710, 16
    %v4721 = vrot.slane %v4719, 7
    %v4722 = vshll.u32 %v4710, 16
    %v4724 = vor.u32 %v4721, %v4722
    %v4727 = vld [vmem:[#allocation4] sm:$0x77]
    %v4728 = vsel %vm3515, %v4717, %v4727
    %4729 = vst [vmem:[#allocation4] sm:$0x77] %v4728
    %v4730 = vld [vmem:[#allocation4 + $0x8] sm:$0x77]
    %v4731 = vsel %vm3515, %v4724, %v4730
    %4732 = vst [vmem:[#allocation4 + $0x8] sm:$0x77] %v4731
    %v4733 = vld [vmem:[#allocation4] sm:$0x33]
    %v4734 = vld [vmem:[#allocation4 + $0x8] sm:$0x33]
    %v4735 = vld [vmem:[#allocation4] sm:$0x77]
    %v4736 = vld [vmem:[#allocation4 + $0x8] sm:$0x77]
    %v4737 = vld [vmem:[#allocation4] sm:$0x66]
    %v4738 = vld [vmem:[#allocation4 + $0x8] sm:$0x66]
    %v4741 = vunpack.c.l.b16 %v4733
    %v4742 = vunpack.c.h.b16 %v4733
    %v4743 = vunpack.c.l.b16 %v4734
    %v4744 = vunpack.c.h.b16 %v4734
    %v4745 = vpack.c.b16 %v4741, %v4741
    %v4746 = vpack.c.b16 %v4742, %v4742
    %v4747 = vpack.c.b16 %v4743, %v4743
    %v4748 = vpack.c.b16 %v4744, %v4744
    %v4751 = vunpack.c.l.b16 %v4735
    %v4752 = vunpack.c.h.b16 %v4735
    %v4753 = vunpack.c.l.b16 %v4736
    %v4754 = vunpack.c.h.b16 %v4736
    %v4755 = vpack.c.b16 %v4751, %v4751
    %v4756 = vpack.c.b16 %v4752, %v4752
    %v4757 = vpack.c.b16 %v4753, %v4753
    %v4758 = vpack.c.b16 %v4754, %v4754
    %v4760 = vshrl.u32 %v4755, 16
    %v4762 = vshll.u32 %v4755, 16
    %v4764 = vrot.slane %v4762, 1
    %v4765 = vor.u32 %v4760, %v4764
    %v4767 = vshrl.u32 %v4756, 16
    %v4769 = vshll.u32 %v4756, 16
    %v4771 = vrot.slane %v4769, 1
    %v4772 = vor.u32 %v4767, %v4771
    %v4774 = vshrl.u32 %v4757, 16
    %v4776 = vshll.u32 %v4757, 16
    %v4778 = vrot.slane %v4776, 1
    %v4779 = vor.u32 %v4774, %v4778
    %v4781 = vshrl.u32 %v4758, 16
    %v4783 = vshll.u32 %v4758, 16
    %v4785 = vrot.slane %v4783, 1
    %v4786 = vor.u32 %v4781, %v4785
    %v4787 = vcombine.low %v4745, %v4746
    %v4788 = vcombine.low %v4765, %v4772
    %v4790 = vunpack.c.l.s4 1983009808
    %v4791 = vunpack.c.0.s8 %v4790
    %v4792 = vlaneseq
    %v4793 = vshrl.u32 %v4792, 7
    %v4794 = vsub.s32 %v4791, %v4793
    %v4795 = vrot.slane %v4787, %v4794
    %v4797 = vunpack.c.l.s4 1983009808
    %v4798 = vunpack.c.0.s8 %v4797
    %v4799 = vlaneseq
    %v4800 = vshrl.u32 %v4799, 7
    %v4801 = vsub.s32 %v4798, %v4800
    %v4802 = vrot.slane %v4788, %v4801
    %v4803 = vcombine.low %v4795, %v4802
    %v4804 = vcombine.low %v4747, %v4748
    %v4805 = vcombine.low %v4779, %v4786
    %v4807 = vunpack.c.l.s4 1983009808
    %v4808 = vunpack.c.0.s8 %v4807
    %v4809 = vlaneseq
    %v4810 = vshrl.u32 %v4809, 7
    %v4811 = vsub.s32 %v4808, %v4810
    %v4812 = vrot.slane %v4804, %v4811
    %v4814 = vunpack.c.l.s4 1983009808
    %v4815 = vunpack.c.0.s8 %v4814
    %v4816 = vlaneseq
    %v4817 = vshrl.u32 %v4816, 7
    %v4818 = vsub.s32 %v4815, %v4817
    %v4819 = vrot.slane %v4805, %v4818
    %v4820 = vcombine.low %v4812, %v4819
    %v4823 = vunpack.c.l.b16 %v4737
    %v4824 = vunpack.c.h.b16 %v4737
    %v4825 = vunpack.c.l.b16 %v4738
    %v4826 = vunpack.c.h.b16 %v4738
    %v4827 = vpack.c.b16 %v4823, %v4823
    %v4828 = vpack.c.b16 %v4824, %v4824
    %v4829 = vpack.c.b16 %v4825, %v4825
    %v4830 = vpack.c.b16 %v4826, %v4826
    %v4832 = vshrl.u32 %v4827, 16
    %v4834 = vshll.u32 %v4827, 16
    %v4836 = vrot.slane %v4834, 1
    %v4837 = vor.u32 %v4832, %v4836
    %v4839 = vshrl.u32 %v4828, 16
    %v4841 = vshll.u32 %v4828, 16
    %v4843 = vrot.slane %v4841, 1
    %v4844 = vor.u32 %v4839, %v4843
    %v4846 = vshrl.u32 %v4829, 16
    %v4848 = vshll.u32 %v4829, 16
    %v4850 = vrot.slane %v4848, 1
    %v4851 = vor.u32 %v4846, %v4850
    %v4853 = vshrl.u32 %v4830, 16
    %v4855 = vshll.u32 %v4830, 16
    %v4857 = vrot.slane %v4855, 1
    %v4858 = vor.u32 %v4853, %v4857
    %v4859 = vcombine.low %v4755, %v4756
    %v4860 = vcombine.low %v4837, %v4844
    %v4862 = vunpack.c.l.s4 1983009808
    %v4863 = vunpack.c.0.s8 %v4862
    %v4864 = vlaneseq
    %v4865 = vshrl.u32 %v4864, 7
    %v4866 = vsub.s32 %v4863, %v4865
    %v4867 = vrot.slane %v4859, %v4866
    %v4869 = vunpack.c.l.s4 1983009808
    %v4870 = vunpack.c.0.s8 %v4869
    %v4871 = vlaneseq
    %v4872 = vshrl.u32 %v4871, 7
    %v4873 = vsub.s32 %v4870, %v4872
    %v4874 = vrot.slane %v4860, %v4873
    %v4875 = vcombine.low %v4867, %v4874
    %v4876 = vcombine.high %v4867, %v4874
    %v4877 = vcombine.low %v4757, %v4758
    %v4878 = vcombine.low %v4851, %v4858
    %v4880 = vunpack.c.l.s4 1983009808
    %v4881 = vunpack.c.0.s8 %v4880
    %v4882 = vlaneseq
    %v4883 = vshrl.u32 %v4882, 7
    %v4884 = vsub.s32 %v4881, %v4883
    %v4885 = vrot.slane %v4877, %v4884
    %v4887 = vunpack.c.l.s4 1983009808
    %v4888 = vunpack.c.0.s8 %v4887
    %v4889 = vlaneseq
    %v4890 = vshrl.u32 %v4889, 7
    %v4891 = vsub.s32 %v4888, %v4890
    %v4892 = vrot.slane %v4878, %v4891
    %v4893 = vcombine.low %v4885, %v4892
    %v4894 = vcombine.high %v4885, %v4892
    %vm4895 = vsmask.f32 1280
    %vm4896 = vsmask.f32 3336
    %vm4897 = vmor %vm4895, %vm4896
    %vm4898 = vsmask.f32 5392
    %vm4899 = vmor %vm4897, %vm4898
    %vm4900 = vsmask.f32 7448
    %vm4901 = vmor %vm4899, %vm4900
    %v4903 = vshrl.u32 %v4875, 16
    %v4905 = vrot.slane %v4903, 6
    %v4906 = vshll.u32 %v4875, 16
    %v4908 = vrot.slane %v4906, 7
    %v4909 = vor.u32 %v4905, %v4908
    %v4910 = vrot.slane %v4909, 2
    %v4912 = vshll.u32 %v4876, 16
    %v4914 = vrot.slane %v4912, 7
    %v4915 = vsel %vm4901, %v4910, %v4914
    %v4917 = vshrl.u32 %v4893, 16
    %v4919 = vrot.slane %v4917, 6
    %v4920 = vshll.u32 %v4893, 16
    %v4922 = vrot.slane %v4920, 7
    %v4923 = vor.u32 %v4919, %v4922
    %v4924 = vrot.slane %v4923, 2
    %v4926 = vshll.u32 %v4894, 16
    %v4928 = vrot.slane %v4926, 7
    %v4929 = vsel %vm4901, %v4924, %v4928
    %v4930 = vld [vmem:[#allocation11] sm:$0xff]
    %v4931 = vld [vmem:[#allocation11 + $0x8] sm:$0xff]
    %v4932 = vld [vmem:[#allocation11 + $0x10] sm:$0xff]
    %v4933 = vld [vmem:[#allocation11 + $0x18] sm:$0xff]
    %v4934 = vld [vmem:[#allocation11 + $0x20] sm:$0xff]
    %v4935 = vld [vmem:[#allocation11 + $0x28] sm:$0xff]
    %v4936 = vld [vmem:[#allocation11 + $0x30] sm:$0xff]
    %v4937 = vld [vmem:[#allocation11 + $0x38] sm:$0xff]
    %v4938 = vld [vmem:[#allocation11 + $0x40] sm:$0xff]
    %v4939 = vld [vmem:[#allocation11 + $0x48] sm:$0xff]
    %v4940 = vld [vmem:[#allocation11 + $0x50] sm:$0xff]
    %v4941 = vld [vmem:[#allocation11 + $0x58] sm:$0xff]
    %v4942 = vld [vmem:[#allocation11 + $0x60] sm:$0xff]
    %v4943 = vld [vmem:[#allocation11 + $0x68] sm:$0xff]
    %v4944 = vld [vmem:[#allocation11 + $0x70] sm:$0xff]
    %v4945 = vld [vmem:[#allocation11 + $0x78] sm:$0xff]
    %v4946 = vld [vmem:[#allocation11 + $0x80] sm:$0xff]
    %v4947 = vld [vmem:[#allocation11 + $0x88] sm:$0xff]
    %v4948 = vld [vmem:[#allocation11 + $0x90] sm:$0xff]
    %v4949 = vld [vmem:[#allocation11 + $0x98] sm:$0xff]
    %v4950 = vld [vmem:[#allocation11 + $0xa0] sm:$0xff]
    %v4951 = vld [vmem:[#allocation11 + $0xa8] sm:$0xff]
    %v4952 = vld [vmem:[#allocation11 + $0xb0] sm:$0xff]
    %v4953 = vld [vmem:[#allocation11 + $0xb8] sm:$0xff]
    %v4954 = vld [vmem:[#allocation11 + $0xc0] sm:$0xff]
    %v4955 = vld [vmem:[#allocation11 + $0xc8] sm:$0xff]
    %v4956 = vld [vmem:[#allocation11 + $0xd0] sm:$0xff]
    %v4957 = vld [vmem:[#allocation11 + $0xd8] sm:$0xff]
    %v4958 = vld [vmem:[#allocation11 + $0xe0] sm:$0xff]
    %v4959 = vld [vmem:[#allocation11 + $0xe8] sm:$0xff]
    %v4960 = vld [vmem:[#allocation11 + $0xf0] sm:$0xff]
    %v4961 = vld [vmem:[#allocation11 + $0xf8] sm:$0xff]
    %v4962 = vld [vmem:[#allocation11 + $0x100] sm:$0xff]
    %v4963 = vld [vmem:[#allocation11 + $0x108] sm:$0xff]
    %v4964 = vld [vmem:[#allocation11 + $0x110] sm:$0xff]
    %v4965 = vld [vmem:[#allocation11 + $0x118] sm:$0xff]
    %v4966 = vld [vmem:[#allocation11 + $0x120] sm:$0xff]
    %v4967 = vld [vmem:[#allocation11 + $0x128] sm:$0xff]
    %v4968 = vld [vmem:[#allocation11 + $0x130] sm:$0xff]
    %v4969 = vld [vmem:[#allocation11 + $0x138] sm:$0xff]
    %v4970 = vld [vmem:[#allocation11 + $0x140] sm:$0xff]
    %v4971 = vld [vmem:[#allocation11 + $0x148] sm:$0xff]
    %v4972 = vld [vmem:[#allocation11 + $0x150] sm:$0xff]
    %v4973 = vld [vmem:[#allocation11 + $0x158] sm:$0xff]
    %v4974 = vld [vmem:[#allocation11 + $0x160] sm:$0xff]
    %v4975 = vld [vmem:[#allocation11 + $0x168] sm:$0xff]
    %v4976 = vld [vmem:[#allocation11 + $0x170] sm:$0xff]
    %v4977 = vld [vmem:[#allocation11 + $0x178] sm:$0xff]
    %v4978 = vld [vmem:[#allocation11 + $0x180] sm:$0xff]
    %v4979 = vld [vmem:[#allocation11 + $0x188] sm:$0xff]
    %v4980 = vld [vmem:[#allocation11 + $0x190] sm:$0xff]
    %v4981 = vld [vmem:[#allocation11 + $0x198] sm:$0xff]
    %v4982 = vld [vmem:[#allocation11 + $0x1a0] sm:$0xff]
    %v4983 = vld [vmem:[#allocation11 + $0x1a8] sm:$0xff]
    %v4984 = vld [vmem:[#allocation11 + $0x1b0] sm:$0xff]
    %v4985 = vld [vmem:[#allocation11 + $0x1b8] sm:$0xff]
    %v4986 = vld [vmem:[#allocation11 + $0x1c0] sm:$0xff]
    %v4987 = vld [vmem:[#allocation11 + $0x1c8] sm:$0xff]
    %v4988 = vld [vmem:[#allocation11 + $0x1d0] sm:$0xff]
    %v4989 = vld [vmem:[#allocation11 + $0x1d8] sm:$0xff]
    %v4990 = vld [vmem:[#allocation11 + $0x1e0] sm:$0xff]
    %v4991 = vld [vmem:[#allocation11 + $0x1e8] sm:$0xff]
    %v4992 = vld [vmem:[#allocation11 + $0x1f0] sm:$0xff]
    %v4993 = vld [vmem:[#allocation11 + $0x1f8] sm:$0xff]
    %v4994 = vld [vmem:[%s9] sm:$0x3]
    %v4996 = vlaneseq
    %v4997 = vshrl.u32 %v4996, 7
    %v4998 = vsub.s32 0, %v4997
    %v4999 = vrot.slane %v4994, %v4998
    %v5000 = vlaneseq
    %v5001 = vshrl.u32 %v5000, 7
    %v5002 = vsub.s32 1, %v5001
    %v5003 = vrot.slane %v4994, %v5002
    %v5006 = vcombine.low %v4803, %v4820
    %v5007 = vcombine.high %v4803, %v4820
    %v5009 = vunpack.c.l.s4 1983009808
    %v5010 = vunpack.c.0.s8 %v5009
    %v5011 = vlaneseq
    %v5012 = vshrl.u32 %v5011, 7
    %v5013 = vsub.s32 %v5010, %v5012
    %v5014 = vrot.slane %v5006, %v5013
    %v5016 = vunpack.c.l.s4 1983009808
    %v5017 = vunpack.c.0.s8 %v5016
    %v5018 = vlaneseq
    %v5019 = vshrl.u32 %v5018, 7
    %v5020 = vsub.s32 %v5017, %v5019
    %v5021 = vrot.slane %v5007, %v5020
    %v5022 = vcombine.high %v5014, %v5014
    %v5023 = vcombine.high %v5021, %v5021
    %v5092 = vunpack.c.l.b16 %v4930
    %v5093 = vunpack.c.h.b16 %v4930
    %v5094 = vunpack.c.l.b16 %v4931
    %v5095 = vunpack.c.h.b16 %v4931
    %v5096 = vunpack.c.l.b16 %v4932
    %v5097 = vunpack.c.h.b16 %v4932
    %v5098 = vunpack.c.l.b16 %v4933
    %v5099 = vunpack.c.h.b16 %v4933
    %v5100 = vunpack.c.l.b16 %v4934
    %v5101 = vunpack.c.h.b16 %v4934
    %v5102 = vunpack.c.l.b16 %v4935
    %v5103 = vunpack.c.h.b16 %v4935
    %v5104 = vunpack.c.l.b16 %v4936
    %v5105 = vunpack.c.h.b16 %v4936
    %v5106 = vunpack.c.l.b16 %v4937
    %v5107 = vunpack.c.h.b16 %v4937
    %v5108 = vunpack.c.l.b16 %v4938
    %v5109 = vunpack.c.h.b16 %v4938
    %v5110 = vunpack.c.l.b16 %v4939
    %v5111 = vunpack.c.h.b16 %v4939
    %v5112 = vunpack.c.l.b16 %v4940
    %v5113 = vunpack.c.h.b16 %v4940
    %v5114 = vunpack.c.l.b16 %v4941
    %v5115 = vunpack.c.h.b16 %v4941
    %v5116 = vunpack.c.l.b16 %v4942
    %v5117 = vunpack.c.h.b16 %v4942
    %v5118 = vunpack.c.l.b16 %v4943
    %v5119 = vunpack.c.h.b16 %v4943
    %v5120 = vunpack.c.l.b16 %v4944
    %v5121 = vunpack.c.h.b16 %v4944
    %v5122 = vunpack.c.l.b16 %v4945
    %v5123 = vunpack.c.h.b16 %v4945
    %v5124 = vunpack.c.l.b16 %v4946
    %v5125 = vunpack.c.h.b16 %v4946
    %v5126 = vunpack.c.l.b16 %v4947
    %v5127 = vunpack.c.h.b16 %v4947
    %v5128 = vunpack.c.l.b16 %v4948
    %v5129 = vunpack.c.h.b16 %v4948
    %v5130 = vunpack.c.l.b16 %v4949
    %v5131 = vunpack.c.h.b16 %v4949
    %v5132 = vunpack.c.l.b16 %v4950
    %v5133 = vunpack.c.h.b16 %v4950
    %v5134 = vunpack.c.l.b16 %v4951
    %v5135 = vunpack.c.h.b16 %v4951
    %v5136 = vunpack.c.l.b16 %v4952
    %v5137 = vunpack.c.h.b16 %v4952
    %v5138 = vunpack.c.l.b16 %v4953
    %v5139 = vunpack.c.h.b16 %v4953
    %v5140 = vunpack.c.l.b16 %v4954
    %v5141 = vunpack.c.h.b16 %v4954
    %v5142 = vunpack.c.l.b16 %v4955
    %v5143 = vunpack.c.h.b16 %v4955
    %v5144 = vunpack.c.l.b16 %v4956
    %v5145 = vunpack.c.h.b16 %v4956
    %v5146 = vunpack.c.l.b16 %v4957
    %v5147 = vunpack.c.h.b16 %v4957
    %v5148 = vunpack.c.l.b16 %v4958
    %v5149 = vunpack.c.h.b16 %v4958
    %v5150 = vunpack.c.l.b16 %v4959
    %v5151 = vunpack.c.h.b16 %v4959
    %v5152 = vunpack.c.l.b16 %v4960
    %v5153 = vunpack.c.h.b16 %v4960
    %v5154 = vunpack.c.l.b16 %v4961
    %v5155 = vunpack.c.h.b16 %v4961
    %v5156 = vunpack.c.l.b16 %v4962
    %v5157 = vunpack.c.h.b16 %v4962
    %v5158 = vunpack.c.l.b16 %v4963
    %v5159 = vunpack.c.h.b16 %v4963
    %v5160 = vunpack.c.l.b16 %v4964
    %v5161 = vunpack.c.h.b16 %v4964
    %v5162 = vunpack.c.l.b16 %v4965
    %v5163 = vunpack.c.h.b16 %v4965
    %v5164 = vunpack.c.l.b16 %v4966
    %v5165 = vunpack.c.h.b16 %v4966
    %v5166 = vunpack.c.l.b16 %v4967
    %v5167 = vunpack.c.h.b16 %v4967
    %v5168 = vunpack.c.l.b16 %v4968
    %v5169 = vunpack.c.h.b16 %v4968
    %v5170 = vunpack.c.l.b16 %v4969
    %v5171 = vunpack.c.h.b16 %v4969
    %v5172 = vunpack.c.l.b16 %v4970
    %v5173 = vunpack.c.h.b16 %v4970
    %v5174 = vunpack.c.l.b16 %v4971
    %v5175 = vunpack.c.h.b16 %v4971
    %v5176 = vunpack.c.l.b16 %v4972
    %v5177 = vunpack.c.h.b16 %v4972
    %v5178 = vunpack.c.l.b16 %v4973
    %v5179 = vunpack.c.h.b16 %v4973
    %v5180 = vunpack.c.l.b16 %v4974
    %v5181 = vunpack.c.h.b16 %v4974
    %v5182 = vunpack.c.l.b16 %v4975
    %v5183 = vunpack.c.h.b16 %v4975
    %v5184 = vunpack.c.l.b16 %v4976
    %v5185 = vunpack.c.h.b16 %v4976
    %v5186 = vunpack.c.l.b16 %v4977
    %v5187 = vunpack.c.h.b16 %v4977
    %v5188 = vunpack.c.l.b16 %v4978
    %v5189 = vunpack.c.h.b16 %v4978
    %v5190 = vunpack.c.l.b16 %v4979
    %v5191 = vunpack.c.h.b16 %v4979
    %v5192 = vunpack.c.l.b16 %v4980
    %v5193 = vunpack.c.h.b16 %v4980
    %v5194 = vunpack.c.l.b16 %v4981
    %v5195 = vunpack.c.h.b16 %v4981
    %v5196 = vunpack.c.l.b16 %v4982
    %v5197 = vunpack.c.h.b16 %v4982
    %v5198 = vunpack.c.l.b16 %v4983
    %v5199 = vunpack.c.h.b16 %v4983
    %v5200 = vunpack.c.l.b16 %v4984
    %v5201 = vunpack.c.h.b16 %v4984
    %v5202 = vunpack.c.l.b16 %v4985
    %v5203 = vunpack.c.h.b16 %v4985
    %v5204 = vunpack.c.l.b16 %v4986
    %v5205 = vunpack.c.h.b16 %v4986
    %v5206 = vunpack.c.l.b16 %v4987
    %v5207 = vunpack.c.h.b16 %v4987
    %v5208 = vunpack.c.l.b16 %v4988
    %v5209 = vunpack.c.h.b16 %v4988
    %v5210 = vunpack.c.l.b16 %v4989
    %v5211 = vunpack.c.h.b16 %v4989
    %v5212 = vunpack.c.l.b16 %v4990
    %v5213 = vunpack.c.h.b16 %v4990
    %v5214 = vunpack.c.l.b16 %v4991
    %v5215 = vunpack.c.h.b16 %v4991
    %v5216 = vunpack.c.l.b16 %v4992
    %v5217 = vunpack.c.h.b16 %v4992
    %v5218 = vunpack.c.l.b16 %v4993
    %v5219 = vunpack.c.h.b16 %v4993
    %v5220 = vpack.c.b16 %v5094, %v5092
    %v5221 = vpack.c.b16 %v5095, %v5093
    %v5222 = vpack.c.b16 %v5098, %v5096
    %v5223 = vpack.c.b16 %v5099, %v5097
    %v5224 = vpack.c.b16 %v5102, %v5100
    %v5225 = vpack.c.b16 %v5103, %v5101
    %v5226 = vpack.c.b16 %v5106, %v5104
    %v5227 = vpack.c.b16 %v5107, %v5105
    %v5228 = vpack.c.b16 %v5110, %v5108
    %v5229 = vpack.c.b16 %v5111, %v5109
    %v5230 = vpack.c.b16 %v5114, %v5112
    %v5231 = vpack.c.b16 %v5115, %v5113
    %v5232 = vpack.c.b16 %v5118, %v5116
    %v5233 = vpack.c.b16 %v5119, %v5117
    %v5234 = vpack.c.b16 %v5122, %v5120
    %v5235 = vpack.c.b16 %v5123, %v5121
    %v5236 = vpack.c.b16 %v5126, %v5124
    %v5237 = vpack.c.b16 %v5127, %v5125
    %v5238 = vpack.c.b16 %v5130, %v5128
    %v5239 = vpack.c.b16 %v5131, %v5129
    %v5240 = vpack.c.b16 %v5134, %v5132
    %v5241 = vpack.c.b16 %v5135, %v5133
    %v5242 = vpack.c.b16 %v5138, %v5136
    %v5243 = vpack.c.b16 %v5139, %v5137
    %v5244 = vpack.c.b16 %v5142, %v5140
    %v5245 = vpack.c.b16 %v5143, %v5141
    %v5246 = vpack.c.b16 %v5146, %v5144
    %v5247 = vpack.c.b16 %v5147, %v5145
    %v5248 = vpack.c.b16 %v5150, %v5148
    %v5249 = vpack.c.b16 %v5151, %v5149
    %v5250 = vpack.c.b16 %v5154, %v5152
    %v5251 = vpack.c.b16 %v5155, %v5153
    %v5252 = vpack.c.b16 %v5158, %v5156
    %v5253 = vpack.c.b16 %v5159, %v5157
    %v5254 = vpack.c.b16 %v5162, %v5160
    %v5255 = vpack.c.b16 %v5163, %v5161
    %v5256 = vpack.c.b16 %v5166, %v5164
    %v5257 = vpack.c.b16 %v5167, %v5165
    %v5258 = vpack.c.b16 %v5170, %v5168
    %v5259 = vpack.c.b16 %v5171, %v5169
    %v5260 = vpack.c.b16 %v5174, %v5172
    %v5261 = vpack.c.b16 %v5175, %v5173
    %v5262 = vpack.c.b16 %v5178, %v5176
    %v5263 = vpack.c.b16 %v5179, %v5177
    %v5264 = vpack.c.b16 %v5182, %v5180
    %v5265 = vpack.c.b16 %v5183, %v5181
    %v5266 = vpack.c.b16 %v5186, %v5184
    %v5267 = vpack.c.b16 %v5187, %v5185
    %v5268 = vpack.c.b16 %v5190, %v5188
    %v5269 = vpack.c.b16 %v5191, %v5189
    %v5270 = vpack.c.b16 %v5194, %v5192
    %v5271 = vpack.c.b16 %v5195, %v5193
    %v5272 = vpack.c.b16 %v5198, %v5196
    %v5273 = vpack.c.b16 %v5199, %v5197
    %v5274 = vpack.c.b16 %v5202, %v5200
    %v5275 = vpack.c.b16 %v5203, %v5201
    %v5276 = vpack.c.b16 %v5206, %v5204
    %v5277 = vpack.c.b16 %v5207, %v5205
    %v5278 = vpack.c.b16 %v5210, %v5208
    %v5279 = vpack.c.b16 %v5211, %v5209
    %v5280 = vpack.c.b16 %v5214, %v5212
    %v5281 = vpack.c.b16 %v5215, %v5213
    %v5282 = vpack.c.b16 %v5218, %v5216
    %v5283 = vpack.c.b16 %v5219, %v5217
    %5348 = vmatprep.subr.bf16.mxu0 %v5221
    %5349 = vmatpush1.bf16.msra.mxu0 %v5220
    %5350 = vmatprep.subr.bf16.mxu0 %v5223
    %5351 = vmatpush1.bf16.msra.mxu0 %v5222
    %5352 = vmatprep.subr.bf16.mxu0 %v5225
    %5353 = vmatpush1.bf16.msra.mxu0 %v5224
    %5354 = vmatprep.subr.bf16.mxu0 %v5227
    %5355 = vmatpush1.bf16.msra.mxu0 %v5226
    %5356 = vmatprep.subr.bf16.mxu0 %v5229
    %5357 = vmatpush1.bf16.msra.mxu0 %v5228
    %5358 = vmatprep.subr.bf16.mxu0 %v5231
    %5359 = vmatpush1.bf16.msra.mxu0 %v5230
    %5360 = vmatprep.subr.bf16.mxu0 %v5233
    %5361 = vmatpush1.bf16.msra.mxu0 %v5232
    %5362 = vmatprep.subr.bf16.mxu0 %v5235
    %5363 = vmatpush1.bf16.msra.mxu0 %v5234
    %5364 = vmatprep.subr.bf16.mxu0 %v5237
    %5365 = vmatpush1.bf16.msra.mxu0 %v5236
    %5366 = vmatprep.subr.bf16.mxu0 %v5239
    %5367 = vmatpush1.bf16.msra.mxu0 %v5238
    %5368 = vmatprep.subr.bf16.mxu0 %v5241
    %5369 = vmatpush1.bf16.msra.mxu0 %v5240
    %5370 = vmatprep.subr.bf16.mxu0 %v5243
    %5371 = vmatpush1.bf16.msra.mxu0 %v5242
    %5372 = vmatprep.subr.bf16.mxu0 %v5245
    %5373 = vmatpush1.bf16.msra.mxu0 %v5244
    %5374 = vmatprep.subr.bf16.mxu0 %v5247
    %5375 = vmatpush1.bf16.msra.mxu0 %v5246
    %5376 = vmatprep.subr.bf16.mxu0 %v5249
    %5377 = vmatpush1.bf16.msra.mxu0 %v5248
    %5378 = vmatprep.subr.bf16.mxu0 %v5251
    %5379 = vmatpush1.bf16.msra.mxu0 %v5250
    %5380 = vmatprep.mubr.bf16.mxu0 %v5022
    %5381 = vmatmul.mubr.bf16.gmra.mrb[0].mxu0 %v5014
    %v5382 = vpop.f32.mrb[0].mxu0
    %v5383 = vadd.f32 %v4999, %v5382
    %v5384 = vpop.f32.mrb[0].mxu0
    %v5385 = vadd.f32 %v5003, %v5384
    %v5386 = vpop.f32.mrb[0].mxu0
    %v5387 = vpop.f32.mrb[0].mxu0
    %5388 = vdwg.mxu0
    %5389 = vmatprep.subr.bf16.mxu0 %v5253
    %5390 = vmatpush1.bf16.msra.mxu0 %v5252
    %5391 = vmatprep.subr.bf16.mxu0 %v5255
    %5392 = vmatpush1.bf16.msra.mxu0 %v5254
    %5393 = vmatprep.subr.bf16.mxu0 %v5257
    %5394 = vmatpush1.bf16.msra.mxu0 %v5256
    %5395 = vmatprep.subr.bf16.mxu0 %v5259
    %5396 = vmatpush1.bf16.msra.mxu0 %v5258
    %5397 = vmatprep.subr.bf16.mxu0 %v5261
    %5398 = vmatpush1.bf16.msra.mxu0 %v5260
    %5399 = vmatprep.subr.bf16.mxu0 %v5263
    %5400 = vmatpush1.bf16.msra.mxu0 %v5262
    %5401 = vmatprep.subr.bf16.mxu0 %v5265
    %5402 = vmatpush1.bf16.msra.mxu0 %v5264
    %5403 = vmatprep.subr.bf16.mxu0 %v5267
    %5404 = vmatpush1.bf16.msra.mxu0 %v5266
    %5405 = vmatprep.subr.bf16.mxu0 %v5269
    %5406 = vmatpush1.bf16.msra.mxu0 %v5268
    %5407 = vmatprep.subr.bf16.mxu0 %v5271
    %5408 = vmatpush1.bf16.msra.mxu0 %v5270
    %5409 = vmatprep.subr.bf16.mxu0 %v5273
    %5410 = vmatpush1.bf16.msra.mxu0 %v5272
    %5411 = vmatprep.subr.bf16.mxu0 %v5275
    %5412 = vmatpush1.bf16.msra.mxu0 %v5274
    %5413 = vmatprep.subr.bf16.mxu0 %v5277
    %5414 = vmatpush1.bf16.msra.mxu0 %v5276
    %5415 = vmatprep.subr.bf16.mxu0 %v5279
    %5416 = vmatpush1.bf16.msra.mxu0 %v5278
    %5417 = vmatprep.subr.bf16.mxu0 %v5281
    %5418 = vmatpush1.bf16.msra.mxu0 %v5280
    %5419 = vmatprep.subr.bf16.mxu0 %v5283
    %5420 = vmatpush1.bf16.msra.mxu0 %v5282
    %5421 = vmatprep.mubr.bf16.mxu0 %v5023
    %5422 = vmatmul.mubr.bf16.gmra.mrb[0].mxu0 %v5021
    %v5423 = vpop.f32.mrb[0].mxu0
    %v5424 = vadd.f32 %v5383, %v5423
    %v5425 = vpop.f32.mrb[0].mxu0
    %v5426 = vadd.f32 %v5385, %v5425
    %v5427 = vpop.f32.mrb[0].mxu0
    %v5428 = vpop.f32.mrb[0].mxu0
    %5429 = vdwg.mxu0
    %v5430 = vld [vmem:[#allocation12] sm:$0xff]
    %v5431 = vld [vmem:[#allocation12 + $0x8] sm:$0xff]
    %v5432 = vld [vmem:[#allocation12 + $0x10] sm:$0xff]
    %v5433 = vld [vmem:[#allocation12 + $0x18] sm:$0xff]
    %v5434 = vld [vmem:[#allocation12 + $0x20] sm:$0xff]
    %v5435 = vld [vmem:[#allocation12 + $0x28] sm:$0xff]
    %v5436 = vld [vmem:[#allocation12 + $0x30] sm:$0xff]
    %v5437 = vld [vmem:[#allocation12 + $0x38] sm:$0xff]
    %v5438 = vld [vmem:[#allocation12 + $0x40] sm:$0xff]
    %v5439 = vld [vmem:[#allocation12 + $0x48] sm:$0xff]
    %v5440 = vld [vmem:[#allocation12 + $0x50] sm:$0xff]
    %v5441 = vld [vmem:[#allocation12 + $0x58] sm:$0xff]
    %v5442 = vld [vmem:[#allocation12 + $0x60] sm:$0xff]
    %v5443 = vld [vmem:[#allocation12 + $0x68] sm:$0xff]
    %v5444 = vld [vmem:[#allocation12 + $0x70] sm:$0xff]
    %v5445 = vld [vmem:[#allocation12 + $0x78] sm:$0xff]
    %v5446 = vld [vmem:[#allocation12 + $0x80] sm:$0xff]
    %v5447 = vld [vmem:[#allocation12 + $0x88] sm:$0xff]
    %v5448 = vld [vmem:[#allocation12 + $0x90] sm:$0xff]
    %v5449 = vld [vmem:[#allocation12 + $0x98] sm:$0xff]
    %v5450 = vld [vmem:[#allocation12 + $0xa0] sm:$0xff]
    %v5451 = vld [vmem:[#allocation12 + $0xa8] sm:$0xff]
    %v5452 = vld [vmem:[#allocation12 + $0xb0] sm:$0xff]
    %v5453 = vld [vmem:[#allocation12 + $0xb8] sm:$0xff]
    %v5454 = vld [vmem:[#allocation12 + $0xc0] sm:$0xff]
    %v5455 = vld [vmem:[#allocation12 + $0xc8] sm:$0xff]
    %v5456 = vld [vmem:[#allocation12 + $0xd0] sm:$0xff]
    %v5457 = vld [vmem:[#allocation12 + $0xd8] sm:$0xff]
    %v5458 = vld [vmem:[#allocation12 + $0xe0] sm:$0xff]
    %v5459 = vld [vmem:[#allocation12 + $0xe8] sm:$0xff]
    %v5460 = vld [vmem:[#allocation12 + $0xf0] sm:$0xff]
    %v5461 = vld [vmem:[#allocation12 + $0xf8] sm:$0xff]
    %v5462 = vld [vmem:[#allocation12 + $0x100] sm:$0xff]
    %v5463 = vld [vmem:[#allocation12 + $0x108] sm:$0xff]
    %v5464 = vld [vmem:[#allocation12 + $0x110] sm:$0xff]
    %v5465 = vld [vmem:[#allocation12 + $0x118] sm:$0xff]
    %v5466 = vld [vmem:[#allocation12 + $0x120] sm:$0xff]
    %v5467 = vld [vmem:[#allocation12 + $0x128] sm:$0xff]
    %v5468 = vld [vmem:[#allocation12 + $0x130] sm:$0xff]
    %v5469 = vld [vmem:[#allocation12 + $0x138] sm:$0xff]
    %v5470 = vld [vmem:[#allocation12 + $0x140] sm:$0xff]
    %v5471 = vld [vmem:[#allocation12 + $0x148] sm:$0xff]
    %v5472 = vld [vmem:[#allocation12 + $0x150] sm:$0xff]
    %v5473 = vld [vmem:[#allocation12 + $0x158] sm:$0xff]
    %v5474 = vld [vmem:[#allocation12 + $0x160] sm:$0xff]
    %v5475 = vld [vmem:[#allocation12 + $0x168] sm:$0xff]
    %v5476 = vld [vmem:[#allocation12 + $0x170] sm:$0xff]
    %v5477 = vld [vmem:[#allocation12 + $0x178] sm:$0xff]
    %v5478 = vld [vmem:[#allocation12 + $0x180] sm:$0xff]
    %v5479 = vld [vmem:[#allocation12 + $0x188] sm:$0xff]
    %v5480 = vld [vmem:[#allocation12 + $0x190] sm:$0xff]
    %v5481 = vld [vmem:[#allocation12 + $0x198] sm:$0xff]
    %v5482 = vld [vmem:[#allocation12 + $0x1a0] sm:$0xff]
    %v5483 = vld [vmem:[#allocation12 + $0x1a8] sm:$0xff]
    %v5484 = vld [vmem:[#allocation12 + $0x1b0] sm:$0xff]
    %v5485 = vld [vmem:[#allocation12 + $0x1b8] sm:$0xff]
    %v5486 = vld [vmem:[#allocation12 + $0x1c0] sm:$0xff]
    %v5487 = vld [vmem:[#allocation12 + $0x1c8] sm:$0xff]
    %v5488 = vld [vmem:[#allocation12 + $0x1d0] sm:$0xff]
    %v5489 = vld [vmem:[#allocation12 + $0x1d8] sm:$0xff]
    %v5490 = vld [vmem:[#allocation12 + $0x1e0] sm:$0xff]
    %v5491 = vld [vmem:[#allocation12 + $0x1e8] sm:$0xff]
    %v5492 = vld [vmem:[#allocation12 + $0x1f0] sm:$0xff]
    %v5493 = vld [vmem:[#allocation12 + $0x1f8] sm:$0xff]
    %v5494 = vcombine.low %v4915, %v4929
    %v5495 = vcombine.high %v4915, %v4929
    %v5497 = vunpack.c.l.s4 1983009808
    %v5498 = vunpack.c.0.s8 %v5497
    %v5499 = vlaneseq
    %v5500 = vshrl.u32 %v5499, 7
    %v5501 = vsub.s32 %v5498, %v5500
    %v5502 = vrot.slane %v5494, %v5501
    %v5504 = vunpack.c.l.s4 1983009808
    %v5505 = vunpack.c.0.s8 %v5504
    %v5506 = vlaneseq
    %v5507 = vshrl.u32 %v5506, 7
    %v5508 = vsub.s32 %v5505, %v5507
    %v5509 = vrot.slane %v5495, %v5508
    %v5510 = vcombine.high %v5502, %v5502
    %v5511 = vcombine.high %v5509, %v5509
    %v5580 = vunpack.c.l.b16 %v5430
    %v5581 = vunpack.c.h.b16 %v5430
    %v5582 = vunpack.c.l.b16 %v5431
    %v5583 = vunpack.c.h.b16 %v5431
    %v5584 = vunpack.c.l.b16 %v5432
    %v5585 = vunpack.c.h.b16 %v5432
    %v5586 = vunpack.c.l.b16 %v5433
    %v5587 = vunpack.c.h.b16 %v5433
    %v5588 = vunpack.c.l.b16 %v5434
    %v5589 = vunpack.c.h.b16 %v5434
    %v5590 = vunpack.c.l.b16 %v5435
    %v5591 = vunpack.c.h.b16 %v5435
    %v5592 = vunpack.c.l.b16 %v5436
    %v5593 = vunpack.c.h.b16 %v5436
    %v5594 = vunpack.c.l.b16 %v5437
    %v5595 = vunpack.c.h.b16 %v5437
    %v5596 = vunpack.c.l.b16 %v5438
    %v5597 = vunpack.c.h.b16 %v5438
    %v5598 = vunpack.c.l.b16 %v5439
    %v5599 = vunpack.c.h.b16 %v5439
    %v5600 = vunpack.c.l.b16 %v5440
    %v5601 = vunpack.c.h.b16 %v5440
    %v5602 = vunpack.c.l.b16 %v5441
    %v5603 = vunpack.c.h.b16 %v5441
    %v5604 = vunpack.c.l.b16 %v5442
    %v5605 = vunpack.c.h.b16 %v5442
    %v5606 = vunpack.c.l.b16 %v5443
    %v5607 = vunpack.c.h.b16 %v5443
    %v5608 = vunpack.c.l.b16 %v5444
    %v5609 = vunpack.c.h.b16 %v5444
    %v5610 = vunpack.c.l.b16 %v5445
    %v5611 = vunpack.c.h.b16 %v5445
    %v5612 = vunpack.c.l.b16 %v5446
    %v5613 = vunpack.c.h.b16 %v5446
    %v5614 = vunpack.c.l.b16 %v5447
    %v5615 = vunpack.c.h.b16 %v5447
    %v5616 = vunpack.c.l.b16 %v5448
    %v5617 = vunpack.c.h.b16 %v5448
    %v5618 = vunpack.c.l.b16 %v5449
    %v5619 = vunpack.c.h.b16 %v5449
    %v5620 = vunpack.c.l.b16 %v5450
    %v5621 = vunpack.c.h.b16 %v5450
    %v5622 = vunpack.c.l.b16 %v5451
    %v5623 = vunpack.c.h.b16 %v5451
    %v5624 = vunpack.c.l.b16 %v5452
    %v5625 = vunpack.c.h.b16 %v5452
    %v5626 = vunpack.c.l.b16 %v5453
    %v5627 = vunpack.c.h.b16 %v5453
    %v5628 = vunpack.c.l.b16 %v5454
    %v5629 = vunpack.c.h.b16 %v5454
    %v5630 = vunpack.c.l.b16 %v5455
    %v5631 = vunpack.c.h.b16 %v5455
    %v5632 = vunpack.c.l.b16 %v5456
    %v5633 = vunpack.c.h.b16 %v5456
    %v5634 = vunpack.c.l.b16 %v5457
    %v5635 = vunpack.c.h.b16 %v5457
    %v5636 = vunpack.c.l.b16 %v5458
    %v5637 = vunpack.c.h.b16 %v5458
    %v5638 = vunpack.c.l.b16 %v5459
    %v5639 = vunpack.c.h.b16 %v5459
    %v5640 = vunpack.c.l.b16 %v5460
    %v5641 = vunpack.c.h.b16 %v5460
    %v5642 = vunpack.c.l.b16 %v5461
    %v5643 = vunpack.c.h.b16 %v5461
    %v5644 = vunpack.c.l.b16 %v5462
    %v5645 = vunpack.c.h.b16 %v5462
    %v5646 = vunpack.c.l.b16 %v5463
    %v5647 = vunpack.c.h.b16 %v5463
    %v5648 = vunpack.c.l.b16 %v5464
    %v5649 = vunpack.c.h.b16 %v5464
    %v5650 = vunpack.c.l.b16 %v5465
    %v5651 = vunpack.c.h.b16 %v5465
    %v5652 = vunpack.c.l.b16 %v5466
    %v5653 = vunpack.c.h.b16 %v5466
    %v5654 = vunpack.c.l.b16 %v5467
    %v5655 = vunpack.c.h.b16 %v5467
    %v5656 = vunpack.c.l.b16 %v5468
    %v5657 = vunpack.c.h.b16 %v5468
    %v5658 = vunpack.c.l.b16 %v5469
    %v5659 = vunpack.c.h.b16 %v5469
    %v5660 = vunpack.c.l.b16 %v5470
    %v5661 = vunpack.c.h.b16 %v5470
    %v5662 = vunpack.c.l.b16 %v5471
    %v5663 = vunpack.c.h.b16 %v5471
    %v5664 = vunpack.c.l.b16 %v5472
    %v5665 = vunpack.c.h.b16 %v5472
    %v5666 = vunpack.c.l.b16 %v5473
    %v5667 = vunpack.c.h.b16 %v5473
    %v5668 = vunpack.c.l.b16 %v5474
    %v5669 = vunpack.c.h.b16 %v5474
    %v5670 = vunpack.c.l.b16 %v5475
    %v5671 = vunpack.c.h.b16 %v5475
    %v5672 = vunpack.c.l.b16 %v5476
    %v5673 = vunpack.c.h.b16 %v5476
    %v5674 = vunpack.c.l.b16 %v5477
    %v5675 = vunpack.c.h.b16 %v5477
    %v5676 = vunpack.c.l.b16 %v5478
    %v5677 = vunpack.c.h.b16 %v5478
    %v5678 = vunpack.c.l.b16 %v5479
    %v5679 = vunpack.c.h.b16 %v5479
    %v5680 = vunpack.c.l.b16 %v5480
    %v5681 = vunpack.c.h.b16 %v5480
    %v5682 = vunpack.c.l.b16 %v5481
    %v5683 = vunpack.c.h.b16 %v5481
    %v5684 = vunpack.c.l.b16 %v5482
    %v5685 = vunpack.c.h.b16 %v5482
    %v5686 = vunpack.c.l.b16 %v5483
    %v5687 = vunpack.c.h.b16 %v5483
    %v5688 = vunpack.c.l.b16 %v5484
    %v5689 = vunpack.c.h.b16 %v5484
    %v5690 = vunpack.c.l.b16 %v5485
    %v5691 = vunpack.c.h.b16 %v5485
    %v5692 = vunpack.c.l.b16 %v5486
    %v5693 = vunpack.c.h.b16 %v5486
    %v5694 = vunpack.c.l.b16 %v5487
    %v5695 = vunpack.c.h.b16 %v5487
    %v5696 = vunpack.c.l.b16 %v5488
    %v5697 = vunpack.c.h.b16 %v5488
    %v5698 = vunpack.c.l.b16 %v5489
    %v5699 = vunpack.c.h.b16 %v5489
    %v5700 = vunpack.c.l.b16 %v5490
    %v5701 = vunpack.c.h.b16 %v5490
    %v5702 = vunpack.c.l.b16 %v5491
    %v5703 = vunpack.c.h.b16 %v5491
    %v5704 = vunpack.c.l.b16 %v5492
    %v5705 = vunpack.c.h.b16 %v5492
    %v5706 = vunpack.c.l.b16 %v5493
    %v5707 = vunpack.c.h.b16 %v5493
    %v5708 = vpack.c.b16 %v5582, %v5580
    %v5709 = vpack.c.b16 %v5583, %v5581
    %v5710 = vpack.c.b16 %v5586, %v5584
    %v5711 = vpack.c.b16 %v5587, %v5585
    %v5712 = vpack.c.b16 %v5590, %v5588
    %v5713 = vpack.c.b16 %v5591, %v5589
    %v5714 = vpack.c.b16 %v5594, %v5592
    %v5715 = vpack.c.b16 %v5595, %v5593
    %v5716 = vpack.c.b16 %v5598, %v5596
    %v5717 = vpack.c.b16 %v5599, %v5597
    %v5718 = vpack.c.b16 %v5602, %v5600
    %v5719 = vpack.c.b16 %v5603, %v5601
    %v5720 = vpack.c.b16 %v5606, %v5604
    %v5721 = vpack.c.b16 %v5607, %v5605
    %v5722 = vpack.c.b16 %v5610, %v5608
    %v5723 = vpack.c.b16 %v5611, %v5609
    %v5724 = vpack.c.b16 %v5614, %v5612
    %v5725 = vpack.c.b16 %v5615, %v5613
    %v5726 = vpack.c.b16 %v5618, %v5616
    %v5727 = vpack.c.b16 %v5619, %v5617
    %v5728 = vpack.c.b16 %v5622, %v5620
    %v5729 = vpack.c.b16 %v5623, %v5621
    %v5730 = vpack.c.b16 %v5626, %v5624
    %v5731 = vpack.c.b16 %v5627, %v5625
    %v5732 = vpack.c.b16 %v5630, %v5628
    %v5733 = vpack.c.b16 %v5631, %v5629
    %v5734 = vpack.c.b16 %v5634, %v5632
    %v5735 = vpack.c.b16 %v5635, %v5633
    %v5736 = vpack.c.b16 %v5638, %v5636
    %v5737 = vpack.c.b16 %v5639, %v5637
    %v5738 = vpack.c.b16 %v5642, %v5640
    %v5739 = vpack.c.b16 %v5643, %v5641
    %v5740 = vpack.c.b16 %v5646, %v5644
    %v5741 = vpack.c.b16 %v5647, %v5645
    %v5742 = vpack.c.b16 %v5650, %v5648
    %v5743 = vpack.c.b16 %v5651, %v5649
    %v5744 = vpack.c.b16 %v5654, %v5652
    %v5745 = vpack.c.b16 %v5655, %v5653
    %v5746 = vpack.c.b16 %v5658, %v5656
    %v5747 = vpack.c.b16 %v5659, %v5657
    %v5748 = vpack.c.b16 %v5662, %v5660
    %v5749 = vpack.c.b16 %v5663, %v5661
    %v5750 = vpack.c.b16 %v5666, %v5664
    %v5751 = vpack.c.b16 %v5667, %v5665
    %v5752 = vpack.c.b16 %v5670, %v5668
    %v5753 = vpack.c.b16 %v5671, %v5669
    %v5754 = vpack.c.b16 %v5674, %v5672
    %v5755 = vpack.c.b16 %v5675, %v5673
    %v5756 = vpack.c.b16 %v5678, %v5676
    %v5757 = vpack.c.b16 %v5679, %v5677
    %v5758 = vpack.c.b16 %v5682, %v5680
    %v5759 = vpack.c.b16 %v5683, %v5681
    %v5760 = vpack.c.b16 %v5686, %v5684
    %v5761 = vpack.c.b16 %v5687, %v5685
    %v5762 = vpack.c.b16 %v5690, %v5688
    %v5763 = vpack.c.b16 %v5691, %v5689
    %v5764 = vpack.c.b16 %v5694, %v5692
    %v5765 = vpack.c.b16 %v5695, %v5693
    %v5766 = vpack.c.b16 %v5698, %v5696
    %v5767 = vpack.c.b16 %v5699, %v5697
    %v5768 = vpack.c.b16 %v5702, %v5700
    %v5769 = vpack.c.b16 %v5703, %v5701
    %v5770 = vpack.c.b16 %v5706, %v5704
    %v5771 = vpack.c.b16 %v5707, %v5705
    %5836 = vmatprep.subr.bf16.mxu0 %v5709
    %5837 = vmatpush1.bf16.msra.mxu0 %v5708
    %5838 = vmatprep.subr.bf16.mxu0 %v5711
    %5839 = vmatpush1.bf16.msra.mxu0 %v5710
    %5840 = vmatprep.subr.bf16.mxu0 %v5713
    %5841 = vmatpush1.bf16.msra.mxu0 %v5712
    %5842 = vmatprep.subr.bf16.mxu0 %v5715
    %5843 = vmatpush1.bf16.msra.mxu0 %v5714
    %5844 = vmatprep.subr.bf16.mxu0 %v5717
    %5845 = vmatpush1.bf16.msra.mxu0 %v5716
    %5846 = vmatprep.subr.bf16.mxu0 %v5719
    %5847 = vmatpush1.bf16.msra.mxu0 %v5718
    %5848 = vmatprep.subr.bf16.mxu0 %v5721
    %5849 = vmatpush1.bf16.msra.mxu0 %v5720
    %5850 = vmatprep.subr.bf16.mxu0 %v5723
    %5851 = vmatpush1.bf16.msra.mxu0 %v5722
    %5852 = vmatprep.subr.bf16.mxu0 %v5725
    %5853 = vmatpush1.bf16.msra.mxu0 %v5724
    %5854 = vmatprep.subr.bf16.mxu0 %v5727
    %5855 = vmatpush1.bf16.msra.mxu0 %v5726
    %5856 = vmatprep.subr.bf16.mxu0 %v5729
    %5857 = vmatpush1.bf16.msra.mxu0 %v5728
    %5858 = vmatprep.subr.bf16.mxu0 %v5731
    %5859 = vmatpush1.bf16.msra.mxu0 %v5730
    %5860 = vmatprep.subr.bf16.mxu0 %v5733
    %5861 = vmatpush1.bf16.msra.mxu0 %v5732
    %5862 = vmatprep.subr.bf16.mxu0 %v5735
    %5863 = vmatpush1.bf16.msra.mxu0 %v5734
    %5864 = vmatprep.subr.bf16.mxu0 %v5737
    %5865 = vmatpush1.bf16.msra.mxu0 %v5736
    %5866 = vmatprep.subr.bf16.mxu0 %v5739
    %5867 = vmatpush1.bf16.msra.mxu0 %v5738
    %5868 = vmatprep.mubr.bf16.mxu0 %v5510
    %5869 = vmatmul.mubr.bf16.gmra.mrb[0].mxu0 %v5502
    %v5870 = vpop.f32.mrb[0].mxu0
    %v5871 = vadd.f32 %v4999, %v5870
    %v5872 = vpop.f32.mrb[0].mxu0
    %v5873 = vadd.f32 %v5003, %v5872
    %v5874 = vpop.f32.mrb[0].mxu0
    %v5875 = vpop.f32.mrb[0].mxu0
    %5876 = vdwg.mxu0
    %5877 = vmatprep.subr.bf16.mxu0 %v5741
    %5878 = vmatpush1.bf16.msra.mxu0 %v5740
    %5879 = vmatprep.subr.bf16.mxu0 %v5743
    %5880 = vmatpush1.bf16.msra.mxu0 %v5742
    %5881 = vmatprep.subr.bf16.mxu0 %v5745
    %5882 = vmatpush1.bf16.msra.mxu0 %v5744
    %5883 = vmatprep.subr.bf16.mxu0 %v5747
    %5884 = vmatpush1.bf16.msra.mxu0 %v5746
    %5885 = vmatprep.subr.bf16.mxu0 %v5749
    %5886 = vmatpush1.bf16.msra.mxu0 %v5748
    %5887 = vmatprep.subr.bf16.mxu0 %v5751
    %5888 = vmatpush1.bf16.msra.mxu0 %v5750
    %5889 = vmatprep.subr.bf16.mxu0 %v5753
    %5890 = vmatpush1.bf16.msra.mxu0 %v5752
    %5891 = vmatprep.subr.bf16.mxu0 %v5755
    %5892 = vmatpush1.bf16.msra.mxu0 %v5754
    %5893 = vmatprep.subr.bf16.mxu0 %v5757
    %5894 = vmatpush1.bf16.msra.mxu0 %v5756
    %5895 = vmatprep.subr.bf16.mxu0 %v5759
    %5896 = vmatpush1.bf16.msra.mxu0 %v5758
    %5897 = vmatprep.subr.bf16.mxu0 %v5761
    %5898 = vmatpush1.bf16.msra.mxu0 %v5760
    %5899 = vmatprep.subr.bf16.mxu0 %v5763
    %5900 = vmatpush1.bf16.msra.mxu0 %v5762
    %5901 = vmatprep.subr.bf16.mxu0 %v5765
    %5902 = vmatpush1.bf16.msra.mxu0 %v5764
    %5903 = vmatprep.subr.bf16.mxu0 %v5767
    %5904 = vmatpush1.bf16.msra.mxu0 %v5766
    %5905 = vmatprep.subr.bf16.mxu0 %v5769
    %5906 = vmatpush1.bf16.msra.mxu0 %v5768
    %5907 = vmatprep.subr.bf16.mxu0 %v5771
    %5908 = vmatpush1.bf16.msra.mxu0 %v5770
    %5909 = vmatprep.mubr.bf16.mxu0 %v5511
    %5910 = vmatmul.mubr.bf16.gmra.mrb[0].mxu0 %v5509
    %v5911 = vpop.f32.mrb[0].mxu0
    %v5912 = vadd.f32 %v5871, %v5911
    %v5913 = vpop.f32.mrb[0].mxu0
    %v5914 = vadd.f32 %v5873, %v5913
    %v5915 = vpop.f32.mrb[0].mxu0
    %v5916 = vpop.f32.mrb[0].mxu0
    %5917 = vdwg.mxu0
    %v5918 = vmax.f32 %v5424, 0.0
    %v5919 = vmax.f32 %v5426, 0.0
    %v5920 = vmax.f32 %v5912, 0.0
    %v5921 = vmax.f32 %v5914, 0.0
    %v5924 = vcombine.low %v5918, %v5919
    %v5925 = vcombine.high %v5918, %v5919
    %v5927 = vunpack.c.l.s4 1966171168
    %v5928 = vunpack.c.0.s8 %v5927
    %v5929 = vlaneseq
    %v5930 = vshrl.u32 %v5929, 7
    %v5931 = vsub.s32 %v5928, %v5930
    %v5932 = vrot.slane %v5924, %v5931
    %v5934 = vunpack.c.l.s4 1966171168
    %v5935 = vunpack.c.0.s8 %v5934
    %v5936 = vlaneseq
    %v5937 = vshrl.u32 %v5936, 7
    %v5938 = vsub.s32 %v5935, %v5937
    %v5939 = vrot.slane %v5925, %v5938
    %v5940 = vcombine.high %v5932, %v5932
    %v5941 = vcombine.high %v5939, %v5939
    %v5943 = vunpack.c.l.s4 1966171168
    %v5944 = vunpack.c.0.s8 %v5943
    %v5945 = vlaneseq
    %v5946 = vshrl.u32 %v5945, 7
    %v5947 = vsub.s32 %v5944, %v5946
    %v5948 = vrot.slane %v5932, %v5947
    %v5950 = vunpack.c.l.s4 1966171168
    %v5951 = vunpack.c.0.s8 %v5950
    %v5952 = vlaneseq
    %v5953 = vshrl.u32 %v5952, 7
    %v5954 = vsub.s32 %v5951, %v5953
    %v5955 = vrot.slane %v5939, %v5954
    %v5957 = vunpack.c.l.s4 1966171168
    %v5958 = vunpack.c.0.s8 %v5957
    %v5959 = vlaneseq
    %v5960 = vshrl.u32 %v5959, 7
    %v5961 = vsub.s32 %v5958, %v5960
    %v5962 = vrot.slane %v5940, %v5961
    %v5964 = vunpack.c.l.s4 1966171168
    %v5965 = vunpack.c.0.s8 %v5964
    %v5966 = vlaneseq
    %v5967 = vshrl.u32 %v5966, 7
    %v5968 = vsub.s32 %v5965, %v5967
    %v5969 = vrot.slane %v5941, %v5968
    %v5970 = vcombine.high %v5948, %v5948
    %v5971 = vcombine.high %v5955, %v5955
    %v5972 = vcombine.high %v5962, %v5962
    %v5973 = vcombine.high %v5969, %v5969
    %v5976 = vcombine.low %v5920, %v5921
    %v5977 = vcombine.high %v5920, %v5921
    %v5979 = vunpack.c.l.s4 1966171168
    %v5980 = vunpack.c.0.s8 %v5979
    %v5981 = vlaneseq
    %v5982 = vshrl.u32 %v5981, 7
    %v5983 = vsub.s32 %v5980, %v5982
    %v5984 = vrot.slane %v5976, %v5983
    %v5986 = vunpack.c.l.s4 1966171168
    %v5987 = vunpack.c.0.s8 %v5986
    %v5988 = vlaneseq
    %v5989 = vshrl.u32 %v5988, 7
    %v5990 = vsub.s32 %v5987, %v5989
    %v5991 = vrot.slane %v5977, %v5990
    %v5992 = vcombine.high %v5984, %v5984
    %v5993 = vcombine.high %v5991, %v5991
    %v5995 = vunpack.c.l.s4 1966171168
    %v5996 = vunpack.c.0.s8 %v5995
    %v5997 = vlaneseq
    %v5998 = vshrl.u32 %v5997, 7
    %v5999 = vsub.s32 %v5996, %v5998
    %v6000 = vrot.slane %v5984, %v5999
    %v6002 = vunpack.c.l.s4 1966171168
    %v6003 = vunpack.c.0.s8 %v6002
    %v6004 = vlaneseq
    %v6005 = vshrl.u32 %v6004, 7
    %v6006 = vsub.s32 %v6003, %v6005
    %v6007 = vrot.slane %v5991, %v6006
    %v6009 = vunpack.c.l.s4 1966171168
    %v6010 = vunpack.c.0.s8 %v6009
    %v6011 = vlaneseq
    %v6012 = vshrl.u32 %v6011, 7
    %v6013 = vsub.s32 %v6010, %v6012
    %v6014 = vrot.slane %v5992, %v6013
    %v6016 = vunpack.c.l.s4 1966171168
    %v6017 = vunpack.c.0.s8 %v6016
    %v6018 = vlaneseq
    %v6019 = vshrl.u32 %v6018, 7
    %v6020 = vsub.s32 %v6017, %v6019
    %v6021 = vrot.slane %v5993, %v6020
    %v6022 = vcombine.high %v6000, %v6000
    %v6023 = vcombine.high %v6007, %v6007
    %v6024 = vcombine.high %v6014, %v6014
    %v6025 = vcombine.high %v6021, %v6021
    %v6026 = vlaneseq
    %v6027 = vshrl.u32 %v6026, 7
    %v6028 = vsub.s32 0, %v6027
    %v6029 = vrot.slane %v5948, %v6028
    %v6030 = vlaneseq
    %v6031 = vshrl.u32 %v6030, 7
    %v6032 = vsub.s32 1, %v6031
    %v6033 = vrot.slane %v5948, %v6032
    %v6034 = vlaneseq
    %v6035 = vshrl.u32 %v6034, 7
    %v6036 = vsub.s32 0, %v6035
    %v6037 = vrot.slane %v5962, %v6036
    %v6038 = vlaneseq
    %v6039 = vshrl.u32 %v6038, 7
    %v6040 = vsub.s32 1, %v6039
    %v6041 = vrot.slane %v5962, %v6040
    %v6042 = vlaneseq
    %v6043 = vshrl.u32 %v6042, 7
    %v6044 = vsub.s32 0, %v6043
    %v6045 = vrot.slane %v5970, %v6044
    %v6046 = vlaneseq
    %v6047 = vshrl.u32 %v6046, 7
    %v6048 = vsub.s32 1, %v6047
    %v6049 = vrot.slane %v5970, %v6048
    %v6050 = vlaneseq
    %v6051 = vshrl.u32 %v6050, 7
    %v6052 = vsub.s32 0, %v6051
    %v6053 = vrot.slane %v5972, %v6052
    %v6054 = vlaneseq
    %v6055 = vshrl.u32 %v6054, 7
    %v6056 = vsub.s32 1, %v6055
    %v6057 = vrot.slane %v5972, %v6056
    %v6058 = vlaneseq
    %v6059 = vshrl.u32 %v6058, 7
    %v6060 = vsub.s32 0, %v6059
    %v6061 = vrot.slane %v5955, %v6060
    %v6062 = vlaneseq
    %v6063 = vshrl.u32 %v6062, 7
    %v6064 = vsub.s32 1, %v6063
    %v6065 = vrot.slane %v5955, %v6064
    %v6066 = vlaneseq
    %v6067 = vshrl.u32 %v6066, 7
    %v6068 = vsub.s32 0, %v6067
    %v6069 = vrot.slane %v5969, %v6068
    %v6070 = vlaneseq
    %v6071 = vshrl.u32 %v6070, 7
    %v6072 = vsub.s32 1, %v6071
    %v6073 = vrot.slane %v5969, %v6072
    %v6074 = vlaneseq
    %v6075 = vshrl.u32 %v6074, 7
    %v6076 = vsub.s32 0, %v6075
    %v6077 = vrot.slane %v5971, %v6076
    %v6078 = vlaneseq
    %v6079 = vshrl.u32 %v6078, 7
    %v6080 = vsub.s32 1, %v6079
    %v6081 = vrot.slane %v5971, %v6080
    %v6082 = vlaneseq
    %v6083 = vshrl.u32 %v6082, 7
    %v6084 = vsub.s32 0, %v6083
    %v6085 = vrot.slane %v5973, %v6084
    %v6086 = vlaneseq
    %v6087 = vshrl.u32 %v6086, 7
    %v6088 = vsub.s32 1, %v6087
    %v6089 = vrot.slane %v5973, %v6088
    %v6106 = vlaneseq
    %v6107 = vshrl.u32 %v6106, 7
    %v6108 = vsub.s32 0, %v6107
    %v6109 = vrot.slane %v6000, %v6108
    %v6110 = vlaneseq
    %v6111 = vshrl.u32 %v6110, 7
    %v6112 = vsub.s32 1, %v6111
    %v6113 = vrot.slane %v6000, %v6112
    %v6114 = vlaneseq
    %v6115 = vshrl.u32 %v6114, 7
    %v6116 = vsub.s32 0, %v6115
    %v6117 = vrot.slane %v6014, %v6116
    %v6118 = vlaneseq
    %v6119 = vshrl.u32 %v6118, 7
    %v6120 = vsub.s32 1, %v6119
    %v6121 = vrot.slane %v6014, %v6120
    %v6122 = vlaneseq
    %v6123 = vshrl.u32 %v6122, 7
    %v6124 = vsub.s32 0, %v6123
    %v6125 = vrot.slane %v6022, %v6124
    %v6126 = vlaneseq
    %v6127 = vshrl.u32 %v6126, 7
    %v6128 = vsub.s32 1, %v6127
    %v6129 = vrot.slane %v6022, %v6128
    %v6130 = vlaneseq
    %v6131 = vshrl.u32 %v6130, 7
    %v6132 = vsub.s32 0, %v6131
    %v6133 = vrot.slane %v6024, %v6132
    %v6134 = vlaneseq
    %v6135 = vshrl.u32 %v6134, 7
    %v6136 = vsub.s32 1, %v6135
    %v6137 = vrot.slane %v6024, %v6136
    %v6138 = vlaneseq
    %v6139 = vshrl.u32 %v6138, 7
    %v6140 = vsub.s32 0, %v6139
    %v6141 = vrot.slane %v6007, %v6140
    %v6142 = vlaneseq
    %v6143 = vshrl.u32 %v6142, 7
    %v6144 = vsub.s32 1, %v6143
    %v6145 = vrot.slane %v6007, %v6144
    %v6146 = vlaneseq
    %v6147 = vshrl.u32 %v6146, 7
    %v6148 = vsub.s32 0, %v6147
    %v6149 = vrot.slane %v6021, %v6148
    %v6150 = vlaneseq
    %v6151 = vshrl.u32 %v6150, 7
    %v6152 = vsub.s32 1, %v6151
    %v6153 = vrot.slane %v6021, %v6152
    %v6154 = vlaneseq
    %v6155 = vshrl.u32 %v6154, 7
    %v6156 = vsub.s32 0, %v6155
    %v6157 = vrot.slane %v6023, %v6156
    %v6158 = vlaneseq
    %v6159 = vshrl.u32 %v6158, 7
    %v6160 = vsub.s32 1, %v6159
    %v6161 = vrot.slane %v6023, %v6160
    %v6162 = vlaneseq
    %v6163 = vshrl.u32 %v6162, 7
    %v6164 = vsub.s32 0, %v6163
    %v6165 = vrot.slane %v6025, %v6164
    %v6166 = vlaneseq
    %v6167 = vshrl.u32 %v6166, 7
    %v6168 = vsub.s32 1, %v6167
    %v6169 = vrot.slane %v6025, %v6168
    %vm6186 = vcmask 1040384
    %v6187 = vsel %vm6186, %v6029, %v6109
    %v6188 = vsel %vm6186, %v6033, %v6113
    %v6189 = vsel %vm6186, %v6037, %v6117
    %v6190 = vsel %vm6186, %v6041, %v6121
    %v6191 = vsel %vm6186, %v6045, %v6125
    %v6192 = vsel %vm6186, %v6049, %v6129
    %v6193 = vsel %vm6186, %v6053, %v6133
    %v6194 = vsel %vm6186, %v6057, %v6137
    %v6195 = vsel %vm6186, %v6061, %v6141
    %v6196 = vsel %vm6186, %v6065, %v6145
    %v6197 = vsel %vm6186, %v6069, %v6149
    %v6198 = vsel %vm6186, %v6073, %v6153
    %v6199 = vsel %vm6186, %v6077, %v6157
    %v6200 = vsel %vm6186, %v6081, %v6161
    %v6201 = vsel %vm6186, %v6085, %v6165
    %v6202 = vsel %vm6186, %v6089, %v6169
    %v6219 = vcombine.low %v6187, %v6188
    %v6221 = vunpack.c.l.s4 1983009808
    %v6222 = vunpack.c.0.s8 %v6221
    %v6223 = vlaneseq
    %v6224 = vshrl.u32 %v6223, 7
    %v6225 = vsub.s32 %v6222, %v6224
    %v6226 = vrot.slane %v6219, %v6225
    %v6227 = vcombine.low %v6189, %v6190
    %v6229 = vunpack.c.l.s4 1983009808
    %v6230 = vunpack.c.0.s8 %v6229
    %v6231 = vlaneseq
    %v6232 = vshrl.u32 %v6231, 7
    %v6233 = vsub.s32 %v6230, %v6232
    %v6234 = vrot.slane %v6227, %v6233
    %v6235 = vcombine.low %v6191, %v6192
    %v6237 = vunpack.c.l.s4 1983009808
    %v6238 = vunpack.c.0.s8 %v6237
    %v6239 = vlaneseq
    %v6240 = vshrl.u32 %v6239, 7
    %v6241 = vsub.s32 %v6238, %v6240
    %v6242 = vrot.slane %v6235, %v6241
    %v6243 = vcombine.low %v6193, %v6194
    %v6245 = vunpack.c.l.s4 1983009808
    %v6246 = vunpack.c.0.s8 %v6245
    %v6247 = vlaneseq
    %v6248 = vshrl.u32 %v6247, 7
    %v6249 = vsub.s32 %v6246, %v6248
    %v6250 = vrot.slane %v6243, %v6249
    %v6251 = vcombine.low %v6195, %v6196
    %v6253 = vunpack.c.l.s4 1983009808
    %v6254 = vunpack.c.0.s8 %v6253
    %v6255 = vlaneseq
    %v6256 = vshrl.u32 %v6255, 7
    %v6257 = vsub.s32 %v6254, %v6256
    %v6258 = vrot.slane %v6251, %v6257
    %v6259 = vcombine.low %v6197, %v6198
    %v6261 = vunpack.c.l.s4 1983009808
    %v6262 = vunpack.c.0.s8 %v6261
    %v6263 = vlaneseq
    %v6264 = vshrl.u32 %v6263, 7
    %v6265 = vsub.s32 %v6262, %v6264
    %v6266 = vrot.slane %v6259, %v6265
    %v6267 = vcombine.low %v6199, %v6200
    %v6269 = vunpack.c.l.s4 1983009808
    %v6270 = vunpack.c.0.s8 %v6269
    %v6271 = vlaneseq
    %v6272 = vshrl.u32 %v6271, 7
    %v6273 = vsub.s32 %v6270, %v6272
    %v6274 = vrot.slane %v6267, %v6273
    %v6275 = vcombine.low %v6201, %v6202
    %v6277 = vunpack.c.l.s4 1983009808
    %v6278 = vunpack.c.0.s8 %v6277
    %v6279 = vlaneseq
    %v6280 = vshrl.u32 %v6279, 7
    %v6281 = vsub.s32 %v6278, %v6280
    %v6282 = vrot.slane %v6275, %v6281
    %v6283 = vcombine.low %v6226, %v6234
    %v6284 = vcombine.low %v6242, %v6250
    %v6286 = vunpack.c.l.s4 1983009808
    %v6287 = vunpack.c.0.s8 %v6286
    %v6288 = vlaneseq
    %v6289 = vshrl.u32 %v6288, 7
    %v6290 = vsub.s32 %v6287, %v6289
    %v6291 = vrot.slane %v6283, %v6290
    %v6293 = vunpack.c.l.s4 1983009808
    %v6294 = vunpack.c.0.s8 %v6293
    %v6295 = vlaneseq
    %v6296 = vshrl.u32 %v6295, 7
    %v6297 = vsub.s32 %v6294, %v6296
    %v6298 = vrot.slane %v6284, %v6297
    %v6299 = vcombine.low %v6291, %v6298
    %v6300 = vcombine.high %v6291, %v6298
    %v6301 = vcombine.low %v6258, %v6266
    %v6302 = vcombine.low %v6274, %v6282
    %v6304 = vunpack.c.l.s4 1983009808
    %v6305 = vunpack.c.0.s8 %v6304
    %v6306 = vlaneseq
    %v6307 = vshrl.u32 %v6306, 7
    %v6308 = vsub.s32 %v6305, %v6307
    %v6309 = vrot.slane %v6301, %v6308
    %v6311 = vunpack.c.l.s4 1983009808
    %v6312 = vunpack.c.0.s8 %v6311
    %v6313 = vlaneseq
    %v6314 = vshrl.u32 %v6313, 7
    %v6315 = vsub.s32 %v6312, %v6314
    %v6316 = vrot.slane %v6302, %v6315
    %v6317 = vcombine.low %v6309, %v6316
    %v6318 = vcombine.high %v6309, %v6316
    %v6323 = vpack.c.bf16 %v6299, %v6299
    %v6324 = vpack.c.bf16 %v6300, %v6300
    %v6325 = vpack.c.bf16 %v6317, %v6317
    %v6326 = vpack.c.bf16 %v6318, %v6318
    %v6331 = vunpack.c.l.b16 %v6323
    %v6332 = vunpack.c.l.b16 %v6324
    %v6333 = vunpack.c.l.b16 %v6325
    %v6334 = vunpack.c.l.b16 %v6326
    %v6335 = vpack.c.b16 %v6332, %v6331
    %v6336 = vpack.c.b16 %v6334, %v6333
    %v6338 = vshrl.u32 %v6335, 16
    %v6340 = vrot.slane %v6338, 7
    %v6341 = vshll.u32 %v6335, 16
    %v6343 = vor.u32 %v6340, %v6341
    %v6344 = vrot.slane %v6340, 4
    %v6346 = vshrl.u32 %v6336, 16
    %v6348 = vrot.slane %v6346, 7
    %v6349 = vshll.u32 %v6336, 16
    %v6351 = vor.u32 %v6348, %v6349
    %v6352 = vrot.slane %v6348, 4
    %v6357 = vld [vmem:[#allocation5] sm:$0xff]
    %v6358 = vsel %vm2192, %v6343, %v6357
    %6359 = vst [vmem:[#allocation5] sm:$0xff] %v6358
    %v6360 = vld [vmem:[#allocation5 + $0x8] sm:$0x11]
    %v6361 = vsel %vm169, %v6344, %v6360
    %6362 = vst [vmem:[#allocation5 + $0x8] sm:$0x11] %v6361
    %v6363 = vld [vmem:[#allocation5 + $0x10] sm:$0xff]
    %v6364 = vsel %vm2192, %v6351, %v6363
    %6365 = vst [vmem:[#allocation5 + $0x10] sm:$0xff] %v6364
    %v6366 = vld [vmem:[#allocation5 + $0x18] sm:$0x11]
    %v6367 = vsel %vm169, %v6352, %v6366
    %6368 = vst [vmem:[#allocation5 + $0x18] sm:$0x11] %v6367
    %v6369 = vld [vmem:[#allocation5] sm:$0xff]
    %v6370 = vld [vmem:[#allocation5 + $0x10] sm:$0xff]
    %v6371 = vld [vmem:[#allocation5 + $0x8] sm:$0x11]
    %v6372 = vld [vmem:[#allocation5 + $0x18] sm:$0x11]
    %v6373 = vld [vmem:[#allocation5] sm:$0xee]
    %v6374 = vld [vmem:[#allocation5 + $0x10] sm:$0xee]
    %v6377 = vunpack.c.l.b16 %v6369
    %v6378 = vunpack.c.h.b16 %v6369
    %v6379 = vunpack.c.l.b16 %v6370
    %v6380 = vunpack.c.h.b16 %v6370
    %v6383 = vunpack.c.l.b16 %v6371
    %v6384 = vunpack.c.h.b16 %v6371
    %v6385 = vunpack.c.l.b16 %v6372
    %v6386 = vunpack.c.h.b16 %v6372
    %v6387 = vpack.c.b16 %v6383, %v6377
    %v6388 = vpack.c.b16 %v6384, %v6378
    %v6389 = vpack.c.b16 %v6385, %v6379
    %v6390 = vpack.c.b16 %v6386, %v6380
    %v6392 = vshrl.u32 %v6387, 16
    %v6394 = vshll.u32 %v6387, 16
    %v6396 = vrot.slane %v6394, 1
    %v6397 = vor.u32 %v6392, %v6396
    %v6399 = vshrl.u32 %v6388, 16
    %v6401 = vshll.u32 %v6388, 16
    %v6403 = vrot.slane %v6401, 1
    %v6404 = vor.u32 %v6399, %v6403
    %v6406 = vshrl.u32 %v6389, 16
    %v6408 = vshll.u32 %v6389, 16
    %v6410 = vrot.slane %v6408, 1
    %v6411 = vor.u32 %v6406, %v6410
    %v6413 = vshrl.u32 %v6390, 16
    %v6415 = vshll.u32 %v6390, 16
    %v6417 = vrot.slane %v6415, 1
    %v6418 = vor.u32 %v6413, %v6417
    %v6419 = vunpack.c.l.b16 %v6397
    %v6420 = vunpack.c.l.b16 %v6404
    %v6421 = vunpack.c.l.b16 %v6411
    %v6422 = vunpack.c.l.b16 %v6418
    %v6425 = vunpack.c.l.b16 %v6373
    %v6426 = vunpack.c.h.b16 %v6373
    %v6427 = vunpack.c.l.b16 %v6374
    %v6428 = vunpack.c.h.b16 %v6374
    %v6429 = vpack.c.b16 %v6383, %v6425
    %v6430 = vpack.c.b16 %v6384, %v6426
    %v6431 = vpack.c.b16 %v6385, %v6427
    %v6432 = vpack.c.b16 %v6386, %v6428
    %v6434 = vshrl.u32 %v6429, 16
    %v6436 = vshll.u32 %v6429, 16
    %v6438 = vrot.slane %v6436, 1
    %v6439 = vor.u32 %v6434, %v6438
    %v6441 = vshrl.u32 %v6430, 16
    %v6443 = vshll.u32 %v6430, 16
    %v6445 = vrot.slane %v6443, 1
    %v6446 = vor.u32 %v6441, %v6445
    %v6448 = vshrl.u32 %v6431, 16
    %v6450 = vshll.u32 %v6431, 16
    %v6452 = vrot.slane %v6450, 1
    %v6453 = vor.u32 %v6448, %v6452
    %v6455 = vshrl.u32 %v6432, 16
    %v6457 = vshll.u32 %v6432, 16
    %v6459 = vrot.slane %v6457, 1
    %v6460 = vor.u32 %v6455, %v6459
    %v6461 = vunpack.c.l.b16 %v6439
    %v6462 = vunpack.c.l.b16 %v6446
    %v6463 = vunpack.c.h.b16 %v6439
    %v6464 = vunpack.c.h.b16 %v6446
    %v6465 = vunpack.c.l.b16 %v6453
    %v6466 = vunpack.c.l.b16 %v6460
    %v6467 = vunpack.c.h.b16 %v6453
    %v6468 = vunpack.c.h.b16 %v6460
    %v6469 = vpack.c.b16 %v6378, %v6377
    %v6470 = vpack.c.b16 %v6462, %v6461
    %v6471 = vpack.c.b16 %v6384, %v6383
    %v6472 = vpack.c.b16 %v6464, %v6463
    %v6473 = vpack.c.b16 %v6380, %v6379
    %v6474 = vpack.c.b16 %v6466, %v6465
    %v6475 = vpack.c.b16 %v6386, %v6385
    %v6476 = vpack.c.b16 %v6468, %v6467
    %vm6477 = vsmask.f32 3328
    %vm6478 = vsmask.f32 7440
    %vm6479 = vmor %vm6477, %vm6478
    %v6481 = vshrl.u32 %v6469, 16
    %v6483 = vrot.slane %v6481, 4
    %v6484 = vshll.u32 %v6469, 16
    %v6486 = vrot.slane %v6484, 5
    %v6487 = vor.u32 %v6483, %v6486
    %v6488 = vrot.slane %v6487, 4
    %v6490 = vshll.u32 %v6471, 16
    %v6492 = vrot.slane %v6490, 5
    %v6493 = vsel %vm6479, %v6488, %v6492
    %v6495 = vshrl.u32 %v6470, 16
    %v6497 = vrot.slane %v6495, 4
    %v6498 = vshll.u32 %v6470, 16
    %v6500 = vrot.slane %v6498, 5
    %v6501 = vor.u32 %v6497, %v6500
    %v6502 = vrot.slane %v6501, 4
    %v6504 = vshll.u32 %v6472, 16
    %v6506 = vrot.slane %v6504, 5
    %v6507 = vsel %vm6479, %v6502, %v6506
    %v6509 = vshrl.u32 %v6473, 16
    %v6511 = vrot.slane %v6509, 4
    %v6512 = vshll.u32 %v6473, 16
    %v6514 = vrot.slane %v6512, 5
    %v6515 = vor.u32 %v6511, %v6514
    %v6516 = vrot.slane %v6515, 4
    %v6518 = vshll.u32 %v6475, 16
    %v6520 = vrot.slane %v6518, 5
    %v6521 = vsel %vm6479, %v6516, %v6520
    %v6523 = vshrl.u32 %v6474, 16
    %v6525 = vrot.slane %v6523, 4
    %v6526 = vshll.u32 %v6474, 16
    %v6528 = vrot.slane %v6526, 5
    %v6529 = vor.u32 %v6525, %v6528
    %v6530 = vrot.slane %v6529, 4
    %v6532 = vshll.u32 %v6476, 16
    %v6534 = vrot.slane %v6532, 5
    %v6535 = vsel %vm6479, %v6530, %v6534
    %v6536 = vld [vmem:[#allocation14] sm:$0xff]
    %v6537 = vld [vmem:[#allocation14 + $0x8] sm:$0xff]
    %v6538 = vld [vmem:[#allocation14 + $0x10] sm:$0xff]
    %v6539 = vld [vmem:[#allocation14 + $0x18] sm:$0xff]
    %v6540 = vld [vmem:[#allocation14 + $0x20] sm:$0xff]
    %v6541 = vld [vmem:[#allocation14 + $0x28] sm:$0xff]
    %v6542 = vld [vmem:[#allocation14 + $0x30] sm:$0xff]
    %v6543 = vld [vmem:[#allocation14 + $0x38] sm:$0xff]
    %v6544 = vld [vmem:[#allocation14 + $0x40] sm:$0xff]
    %v6545 = vld [vmem:[#allocation14 + $0x48] sm:$0xff]
    %v6546 = vld [vmem:[#allocation14 + $0x50] sm:$0xff]
    %v6547 = vld [vmem:[#allocation14 + $0x58] sm:$0xff]
    %v6548 = vld [vmem:[#allocation14 + $0x60] sm:$0xff]
    %v6549 = vld [vmem:[#allocation14 + $0x68] sm:$0xff]
    %v6550 = vld [vmem:[#allocation14 + $0x70] sm:$0xff]
    %v6551 = vld [vmem:[#allocation14 + $0x78] sm:$0xff]
    %v6552 = vld [vmem:[#allocation14 + $0x80] sm:$0xff]
    %v6553 = vld [vmem:[#allocation14 + $0x88] sm:$0xff]
    %v6554 = vld [vmem:[#allocation14 + $0x90] sm:$0xff]
    %v6555 = vld [vmem:[#allocation14 + $0x98] sm:$0xff]
    %v6556 = vld [vmem:[#allocation14 + $0xa0] sm:$0xff]
    %v6557 = vld [vmem:[#allocation14 + $0xa8] sm:$0xff]
    %v6558 = vld [vmem:[#allocation14 + $0xb0] sm:$0xff]
    %v6559 = vld [vmem:[#allocation14 + $0xb8] sm:$0xff]
    %v6560 = vld [vmem:[#allocation14 + $0xc0] sm:$0xff]
    %v6561 = vld [vmem:[#allocation14 + $0xc8] sm:$0xff]
    %v6562 = vld [vmem:[#allocation14 + $0xd0] sm:$0xff]
    %v6563 = vld [vmem:[#allocation14 + $0xd8] sm:$0xff]
    %v6564 = vld [vmem:[#allocation14 + $0xe0] sm:$0xff]
    %v6565 = vld [vmem:[#allocation14 + $0xe8] sm:$0xff]
    %v6566 = vld [vmem:[#allocation14 + $0xf0] sm:$0xff]
    %v6567 = vld [vmem:[#allocation14 + $0xf8] sm:$0xff]
    %v6568 = vld [vmem:[#allocation14 + $0x100] sm:$0xff]
    %v6569 = vld [vmem:[#allocation14 + $0x108] sm:$0xff]
    %v6570 = vld [vmem:[#allocation14 + $0x110] sm:$0xff]
    %v6571 = vld [vmem:[#allocation14 + $0x118] sm:$0xff]
    %v6572 = vld [vmem:[#allocation14 + $0x120] sm:$0xff]
    %v6573 = vld [vmem:[#allocation14 + $0x128] sm:$0xff]
    %v6574 = vld [vmem:[#allocation14 + $0x130] sm:$0xff]
    %v6575 = vld [vmem:[#allocation14 + $0x138] sm:$0xff]
    %v6576 = vld [vmem:[#allocation14 + $0x140] sm:$0xff]
    %v6577 = vld [vmem:[#allocation14 + $0x148] sm:$0xff]
    %v6578 = vld [vmem:[#allocation14 + $0x150] sm:$0xff]
    %v6579 = vld [vmem:[#allocation14 + $0x158] sm:$0xff]
    %v6580 = vld [vmem:[#allocation14 + $0x160] sm:$0xff]
    %v6581 = vld [vmem:[#allocation14 + $0x168] sm:$0xff]
    %v6582 = vld [vmem:[#allocation14 + $0x170] sm:$0xff]
    %v6583 = vld [vmem:[#allocation14 + $0x178] sm:$0xff]
    %v6584 = vld [vmem:[#allocation14 + $0x180] sm:$0xff]
    %v6585 = vld [vmem:[#allocation14 + $0x188] sm:$0xff]
    %v6586 = vld [vmem:[#allocation14 + $0x190] sm:$0xff]
    %v6587 = vld [vmem:[#allocation14 + $0x198] sm:$0xff]
    %v6588 = vld [vmem:[#allocation14 + $0x1a0] sm:$0xff]
    %v6589 = vld [vmem:[#allocation14 + $0x1a8] sm:$0xff]
    %v6590 = vld [vmem:[#allocation14 + $0x1b0] sm:$0xff]
    %v6591 = vld [vmem:[#allocation14 + $0x1b8] sm:$0xff]
    %v6592 = vld [vmem:[#allocation14 + $0x1c0] sm:$0xff]
    %v6593 = vld [vmem:[#allocation14 + $0x1c8] sm:$0xff]
    %v6594 = vld [vmem:[#allocation14 + $0x1d0] sm:$0xff]
    %v6595 = vld [vmem:[#allocation14 + $0x1d8] sm:$0xff]
    %v6596 = vld [vmem:[#allocation14 + $0x1e0] sm:$0xff]
    %v6597 = vld [vmem:[#allocation14 + $0x1e8] sm:$0xff]
    %v6598 = vld [vmem:[#allocation14 + $0x1f0] sm:$0xff]
    %v6599 = vld [vmem:[#allocation14 + $0x1f8] sm:$0xff]
    %v6600 = vld [vmem:[%s12] sm:$0x3]
    %v6602 = vlaneseq
    %v6603 = vshrl.u32 %v6602, 7
    %v6604 = vsub.s32 0, %v6603
    %v6605 = vrot.slane %v6600, %v6604
    %v6606 = vlaneseq
    %v6607 = vshrl.u32 %v6606, 7
    %v6608 = vsub.s32 1, %v6607
    %v6609 = vrot.slane %v6600, %v6608
    %v6612 = vpack.c.b16 %v6379, %v6377
    %v6613 = vpack.c.b16 %v6380, %v6378
    %v6614 = vpack.c.b16 %v6421, %v6419
    %v6615 = vpack.c.b16 %v6422, %v6420
    %v6684 = vunpack.c.l.b16 %v6536
    %v6685 = vunpack.c.h.b16 %v6536
    %v6686 = vunpack.c.l.b16 %v6537
    %v6687 = vunpack.c.h.b16 %v6537
    %v6688 = vunpack.c.l.b16 %v6538
    %v6689 = vunpack.c.h.b16 %v6538
    %v6690 = vunpack.c.l.b16 %v6539
    %v6691 = vunpack.c.h.b16 %v6539
    %v6692 = vunpack.c.l.b16 %v6540
    %v6693 = vunpack.c.h.b16 %v6540
    %v6694 = vunpack.c.l.b16 %v6541
    %v6695 = vunpack.c.h.b16 %v6541
    %v6696 = vunpack.c.l.b16 %v6542
    %v6697 = vunpack.c.h.b16 %v6542
    %v6698 = vunpack.c.l.b16 %v6543
    %v6699 = vunpack.c.h.b16 %v6543
    %v6700 = vunpack.c.l.b16 %v6544
    %v6701 = vunpack.c.h.b16 %v6544
    %v6702 = vunpack.c.l.b16 %v6545
    %v6703 = vunpack.c.h.b16 %v6545
    %v6704 = vunpack.c.l.b16 %v6546
    %v6705 = vunpack.c.h.b16 %v6546
    %v6706 = vunpack.c.l.b16 %v6547
    %v6707 = vunpack.c.h.b16 %v6547
    %v6708 = vunpack.c.l.b16 %v6548
    %v6709 = vunpack.c.h.b16 %v6548
    %v6710 = vunpack.c.l.b16 %v6549
    %v6711 = vunpack.c.h.b16 %v6549
    %v6712 = vunpack.c.l.b16 %v6550
    %v6713 = vunpack.c.h.b16 %v6550
    %v6714 = vunpack.c.l.b16 %v6551
    %v6715 = vunpack.c.h.b16 %v6551
    %v6716 = vunpack.c.l.b16 %v6552
    %v6717 = vunpack.c.h.b16 %v6552
    %v6718 = vunpack.c.l.b16 %v6553
    %v6719 = vunpack.c.h.b16 %v6553
    %v6720 = vunpack.c.l.b16 %v6554
    %v6721 = vunpack.c.h.b16 %v6554
    %v6722 = vunpack.c.l.b16 %v6555
    %v6723 = vunpack.c.h.b16 %v6555
    %v6724 = vunpack.c.l.b16 %v6556
    %v6725 = vunpack.c.h.b16 %v6556
    %v6726 = vunpack.c.l.b16 %v6557
    %v6727 = vunpack.c.h.b16 %v6557
    %v6728 = vunpack.c.l.b16 %v6558
    %v6729 = vunpack.c.h.b16 %v6558
    %v6730 = vunpack.c.l.b16 %v6559
    %v6731 = vunpack.c.h.b16 %v6559
    %v6732 = vunpack.c.l.b16 %v6560
    %v6733 = vunpack.c.h.b16 %v6560
    %v6734 = vunpack.c.l.b16 %v6561
    %v6735 = vunpack.c.h.b16 %v6561
    %v6736 = vunpack.c.l.b16 %v6562
    %v6737 = vunpack.c.h.b16 %v6562
    %v6738 = vunpack.c.l.b16 %v6563
    %v6739 = vunpack.c.h.b16 %v6563
    %v6740 = vunpack.c.l.b16 %v6564
    %v6741 = vunpack.c.h.b16 %v6564
    %v6742 = vunpack.c.l.b16 %v6565
    %v6743 = vunpack.c.h.b16 %v6565
    %v6744 = vunpack.c.l.b16 %v6566
    %v6745 = vunpack.c.h.b16 %v6566
    %v6746 = vunpack.c.l.b16 %v6567
    %v6747 = vunpack.c.h.b16 %v6567
    %v6748 = vunpack.c.l.b16 %v6568
    %v6749 = vunpack.c.h.b16 %v6568
    %v6750 = vunpack.c.l.b16 %v6569
    %v6751 = vunpack.c.h.b16 %v6569
    %v6752 = vunpack.c.l.b16 %v6570
    %v6753 = vunpack.c.h.b16 %v6570
    %v6754 = vunpack.c.l.b16 %v6571
    %v6755 = vunpack.c.h.b16 %v6571
    %v6756 = vunpack.c.l.b16 %v6572
    %v6757 = vunpack.c.h.b16 %v6572
    %v6758 = vunpack.c.l.b16 %v6573
    %v6759 = vunpack.c.h.b16 %v6573
    %v6760 = vunpack.c.l.b16 %v6574
    %v6761 = vunpack.c.h.b16 %v6574
    %v6762 = vunpack.c.l.b16 %v6575
    %v6763 = vunpack.c.h.b16 %v6575
    %v6764 = vunpack.c.l.b16 %v6576
    %v6765 = vunpack.c.h.b16 %v6576
    %v6766 = vunpack.c.l.b16 %v6577
    %v6767 = vunpack.c.h.b16 %v6577
    %v6768 = vunpack.c.l.b16 %v6578
    %v6769 = vunpack.c.h.b16 %v6578
    %v6770 = vunpack.c.l.b16 %v6579
    %v6771 = vunpack.c.h.b16 %v6579
    %v6772 = vunpack.c.l.b16 %v6580
    %v6773 = vunpack.c.h.b16 %v6580
    %v6774 = vunpack.c.l.b16 %v6581
    %v6775 = vunpack.c.h.b16 %v6581
    %v6776 = vunpack.c.l.b16 %v6582
    %v6777 = vunpack.c.h.b16 %v6582
    %v6778 = vunpack.c.l.b16 %v6583
    %v6779 = vunpack.c.h.b16 %v6583
    %v6780 = vunpack.c.l.b16 %v6584
    %v6781 = vunpack.c.h.b16 %v6584
    %v6782 = vunpack.c.l.b16 %v6585
    %v6783 = vunpack.c.h.b16 %v6585
    %v6784 = vunpack.c.l.b16 %v6586
    %v6785 = vunpack.c.h.b16 %v6586
    %v6786 = vunpack.c.l.b16 %v6587
    %v6787 = vunpack.c.h.b16 %v6587
    %v6788 = vunpack.c.l.b16 %v6588
    %v6789 = vunpack.c.h.b16 %v6588
    %v6790 = vunpack.c.l.b16 %v6589
    %v6791 = vunpack.c.h.b16 %v6589
    %v6792 = vunpack.c.l.b16 %v6590
    %v6793 = vunpack.c.h.b16 %v6590
    %v6794 = vunpack.c.l.b16 %v6591
    %v6795 = vunpack.c.h.b16 %v6591
    %v6796 = vunpack.c.l.b16 %v6592
    %v6797 = vunpack.c.h.b16 %v6592
    %v6798 = vunpack.c.l.b16 %v6593
    %v6799 = vunpack.c.h.b16 %v6593
    %v6800 = vunpack.c.l.b16 %v6594
    %v6801 = vunpack.c.h.b16 %v6594
    %v6802 = vunpack.c.l.b16 %v6595
    %v6803 = vunpack.c.h.b16 %v6595
    %v6804 = vunpack.c.l.b16 %v6596
    %v6805 = vunpack.c.h.b16 %v6596
    %v6806 = vunpack.c.l.b16 %v6597
    %v6807 = vunpack.c.h.b16 %v6597
    %v6808 = vunpack.c.l.b16 %v6598
    %v6809 = vunpack.c.h.b16 %v6598
    %v6810 = vunpack.c.l.b16 %v6599
    %v6811 = vunpack.c.h.b16 %v6599
    %v6812 = vpack.c.b16 %v6686, %v6684
    %v6813 = vpack.c.b16 %v6687, %v6685
    %v6814 = vpack.c.b16 %v6690, %v6688
    %v6815 = vpack.c.b16 %v6691, %v6689
    %v6816 = vpack.c.b16 %v6694, %v6692
    %v6817 = vpack.c.b16 %v6695, %v6693
    %v6818 = vpack.c.b16 %v6698, %v6696
    %v6819 = vpack.c.b16 %v6699, %v6697
    %v6820 = vpack.c.b16 %v6702, %v6700
    %v6821 = vpack.c.b16 %v6703, %v6701
    %v6822 = vpack.c.b16 %v6706, %v6704
    %v6823 = vpack.c.b16 %v6707, %v6705
    %v6824 = vpack.c.b16 %v6710, %v6708
    %v6825 = vpack.c.b16 %v6711, %v6709
    %v6826 = vpack.c.b16 %v6714, %v6712
    %v6827 = vpack.c.b16 %v6715, %v6713
    %v6828 = vpack.c.b16 %v6718, %v6716
    %v6829 = vpack.c.b16 %v6719, %v6717
    %v6830 = vpack.c.b16 %v6722, %v6720
    %v6831 = vpack.c.b16 %v6723, %v6721
    %v6832 = vpack.c.b16 %v6726, %v6724
    %v6833 = vpack.c.b16 %v6727, %v6725
    %v6834 = vpack.c.b16 %v6730, %v6728
    %v6835 = vpack.c.b16 %v6731, %v6729
    %v6836 = vpack.c.b16 %v6734, %v6732
    %v6837 = vpack.c.b16 %v6735, %v6733
    %v6838 = vpack.c.b16 %v6738, %v6736
    %v6839 = vpack.c.b16 %v6739, %v6737
    %v6840 = vpack.c.b16 %v6742, %v6740
    %v6841 = vpack.c.b16 %v6743, %v6741
    %v6842 = vpack.c.b16 %v6746, %v6744
    %v6843 = vpack.c.b16 %v6747, %v6745
    %v6844 = vpack.c.b16 %v6750, %v6748
    %v6845 = vpack.c.b16 %v6751, %v6749
    %v6846 = vpack.c.b16 %v6754, %v6752
    %v6847 = vpack.c.b16 %v6755, %v6753
    %v6848 = vpack.c.b16 %v6758, %v6756
    %v6849 = vpack.c.b16 %v6759, %v6757
    %v6850 = vpack.c.b16 %v6762, %v6760
    %v6851 = vpack.c.b16 %v6763, %v6761
    %v6852 = vpack.c.b16 %v6766, %v6764
    %v6853 = vpack.c.b16 %v6767, %v6765
    %v6854 = vpack.c.b16 %v6770, %v6768
    %v6855 = vpack.c.b16 %v6771, %v6769
    %v6856 = vpack.c.b16 %v6774, %v6772
    %v6857 = vpack.c.b16 %v6775, %v6773
    %v6858 = vpack.c.b16 %v6778, %v6776
    %v6859 = vpack.c.b16 %v6779, %v6777
    %v6860 = vpack.c.b16 %v6782, %v6780
    %v6861 = vpack.c.b16 %v6783, %v6781
    %v6862 = vpack.c.b16 %v6786, %v6784
    %v6863 = vpack.c.b16 %v6787, %v6785
    %v6864 = vpack.c.b16 %v6790, %v6788
    %v6865 = vpack.c.b16 %v6791, %v6789
    %v6866 = vpack.c.b16 %v6794, %v6792
    %v6867 = vpack.c.b16 %v6795, %v6793
    %v6868 = vpack.c.b16 %v6798, %v6796
    %v6869 = vpack.c.b16 %v6799, %v6797
    %v6870 = vpack.c.b16 %v6802, %v6800
    %v6871 = vpack.c.b16 %v6803, %v6801
    %v6872 = vpack.c.b16 %v6806, %v6804
    %v6873 = vpack.c.b16 %v6807, %v6805
    %v6874 = vpack.c.b16 %v6810, %v6808
    %v6875 = vpack.c.b16 %v6811, %v6809
    %6940 = vmatprep.subr.bf16.mxu0 %v6813
    %6941 = vmatpush1.bf16.msra.mxu0 %v6812
    %6942 = vmatprep.subr.bf16.mxu0 %v6815
    %6943 = vmatpush1.bf16.msra.mxu0 %v6814
    %6944 = vmatprep.subr.bf16.mxu0 %v6817
    %6945 = vmatpush1.bf16.msra.mxu0 %v6816
    %6946 = vmatprep.subr.bf16.mxu0 %v6819
    %6947 = vmatpush1.bf16.msra.mxu0 %v6818
    %6948 = vmatprep.subr.bf16.mxu0 %v6821
    %6949 = vmatpush1.bf16.msra.mxu0 %v6820
    %6950 = vmatprep.subr.bf16.mxu0 %v6823
    %6951 = vmatpush1.bf16.msra.mxu0 %v6822
    %6952 = vmatprep.subr.bf16.mxu0 %v6825
    %6953 = vmatpush1.bf16.msra.mxu0 %v6824
    %6954 = vmatprep.subr.bf16.mxu0 %v6827
    %6955 = vmatpush1.bf16.msra.mxu0 %v6826
    %6956 = vmatprep.subr.bf16.mxu0 %v6829
    %6957 = vmatpush1.bf16.msra.mxu0 %v6828
    %6958 = vmatprep.subr.bf16.mxu0 %v6831
    %6959 = vmatpush1.bf16.msra.mxu0 %v6830
    %6960 = vmatprep.subr.bf16.mxu0 %v6833
    %6961 = vmatpush1.bf16.msra.mxu0 %v6832
    %6962 = vmatprep.subr.bf16.mxu0 %v6835
    %6963 = vmatpush1.bf16.msra.mxu0 %v6834
    %6964 = vmatprep.subr.bf16.mxu0 %v6837
    %6965 = vmatpush1.bf16.msra.mxu0 %v6836
    %6966 = vmatprep.subr.bf16.mxu0 %v6839
    %6967 = vmatpush1.bf16.msra.mxu0 %v6838
    %6968 = vmatprep.subr.bf16.mxu0 %v6841
    %6969 = vmatpush1.bf16.msra.mxu0 %v6840
    %6970 = vmatprep.subr.bf16.mxu0 %v6843
    %6971 = vmatpush1.bf16.msra.mxu0 %v6842
    %6972 = vmatprep.mubr.bf16.mxu0 %v6613
    %6973 = vmatmul.mubr.bf16.gmra.mrb[0].mxu0 %v6612
    %v6974 = vpop.f32.mrb[0].mxu0
    %v6975 = vadd.f32 %v6605, %v6974
    %v6976 = vpop.f32.mrb[0].mxu0
    %v6977 = vadd.f32 %v6609, %v6976
    %v6978 = vpop.f32.mrb[0].mxu0
    %v6979 = vadd.f32 %v6605, %v6978
    %v6980 = vpop.f32.mrb[0].mxu0
    %v6981 = vadd.f32 %v6609, %v6980
    %6982 = vdwg.mxu0
    %6983 = vmatprep.subr.bf16.mxu0 %v6845
    %6984 = vmatpush1.bf16.msra.mxu0 %v6844
    %6985 = vmatprep.subr.bf16.mxu0 %v6847
    %6986 = vmatpush1.bf16.msra.mxu0 %v6846
    %6987 = vmatprep.subr.bf16.mxu0 %v6849
    %6988 = vmatpush1.bf16.msra.mxu0 %v6848
    %6989 = vmatprep.subr.bf16.mxu0 %v6851
    %6990 = vmatpush1.bf16.msra.mxu0 %v6850
    %6991 = vmatprep.subr.bf16.mxu0 %v6853
    %6992 = vmatpush1.bf16.msra.mxu0 %v6852
    %6993 = vmatprep.subr.bf16.mxu0 %v6855
    %6994 = vmatpush1.bf16.msra.mxu0 %v6854
    %6995 = vmatprep.subr.bf16.mxu0 %v6857
    %6996 = vmatpush1.bf16.msra.mxu0 %v6856
    %6997 = vmatprep.subr.bf16.mxu0 %v6859
    %6998 = vmatpush1.bf16.msra.mxu0 %v6858
    %6999 = vmatprep.subr.bf16.mxu0 %v6861
    %7000 = vmatpush1.bf16.msra.mxu0 %v6860
    %7001 = vmatprep.subr.bf16.mxu0 %v6863
    %7002 = vmatpush1.bf16.msra.mxu0 %v6862
    %7003 = vmatprep.subr.bf16.mxu0 %v6865
    %7004 = vmatpush1.bf16.msra.mxu0 %v6864
    %7005 = vmatprep.subr.bf16.mxu0 %v6867
    %7006 = vmatpush1.bf16.msra.mxu0 %v6866
    %7007 = vmatprep.subr.bf16.mxu0 %v6869
    %7008 = vmatpush1.bf16.msra.mxu0 %v6868
    %7009 = vmatprep.subr.bf16.mxu0 %v6871
    %7010 = vmatpush1.bf16.msra.mxu0 %v6870
    %7011 = vmatprep.subr.bf16.mxu0 %v6873
    %7012 = vmatpush1.bf16.msra.mxu0 %v6872
    %7013 = vmatprep.subr.bf16.mxu0 %v6875
    %7014 = vmatpush1.bf16.msra.mxu0 %v6874
    %7015 = vmatprep.mubr.bf16.mxu0 %v6615
    %7016 = vmatmul.mubr.bf16.gmra.mrb[0].mxu0 %v6614
    %v7017 = vpop.f32.mrb[0].mxu0
    %v7018 = vadd.f32 %v6975, %v7017
    %v7019 = vpop.f32.mrb[0].mxu0
    %v7020 = vadd.f32 %v6977, %v7019
    %v7021 = vpop.f32.mrb[0].mxu0
    %v7022 = vadd.f32 %v6979, %v7021
    %v7023 = vpop.f32.mrb[0].mxu0
    %v7024 = vadd.f32 %v6981, %v7023
    %7025 = vdwg.mxu0
    %v7026 = vld [vmem:[#allocation15] sm:$0xff]
    %v7027 = vld [vmem:[#allocation15 + $0x8] sm:$0xff]
    %v7028 = vld [vmem:[#allocation15 + $0x10] sm:$0xff]
    %v7029 = vld [vmem:[#allocation15 + $0x18] sm:$0xff]
    %v7030 = vld [vmem:[#allocation15 + $0x20] sm:$0xff]
    %v7031 = vld [vmem:[#allocation15 + $0x28] sm:$0xff]
    %v7032 = vld [vmem:[#allocation15 + $0x30] sm:$0xff]
    %v7033 = vld [vmem:[#allocation15 + $0x38] sm:$0xff]
    %v7034 = vld [vmem:[#allocation15 + $0x40] sm:$0xff]
    %v7035 = vld [vmem:[#allocation15 + $0x48] sm:$0xff]
    %v7036 = vld [vmem:[#allocation15 + $0x50] sm:$0xff]
    %v7037 = vld [vmem:[#allocation15 + $0x58] sm:$0xff]
    %v7038 = vld [vmem:[#allocation15 + $0x60] sm:$0xff]
    %v7039 = vld [vmem:[#allocation15 + $0x68] sm:$0xff]
    %v7040 = vld [vmem:[#allocation15 + $0x70] sm:$0xff]
    %v7041 = vld [vmem:[#allocation15 + $0x78] sm:$0xff]
    %v7042 = vld [vmem:[#allocation15 + $0x80] sm:$0xff]
    %v7043 = vld [vmem:[#allocation15 + $0x88] sm:$0xff]
    %v7044 = vld [vmem:[#allocation15 + $0x90] sm:$0xff]
    %v7045 = vld [vmem:[#allocation15 + $0x98] sm:$0xff]
    %v7046 = vld [vmem:[#allocation15 + $0xa0] sm:$0xff]
    %v7047 = vld [vmem:[#allocation15 + $0xa8] sm:$0xff]
    %v7048 = vld [vmem:[#allocation15 + $0xb0] sm:$0xff]
    %v7049 = vld [vmem:[#allocation15 + $0xb8] sm:$0xff]
    %v7050 = vld [vmem:[#allocation15 + $0xc0] sm:$0xff]
    %v7051 = vld [vmem:[#allocation15 + $0xc8] sm:$0xff]
    %v7052 = vld [vmem:[#allocation15 + $0xd0] sm:$0xff]
    %v7053 = vld [vmem:[#allocation15 + $0xd8] sm:$0xff]
    %v7054 = vld [vmem:[#allocation15 + $0xe0] sm:$0xff]
    %v7055 = vld [vmem:[#allocation15 + $0xe8] sm:$0xff]
    %v7056 = vld [vmem:[#allocation15 + $0xf0] sm:$0xff]
    %v7057 = vld [vmem:[#allocation15 + $0xf8] sm:$0xff]
    %v7058 = vld [vmem:[#allocation15 + $0x100] sm:$0xff]
    %v7059 = vld [vmem:[#allocation15 + $0x108] sm:$0xff]
    %v7060 = vld [vmem:[#allocation15 + $0x110] sm:$0xff]
    %v7061 = vld [vmem:[#allocation15 + $0x118] sm:$0xff]
    %v7062 = vld [vmem:[#allocation15 + $0x120] sm:$0xff]
    %v7063 = vld [vmem:[#allocation15 + $0x128] sm:$0xff]
    %v7064 = vld [vmem:[#allocation15 + $0x130] sm:$0xff]
    %v7065 = vld [vmem:[#allocation15 + $0x138] sm:$0xff]
    %v7066 = vld [vmem:[#allocation15 + $0x140] sm:$0xff]
    %v7067 = vld [vmem:[#allocation15 + $0x148] sm:$0xff]
    %v7068 = vld [vmem:[#allocation15 + $0x150] sm:$0xff]
    %v7069 = vld [vmem:[#allocation15 + $0x158] sm:$0xff]
    %v7070 = vld [vmem:[#allocation15 + $0x160] sm:$0xff]
    %v7071 = vld [vmem:[#allocation15 + $0x168] sm:$0xff]
    %v7072 = vld [vmem:[#allocation15 + $0x170] sm:$0xff]
    %v7073 = vld [vmem:[#allocation15 + $0x178] sm:$0xff]
    %v7074 = vld [vmem:[#allocation15 + $0x180] sm:$0xff]
    %v7075 = vld [vmem:[#allocation15 + $0x188] sm:$0xff]
    %v7076 = vld [vmem:[#allocation15 + $0x190] sm:$0xff]
    %v7077 = vld [vmem:[#allocation15 + $0x198] sm:$0xff]
    %v7078 = vld [vmem:[#allocation15 + $0x1a0] sm:$0xff]
    %v7079 = vld [vmem:[#allocation15 + $0x1a8] sm:$0xff]
    %v7080 = vld [vmem:[#allocation15 + $0x1b0] sm:$0xff]
    %v7081 = vld [vmem:[#allocation15 + $0x1b8] sm:$0xff]
    %v7082 = vld [vmem:[#allocation15 + $0x1c0] sm:$0xff]
    %v7083 = vld [vmem:[#allocation15 + $0x1c8] sm:$0xff]
    %v7084 = vld [vmem:[#allocation15 + $0x1d0] sm:$0xff]
    %v7085 = vld [vmem:[#allocation15 + $0x1d8] sm:$0xff]
    %v7086 = vld [vmem:[#allocation15 + $0x1e0] sm:$0xff]
    %v7087 = vld [vmem:[#allocation15 + $0x1e8] sm:$0xff]
    %v7088 = vld [vmem:[#allocation15 + $0x1f0] sm:$0xff]
    %v7089 = vld [vmem:[#allocation15 + $0x1f8] sm:$0xff]
    %v7090 = vunpack.c.l.b16 %v6493
    %v7091 = vunpack.c.h.b16 %v6493
    %v7092 = vunpack.c.l.b16 %v6507
    %v7093 = vunpack.c.h.b16 %v6507
    %v7094 = vunpack.c.l.b16 %v6521
    %v7095 = vunpack.c.h.b16 %v6521
    %v7096 = vunpack.c.l.b16 %v6535
    %v7097 = vunpack.c.h.b16 %v6535
    %v7098 = vpack.c.b16 %v7094, %v7090
    %v7099 = vpack.c.b16 %v7095, %v7091
    %v7100 = vpack.c.b16 %v7096, %v7092
    %v7101 = vpack.c.b16 %v7097, %v7093
    %v7170 = vunpack.c.l.b16 %v7026
    %v7171 = vunpack.c.h.b16 %v7026
    %v7172 = vunpack.c.l.b16 %v7027
    %v7173 = vunpack.c.h.b16 %v7027
    %v7174 = vunpack.c.l.b16 %v7028
    %v7175 = vunpack.c.h.b16 %v7028
    %v7176 = vunpack.c.l.b16 %v7029
    %v7177 = vunpack.c.h.b16 %v7029
    %v7178 = vunpack.c.l.b16 %v7030
    %v7179 = vunpack.c.h.b16 %v7030
    %v7180 = vunpack.c.l.b16 %v7031
    %v7181 = vunpack.c.h.b16 %v7031
    %v7182 = vunpack.c.l.b16 %v7032
    %v7183 = vunpack.c.h.b16 %v7032
    %v7184 = vunpack.c.l.b16 %v7033
    %v7185 = vunpack.c.h.b16 %v7033
    %v7186 = vunpack.c.l.b16 %v7034
    %v7187 = vunpack.c.h.b16 %v7034
    %v7188 = vunpack.c.l.b16 %v7035
    %v7189 = vunpack.c.h.b16 %v7035
    %v7190 = vunpack.c.l.b16 %v7036
    %v7191 = vunpack.c.h.b16 %v7036
    %v7192 = vunpack.c.l.b16 %v7037
    %v7193 = vunpack.c.h.b16 %v7037
    %v7194 = vunpack.c.l.b16 %v7038
    %v7195 = vunpack.c.h.b16 %v7038
    %v7196 = vunpack.c.l.b16 %v7039
    %v7197 = vunpack.c.h.b16 %v7039
    %v7198 = vunpack.c.l.b16 %v7040
    %v7199 = vunpack.c.h.b16 %v7040
    %v7200 = vunpack.c.l.b16 %v7041
    %v7201 = vunpack.c.h.b16 %v7041
    %v7202 = vunpack.c.l.b16 %v7042
    %v7203 = vunpack.c.h.b16 %v7042
    %v7204 = vunpack.c.l.b16 %v7043
    %v7205 = vunpack.c.h.b16 %v7043
    %v7206 = vunpack.c.l.b16 %v7044
    %v7207 = vunpack.c.h.b16 %v7044
    %v7208 = vunpack.c.l.b16 %v7045
    %v7209 = vunpack.c.h.b16 %v7045
    %v7210 = vunpack.c.l.b16 %v7046
    %v7211 = vunpack.c.h.b16 %v7046
    %v7212 = vunpack.c.l.b16 %v7047
    %v7213 = vunpack.c.h.b16 %v7047
    %v7214 = vunpack.c.l.b16 %v7048
    %v7215 = vunpack.c.h.b16 %v7048
    %v7216 = vunpack.c.l.b16 %v7049
    %v7217 = vunpack.c.h.b16 %v7049
    %v7218 = vunpack.c.l.b16 %v7050
    %v7219 = vunpack.c.h.b16 %v7050
    %v7220 = vunpack.c.l.b16 %v7051
    %v7221 = vunpack.c.h.b16 %v7051
    %v7222 = vunpack.c.l.b16 %v7052
    %v7223 = vunpack.c.h.b16 %v7052
    %v7224 = vunpack.c.l.b16 %v7053
    %v7225 = vunpack.c.h.b16 %v7053
    %v7226 = vunpack.c.l.b16 %v7054
    %v7227 = vunpack.c.h.b16 %v7054
    %v7228 = vunpack.c.l.b16 %v7055
    %v7229 = vunpack.c.h.b16 %v7055
    %v7230 = vunpack.c.l.b16 %v7056
    %v7231 = vunpack.c.h.b16 %v7056
    %v7232 = vunpack.c.l.b16 %v7057
    %v7233 = vunpack.c.h.b16 %v7057
    %v7234 = vunpack.c.l.b16 %v7058
    %v7235 = vunpack.c.h.b16 %v7058
    %v7236 = vunpack.c.l.b16 %v7059
    %v7237 = vunpack.c.h.b16 %v7059
    %v7238 = vunpack.c.l.b16 %v7060
    %v7239 = vunpack.c.h.b16 %v7060
    %v7240 = vunpack.c.l.b16 %v7061
    %v7241 = vunpack.c.h.b16 %v7061
    %v7242 = vunpack.c.l.b16 %v7062
    %v7243 = vunpack.c.h.b16 %v7062
    %v7244 = vunpack.c.l.b16 %v7063
    %v7245 = vunpack.c.h.b16 %v7063
    %v7246 = vunpack.c.l.b16 %v7064
    %v7247 = vunpack.c.h.b16 %v7064
    %v7248 = vunpack.c.l.b16 %v7065
    %v7249 = vunpack.c.h.b16 %v7065
    %v7250 = vunpack.c.l.b16 %v7066
    %v7251 = vunpack.c.h.b16 %v7066
    %v7252 = vunpack.c.l.b16 %v7067
    %v7253 = vunpack.c.h.b16 %v7067
    %v7254 = vunpack.c.l.b16 %v7068
    %v7255 = vunpack.c.h.b16 %v7068
    %v7256 = vunpack.c.l.b16 %v7069
    %v7257 = vunpack.c.h.b16 %v7069
    %v7258 = vunpack.c.l.b16 %v7070
    %v7259 = vunpack.c.h.b16 %v7070
    %v7260 = vunpack.c.l.b16 %v7071
    %v7261 = vunpack.c.h.b16 %v7071
    %v7262 = vunpack.c.l.b16 %v7072
    %v7263 = vunpack.c.h.b16 %v7072
    %v7264 = vunpack.c.l.b16 %v7073
    %v7265 = vunpack.c.h.b16 %v7073
    %v7266 = vunpack.c.l.b16 %v7074
    %v7267 = vunpack.c.h.b16 %v7074
    %v7268 = vunpack.c.l.b16 %v7075
    %v7269 = vunpack.c.h.b16 %v7075
    %v7270 = vunpack.c.l.b16 %v7076
    %v7271 = vunpack.c.h.b16 %v7076
    %v7272 = vunpack.c.l.b16 %v7077
    %v7273 = vunpack.c.h.b16 %v7077
    %v7274 = vunpack.c.l.b16 %v7078
    %v7275 = vunpack.c.h.b16 %v7078
    %v7276 = vunpack.c.l.b16 %v7079
    %v7277 = vunpack.c.h.b16 %v7079
    %v7278 = vunpack.c.l.b16 %v7080
    %v7279 = vunpack.c.h.b16 %v7080
    %v7280 = vunpack.c.l.b16 %v7081
    %v7281 = vunpack.c.h.b16 %v7081
    %v7282 = vunpack.c.l.b16 %v7082
    %v7283 = vunpack.c.h.b16 %v7082
    %v7284 = vunpack.c.l.b16 %v7083
    %v7285 = vunpack.c.h.b16 %v7083
    %v7286 = vunpack.c.l.b16 %v7084
    %v7287 = vunpack.c.h.b16 %v7084
    %v7288 = vunpack.c.l.b16 %v7085
    %v7289 = vunpack.c.h.b16 %v7085
    %v7290 = vunpack.c.l.b16 %v7086
    %v7291 = vunpack.c.h.b16 %v7086
    %v7292 = vunpack.c.l.b16 %v7087
    %v7293 = vunpack.c.h.b16 %v7087
    %v7294 = vunpack.c.l.b16 %v7088
    %v7295 = vunpack.c.h.b16 %v7088
    %v7296 = vunpack.c.l.b16 %v7089
    %v7297 = vunpack.c.h.b16 %v7089
    %v7298 = vpack.c.b16 %v7172, %v7170
    %v7299 = vpack.c.b16 %v7173, %v7171
    %v7300 = vpack.c.b16 %v7176, %v7174
    %v7301 = vpack.c.b16 %v7177, %v7175
    %v7302 = vpack.c.b16 %v7180, %v7178
    %v7303 = vpack.c.b16 %v7181, %v7179
    %v7304 = vpack.c.b16 %v7184, %v7182
    %v7305 = vpack.c.b16 %v7185, %v7183
    %v7306 = vpack.c.b16 %v7188, %v7186
    %v7307 = vpack.c.b16 %v7189, %v7187
    %v7308 = vpack.c.b16 %v7192, %v7190
    %v7309 = vpack.c.b16 %v7193, %v7191
    %v7310 = vpack.c.b16 %v7196, %v7194
    %v7311 = vpack.c.b16 %v7197, %v7195
    %v7312 = vpack.c.b16 %v7200, %v7198
    %v7313 = vpack.c.b16 %v7201, %v7199
    %v7314 = vpack.c.b16 %v7204, %v7202
    %v7315 = vpack.c.b16 %v7205, %v7203
    %v7316 = vpack.c.b16 %v7208, %v7206
    %v7317 = vpack.c.b16 %v7209, %v7207
    %v7318 = vpack.c.b16 %v7212, %v7210
    %v7319 = vpack.c.b16 %v7213, %v7211
    %v7320 = vpack.c.b16 %v7216, %v7214
    %v7321 = vpack.c.b16 %v7217, %v7215
    %v7322 = vpack.c.b16 %v7220, %v7218
    %v7323 = vpack.c.b16 %v7221, %v7219
    %v7324 = vpack.c.b16 %v7224, %v7222
    %v7325 = vpack.c.b16 %v7225, %v7223
    %v7326 = vpack.c.b16 %v7228, %v7226
    %v7327 = vpack.c.b16 %v7229, %v7227
    %v7328 = vpack.c.b16 %v7232, %v7230
    %v7329 = vpack.c.b16 %v7233, %v7231
    %v7330 = vpack.c.b16 %v7236, %v7234
    %v7331 = vpack.c.b16 %v7237, %v7235
    %v7332 = vpack.c.b16 %v7240, %v7238
    %v7333 = vpack.c.b16 %v7241, %v7239
    %v7334 = vpack.c.b16 %v7244, %v7242
    %v7335 = vpack.c.b16 %v7245, %v7243
    %v7336 = vpack.c.b16 %v7248, %v7246
    %v7337 = vpack.c.b16 %v7249, %v7247
    %v7338 = vpack.c.b16 %v7252, %v7250
    %v7339 = vpack.c.b16 %v7253, %v7251
    %v7340 = vpack.c.b16 %v7256, %v7254
    %v7341 = vpack.c.b16 %v7257, %v7255
    %v7342 = vpack.c.b16 %v7260, %v7258
    %v7343 = vpack.c.b16 %v7261, %v7259
    %v7344 = vpack.c.b16 %v7264, %v7262
    %v7345 = vpack.c.b16 %v7265, %v7263
    %v7346 = vpack.c.b16 %v7268, %v7266
    %v7347 = vpack.c.b16 %v7269, %v7267
    %v7348 = vpack.c.b16 %v7272, %v7270
    %v7349 = vpack.c.b16 %v7273, %v7271
    %v7350 = vpack.c.b16 %v7276, %v7274
    %v7351 = vpack.c.b16 %v7277, %v7275
    %v7352 = vpack.c.b16 %v7280, %v7278
    %v7353 = vpack.c.b16 %v7281, %v7279
    %v7354 = vpack.c.b16 %v7284, %v7282
    %v7355 = vpack.c.b16 %v7285, %v7283
    %v7356 = vpack.c.b16 %v7288, %v7286
    %v7357 = vpack.c.b16 %v7289, %v7287
    %v7358 = vpack.c.b16 %v7292, %v7290
    %v7359 = vpack.c.b16 %v7293, %v7291
    %v7360 = vpack.c.b16 %v7296, %v7294
    %v7361 = vpack.c.b16 %v7297, %v7295
    %7426 = vmatprep.subr.bf16.mxu0 %v7299
    %7427 = vmatpush1.bf16.msra.mxu0 %v7298
    %7428 = vmatprep.subr.bf16.mxu0 %v7301
    %7429 = vmatpush1.bf16.msra.mxu0 %v7300
    %7430 = vmatprep.subr.bf16.mxu0 %v7303
    %7431 = vmatpush1.bf16.msra.mxu0 %v7302
    %7432 = vmatprep.subr.bf16.mxu0 %v7305
    %7433 = vmatpush1.bf16.msra.mxu0 %v7304
    %7434 = vmatprep.subr.bf16.mxu0 %v7307
    %7435 = vmatpush1.bf16.msra.mxu0 %v7306
    %7436 = vmatprep.subr.bf16.mxu0 %v7309
    %7437 = vmatpush1.bf16.msra.mxu0 %v7308
    %7438 = vmatprep.subr.bf16.mxu0 %v7311
    %7439 = vmatpush1.bf16.msra.mxu0 %v7310
    %7440 = vmatprep.subr.bf16.mxu0 %v7313
    %7441 = vmatpush1.bf16.msra.mxu0 %v7312
    %7442 = vmatprep.subr.bf16.mxu0 %v7315
    %7443 = vmatpush1.bf16.msra.mxu0 %v7314
    %7444 = vmatprep.subr.bf16.mxu0 %v7317
    %7445 = vmatpush1.bf16.msra.mxu0 %v7316
    %7446 = vmatprep.subr.bf16.mxu0 %v7319
    %7447 = vmatpush1.bf16.msra.mxu0 %v7318
    %7448 = vmatprep.subr.bf16.mxu0 %v7321
    %7449 = vmatpush1.bf16.msra.mxu0 %v7320
    %7450 = vmatprep.subr.bf16.mxu0 %v7323
    %7451 = vmatpush1.bf16.msra.mxu0 %v7322
    %7452 = vmatprep.subr.bf16.mxu0 %v7325
    %7453 = vmatpush1.bf16.msra.mxu0 %v7324
    %7454 = vmatprep.subr.bf16.mxu0 %v7327
    %7455 = vmatpush1.bf16.msra.mxu0 %v7326
    %7456 = vmatprep.subr.bf16.mxu0 %v7329
    %7457 = vmatpush1.bf16.msra.mxu0 %v7328
    %7458 = vmatprep.mubr.bf16.mxu0 %v7099
    %7459 = vmatmul.mubr.bf16.gmra.mrb[0].mxu0 %v7098
    %v7460 = vpop.f32.mrb[0].mxu0
    %v7461 = vadd.f32 %v6605, %v7460
    %v7462 = vpop.f32.mrb[0].mxu0
    %v7463 = vadd.f32 %v6609, %v7462
    %v7464 = vpop.f32.mrb[0].mxu0
    %v7465 = vadd.f32 %v6605, %v7464
    %v7466 = vpop.f32.mrb[0].mxu0
    %v7467 = vadd.f32 %v6609, %v7466
    %7468 = vdwg.mxu0
    %7469 = vmatprep.subr.bf16.mxu0 %v7331
    %7470 = vmatpush1.bf16.msra.mxu0 %v7330
    %7471 = vmatprep.subr.bf16.mxu0 %v7333
    %7472 = vmatpush1.bf16.msra.mxu0 %v7332
    %7473 = vmatprep.subr.bf16.mxu0 %v7335
    %7474 = vmatpush1.bf16.msra.mxu0 %v7334
    %7475 = vmatprep.subr.bf16.mxu0 %v7337
    %7476 = vmatpush1.bf16.msra.mxu0 %v7336
    %7477 = vmatprep.subr.bf16.mxu0 %v7339
    %7478 = vmatpush1.bf16.msra.mxu0 %v7338
    %7479 = vmatprep.subr.bf16.mxu0 %v7341
    %7480 = vmatpush1.bf16.msra.mxu0 %v7340
    %7481 = vmatprep.subr.bf16.mxu0 %v7343
    %7482 = vmatpush1.bf16.msra.mxu0 %v7342
    %7483 = vmatprep.subr.bf16.mxu0 %v7345
    %7484 = vmatpush1.bf16.msra.mxu0 %v7344
    %7485 = vmatprep.subr.bf16.mxu0 %v7347
    %7486 = vmatpush1.bf16.msra.mxu0 %v7346
    %7487 = vmatprep.subr.bf16.mxu0 %v7349
    %7488 = vmatpush1.bf16.msra.mxu0 %v7348
    %7489 = vmatprep.subr.bf16.mxu0 %v7351
    %7490 = vmatpush1.bf16.msra.mxu0 %v7350
    %7491 = vmatprep.subr.bf16.mxu0 %v7353
    %7492 = vmatpush1.bf16.msra.mxu0 %v7352
    %7493 = vmatprep.subr.bf16.mxu0 %v7355
    %7494 = vmatpush1.bf16.msra.mxu0 %v7354
    %7495 = vmatprep.subr.bf16.mxu0 %v7357
    %7496 = vmatpush1.bf16.msra.mxu0 %v7356
    %7497 = vmatprep.subr.bf16.mxu0 %v7359
    %7498 = vmatpush1.bf16.msra.mxu0 %v7358
    %7499 = vmatprep.subr.bf16.mxu0 %v7361
    %7500 = vmatpush1.bf16.msra.mxu0 %v7360
    %7501 = vmatprep.mubr.bf16.mxu0 %v7101
    %7502 = vmatmul.mubr.bf16.gmra.mrb[0].mxu0 %v7100
    %v7503 = vpop.f32.mrb[0].mxu0
    %v7504 = vadd.f32 %v7461, %v7503
    %v7505 = vpop.f32.mrb[0].mxu0
    %v7506 = vadd.f32 %v7463, %v7505
    %v7507 = vpop.f32.mrb[0].mxu0
    %v7508 = vadd.f32 %v7465, %v7507
    %v7509 = vpop.f32.mrb[0].mxu0
    %v7510 = vadd.f32 %v7467, %v7509
    %7511 = vdwg.mxu0
    %v7512 = vmax.f32 %v7018, 0.0
    %v7513 = vmax.f32 %v7020, 0.0
    %v7514 = vmax.f32 %v7022, 0.0
    %v7515 = vmax.f32 %v7024, 0.0
    %v7516 = vmax.f32 %v7504, 0.0
    %v7517 = vmax.f32 %v7506, 0.0
    %v7518 = vmax.f32 %v7508, 0.0
    %v7519 = vmax.f32 %v7510, 0.0
    %v7524 = vcombine.low %v7512, %v7513
    %v7525 = vcombine.high %v7512, %v7513
    %v7527 = vunpack.c.l.s4 1966171168
    %v7528 = vunpack.c.0.s8 %v7527
    %v7529 = vlaneseq
    %v7530 = vshrl.u32 %v7529, 7
    %v7531 = vsub.s32 %v7528, %v7530
    %v7532 = vrot.slane %v7524, %v7531
    %v7534 = vunpack.c.l.s4 1966171168
    %v7535 = vunpack.c.0.s8 %v7534
    %v7536 = vlaneseq
    %v7537 = vshrl.u32 %v7536, 7
    %v7538 = vsub.s32 %v7535, %v7537
    %v7539 = vrot.slane %v7525, %v7538
    %v7540 = vcombine.high %v7532, %v7532
    %v7541 = vcombine.high %v7539, %v7539
    %v7543 = vunpack.c.l.s4 1966171168
    %v7544 = vunpack.c.0.s8 %v7543
    %v7545 = vlaneseq
    %v7546 = vshrl.u32 %v7545, 7
    %v7547 = vsub.s32 %v7544, %v7546
    %v7548 = vrot.slane %v7532, %v7547
    %v7550 = vunpack.c.l.s4 1966171168
    %v7551 = vunpack.c.0.s8 %v7550
    %v7552 = vlaneseq
    %v7553 = vshrl.u32 %v7552, 7
    %v7554 = vsub.s32 %v7551, %v7553
    %v7555 = vrot.slane %v7539, %v7554
    %v7557 = vunpack.c.l.s4 1966171168
    %v7558 = vunpack.c.0.s8 %v7557
    %v7559 = vlaneseq
    %v7560 = vshrl.u32 %v7559, 7
    %v7561 = vsub.s32 %v7558, %v7560
    %v7562 = vrot.slane %v7540, %v7561
    %v7564 = vunpack.c.l.s4 1966171168
    %v7565 = vunpack.c.0.s8 %v7564
    %v7566 = vlaneseq
    %v7567 = vshrl.u32 %v7566, 7
    %v7568 = vsub.s32 %v7565, %v7567
    %v7569 = vrot.slane %v7541, %v7568
    %v7570 = vcombine.high %v7548, %v7548
    %v7571 = vcombine.high %v7555, %v7555
    %v7572 = vcombine.high %v7562, %v7562
    %v7573 = vcombine.high %v7569, %v7569
    %v7574 = vcombine.low %v7514, %v7515
    %v7575 = vcombine.high %v7514, %v7515
    %v7577 = vunpack.c.l.s4 1966171168
    %v7578 = vunpack.c.0.s8 %v7577
    %v7579 = vlaneseq
    %v7580 = vshrl.u32 %v7579, 7
    %v7581 = vsub.s32 %v7578, %v7580
    %v7582 = vrot.slane %v7574, %v7581
    %v7584 = vunpack.c.l.s4 1966171168
    %v7585 = vunpack.c.0.s8 %v7584
    %v7586 = vlaneseq
    %v7587 = vshrl.u32 %v7586, 7
    %v7588 = vsub.s32 %v7585, %v7587
    %v7589 = vrot.slane %v7575, %v7588
    %v7590 = vcombine.high %v7582, %v7582
    %v7591 = vcombine.high %v7589, %v7589
    %v7593 = vunpack.c.l.s4 1966171168
    %v7594 = vunpack.c.0.s8 %v7593
    %v7595 = vlaneseq
    %v7596 = vshrl.u32 %v7595, 7
    %v7597 = vsub.s32 %v7594, %v7596
    %v7598 = vrot.slane %v7582, %v7597
    %v7600 = vunpack.c.l.s4 1966171168
    %v7601 = vunpack.c.0.s8 %v7600
    %v7602 = vlaneseq
    %v7603 = vshrl.u32 %v7602, 7
    %v7604 = vsub.s32 %v7601, %v7603
    %v7605 = vrot.slane %v7589, %v7604
    %v7607 = vunpack.c.l.s4 1966171168
    %v7608 = vunpack.c.0.s8 %v7607
    %v7609 = vlaneseq
    %v7610 = vshrl.u32 %v7609, 7
    %v7611 = vsub.s32 %v7608, %v7610
    %v7612 = vrot.slane %v7590, %v7611
    %v7614 = vunpack.c.l.s4 1966171168
    %v7615 = vunpack.c.0.s8 %v7614
    %v7616 = vlaneseq
    %v7617 = vshrl.u32 %v7616, 7
    %v7618 = vsub.s32 %v7615, %v7617
    %v7619 = vrot.slane %v7591, %v7618
    %v7620 = vcombine.high %v7598, %v7598
    %v7621 = vcombine.high %v7605, %v7605
    %v7622 = vcombine.high %v7612, %v7612
    %v7623 = vcombine.high %v7619, %v7619
    %v7628 = vcombine.low %v7516, %v7517
    %v7629 = vcombine.high %v7516, %v7517
    %v7631 = vunpack.c.l.s4 1966171168
    %v7632 = vunpack.c.0.s8 %v7631
    %v7633 = vlaneseq
    %v7634 = vshrl.u32 %v7633, 7
    %v7635 = vsub.s32 %v7632, %v7634
    %v7636 = vrot.slane %v7628, %v7635
    %v7638 = vunpack.c.l.s4 1966171168
    %v7639 = vunpack.c.0.s8 %v7638
    %v7640 = vlaneseq
    %v7641 = vshrl.u32 %v7640, 7
    %v7642 = vsub.s32 %v7639, %v7641
    %v7643 = vrot.slane %v7629, %v7642
    %v7644 = vcombine.high %v7636, %v7636
    %v7645 = vcombine.high %v7643, %v7643
    %v7647 = vunpack.c.l.s4 1966171168
    %v7648 = vunpack.c.0.s8 %v7647
    %v7649 = vlaneseq
    %v7650 = vshrl.u32 %v7649, 7
    %v7651 = vsub.s32 %v7648, %v7650
    %v7652 = vrot.slane %v7636, %v7651
    %v7654 = vunpack.c.l.s4 1966171168
    %v7655 = vunpack.c.0.s8 %v7654
    %v7656 = vlaneseq
    %v7657 = vshrl.u32 %v7656, 7
    %v7658 = vsub.s32 %v7655, %v7657
    %v7659 = vrot.slane %v7643, %v7658
    %v7661 = vunpack.c.l.s4 1966171168
    %v7662 = vunpack.c.0.s8 %v7661
    %v7663 = vlaneseq
    %v7664 = vshrl.u32 %v7663, 7
    %v7665 = vsub.s32 %v7662, %v7664
    %v7666 = vrot.slane %v7644, %v7665
    %v7668 = vunpack.c.l.s4 1966171168
    %v7669 = vunpack.c.0.s8 %v7668
    %v7670 = vlaneseq
    %v7671 = vshrl.u32 %v7670, 7
    %v7672 = vsub.s32 %v7669, %v7671
    %v7673 = vrot.slane %v7645, %v7672
    %v7674 = vcombine.high %v7652, %v7652
    %v7675 = vcombine.high %v7659, %v7659
    %v7676 = vcombine.high %v7666, %v7666
    %v7677 = vcombine.high %v7673, %v7673
    %v7678 = vcombine.low %v7518, %v7519
    %v7679 = vcombine.high %v7518, %v7519
    %v7681 = vunpack.c.l.s4 1966171168
    %v7682 = vunpack.c.0.s8 %v7681
    %v7683 = vlaneseq
    %v7684 = vshrl.u32 %v7683, 7
    %v7685 = vsub.s32 %v7682, %v7684
    %v7686 = vrot.slane %v7678, %v7685
    %v7688 = vunpack.c.l.s4 1966171168
    %v7689 = vunpack.c.0.s8 %v7688
    %v7690 = vlaneseq
    %v7691 = vshrl.u32 %v7690, 7
    %v7692 = vsub.s32 %v7689, %v7691
    %v7693 = vrot.slane %v7679, %v7692
    %v7694 = vcombine.high %v7686, %v7686
    %v7695 = vcombine.high %v7693, %v7693
    %v7697 = vunpack.c.l.s4 1966171168
    %v7698 = vunpack.c.0.s8 %v7697
    %v7699 = vlaneseq
    %v7700 = vshrl.u32 %v7699, 7
    %v7701 = vsub.s32 %v7698, %v7700
    %v7702 = vrot.slane %v7686, %v7701
    %v7704 = vunpack.c.l.s4 1966171168
    %v7705 = vunpack.c.0.s8 %v7704
    %v7706 = vlaneseq
    %v7707 = vshrl.u32 %v7706, 7
    %v7708 = vsub.s32 %v7705, %v7707
    %v7709 = vrot.slane %v7693, %v7708
    %v7711 = vunpack.c.l.s4 1966171168
    %v7712 = vunpack.c.0.s8 %v7711
    %v7713 = vlaneseq
    %v7714 = vshrl.u32 %v7713, 7
    %v7715 = vsub.s32 %v7712, %v7714
    %v7716 = vrot.slane %v7694, %v7715
    %v7718 = vunpack.c.l.s4 1966171168
    %v7719 = vunpack.c.0.s8 %v7718
    %v7720 = vlaneseq
    %v7721 = vshrl.u32 %v7720, 7
    %v7722 = vsub.s32 %v7719, %v7721
    %v7723 = vrot.slane %v7695, %v7722
    %v7724 = vcombine.high %v7702, %v7702
    %v7725 = vcombine.high %v7709, %v7709
    %v7726 = vcombine.high %v7716, %v7716
    %v7727 = vcombine.high %v7723, %v7723
    %v7728 = vlaneseq
    %v7729 = vshrl.u32 %v7728, 7
    %v7730 = vsub.s32 0, %v7729
    %v7731 = vrot.slane %v7548, %v7730
    %v7732 = vlaneseq
    %v7733 = vshrl.u32 %v7732, 7
    %v7734 = vsub.s32 1, %v7733
    %v7735 = vrot.slane %v7548, %v7734
    %v7736 = vlaneseq
    %v7737 = vshrl.u32 %v7736, 7
    %v7738 = vsub.s32 0, %v7737
    %v7739 = vrot.slane %v7562, %v7738
    %v7740 = vlaneseq
    %v7741 = vshrl.u32 %v7740, 7
    %v7742 = vsub.s32 1, %v7741
    %v7743 = vrot.slane %v7562, %v7742
    %v7744 = vlaneseq
    %v7745 = vshrl.u32 %v7744, 7
    %v7746 = vsub.s32 0, %v7745
    %v7747 = vrot.slane %v7570, %v7746
    %v7748 = vlaneseq
    %v7749 = vshrl.u32 %v7748, 7
    %v7750 = vsub.s32 1, %v7749
    %v7751 = vrot.slane %v7570, %v7750
    %v7752 = vlaneseq
    %v7753 = vshrl.u32 %v7752, 7
    %v7754 = vsub.s32 0, %v7753
    %v7755 = vrot.slane %v7572, %v7754
    %v7756 = vlaneseq
    %v7757 = vshrl.u32 %v7756, 7
    %v7758 = vsub.s32 1, %v7757
    %v7759 = vrot.slane %v7572, %v7758
    %v7760 = vlaneseq
    %v7761 = vshrl.u32 %v7760, 7
    %v7762 = vsub.s32 0, %v7761
    %v7763 = vrot.slane %v7555, %v7762
    %v7764 = vlaneseq
    %v7765 = vshrl.u32 %v7764, 7
    %v7766 = vsub.s32 1, %v7765
    %v7767 = vrot.slane %v7555, %v7766
    %v7768 = vlaneseq
    %v7769 = vshrl.u32 %v7768, 7
    %v7770 = vsub.s32 0, %v7769
    %v7771 = vrot.slane %v7569, %v7770
    %v7772 = vlaneseq
    %v7773 = vshrl.u32 %v7772, 7
    %v7774 = vsub.s32 1, %v7773
    %v7775 = vrot.slane %v7569, %v7774
    %v7776 = vlaneseq
    %v7777 = vshrl.u32 %v7776, 7
    %v7778 = vsub.s32 0, %v7777
    %v7779 = vrot.slane %v7571, %v7778
    %v7780 = vlaneseq
    %v7781 = vshrl.u32 %v7780, 7
    %v7782 = vsub.s32 1, %v7781
    %v7783 = vrot.slane %v7571, %v7782
    %v7784 = vlaneseq
    %v7785 = vshrl.u32 %v7784, 7
    %v7786 = vsub.s32 0, %v7785
    %v7787 = vrot.slane %v7573, %v7786
    %v7788 = vlaneseq
    %v7789 = vshrl.u32 %v7788, 7
    %v7790 = vsub.s32 1, %v7789
    %v7791 = vrot.slane %v7573, %v7790
    %v7792 = vlaneseq
    %v7793 = vshrl.u32 %v7792, 7
    %v7794 = vsub.s32 0, %v7793
    %v7795 = vrot.slane %v7598, %v7794
    %v7796 = vlaneseq
    %v7797 = vshrl.u32 %v7796, 7
    %v7798 = vsub.s32 1, %v7797
    %v7799 = vrot.slane %v7598, %v7798
    %v7800 = vlaneseq
    %v7801 = vshrl.u32 %v7800, 7
    %v7802 = vsub.s32 0, %v7801
    %v7803 = vrot.slane %v7612, %v7802
    %v7804 = vlaneseq
    %v7805 = vshrl.u32 %v7804, 7
    %v7806 = vsub.s32 1, %v7805
    %v7807 = vrot.slane %v7612, %v7806
    %v7808 = vlaneseq
    %v7809 = vshrl.u32 %v7808, 7
    %v7810 = vsub.s32 0, %v7809
    %v7811 = vrot.slane %v7620, %v7810
    %v7812 = vlaneseq
    %v7813 = vshrl.u32 %v7812, 7
    %v7814 = vsub.s32 1, %v7813
    %v7815 = vrot.slane %v7620, %v7814
    %v7816 = vlaneseq
    %v7817 = vshrl.u32 %v7816, 7
    %v7818 = vsub.s32 0, %v7817
    %v7819 = vrot.slane %v7622, %v7818
    %v7820 = vlaneseq
    %v7821 = vshrl.u32 %v7820, 7
    %v7822 = vsub.s32 1, %v7821
    %v7823 = vrot.slane %v7622, %v7822
    %v7824 = vlaneseq
    %v7825 = vshrl.u32 %v7824, 7
    %v7826 = vsub.s32 0, %v7825
    %v7827 = vrot.slane %v7605, %v7826
    %v7828 = vlaneseq
    %v7829 = vshrl.u32 %v7828, 7
    %v7830 = vsub.s32 1, %v7829
    %v7831 = vrot.slane %v7605, %v7830
    %v7832 = vlaneseq
    %v7833 = vshrl.u32 %v7832, 7
    %v7834 = vsub.s32 0, %v7833
    %v7835 = vrot.slane %v7619, %v7834
    %v7836 = vlaneseq
    %v7837 = vshrl.u32 %v7836, 7
    %v7838 = vsub.s32 1, %v7837
    %v7839 = vrot.slane %v7619, %v7838
    %v7840 = vlaneseq
    %v7841 = vshrl.u32 %v7840, 7
    %v7842 = vsub.s32 0, %v7841
    %v7843 = vrot.slane %v7621, %v7842
    %v7844 = vlaneseq
    %v7845 = vshrl.u32 %v7844, 7
    %v7846 = vsub.s32 1, %v7845
    %v7847 = vrot.slane %v7621, %v7846
    %v7848 = vlaneseq
    %v7849 = vshrl.u32 %v7848, 7
    %v7850 = vsub.s32 0, %v7849
    %v7851 = vrot.slane %v7623, %v7850
    %v7852 = vlaneseq
    %v7853 = vshrl.u32 %v7852, 7
    %v7854 = vsub.s32 1, %v7853
    %v7855 = vrot.slane %v7623, %v7854
    %v7888 = vlaneseq
    %v7889 = vshrl.u32 %v7888, 7
    %v7890 = vsub.s32 0, %v7889
    %v7891 = vrot.slane %v7652, %v7890
    %v7892 = vlaneseq
    %v7893 = vshrl.u32 %v7892, 7
    %v7894 = vsub.s32 1, %v7893
    %v7895 = vrot.slane %v7652, %v7894
    %v7896 = vlaneseq
    %v7897 = vshrl.u32 %v7896, 7
    %v7898 = vsub.s32 0, %v7897
    %v7899 = vrot.slane %v7666, %v7898
    %v7900 = vlaneseq
    %v7901 = vshrl.u32 %v7900, 7
    %v7902 = vsub.s32 1, %v7901
    %v7903 = vrot.slane %v7666, %v7902
    %v7904 = vlaneseq
    %v7905 = vshrl.u32 %v7904, 7
    %v7906 = vsub.s32 0, %v7905
    %v7907 = vrot.slane %v7674, %v7906
    %v7908 = vlaneseq
    %v7909 = vshrl.u32 %v7908, 7
    %v7910 = vsub.s32 1, %v7909
    %v7911 = vrot.slane %v7674, %v7910
    %v7912 = vlaneseq
    %v7913 = vshrl.u32 %v7912, 7
    %v7914 = vsub.s32 0, %v7913
    %v7915 = vrot.slane %v7676, %v7914
    %v7916 = vlaneseq
    %v7917 = vshrl.u32 %v7916, 7
    %v7918 = vsub.s32 1, %v7917
    %v7919 = vrot.slane %v7676, %v7918
    %v7920 = vlaneseq
    %v7921 = vshrl.u32 %v7920, 7
    %v7922 = vsub.s32 0, %v7921
    %v7923 = vrot.slane %v7659, %v7922
    %v7924 = vlaneseq
    %v7925 = vshrl.u32 %v7924, 7
    %v7926 = vsub.s32 1, %v7925
    %v7927 = vrot.slane %v7659, %v7926
    %v7928 = vlaneseq
    %v7929 = vshrl.u32 %v7928, 7
    %v7930 = vsub.s32 0, %v7929
    %v7931 = vrot.slane %v7673, %v7930
    %v7932 = vlaneseq
    %v7933 = vshrl.u32 %v7932, 7
    %v7934 = vsub.s32 1, %v7933
    %v7935 = vrot.slane %v7673, %v7934
    %v7936 = vlaneseq
    %v7937 = vshrl.u32 %v7936, 7
    %v7938 = vsub.s32 0, %v7937
    %v7939 = vrot.slane %v7675, %v7938
    %v7940 = vlaneseq
    %v7941 = vshrl.u32 %v7940, 7
    %v7942 = vsub.s32 1, %v7941
    %v7943 = vrot.slane %v7675, %v7942
    %v7944 = vlaneseq
    %v7945 = vshrl.u32 %v7944, 7
    %v7946 = vsub.s32 0, %v7945
    %v7947 = vrot.slane %v7677, %v7946
    %v7948 = vlaneseq
    %v7949 = vshrl.u32 %v7948, 7
    %v7950 = vsub.s32 1, %v7949
    %v7951 = vrot.slane %v7677, %v7950
    %v7952 = vlaneseq
    %v7953 = vshrl.u32 %v7952, 7
    %v7954 = vsub.s32 0, %v7953
    %v7955 = vrot.slane %v7702, %v7954
    %v7956 = vlaneseq
    %v7957 = vshrl.u32 %v7956, 7
    %v7958 = vsub.s32 1, %v7957
    %v7959 = vrot.slane %v7702, %v7958
    %v7960 = vlaneseq
    %v7961 = vshrl.u32 %v7960, 7
    %v7962 = vsub.s32 0, %v7961
    %v7963 = vrot.slane %v7716, %v7962
    %v7964 = vlaneseq
    %v7965 = vshrl.u32 %v7964, 7
    %v7966 = vsub.s32 1, %v7965
    %v7967 = vrot.slane %v7716, %v7966
    %v7968 = vlaneseq
    %v7969 = vshrl.u32 %v7968, 7
    %v7970 = vsub.s32 0, %v7969
    %v7971 = vrot.slane %v7724, %v7970
    %v7972 = vlaneseq
    %v7973 = vshrl.u32 %v7972, 7
    %v7974 = vsub.s32 1, %v7973
    %v7975 = vrot.slane %v7724, %v7974
    %v7976 = vlaneseq
    %v7977 = vshrl.u32 %v7976, 7
    %v7978 = vsub.s32 0, %v7977
    %v7979 = vrot.slane %v7726, %v7978
    %v7980 = vlaneseq
    %v7981 = vshrl.u32 %v7980, 7
    %v7982 = vsub.s32 1, %v7981
    %v7983 = vrot.slane %v7726, %v7982
    %v7984 = vlaneseq
    %v7985 = vshrl.u32 %v7984, 7
    %v7986 = vsub.s32 0, %v7985
    %v7987 = vrot.slane %v7709, %v7986
    %v7988 = vlaneseq
    %v7989 = vshrl.u32 %v7988, 7
    %v7990 = vsub.s32 1, %v7989
    %v7991 = vrot.slane %v7709, %v7990
    %v7992 = vlaneseq
    %v7993 = vshrl.u32 %v7992, 7
    %v7994 = vsub.s32 0, %v7993
    %v7995 = vrot.slane %v7723, %v7994
    %v7996 = vlaneseq
    %v7997 = vshrl.u32 %v7996, 7
    %v7998 = vsub.s32 1, %v7997
    %v7999 = vrot.slane %v7723, %v7998
    %v8000 = vlaneseq
    %v8001 = vshrl.u32 %v8000, 7
    %v8002 = vsub.s32 0, %v8001
    %v8003 = vrot.slane %v7725, %v8002
    %v8004 = vlaneseq
    %v8005 = vshrl.u32 %v8004, 7
    %v8006 = vsub.s32 1, %v8005
    %v8007 = vrot.slane %v7725, %v8006
    %v8008 = vlaneseq
    %v8009 = vshrl.u32 %v8008, 7
    %v8010 = vsub.s32 0, %v8009
    %v8011 = vrot.slane %v7727, %v8010
    %v8012 = vlaneseq
    %v8013 = vshrl.u32 %v8012, 7
    %v8014 = vsub.s32 1, %v8013
    %v8015 = vrot.slane %v7727, %v8014
    %v8048 = vsel %vm6186, %v7731, %v7891
    %v8049 = vsel %vm6186, %v7735, %v7895
    %v8050 = vsel %vm6186, %v7739, %v7899
    %v8051 = vsel %vm6186, %v7743, %v7903
    %v8052 = vsel %vm6186, %v7747, %v7907
    %v8053 = vsel %vm6186, %v7751, %v7911
    %v8054 = vsel %vm6186, %v7755, %v7915
    %v8055 = vsel %vm6186, %v7759, %v7919
    %v8056 = vsel %vm6186, %v7763, %v7923
    %v8057 = vsel %vm6186, %v7767, %v7927
    %v8058 = vsel %vm6186, %v7771, %v7931
    %v8059 = vsel %vm6186, %v7775, %v7935
    %v8060 = vsel %vm6186, %v7779, %v7939
    %v8061 = vsel %vm6186, %v7783, %v7943
    %v8062 = vsel %vm6186, %v7787, %v7947
    %v8063 = vsel %vm6186, %v7791, %v7951
    %v8064 = vsel %vm6186, %v7795, %v7955
    %v8065 = vsel %vm6186, %v7799, %v7959
    %v8066 = vsel %vm6186, %v7803, %v7963
    %v8067 = vsel %vm6186, %v7807, %v7967
    %v8068 = vsel %vm6186, %v7811, %v7971
    %v8069 = vsel %vm6186, %v7815, %v7975
    %v8070 = vsel %vm6186, %v7819, %v7979
    %v8071 = vsel %vm6186, %v7823, %v7983
    %v8072 = vsel %vm6186, %v7827, %v7987
    %v8073 = vsel %vm6186, %v7831, %v7991
    %v8074 = vsel %vm6186, %v7835, %v7995
    %v8075 = vsel %vm6186, %v7839, %v7999
    %v8076 = vsel %vm6186, %v7843, %v8003
    %v8077 = vsel %vm6186, %v7847, %v8007
    %v8078 = vsel %vm6186, %v7851, %v8011
    %v8079 = vsel %vm6186, %v7855, %v8015
    %v8112 = vcombine.low %v8048, %v8049
    %v8114 = vunpack.c.l.s4 1983009808
    %v8115 = vunpack.c.0.s8 %v8114
    %v8116 = vlaneseq
    %v8117 = vshrl.u32 %v8116, 7
    %v8118 = vsub.s32 %v8115, %v8117
    %v8119 = vrot.slane %v8112, %v8118
    %v8120 = vcombine.low %v8050, %v8051
    %v8122 = vunpack.c.l.s4 1983009808
    %v8123 = vunpack.c.0.s8 %v8122
    %v8124 = vlaneseq
    %v8125 = vshrl.u32 %v8124, 7
    %v8126 = vsub.s32 %v8123, %v8125
    %v8127 = vrot.slane %v8120, %v8126
    %v8128 = vcombine.low %v8052, %v8053
    %v8130 = vunpack.c.l.s4 1983009808
    %v8131 = vunpack.c.0.s8 %v8130
    %v8132 = vlaneseq
    %v8133 = vshrl.u32 %v8132, 7
    %v8134 = vsub.s32 %v8131, %v8133
    %v8135 = vrot.slane %v8128, %v8134
    %v8136 = vcombine.low %v8054, %v8055
    %v8138 = vunpack.c.l.s4 1983009808
    %v8139 = vunpack.c.0.s8 %v8138
    %v8140 = vlaneseq
    %v8141 = vshrl.u32 %v8140, 7
    %v8142 = vsub.s32 %v8139, %v8141
    %v8143 = vrot.slane %v8136, %v8142
    %v8144 = vcombine.low %v8056, %v8057
    %v8146 = vunpack.c.l.s4 1983009808
    %v8147 = vunpack.c.0.s8 %v8146
    %v8148 = vlaneseq
    %v8149 = vshrl.u32 %v8148, 7
    %v8150 = vsub.s32 %v8147, %v8149
    %v8151 = vrot.slane %v8144, %v8150
    %v8152 = vcombine.low %v8058, %v8059
    %v8154 = vunpack.c.l.s4 1983009808
    %v8155 = vunpack.c.0.s8 %v8154
    %v8156 = vlaneseq
    %v8157 = vshrl.u32 %v8156, 7
    %v8158 = vsub.s32 %v8155, %v8157
    %v8159 = vrot.slane %v8152, %v8158
    %v8160 = vcombine.low %v8060, %v8061
    %v8162 = vunpack.c.l.s4 1983009808
    %v8163 = vunpack.c.0.s8 %v8162
    %v8164 = vlaneseq
    %v8165 = vshrl.u32 %v8164, 7
    %v8166 = vsub.s32 %v8163, %v8165
    %v8167 = vrot.slane %v8160, %v8166
    %v8168 = vcombine.low %v8062, %v8063
    %v8170 = vunpack.c.l.s4 1983009808
    %v8171 = vunpack.c.0.s8 %v8170
    %v8172 = vlaneseq
    %v8173 = vshrl.u32 %v8172, 7
    %v8174 = vsub.s32 %v8171, %v8173
    %v8175 = vrot.slane %v8168, %v8174
    %v8176 = vcombine.low %v8064, %v8065
    %v8178 = vunpack.c.l.s4 1983009808
    %v8179 = vunpack.c.0.s8 %v8178
    %v8180 = vlaneseq
    %v8181 = vshrl.u32 %v8180, 7
    %v8182 = vsub.s32 %v8179, %v8181
    %v8183 = vrot.slane %v8176, %v8182
    %v8184 = vcombine.low %v8066, %v8067
    %v8186 = vunpack.c.l.s4 1983009808
    %v8187 = vunpack.c.0.s8 %v8186
    %v8188 = vlaneseq
    %v8189 = vshrl.u32 %v8188, 7
    %v8190 = vsub.s32 %v8187, %v8189
    %v8191 = vrot.slane %v8184, %v8190
    %v8192 = vcombine.low %v8068, %v8069
    %v8194 = vunpack.c.l.s4 1983009808
    %v8195 = vunpack.c.0.s8 %v8194
    %v8196 = vlaneseq
    %v8197 = vshrl.u32 %v8196, 7
    %v8198 = vsub.s32 %v8195, %v8197
    %v8199 = vrot.slane %v8192, %v8198
    %v8200 = vcombine.low %v8070, %v8071
    %v8202 = vunpack.c.l.s4 1983009808
    %v8203 = vunpack.c.0.s8 %v8202
    %v8204 = vlaneseq
    %v8205 = vshrl.u32 %v8204, 7
    %v8206 = vsub.s32 %v8203, %v8205
    %v8207 = vrot.slane %v8200, %v8206
    %v8208 = vcombine.low %v8072, %v8073
    %v8210 = vunpack.c.l.s4 1983009808
    %v8211 = vunpack.c.0.s8 %v8210
    %v8212 = vlaneseq
    %v8213 = vshrl.u32 %v8212, 7
    %v8214 = vsub.s32 %v8211, %v8213
    %v8215 = vrot.slane %v8208, %v8214
    %v8216 = vcombine.low %v8074, %v8075
    %v8218 = vunpack.c.l.s4 1983009808
    %v8219 = vunpack.c.0.s8 %v8218
    %v8220 = vlaneseq
    %v8221 = vshrl.u32 %v8220, 7
    %v8222 = vsub.s32 %v8219, %v8221
    %v8223 = vrot.slane %v8216, %v8222
    %v8224 = vcombine.low %v8076, %v8077
    %v8226 = vunpack.c.l.s4 1983009808
    %v8227 = vunpack.c.0.s8 %v8226
    %v8228 = vlaneseq
    %v8229 = vshrl.u32 %v8228, 7
    %v8230 = vsub.s32 %v8227, %v8229
    %v8231 = vrot.slane %v8224, %v8230
    %v8232 = vcombine.low %v8078, %v8079
    %v8234 = vunpack.c.l.s4 1983009808
    %v8235 = vunpack.c.0.s8 %v8234
    %v8236 = vlaneseq
    %v8237 = vshrl.u32 %v8236, 7
    %v8238 = vsub.s32 %v8235, %v8237
    %v8239 = vrot.slane %v8232, %v8238
    %v8240 = vcombine.low %v8119, %v8127
    %v8241 = vcombine.low %v8135, %v8143
    %v8243 = vunpack.c.l.s4 1983009808
    %v8244 = vunpack.c.0.s8 %v8243
    %v8245 = vlaneseq
    %v8246 = vshrl.u32 %v8245, 7
    %v8247 = vsub.s32 %v8244, %v8246
    %v8248 = vrot.slane %v8240, %v8247
    %v8250 = vunpack.c.l.s4 1983009808
    %v8251 = vunpack.c.0.s8 %v8250
    %v8252 = vlaneseq
    %v8253 = vshrl.u32 %v8252, 7
    %v8254 = vsub.s32 %v8251, %v8253
    %v8255 = vrot.slane %v8241, %v8254
    %v8256 = vcombine.low %v8248, %v8255
    %v8257 = vcombine.high %v8248, %v8255
    %v8258 = vcombine.low %v8151, %v8159
    %v8259 = vcombine.low %v8167, %v8175
    %v8261 = vunpack.c.l.s4 1983009808
    %v8262 = vunpack.c.0.s8 %v8261
    %v8263 = vlaneseq
    %v8264 = vshrl.u32 %v8263, 7
    %v8265 = vsub.s32 %v8262, %v8264
    %v8266 = vrot.slane %v8258, %v8265
    %v8268 = vunpack.c.l.s4 1983009808
    %v8269 = vunpack.c.0.s8 %v8268
    %v8270 = vlaneseq
    %v8271 = vshrl.u32 %v8270, 7
    %v8272 = vsub.s32 %v8269, %v8271
    %v8273 = vrot.slane %v8259, %v8272
    %v8274 = vcombine.low %v8266, %v8273
    %v8275 = vcombine.high %v8266, %v8273
    %v8276 = vcombine.low %v8183, %v8191
    %v8277 = vcombine.low %v8199, %v8207
    %v8279 = vunpack.c.l.s4 1983009808
    %v8280 = vunpack.c.0.s8 %v8279
    %v8281 = vlaneseq
    %v8282 = vshrl.u32 %v8281, 7
    %v8283 = vsub.s32 %v8280, %v8282
    %v8284 = vrot.slane %v8276, %v8283
    %v8286 = vunpack.c.l.s4 1983009808
    %v8287 = vunpack.c.0.s8 %v8286
    %v8288 = vlaneseq
    %v8289 = vshrl.u32 %v8288, 7
    %v8290 = vsub.s32 %v8287, %v8289
    %v8291 = vrot.slane %v8277, %v8290
    %v8292 = vcombine.low %v8284, %v8291
    %v8293 = vcombine.high %v8284, %v8291
    %v8294 = vcombine.low %v8215, %v8223
    %v8295 = vcombine.low %v8231, %v8239
    %v8297 = vunpack.c.l.s4 1983009808
    %v8298 = vunpack.c.0.s8 %v8297
    %v8299 = vlaneseq
    %v8300 = vshrl.u32 %v8299, 7
    %v8301 = vsub.s32 %v8298, %v8300
    %v8302 = vrot.slane %v8294, %v8301
    %v8304 = vunpack.c.l.s4 1983009808
    %v8305 = vunpack.c.0.s8 %v8304
    %v8306 = vlaneseq
    %v8307 = vshrl.u32 %v8306, 7
    %v8308 = vsub.s32 %v8305, %v8307
    %v8309 = vrot.slane %v8295, %v8308
    %v8310 = vcombine.low %v8302, %v8309
    %v8311 = vcombine.high %v8302, %v8309
    %v8320 = vpack.c.bf16 %v8274, %v8256
    %v8321 = vpack.c.bf16 %v8275, %v8257
    %v8322 = vpack.c.bf16 %v8310, %v8292
    %v8323 = vpack.c.bf16 %v8311, %v8293
    %v8328 = vunpack.c.l.b16 %v8320
    %v8329 = vunpack.c.l.b16 %v8321
    %v8330 = vunpack.c.h.b16 %v8320
    %v8331 = vunpack.c.h.b16 %v8321
    %v8332 = vunpack.c.l.b16 %v8322
    %v8333 = vunpack.c.l.b16 %v8323
    %v8334 = vunpack.c.h.b16 %v8322
    %v8335 = vunpack.c.h.b16 %v8323
    %v8336 = vpack.c.b16 %v8329, %v8328
    %v8337 = vpack.c.b16 %v8331, %v8330
    %v8338 = vpack.c.b16 %v8333, %v8332
    %v8339 = vpack.c.b16 %v8335, %v8334
    %vm8340 = vsmask.f32 4368
    %vm8341 = vmor %vm164, %vm8340
    %v8343 = vshrl.u32 %v8336, 16
    %v8345 = vrot.slane %v8343, 7
    %v8346 = vshll.u32 %v8336, 16
    %v8348 = vor.u32 %v8345, %v8346
    %v8349 = vrot.slane %v8345, 4
    %v8351 = vshrl.u32 %v8337, 16
    %v8353 = vrot.slane %v8351, 7
    %v8354 = vshll.u32 %v8337, 16
    %v8356 = vor.u32 %v8353, %v8354
    %v8357 = vsel %vm8341, %v8349, %v8356
    %v8358 = vrot.slane %v8353, 4
    %v8360 = vshrl.u32 %v8338, 16
    %v8362 = vrot.slane %v8360, 7
    %v8363 = vshll.u32 %v8338, 16
    %v8365 = vor.u32 %v8362, %v8363
    %v8366 = vrot.slane %v8362, 4
    %v8368 = vshrl.u32 %v8339, 16
    %v8370 = vrot.slane %v8368, 7
    %v8371 = vshll.u32 %v8339, 16
    %v8373 = vor.u32 %v8370, %v8371
    %v8374 = vsel %vm8341, %v8366, %v8373
    %v8375 = vrot.slane %v8370, 4
    %v8382 = vld [vmem:[#allocation6] sm:$0xff]
    %v8383 = vsel %vm2192, %v8348, %v8382
    %8384 = vst [vmem:[#allocation6] sm:$0xff] %v8383
    %8385 = vst [vmem:[#allocation6 + $0x8] sm:$0xff] %v8357
    %v8386 = vld [vmem:[#allocation6 + $0x10] sm:$0x11]
    %v8387 = vsel %vm169, %v8358, %v8386
    %8388 = vst [vmem:[#allocation6 + $0x10] sm:$0x11] %v8387
    %v8389 = vld [vmem:[#allocation6 + $0x18] sm:$0xff]
    %v8390 = vsel %vm2192, %v8365, %v8389
    %8391 = vst [vmem:[#allocation6 + $0x18] sm:$0xff] %v8390
    %8392 = vst [vmem:[#allocation6 + $0x20] sm:$0xff] %v8374
    %v8393 = vld [vmem:[#allocation6 + $0x28] sm:$0x11]
    %v8394 = vsel %vm169, %v8375, %v8393
    %8395 = vst [vmem:[#allocation6 + $0x28] sm:$0x11] %v8394
    %v8396 = vld [vmem:[#allocation6] sm:$0xff]
    %v8397 = vld [vmem:[#allocation6 + $0x8] sm:$0xff]
    %v8398 = vld [vmem:[#allocation6 + $0x18] sm:$0xff]
    %v8399 = vld [vmem:[#allocation6 + $0x20] sm:$0xff]
    %v8400 = vld [vmem:[#allocation6 + $0x10] sm:$0x11]
    %v8401 = vld [vmem:[#allocation6 + $0x28] sm:$0x11]
    %v8402 = vld [vmem:[#allocation6] sm:$0xee]
    %v8403 = vld [vmem:[#allocation6 + $0x18] sm:$0xee]
    %v8408 = vunpack.c.l.b16 %v8396
    %v8409 = vunpack.c.h.b16 %v8396
    %v8410 = vunpack.c.l.b16 %v8397
    %v8411 = vunpack.c.h.b16 %v8397
    %v8412 = vunpack.c.l.b16 %v8398
    %v8413 = vunpack.c.h.b16 %v8398
    %v8414 = vunpack.c.l.b16 %v8399
    %v8415 = vunpack.c.h.b16 %v8399
    %v8416 = vpack.c.b16 %v8410, %v8408
    %v8417 = vpack.c.b16 %v8411, %v8409
    %v8418 = vpack.c.b16 %v8414, %v8412
    %v8419 = vpack.c.b16 %v8415, %v8413
    %v8426 = vunpack.c.l.b16 %v8400
    %v8427 = vunpack.c.h.b16 %v8400
    %v8428 = vunpack.c.l.b16 %v8401
    %v8429 = vunpack.c.h.b16 %v8401
    %v8430 = vpack.c.b16 %v8426, %v8426
    %v8431 = vpack.c.b16 %v8427, %v8427
    %v8432 = vpack.c.b16 %v8428, %v8428
    %v8433 = vpack.c.b16 %v8429, %v8429
    %vm8434 = vsmask.f32 7424
    %v8436 = vshrl.u32 %v8416, 16
    %v8438 = vshll.u32 %v8416, 16
    %v8440 = vrot.slane %v8438, 1
    %v8441 = vor.u32 %v8436, %v8440
    %v8443 = vshll.u32 %v8430, 16
    %v8445 = vrot.slane %v8443, 1
    %v8446 = vsel %vm8434, %v8441, %v8445
    %v8448 = vshrl.u32 %v8417, 16
    %v8450 = vshll.u32 %v8417, 16
    %v8452 = vrot.slane %v8450, 1
    %v8453 = vor.u32 %v8448, %v8452
    %v8455 = vshll.u32 %v8431, 16
    %v8457 = vrot.slane %v8455, 1
    %v8458 = vsel %vm8434, %v8453, %v8457
    %v8460 = vshrl.u32 %v8418, 16
    %v8462 = vshll.u32 %v8418, 16
    %v8464 = vrot.slane %v8462, 1
    %v8465 = vor.u32 %v8460, %v8464
    %v8467 = vshll.u32 %v8432, 16
    %v8469 = vrot.slane %v8467, 1
    %v8470 = vsel %vm8434, %v8465, %v8469
    %v8472 = vshrl.u32 %v8419, 16
    %v8474 = vshll.u32 %v8419, 16
    %v8476 = vrot.slane %v8474, 1
    %v8477 = vor.u32 %v8472, %v8476
    %v8479 = vshll.u32 %v8433, 16
    %v8481 = vrot.slane %v8479, 1
    %v8482 = vsel %vm8434, %v8477, %v8481
    %v8489 = vunpack.c.l.b16 %v8402
    %v8490 = vunpack.c.h.b16 %v8402
    %v8491 = vunpack.c.l.b16 %v8403
    %v8492 = vunpack.c.h.b16 %v8403
    %v8493 = vpack.c.b16 %v8410, %v8489
    %v8494 = vpack.c.b16 %v8411, %v8490
    %v8495 = vpack.c.b16 %v8414, %v8491
    %v8496 = vpack.c.b16 %v8415, %v8492
    %v8498 = vshrl.u32 %v8493, 16
    %v8500 = vshll.u32 %v8493, 16
    %v8502 = vrot.slane %v8500, 1
    %v8503 = vor.u32 %v8498, %v8502
    %v8504 = vsel %vm8434, %v8503, %v8445
    %v8506 = vshrl.u32 %v8494, 16
    %v8508 = vshll.u32 %v8494, 16
    %v8510 = vrot.slane %v8508, 1
    %v8511 = vor.u32 %v8506, %v8510
    %v8512 = vsel %vm8434, %v8511, %v8457
    %v8513 = vshrl.u32 %v8430, 16
    %v8515 = vshrl.u32 %v8431, 16
    %v8518 = vshrl.u32 %v8495, 16
    %v8520 = vshll.u32 %v8495, 16
    %v8522 = vrot.slane %v8520, 1
    %v8523 = vor.u32 %v8518, %v8522
    %v8524 = vsel %vm8434, %v8523, %v8469
    %v8526 = vshrl.u32 %v8496, 16
    %v8528 = vshll.u32 %v8496, 16
    %v8530 = vrot.slane %v8528, 1
    %v8531 = vor.u32 %v8526, %v8530
    %v8532 = vsel %vm8434, %v8531, %v8481
    %v8533 = vshrl.u32 %v8432, 16
    %v8535 = vshrl.u32 %v8433, 16
    %v8538 = vshrl.u32 %v8504, 16
    %v8540 = vshll.u32 %v8504, 16
    %v8542 = vrot.slane %v8540, 1
    %v8543 = vor.u32 %v8538, %v8542
    %v8545 = vshll.u32 %v8513, 16
    %v8547 = vrot.slane %v8545, 1
    %v8548 = vsel %vm8434, %v8543, %v8547
    %v8550 = vshrl.u32 %v8512, 16
    %v8552 = vshll.u32 %v8512, 16
    %v8554 = vrot.slane %v8552, 1
    %v8555 = vor.u32 %v8550, %v8554
    %v8557 = vshll.u32 %v8515, 16
    %v8559 = vrot.slane %v8557, 1
    %v8560 = vsel %vm8434, %v8555, %v8559
    %v8562 = vshrl.u32 %v8524, 16
    %v8564 = vshll.u32 %v8524, 16
    %v8566 = vrot.slane %v8564, 1
    %v8567 = vor.u32 %v8562, %v8566
    %v8569 = vshll.u32 %v8533, 16
    %v8571 = vrot.slane %v8569, 1
    %v8572 = vsel %vm8434, %v8567, %v8571
    %v8574 = vshrl.u32 %v8532, 16
    %v8576 = vshll.u32 %v8532, 16
    %v8578 = vrot.slane %v8576, 1
    %v8579 = vor.u32 %v8574, %v8578
    %v8581 = vshll.u32 %v8535, 16
    %v8583 = vrot.slane %v8581, 1
    %v8584 = vsel %vm8434, %v8579, %v8583
    %v8589 = vld [vmem:[#allocation17] sm:$0xf]
    %v8590 = vld [vmem:[#allocation17 + $0x4] sm:$0xf]
    %v8591 = vld [vmem:[#allocation17 + $0x8] sm:$0xf]
    %v8592 = vld [vmem:[#allocation17 + $0xc] sm:$0xf]
    %v8593 = vld [vmem:[#allocation17 + $0x10] sm:$0xf]
    %v8594 = vld [vmem:[#allocation17 + $0x14] sm:$0xf]
    %v8595 = vld [vmem:[#allocation17 + $0x18] sm:$0xf]
    %v8596 = vld [vmem:[#allocation17 + $0x1c] sm:$0xf]
    %v8597 = vld [vmem:[#allocation17 + $0x20] sm:$0xf]
    %v8598 = vld [vmem:[#allocation17 + $0x24] sm:$0xf]
    %v8599 = vld [vmem:[#allocation17 + $0x28] sm:$0xf]
    %v8600 = vld [vmem:[#allocation17 + $0x2c] sm:$0xf]
    %v8601 = vld [vmem:[#allocation17 + $0x30] sm:$0xf]
    %v8602 = vld [vmem:[#allocation17 + $0x34] sm:$0xf]
    %v8603 = vld [vmem:[#allocation17 + $0x38] sm:$0xf]
    %v8604 = vld [vmem:[#allocation17 + $0x3c] sm:$0xf]
    %v8605 = vld [vmem:[#allocation17 + $0x40] sm:$0xf]
    %v8606 = vld [vmem:[#allocation17 + $0x44] sm:$0xf]
    %v8607 = vld [vmem:[#allocation17 + $0x48] sm:$0xf]
    %v8608 = vld [vmem:[#allocation17 + $0x4c] sm:$0xf]
    %v8609 = vld [vmem:[#allocation17 + $0x50] sm:$0xf]
    %v8610 = vld [vmem:[#allocation17 + $0x54] sm:$0xf]
    %v8611 = vld [vmem:[#allocation17 + $0x58] sm:$0xf]
    %v8612 = vld [vmem:[#allocation17 + $0x5c] sm:$0xf]
    %v8613 = vld [vmem:[#allocation17 + $0x60] sm:$0xf]
    %v8614 = vld [vmem:[#allocation17 + $0x64] sm:$0xf]
    %v8615 = vld [vmem:[#allocation17 + $0x68] sm:$0xf]
    %v8616 = vld [vmem:[#allocation17 + $0x6c] sm:$0xf]
    %v8617 = vld [vmem:[#allocation17 + $0x70] sm:$0xf]
    %v8618 = vld [vmem:[#allocation17 + $0x74] sm:$0xf]
    %v8619 = vld [vmem:[#allocation17 + $0x78] sm:$0xf]
    %v8620 = vld [vmem:[#allocation17 + $0x7c] sm:$0xf]
    %v8621 = vld [vmem:[#allocation17 + $0x80] sm:$0xf]
    %v8622 = vld [vmem:[#allocation17 + $0x84] sm:$0xf]
    %v8623 = vld [vmem:[#allocation17 + $0x88] sm:$0xf]
    %v8624 = vld [vmem:[#allocation17 + $0x8c] sm:$0xf]
    %v8625 = vld [vmem:[#allocation17 + $0x90] sm:$0xf]
    %v8626 = vld [vmem:[#allocation17 + $0x94] sm:$0xf]
    %v8627 = vld [vmem:[#allocation17 + $0x98] sm:$0xf]
    %v8628 = vld [vmem:[#allocation17 + $0x9c] sm:$0xf]
    %v8629 = vld [vmem:[#allocation17 + $0xa0] sm:$0xf]
    %v8630 = vld [vmem:[#allocation17 + $0xa4] sm:$0xf]
    %v8631 = vld [vmem:[#allocation17 + $0xa8] sm:$0xf]
    %v8632 = vld [vmem:[#allocation17 + $0xac] sm:$0xf]
    %v8633 = vld [vmem:[#allocation17 + $0xb0] sm:$0xf]
    %v8634 = vld [vmem:[#allocation17 + $0xb4] sm:$0xf]
    %v8635 = vld [vmem:[#allocation17 + $0xb8] sm:$0xf]
    %v8636 = vld [vmem:[#allocation17 + $0xbc] sm:$0xf]
    %v8637 = vld [vmem:[#allocation17 + $0xc0] sm:$0xf]
    %v8638 = vld [vmem:[#allocation17 + $0xc4] sm:$0xf]
    %v8639 = vld [vmem:[#allocation17 + $0xc8] sm:$0xf]
    %v8640 = vld [vmem:[#allocation17 + $0xcc] sm:$0xf]
    %v8641 = vld [vmem:[#allocation17 + $0xd0] sm:$0xf]
    %v8642 = vld [vmem:[#allocation17 + $0xd4] sm:$0xf]
    %v8643 = vld [vmem:[#allocation17 + $0xd8] sm:$0xf]
    %v8644 = vld [vmem:[#allocation17 + $0xdc] sm:$0xf]
    %v8645 = vld [vmem:[#allocation17 + $0xe0] sm:$0xf]
    %v8646 = vld [vmem:[#allocation17 + $0xe4] sm:$0xf]
    %v8647 = vld [vmem:[#allocation17 + $0xe8] sm:$0xf]
    %v8648 = vld [vmem:[#allocation17 + $0xec] sm:$0xf]
    %v8649 = vld [vmem:[#allocation17 + $0xf0] sm:$0xf]
    %v8650 = vld [vmem:[#allocation17 + $0xf4] sm:$0xf]
    %v8651 = vld [vmem:[#allocation17 + $0xf8] sm:$0xf]
    %v8652 = vld [vmem:[#allocation17 + $0xfc] sm:$0xf]
    %v8653 = vld [vmem:[%s15] sm:$0x1]
    %v8655 = vlaneseq
    %v8656 = vshrl.u32 %v8655, 7
    %v8657 = vsub.s32 0, %v8656
    %v8658 = vrot.slane %v8653, %v8657
    %v8724 = vunpack.c.l.b16 %v8589
    %v8725 = vunpack.c.l.b16 %v8590
    %v8726 = vunpack.c.l.b16 %v8591
    %v8727 = vunpack.c.l.b16 %v8592
    %v8728 = vunpack.c.l.b16 %v8593
    %v8729 = vunpack.c.l.b16 %v8594
    %v8730 = vunpack.c.l.b16 %v8595
    %v8731 = vunpack.c.l.b16 %v8596
    %v8732 = vunpack.c.l.b16 %v8597
    %v8733 = vunpack.c.l.b16 %v8598
    %v8734 = vunpack.c.l.b16 %v8599
    %v8735 = vunpack.c.l.b16 %v8600
    %v8736 = vunpack.c.l.b16 %v8601
    %v8737 = vunpack.c.l.b16 %v8602
    %v8738 = vunpack.c.l.b16 %v8603
    %v8739 = vunpack.c.l.b16 %v8604
    %v8740 = vunpack.c.l.b16 %v8605
    %v8741 = vunpack.c.l.b16 %v8606
    %v8742 = vunpack.c.l.b16 %v8607
    %v8743 = vunpack.c.l.b16 %v8608
    %v8744 = vunpack.c.l.b16 %v8609
    %v8745 = vunpack.c.l.b16 %v8610
    %v8746 = vunpack.c.l.b16 %v8611
    %v8747 = vunpack.c.l.b16 %v8612
    %v8748 = vunpack.c.l.b16 %v8613
    %v8749 = vunpack.c.l.b16 %v8614
    %v8750 = vunpack.c.l.b16 %v8615
    %v8751 = vunpack.c.l.b16 %v8616
    %v8752 = vunpack.c.l.b16 %v8617
    %v8753 = vunpack.c.l.b16 %v8618
    %v8754 = vunpack.c.l.b16 %v8619
    %v8755 = vunpack.c.l.b16 %v8620
    %v8756 = vunpack.c.l.b16 %v8621
    %v8757 = vunpack.c.l.b16 %v8622
    %v8758 = vunpack.c.l.b16 %v8623
    %v8759 = vunpack.c.l.b16 %v8624
    %v8760 = vunpack.c.l.b16 %v8625
    %v8761 = vunpack.c.l.b16 %v8626
    %v8762 = vunpack.c.l.b16 %v8627
    %v8763 = vunpack.c.l.b16 %v8628
    %v8764 = vunpack.c.l.b16 %v8629
    %v8765 = vunpack.c.l.b16 %v8630
    %v8766 = vunpack.c.l.b16 %v8631
    %v8767 = vunpack.c.l.b16 %v8632
    %v8768 = vunpack.c.l.b16 %v8633
    %v8769 = vunpack.c.l.b16 %v8634
    %v8770 = vunpack.c.l.b16 %v8635
    %v8771 = vunpack.c.l.b16 %v8636
    %v8772 = vunpack.c.l.b16 %v8637
    %v8773 = vunpack.c.l.b16 %v8638
    %v8774 = vunpack.c.l.b16 %v8639
    %v8775 = vunpack.c.l.b16 %v8640
    %v8776 = vunpack.c.l.b16 %v8641
    %v8777 = vunpack.c.l.b16 %v8642
    %v8778 = vunpack.c.l.b16 %v8643
    %v8779 = vunpack.c.l.b16 %v8644
    %v8780 = vunpack.c.l.b16 %v8645
    %v8781 = vunpack.c.l.b16 %v8646
    %v8782 = vunpack.c.l.b16 %v8647
    %v8783 = vunpack.c.l.b16 %v8648
    %v8784 = vunpack.c.l.b16 %v8649
    %v8785 = vunpack.c.l.b16 %v8650
    %v8786 = vunpack.c.l.b16 %v8651
    %v8787 = vunpack.c.l.b16 %v8652
    %v8788 = vpack.c.b16 %v8725, %v8724
    %v8789 = vpack.c.b16 %v8727, %v8726
    %v8790 = vpack.c.b16 %v8729, %v8728
    %v8791 = vpack.c.b16 %v8731, %v8730
    %v8792 = vpack.c.b16 %v8733, %v8732
    %v8793 = vpack.c.b16 %v8735, %v8734
    %v8794 = vpack.c.b16 %v8737, %v8736
    %v8795 = vpack.c.b16 %v8739, %v8738
    %v8796 = vpack.c.b16 %v8741, %v8740
    %v8797 = vpack.c.b16 %v8743, %v8742
    %v8798 = vpack.c.b16 %v8745, %v8744
    %v8799 = vpack.c.b16 %v8747, %v8746
    %v8800 = vpack.c.b16 %v8749, %v8748
    %v8801 = vpack.c.b16 %v8751, %v8750
    %v8802 = vpack.c.b16 %v8753, %v8752
    %v8803 = vpack.c.b16 %v8755, %v8754
    %v8804 = vpack.c.b16 %v8757, %v8756
    %v8805 = vpack.c.b16 %v8759, %v8758
    %v8806 = vpack.c.b16 %v8761, %v8760
    %v8807 = vpack.c.b16 %v8763, %v8762
    %v8808 = vpack.c.b16 %v8765, %v8764
    %v8809 = vpack.c.b16 %v8767, %v8766
    %v8810 = vpack.c.b16 %v8769, %v8768
    %v8811 = vpack.c.b16 %v8771, %v8770
    %v8812 = vpack.c.b16 %v8773, %v8772
    %v8813 = vpack.c.b16 %v8775, %v8774
    %v8814 = vpack.c.b16 %v8777, %v8776
    %v8815 = vpack.c.b16 %v8779, %v8778
    %v8816 = vpack.c.b16 %v8781, %v8780
    %v8817 = vpack.c.b16 %v8783, %v8782
    %v8818 = vpack.c.b16 %v8785, %v8784
    %v8819 = vpack.c.b16 %v8787, %v8786
    %8852 = vmatprep.subr.bf16.mxu0 0
    %8853 = vmatpush1.bf16.msra.mxu0 %v8788
    %8854 = vmatprep.subr.bf16.mxu0 0
    %8855 = vmatpush1.bf16.msra.mxu0 %v8789
    %8856 = vmatprep.subr.bf16.mxu0 0
    %8857 = vmatpush1.bf16.msra.mxu0 %v8790
    %8858 = vmatprep.subr.bf16.mxu0 0
    %8859 = vmatpush1.bf16.msra.mxu0 %v8791
    %8860 = vmatprep.subr.bf16.mxu0 0
    %8861 = vmatpush1.bf16.msra.mxu0 %v8792
    %8862 = vmatprep.subr.bf16.mxu0 0
    %8863 = vmatpush1.bf16.msra.mxu0 %v8793
    %8864 = vmatprep.subr.bf16.mxu0 0
    %8865 = vmatpush1.bf16.msra.mxu0 %v8794
    %8866 = vmatprep.subr.bf16.mxu0 0
    %8867 = vmatpush1.bf16.msra.mxu0 %v8795
    %8868 = vmatprep.subr.bf16.mxu0 0
    %8869 = vmatpush1.bf16.msra.mxu0 %v8796
    %8870 = vmatprep.subr.bf16.mxu0 0
    %8871 = vmatpush1.bf16.msra.mxu0 %v8797
    %8872 = vmatprep.subr.bf16.mxu0 0
    %8873 = vmatpush1.bf16.msra.mxu0 %v8798
    %8874 = vmatprep.subr.bf16.mxu0 0
    %8875 = vmatpush1.bf16.msra.mxu0 %v8799
    %8876 = vmatprep.subr.bf16.mxu0 0
    %8877 = vmatpush1.bf16.msra.mxu0 %v8800
    %8878 = vmatprep.subr.bf16.mxu0 0
    %8879 = vmatpush1.bf16.msra.mxu0 %v8801
    %8880 = vmatprep.subr.bf16.mxu0 0
    %8881 = vmatpush1.bf16.msra.mxu0 %v8802
    %8882 = vmatprep.subr.bf16.mxu0 0
    %8883 = vmatpush1.bf16.msra.mxu0 %v8803
    %8884 = vmatprep.mubr.bf16.mxu0 %v8417
    %8885 = vmatmul.mubr.bf16.gmra.mrb[0].mxu0 %v8416
    %v8886 = vpop.f32.mrb[0].mxu0
    %v8887 = vadd.f32 %v8658, %v8886
    %v8888 = vpop.f32.mrb[0].mxu0
    %v8889 = vpop.f32.mrb[0].mxu0
    %v8890 = vadd.f32 %v8658, %v8889
    %v8891 = vpop.f32.mrb[0].mxu0
    %8892 = vmatprep.mubr.bf16.mxu0 %v8419
    %8893 = vmatmul.mubr.bf16.gmra.mrb[0].mxu0 %v8418
    %v8894 = vpop.f32.mrb[0].mxu0
    %v8895 = vadd.f32 %v8658, %v8894
    %v8896 = vpop.f32.mrb[0].mxu0
    %v8897 = vpop.f32.mrb[0].mxu0
    %v8898 = vadd.f32 %v8658, %v8897
    %v8899 = vpop.f32.mrb[0].mxu0
    %8900 = vdwg.mxu0
    %8901 = vmatprep.subr.bf16.mxu0 0
    %8902 = vmatpush1.bf16.msra.mxu0 %v8804
    %8903 = vmatprep.subr.bf16.mxu0 0
    %8904 = vmatpush1.bf16.msra.mxu0 %v8805
    %8905 = vmatprep.subr.bf16.mxu0 0
    %8906 = vmatpush1.bf16.msra.mxu0 %v8806
    %8907 = vmatprep.subr.bf16.mxu0 0
    %8908 = vmatpush1.bf16.msra.mxu0 %v8807
    %8909 = vmatprep.subr.bf16.mxu0 0
    %8910 = vmatpush1.bf16.msra.mxu0 %v8808
    %8911 = vmatprep.subr.bf16.mxu0 0
    %8912 = vmatpush1.bf16.msra.mxu0 %v8809
    %8913 = vmatprep.subr.bf16.mxu0 0
    %8914 = vmatpush1.bf16.msra.mxu0 %v8810
    %8915 = vmatprep.subr.bf16.mxu0 0
    %8916 = vmatpush1.bf16.msra.mxu0 %v8811
    %8917 = vmatprep.subr.bf16.mxu0 0
    %8918 = vmatpush1.bf16.msra.mxu0 %v8812
    %8919 = vmatprep.subr.bf16.mxu0 0
    %8920 = vmatpush1.bf16.msra.mxu0 %v8813
    %8921 = vmatprep.subr.bf16.mxu0 0
    %8922 = vmatpush1.bf16.msra.mxu0 %v8814
    %8923 = vmatprep.subr.bf16.mxu0 0
    %8924 = vmatpush1.bf16.msra.mxu0 %v8815
    %8925 = vmatprep.subr.bf16.mxu0 0
    %8926 = vmatpush1.bf16.msra.mxu0 %v8816
    %8927 = vmatprep.subr.bf16.mxu0 0
    %8928 = vmatpush1.bf16.msra.mxu0 %v8817
    %8929 = vmatprep.subr.bf16.mxu0 0
    %8930 = vmatpush1.bf16.msra.mxu0 %v8818
    %8931 = vmatprep.subr.bf16.mxu0 0
    %8932 = vmatpush1.bf16.msra.mxu0 %v8819
    %8933 = vmatprep.mubr.bf16.mxu0 %v8458
    %8934 = vmatmul.mubr.bf16.gmra.mrb[0].mxu0 %v8446
    %v8935 = vpop.f32.mrb[0].mxu0
    %v8936 = vadd.f32 %v8887, %v8935
    %v8937 = vpop.f32.mrb[0].mxu0
    %v8938 = vpop.f32.mrb[0].mxu0
    %v8939 = vadd.f32 %v8890, %v8938
    %v8940 = vpop.f32.mrb[0].mxu0
    %8941 = vmatprep.mubr.bf16.mxu0 %v8482
    %8942 = vmatmul.mubr.bf16.gmra.mrb[0].mxu0 %v8470
    %v8943 = vpop.f32.mrb[0].mxu0
    %v8944 = vadd.f32 %v8895, %v8943
    %v8945 = vpop.f32.mrb[0].mxu0
    %v8946 = vpop.f32.mrb[0].mxu0
    %v8947 = vadd.f32 %v8898, %v8946
    %v8948 = vpop.f32.mrb[0].mxu0
    %8949 = vdwg.mxu0
    %v8950 = vld [vmem:[#allocation18] sm:$0xf]
    %v8951 = vld [vmem:[#allocation18 + $0x4] sm:$0xf]
    %v8952 = vld [vmem:[#allocation18 + $0x8] sm:$0xf]
    %v8953 = vld [vmem:[#allocation18 + $0xc] sm:$0xf]
    %v8954 = vld [vmem:[#allocation18 + $0x10] sm:$0xf]
    %v8955 = vld [vmem:[#allocation18 + $0x14] sm:$0xf]
    %v8956 = vld [vmem:[#allocation18 + $0x18] sm:$0xf]
    %v8957 = vld [vmem:[#allocation18 + $0x1c] sm:$0xf]
    %v8958 = vld [vmem:[#allocation18 + $0x20] sm:$0xf]
    %v8959 = vld [vmem:[#allocation18 + $0x24] sm:$0xf]
    %v8960 = vld [vmem:[#allocation18 + $0x28] sm:$0xf]
    %v8961 = vld [vmem:[#allocation18 + $0x2c] sm:$0xf]
    %v8962 = vld [vmem:[#allocation18 + $0x30] sm:$0xf]
    %v8963 = vld [vmem:[#allocation18 + $0x34] sm:$0xf]
    %v8964 = vld [vmem:[#allocation18 + $0x38] sm:$0xf]
    %v8965 = vld [vmem:[#allocation18 + $0x3c] sm:$0xf]
    %v8966 = vld [vmem:[#allocation18 + $0x40] sm:$0xf]
    %v8967 = vld [vmem:[#allocation18 + $0x44] sm:$0xf]
    %v8968 = vld [vmem:[#allocation18 + $0x48] sm:$0xf]
    %v8969 = vld [vmem:[#allocation18 + $0x4c] sm:$0xf]
    %v8970 = vld [vmem:[#allocation18 + $0x50] sm:$0xf]
    %v8971 = vld [vmem:[#allocation18 + $0x54] sm:$0xf]
    %v8972 = vld [vmem:[#allocation18 + $0x58] sm:$0xf]
    %v8973 = vld [vmem:[#allocation18 + $0x5c] sm:$0xf]
    %v8974 = vld [vmem:[#allocation18 + $0x60] sm:$0xf]
    %v8975 = vld [vmem:[#allocation18 + $0x64] sm:$0xf]
    %v8976 = vld [vmem:[#allocation18 + $0x68] sm:$0xf]
    %v8977 = vld [vmem:[#allocation18 + $0x6c] sm:$0xf]
    %v8978 = vld [vmem:[#allocation18 + $0x70] sm:$0xf]
    %v8979 = vld [vmem:[#allocation18 + $0x74] sm:$0xf]
    %v8980 = vld [vmem:[#allocation18 + $0x78] sm:$0xf]
    %v8981 = vld [vmem:[#allocation18 + $0x7c] sm:$0xf]
    %v8982 = vld [vmem:[#allocation18 + $0x80] sm:$0xf]
    %v8983 = vld [vmem:[#allocation18 + $0x84] sm:$0xf]
    %v8984 = vld [vmem:[#allocation18 + $0x88] sm:$0xf]
    %v8985 = vld [vmem:[#allocation18 + $0x8c] sm:$0xf]
    %v8986 = vld [vmem:[#allocation18 + $0x90] sm:$0xf]
    %v8987 = vld [vmem:[#allocation18 + $0x94] sm:$0xf]
    %v8988 = vld [vmem:[#allocation18 + $0x98] sm:$0xf]
    %v8989 = vld [vmem:[#allocation18 + $0x9c] sm:$0xf]
    %v8990 = vld [vmem:[#allocation18 + $0xa0] sm:$0xf]
    %v8991 = vld [vmem:[#allocation18 + $0xa4] sm:$0xf]
    %v8992 = vld [vmem:[#allocation18 + $0xa8] sm:$0xf]
    %v8993 = vld [vmem:[#allocation18 + $0xac] sm:$0xf]
    %v8994 = vld [vmem:[#allocation18 + $0xb0] sm:$0xf]
    %v8995 = vld [vmem:[#allocation18 + $0xb4] sm:$0xf]
    %v8996 = vld [vmem:[#allocation18 + $0xb8] sm:$0xf]
    %v8997 = vld [vmem:[#allocation18 + $0xbc] sm:$0xf]
    %v8998 = vld [vmem:[#allocation18 + $0xc0] sm:$0xf]
    %v8999 = vld [vmem:[#allocation18 + $0xc4] sm:$0xf]
    %v9000 = vld [vmem:[#allocation18 + $0xc8] sm:$0xf]
    %v9001 = vld [vmem:[#allocation18 + $0xcc] sm:$0xf]
    %v9002 = vld [vmem:[#allocation18 + $0xd0] sm:$0xf]
    %v9003 = vld [vmem:[#allocation18 + $0xd4] sm:$0xf]
    %v9004 = vld [vmem:[#allocation18 + $0xd8] sm:$0xf]
    %v9005 = vld [vmem:[#allocation18 + $0xdc] sm:$0xf]
    %v9006 = vld [vmem:[#allocation18 + $0xe0] sm:$0xf]
    %v9007 = vld [vmem:[#allocation18 + $0xe4] sm:$0xf]
    %v9008 = vld [vmem:[#allocation18 + $0xe8] sm:$0xf]
    %v9009 = vld [vmem:[#allocation18 + $0xec] sm:$0xf]
    %v9010 = vld [vmem:[#allocation18 + $0xf0] sm:$0xf]
    %v9011 = vld [vmem:[#allocation18 + $0xf4] sm:$0xf]
    %v9012 = vld [vmem:[#allocation18 + $0xf8] sm:$0xf]
    %v9013 = vld [vmem:[#allocation18 + $0xfc] sm:$0xf]
    %v9078 = vunpack.c.l.b16 %v8950
    %v9079 = vunpack.c.l.b16 %v8951
    %v9080 = vunpack.c.l.b16 %v8952
    %v9081 = vunpack.c.l.b16 %v8953
    %v9082 = vunpack.c.l.b16 %v8954
    %v9083 = vunpack.c.l.b16 %v8955
    %v9084 = vunpack.c.l.b16 %v8956
    %v9085 = vunpack.c.l.b16 %v8957
    %v9086 = vunpack.c.l.b16 %v8958
    %v9087 = vunpack.c.l.b16 %v8959
    %v9088 = vunpack.c.l.b16 %v8960
    %v9089 = vunpack.c.l.b16 %v8961
    %v9090 = vunpack.c.l.b16 %v8962
    %v9091 = vunpack.c.l.b16 %v8963
    %v9092 = vunpack.c.l.b16 %v8964
    %v9093 = vunpack.c.l.b16 %v8965
    %v9094 = vunpack.c.l.b16 %v8966
    %v9095 = vunpack.c.l.b16 %v8967
    %v9096 = vunpack.c.l.b16 %v8968
    %v9097 = vunpack.c.l.b16 %v8969
    %v9098 = vunpack.c.l.b16 %v8970
    %v9099 = vunpack.c.l.b16 %v8971
    %v9100 = vunpack.c.l.b16 %v8972
    %v9101 = vunpack.c.l.b16 %v8973
    %v9102 = vunpack.c.l.b16 %v8974
    %v9103 = vunpack.c.l.b16 %v8975
    %v9104 = vunpack.c.l.b16 %v8976
    %v9105 = vunpack.c.l.b16 %v8977
    %v9106 = vunpack.c.l.b16 %v8978
    %v9107 = vunpack.c.l.b16 %v8979
    %v9108 = vunpack.c.l.b16 %v8980
    %v9109 = vunpack.c.l.b16 %v8981
    %v9110 = vunpack.c.l.b16 %v8982
    %v9111 = vunpack.c.l.b16 %v8983
    %v9112 = vunpack.c.l.b16 %v8984
    %v9113 = vunpack.c.l.b16 %v8985
    %v9114 = vunpack.c.l.b16 %v8986
    %v9115 = vunpack.c.l.b16 %v8987
    %v9116 = vunpack.c.l.b16 %v8988
    %v9117 = vunpack.c.l.b16 %v8989
    %v9118 = vunpack.c.l.b16 %v8990
    %v9119 = vunpack.c.l.b16 %v8991
    %v9120 = vunpack.c.l.b16 %v8992
    %v9121 = vunpack.c.l.b16 %v8993
    %v9122 = vunpack.c.l.b16 %v8994
    %v9123 = vunpack.c.l.b16 %v8995
    %v9124 = vunpack.c.l.b16 %v8996
    %v9125 = vunpack.c.l.b16 %v8997
    %v9126 = vunpack.c.l.b16 %v8998
    %v9127 = vunpack.c.l.b16 %v8999
    %v9128 = vunpack.c.l.b16 %v9000
    %v9129 = vunpack.c.l.b16 %v9001
    %v9130 = vunpack.c.l.b16 %v9002
    %v9131 = vunpack.c.l.b16 %v9003
    %v9132 = vunpack.c.l.b16 %v9004
    %v9133 = vunpack.c.l.b16 %v9005
    %v9134 = vunpack.c.l.b16 %v9006
    %v9135 = vunpack.c.l.b16 %v9007
    %v9136 = vunpack.c.l.b16 %v9008
    %v9137 = vunpack.c.l.b16 %v9009
    %v9138 = vunpack.c.l.b16 %v9010
    %v9139 = vunpack.c.l.b16 %v9011
    %v9140 = vunpack.c.l.b16 %v9012
    %v9141 = vunpack.c.l.b16 %v9013
    %v9142 = vpack.c.b16 %v9079, %v9078
    %v9143 = vpack.c.b16 %v9081, %v9080
    %v9144 = vpack.c.b16 %v9083, %v9082
    %v9145 = vpack.c.b16 %v9085, %v9084
    %v9146 = vpack.c.b16 %v9087, %v9086
    %v9147 = vpack.c.b16 %v9089, %v9088
    %v9148 = vpack.c.b16 %v9091, %v9090
    %v9149 = vpack.c.b16 %v9093, %v9092
    %v9150 = vpack.c.b16 %v9095, %v9094
    %v9151 = vpack.c.b16 %v9097, %v9096
    %v9152 = vpack.c.b16 %v9099, %v9098
    %v9153 = vpack.c.b16 %v9101, %v9100
    %v9154 = vpack.c.b16 %v9103, %v9102
    %v9155 = vpack.c.b16 %v9105, %v9104
    %v9156 = vpack.c.b16 %v9107, %v9106
    %v9157 = vpack.c.b16 %v9109, %v9108
    %v9158 = vpack.c.b16 %v9111, %v9110
    %v9159 = vpack.c.b16 %v9113, %v9112
    %v9160 = vpack.c.b16 %v9115, %v9114
    %v9161 = vpack.c.b16 %v9117, %v9116
    %v9162 = vpack.c.b16 %v9119, %v9118
    %v9163 = vpack.c.b16 %v9121, %v9120
    %v9164 = vpack.c.b16 %v9123, %v9122
    %v9165 = vpack.c.b16 %v9125, %v9124
    %v9166 = vpack.c.b16 %v9127, %v9126
    %v9167 = vpack.c.b16 %v9129, %v9128
    %v9168 = vpack.c.b16 %v9131, %v9130
    %v9169 = vpack.c.b16 %v9133, %v9132
    %v9170 = vpack.c.b16 %v9135, %v9134
    %v9171 = vpack.c.b16 %v9137, %v9136
    %v9172 = vpack.c.b16 %v9139, %v9138
    %v9173 = vpack.c.b16 %v9141, %v9140
    %9206 = vmatprep.subr.bf16.mxu0 0
    %9207 = vmatpush1.bf16.msra.mxu0 %v9142
    %9208 = vmatprep.subr.bf16.mxu0 0
    %9209 = vmatpush1.bf16.msra.mxu0 %v9143
    %9210 = vmatprep.subr.bf16.mxu0 0
    %9211 = vmatpush1.bf16.msra.mxu0 %v9144
    %9212 = vmatprep.subr.bf16.mxu0 0
    %9213 = vmatpush1.bf16.msra.mxu0 %v9145
    %9214 = vmatprep.subr.bf16.mxu0 0
    %9215 = vmatpush1.bf16.msra.mxu0 %v9146
    %9216 = vmatprep.subr.bf16.mxu0 0
    %9217 = vmatpush1.bf16.msra.mxu0 %v9147
    %9218 = vmatprep.subr.bf16.mxu0 0
    %9219 = vmatpush1.bf16.msra.mxu0 %v9148
    %9220 = vmatprep.subr.bf16.mxu0 0
    %9221 = vmatpush1.bf16.msra.mxu0 %v9149
    %9222 = vmatprep.subr.bf16.mxu0 0
    %9223 = vmatpush1.bf16.msra.mxu0 %v9150
    %9224 = vmatprep.subr.bf16.mxu0 0
    %9225 = vmatpush1.bf16.msra.mxu0 %v9151
    %9226 = vmatprep.subr.bf16.mxu0 0
    %9227 = vmatpush1.bf16.msra.mxu0 %v9152
    %9228 = vmatprep.subr.bf16.mxu0 0
    %9229 = vmatpush1.bf16.msra.mxu0 %v9153
    %9230 = vmatprep.subr.bf16.mxu0 0
    %9231 = vmatpush1.bf16.msra.mxu0 %v9154
    %9232 = vmatprep.subr.bf16.mxu0 0
    %9233 = vmatpush1.bf16.msra.mxu0 %v9155
    %9234 = vmatprep.subr.bf16.mxu0 0
    %9235 = vmatpush1.bf16.msra.mxu0 %v9156
    %9236 = vmatprep.subr.bf16.mxu0 0
    %9237 = vmatpush1.bf16.msra.mxu0 %v9157
    %9238 = vmatprep.mubr.bf16.mxu0 %v8458
    %9239 = vmatmul.mubr.bf16.gmra.mrb[0].mxu0 %v8446
    %v9240 = vpop.f32.mrb[0].mxu0
    %v9241 = vadd.f32 %v8658, %v9240
    %v9242 = vpop.f32.mrb[0].mxu0
    %v9243 = vpop.f32.mrb[0].mxu0
    %v9244 = vadd.f32 %v8658, %v9243
    %v9245 = vpop.f32.mrb[0].mxu0
    %9246 = vmatprep.mubr.bf16.mxu0 %v8482
    %9247 = vmatmul.mubr.bf16.gmra.mrb[0].mxu0 %v8470
    %v9248 = vpop.f32.mrb[0].mxu0
    %v9249 = vadd.f32 %v8658, %v9248
    %v9250 = vpop.f32.mrb[0].mxu0
    %v9251 = vpop.f32.mrb[0].mxu0
    %v9252 = vadd.f32 %v8658, %v9251
    %v9253 = vpop.f32.mrb[0].mxu0
    %9254 = vdwg.mxu0
    %9255 = vmatprep.subr.bf16.mxu0 0
    %9256 = vmatpush1.bf16.msra.mxu0 %v9158
    %9257 = vmatprep.subr.bf16.mxu0 0
    %9258 = vmatpush1.bf16.msra.mxu0 %v9159
    %9259 = vmatprep.subr.bf16.mxu0 0
    %9260 = vmatpush1.bf16.msra.mxu0 %v9160
    %9261 = vmatprep.subr.bf16.mxu0 0
    %9262 = vmatpush1.bf16.msra.mxu0 %v9161
    %9263 = vmatprep.subr.bf16.mxu0 0
    %9264 = vmatpush1.bf16.msra.mxu0 %v9162
    %9265 = vmatprep.subr.bf16.mxu0 0
    %9266 = vmatpush1.bf16.msra.mxu0 %v9163
    %9267 = vmatprep.subr.bf16.mxu0 0
    %9268 = vmatpush1.bf16.msra.mxu0 %v9164
    %9269 = vmatprep.subr.bf16.mxu0 0
    %9270 = vmatpush1.bf16.msra.mxu0 %v9165
    %9271 = vmatprep.subr.bf16.mxu0 0
    %9272 = vmatpush1.bf16.msra.mxu0 %v9166
    %9273 = vmatprep.subr.bf16.mxu0 0
    %9274 = vmatpush1.bf16.msra.mxu0 %v9167
    %9275 = vmatprep.subr.bf16.mxu0 0
    %9276 = vmatpush1.bf16.msra.mxu0 %v9168
    %9277 = vmatprep.subr.bf16.mxu0 0
    %9278 = vmatpush1.bf16.msra.mxu0 %v9169
    %9279 = vmatprep.subr.bf16.mxu0 0
    %9280 = vmatpush1.bf16.msra.mxu0 %v9170
    %9281 = vmatprep.subr.bf16.mxu0 0
    %9282 = vmatpush1.bf16.msra.mxu0 %v9171
    %9283 = vmatprep.subr.bf16.mxu0 0
    %9284 = vmatpush1.bf16.msra.mxu0 %v9172
    %9285 = vmatprep.subr.bf16.mxu0 0
    %9286 = vmatpush1.bf16.msra.mxu0 %v9173
    %9287 = vmatprep.mubr.bf16.mxu0 %v8560
    %9288 = vmatmul.mubr.bf16.gmra.mrb[0].mxu0 %v8548
    %v9289 = vpop.f32.mrb[0].mxu0
    %v9290 = vadd.f32 %v9241, %v9289
    %v9291 = vpop.f32.mrb[0].mxu0
    %v9292 = vpop.f32.mrb[0].mxu0
    %v9293 = vadd.f32 %v9244, %v9292
    %v9294 = vpop.f32.mrb[0].mxu0
    %9295 = vmatprep.mubr.bf16.mxu0 %v8584
    %9296 = vmatmul.mubr.bf16.gmra.mrb[0].mxu0 %v8572
    %v9297 = vpop.f32.mrb[0].mxu0
    %v9298 = vadd.f32 %v9249, %v9297
    %v9299 = vpop.f32.mrb[0].mxu0
    %v9300 = vpop.f32.mrb[0].mxu0
    %v9301 = vadd.f32 %v9252, %v9300
    %v9302 = vpop.f32.mrb[0].mxu0
    %9303 = vdwg.mxu0
    %v9304 = vtanh.pop %v8936
    %v9305 = vtanh.pop %v8939
    %v9306 = vtanh.pop %v8944
    %v9307 = vtanh.pop %v8947
    %v9308 = vtanh.pop %v9290
    %v9309 = vtanh.pop %v9293
    %v9310 = vtanh.pop %v9298
    %v9311 = vtanh.pop %v9301
    %v9316 = vcombine.high %v9304, %v9304
    %v9318 = vunpack.c.l.s4 1966171168
    %v9319 = vunpack.c.0.s8 %v9318
    %v9320 = vlaneseq
    %v9321 = vshrl.u32 %v9320, 7
    %v9322 = vsub.s32 %v9319, %v9321
    %v9323 = vrot.slane %v9304, %v9322
    %v9325 = vunpack.c.l.s4 1966171168
    %v9326 = vunpack.c.0.s8 %v9325
    %v9327 = vlaneseq
    %v9328 = vshrl.u32 %v9327, 7
    %v9329 = vsub.s32 %v9326, %v9328
    %v9330 = vrot.slane %v9316, %v9329
    %v9331 = vcombine.high %v9323, %v9323
    %v9332 = vcombine.high %v9330, %v9330
    %v9334 = vunpack.c.l.s4 1966171168
    %v9335 = vunpack.c.0.s8 %v9334
    %v9336 = vlaneseq
    %v9337 = vshrl.u32 %v9336, 7
    %v9338 = vsub.s32 %v9335, %v9337
    %v9339 = vrot.slane %v9323, %v9338
    %v9341 = vunpack.c.l.s4 1966171168
    %v9342 = vunpack.c.0.s8 %v9341
    %v9343 = vlaneseq
    %v9344 = vshrl.u32 %v9343, 7
    %v9345 = vsub.s32 %v9342, %v9344
    %v9346 = vrot.slane %v9330, %v9345
    %v9348 = vunpack.c.l.s4 1966171168
    %v9349 = vunpack.c.0.s8 %v9348
    %v9350 = vlaneseq
    %v9351 = vshrl.u32 %v9350, 7
    %v9352 = vsub.s32 %v9349, %v9351
    %v9353 = vrot.slane %v9331, %v9352
    %v9355 = vunpack.c.l.s4 1966171168
    %v9356 = vunpack.c.0.s8 %v9355
    %v9357 = vlaneseq
    %v9358 = vshrl.u32 %v9357, 7
    %v9359 = vsub.s32 %v9356, %v9358
    %v9360 = vrot.slane %v9332, %v9359
    %v9361 = vcombine.high %v9339, %v9339
    %v9362 = vcombine.high %v9346, %v9346
    %v9363 = vcombine.high %v9353, %v9353
    %v9364 = vcombine.high %v9360, %v9360
    %v9365 = vcombine.high %v9305, %v9305
    %v9367 = vunpack.c.l.s4 1966171168
    %v9368 = vunpack.c.0.s8 %v9367
    %v9369 = vlaneseq
    %v9370 = vshrl.u32 %v9369, 7
    %v9371 = vsub.s32 %v9368, %v9370
    %v9372 = vrot.slane %v9305, %v9371
    %v9374 = vunpack.c.l.s4 1966171168
    %v9375 = vunpack.c.0.s8 %v9374
    %v9376 = vlaneseq
    %v9377 = vshrl.u32 %v9376, 7
    %v9378 = vsub.s32 %v9375, %v9377
    %v9379 = vrot.slane %v9365, %v9378
    %v9380 = vcombine.high %v9372, %v9372
    %v9381 = vcombine.high %v9379, %v9379
    %v9383 = vunpack.c.l.s4 1966171168
    %v9384 = vunpack.c.0.s8 %v9383
    %v9385 = vlaneseq
    %v9386 = vshrl.u32 %v9385, 7
    %v9387 = vsub.s32 %v9384, %v9386
    %v9388 = vrot.slane %v9372, %v9387
    %v9390 = vunpack.c.l.s4 1966171168
    %v9391 = vunpack.c.0.s8 %v9390
    %v9392 = vlaneseq
    %v9393 = vshrl.u32 %v9392, 7
    %v9394 = vsub.s32 %v9391, %v9393
    %v9395 = vrot.slane %v9379, %v9394
    %v9397 = vunpack.c.l.s4 1966171168
    %v9398 = vunpack.c.0.s8 %v9397
    %v9399 = vlaneseq
    %v9400 = vshrl.u32 %v9399, 7
    %v9401 = vsub.s32 %v9398, %v9400
    %v9402 = vrot.slane %v9380, %v9401
    %v9404 = vunpack.c.l.s4 1966171168
    %v9405 = vunpack.c.0.s8 %v9404
    %v9406 = vlaneseq
    %v9407 = vshrl.u32 %v9406, 7
    %v9408 = vsub.s32 %v9405, %v9407
    %v9409 = vrot.slane %v9381, %v9408
    %v9410 = vcombine.high %v9388, %v9388
    %v9411 = vcombine.high %v9395, %v9395
    %v9412 = vcombine.high %v9402, %v9402
    %v9413 = vcombine.high %v9409, %v9409
    %v9414 = vcombine.high %v9306, %v9306
    %v9416 = vunpack.c.l.s4 1966171168
    %v9417 = vunpack.c.0.s8 %v9416
    %v9418 = vlaneseq
    %v9419 = vshrl.u32 %v9418, 7
    %v9420 = vsub.s32 %v9417, %v9419
    %v9421 = vrot.slane %v9306, %v9420
    %v9423 = vunpack.c.l.s4 1966171168
    %v9424 = vunpack.c.0.s8 %v9423
    %v9425 = vlaneseq
    %v9426 = vshrl.u32 %v9425, 7
    %v9427 = vsub.s32 %v9424, %v9426
    %v9428 = vrot.slane %v9414, %v9427
    %v9429 = vcombine.high %v9421, %v9421
    %v9430 = vcombine.high %v9428, %v9428
    %v9432 = vunpack.c.l.s4 1966171168
    %v9433 = vunpack.c.0.s8 %v9432
    %v9434 = vlaneseq
    %v9435 = vshrl.u32 %v9434, 7
    %v9436 = vsub.s32 %v9433, %v9435
    %v9437 = vrot.slane %v9421, %v9436
    %v9439 = vunpack.c.l.s4 1966171168
    %v9440 = vunpack.c.0.s8 %v9439
    %v9441 = vlaneseq
    %v9442 = vshrl.u32 %v9441, 7
    %v9443 = vsub.s32 %v9440, %v9442
    %v9444 = vrot.slane %v9428, %v9443
    %v9446 = vunpack.c.l.s4 1966171168
    %v9447 = vunpack.c.0.s8 %v9446
    %v9448 = vlaneseq
    %v9449 = vshrl.u32 %v9448, 7
    %v9450 = vsub.s32 %v9447, %v9449
    %v9451 = vrot.slane %v9429, %v9450
    %v9453 = vunpack.c.l.s4 1966171168
    %v9454 = vunpack.c.0.s8 %v9453
    %v9455 = vlaneseq
    %v9456 = vshrl.u32 %v9455, 7
    %v9457 = vsub.s32 %v9454, %v9456
    %v9458 = vrot.slane %v9430, %v9457
    %v9459 = vcombine.high %v9437, %v9437
    %v9460 = vcombine.high %v9444, %v9444
    %v9461 = vcombine.high %v9451, %v9451
    %v9462 = vcombine.high %v9458, %v9458
    %v9463 = vcombine.high %v9307, %v9307
    %v9465 = vunpack.c.l.s4 1966171168
    %v9466 = vunpack.c.0.s8 %v9465
    %v9467 = vlaneseq
    %v9468 = vshrl.u32 %v9467, 7
    %v9469 = vsub.s32 %v9466, %v9468
    %v9470 = vrot.slane %v9307, %v9469
    %v9472 = vunpack.c.l.s4 1966171168
    %v9473 = vunpack.c.0.s8 %v9472
    %v9474 = vlaneseq
    %v9475 = vshrl.u32 %v9474, 7
    %v9476 = vsub.s32 %v9473, %v9475
    %v9477 = vrot.slane %v9463, %v9476
    %v9478 = vcombine.high %v9470, %v9470
    %v9479 = vcombine.high %v9477, %v9477
    %v9481 = vunpack.c.l.s4 1966171168
    %v9482 = vunpack.c.0.s8 %v9481
    %v9483 = vlaneseq
    %v9484 = vshrl.u32 %v9483, 7
    %v9485 = vsub.s32 %v9482, %v9484
    %v9486 = vrot.slane %v9470, %v9485
    %v9488 = vunpack.c.l.s4 1966171168
    %v9489 = vunpack.c.0.s8 %v9488
    %v9490 = vlaneseq
    %v9491 = vshrl.u32 %v9490, 7
    %v9492 = vsub.s32 %v9489, %v9491
    %v9493 = vrot.slane %v9477, %v9492
    %v9495 = vunpack.c.l.s4 1966171168
    %v9496 = vunpack.c.0.s8 %v9495
    %v9497 = vlaneseq
    %v9498 = vshrl.u32 %v9497, 7
    %v9499 = vsub.s32 %v9496, %v9498
    %v9500 = vrot.slane %v9478, %v9499
    %v9502 = vunpack.c.l.s4 1966171168
    %v9503 = vunpack.c.0.s8 %v9502
    %v9504 = vlaneseq
    %v9505 = vshrl.u32 %v9504, 7
    %v9506 = vsub.s32 %v9503, %v9505
    %v9507 = vrot.slane %v9479, %v9506
    %v9508 = vcombine.high %v9486, %v9486
    %v9509 = vcombine.high %v9493, %v9493
    %v9510 = vcombine.high %v9500, %v9500
    %v9511 = vcombine.high %v9507, %v9507
    %v9548 = vcombine.high %v9308, %v9308
    %v9550 = vunpack.c.l.s4 1966171168
    %v9551 = vunpack.c.0.s8 %v9550
    %v9552 = vlaneseq
    %v9553 = vshrl.u32 %v9552, 7
    %v9554 = vsub.s32 %v9551, %v9553
    %v9555 = vrot.slane %v9308, %v9554
    %v9557 = vunpack.c.l.s4 1966171168
    %v9558 = vunpack.c.0.s8 %v9557
    %v9559 = vlaneseq
    %v9560 = vshrl.u32 %v9559, 7
    %v9561 = vsub.s32 %v9558, %v9560
    %v9562 = vrot.slane %v9548, %v9561
    %v9563 = vcombine.high %v9555, %v9555
    %v9564 = vcombine.high %v9562, %v9562
    %v9566 = vunpack.c.l.s4 1966171168
    %v9567 = vunpack.c.0.s8 %v9566
    %v9568 = vlaneseq
    %v9569 = vshrl.u32 %v9568, 7
    %v9570 = vsub.s32 %v9567, %v9569
    %v9571 = vrot.slane %v9555, %v9570
    %v9573 = vunpack.c.l.s4 1966171168
    %v9574 = vunpack.c.0.s8 %v9573
    %v9575 = vlaneseq
    %v9576 = vshrl.u32 %v9575, 7
    %v9577 = vsub.s32 %v9574, %v9576
    %v9578 = vrot.slane %v9562, %v9577
    %v9580 = vunpack.c.l.s4 1966171168
    %v9581 = vunpack.c.0.s8 %v9580
    %v9582 = vlaneseq
    %v9583 = vshrl.u32 %v9582, 7
    %v9584 = vsub.s32 %v9581, %v9583
    %v9585 = vrot.slane %v9563, %v9584
    %v9587 = vunpack.c.l.s4 1966171168
    %v9588 = vunpack.c.0.s8 %v9587
    %v9589 = vlaneseq
    %v9590 = vshrl.u32 %v9589, 7
    %v9591 = vsub.s32 %v9588, %v9590
    %v9592 = vrot.slane %v9564, %v9591
    %v9593 = vcombine.high %v9571, %v9571
    %v9594 = vcombine.high %v9578, %v9578
    %v9595 = vcombine.high %v9585, %v9585
    %v9596 = vcombine.high %v9592, %v9592
    %v9597 = vcombine.high %v9309, %v9309
    %v9599 = vunpack.c.l.s4 1966171168
    %v9600 = vunpack.c.0.s8 %v9599
    %v9601 = vlaneseq
    %v9602 = vshrl.u32 %v9601, 7
    %v9603 = vsub.s32 %v9600, %v9602
    %v9604 = vrot.slane %v9309, %v9603
    %v9606 = vunpack.c.l.s4 1966171168
    %v9607 = vunpack.c.0.s8 %v9606
    %v9608 = vlaneseq
    %v9609 = vshrl.u32 %v9608, 7
    %v9610 = vsub.s32 %v9607, %v9609
    %v9611 = vrot.slane %v9597, %v9610
    %v9612 = vcombine.high %v9604, %v9604
    %v9613 = vcombine.high %v9611, %v9611
    %v9615 = vunpack.c.l.s4 1966171168
    %v9616 = vunpack.c.0.s8 %v9615
    %v9617 = vlaneseq
    %v9618 = vshrl.u32 %v9617, 7
    %v9619 = vsub.s32 %v9616, %v9618
    %v9620 = vrot.slane %v9604, %v9619
    %v9622 = vunpack.c.l.s4 1966171168
    %v9623 = vunpack.c.0.s8 %v9622
    %v9624 = vlaneseq
    %v9625 = vshrl.u32 %v9624, 7
    %v9626 = vsub.s32 %v9623, %v9625
    %v9627 = vrot.slane %v9611, %v9626
    %v9629 = vunpack.c.l.s4 1966171168
    %v9630 = vunpack.c.0.s8 %v9629
    %v9631 = vlaneseq
    %v9632 = vshrl.u32 %v9631, 7
    %v9633 = vsub.s32 %v9630, %v9632
    %v9634 = vrot.slane %v9612, %v9633
    %v9636 = vunpack.c.l.s4 1966171168
    %v9637 = vunpack.c.0.s8 %v9636
    %v9638 = vlaneseq
    %v9639 = vshrl.u32 %v9638, 7
    %v9640 = vsub.s32 %v9637, %v9639
    %v9641 = vrot.slane %v9613, %v9640
    %v9642 = vcombine.high %v9620, %v9620
    %v9643 = vcombine.high %v9627, %v9627
    %v9644 = vcombine.high %v9634, %v9634
    %v9645 = vcombine.high %v9641, %v9641
    %v9646 = vcombine.high %v9310, %v9310
    %v9648 = vunpack.c.l.s4 1966171168
    %v9649 = vunpack.c.0.s8 %v9648
    %v9650 = vlaneseq
    %v9651 = vshrl.u32 %v9650, 7
    %v9652 = vsub.s32 %v9649, %v9651
    %v9653 = vrot.slane %v9310, %v9652
    %v9655 = vunpack.c.l.s4 1966171168
    %v9656 = vunpack.c.0.s8 %v9655
    %v9657 = vlaneseq
    %v9658 = vshrl.u32 %v9657, 7
    %v9659 = vsub.s32 %v9656, %v9658
    %v9660 = vrot.slane %v9646, %v9659
    %v9661 = vcombine.high %v9653, %v9653
    %v9662 = vcombine.high %v9660, %v9660
    %v9664 = vunpack.c.l.s4 1966171168
    %v9665 = vunpack.c.0.s8 %v9664
    %v9666 = vlaneseq
    %v9667 = vshrl.u32 %v9666, 7
    %v9668 = vsub.s32 %v9665, %v9667
    %v9669 = vrot.slane %v9653, %v9668
    %v9671 = vunpack.c.l.s4 1966171168
    %v9672 = vunpack.c.0.s8 %v9671
    %v9673 = vlaneseq
    %v9674 = vshrl.u32 %v9673, 7
    %v9675 = vsub.s32 %v9672, %v9674
    %v9676 = vrot.slane %v9660, %v9675
    %v9678 = vunpack.c.l.s4 1966171168
    %v9679 = vunpack.c.0.s8 %v9678
    %v9680 = vlaneseq
    %v9681 = vshrl.u32 %v9680, 7
    %v9682 = vsub.s32 %v9679, %v9681
    %v9683 = vrot.slane %v9661, %v9682
    %v9685 = vunpack.c.l.s4 1966171168
    %v9686 = vunpack.c.0.s8 %v9685
    %v9687 = vlaneseq
    %v9688 = vshrl.u32 %v9687, 7
    %v9689 = vsub.s32 %v9686, %v9688
    %v9690 = vrot.slane %v9662, %v9689
    %v9691 = vcombine.high %v9669, %v9669
    %v9692 = vcombine.high %v9676, %v9676
    %v9693 = vcombine.high %v9683, %v9683
    %v9694 = vcombine.high %v9690, %v9690
    %v9695 = vcombine.high %v9311, %v9311
    %v9697 = vunpack.c.l.s4 1966171168
    %v9698 = vunpack.c.0.s8 %v9697
    %v9699 = vlaneseq
    %v9700 = vshrl.u32 %v9699, 7
    %v9701 = vsub.s32 %v9698, %v9700
    %v9702 = vrot.slane %v9311, %v9701
    %v9704 = vunpack.c.l.s4 1966171168
    %v9705 = vunpack.c.0.s8 %v9704
    %v9706 = vlaneseq
    %v9707 = vshrl.u32 %v9706, 7
    %v9708 = vsub.s32 %v9705, %v9707
    %v9709 = vrot.slane %v9695, %v9708
    %v9710 = vcombine.high %v9702, %v9702
    %v9711 = vcombine.high %v9709, %v9709
    %v9713 = vunpack.c.l.s4 1966171168
    %v9714 = vunpack.c.0.s8 %v9713
    %v9715 = vlaneseq
    %v9716 = vshrl.u32 %v9715, 7
    %v9717 = vsub.s32 %v9714, %v9716
    %v9718 = vrot.slane %v9702, %v9717
    %v9720 = vunpack.c.l.s4 1966171168
    %v9721 = vunpack.c.0.s8 %v9720
    %v9722 = vlaneseq
    %v9723 = vshrl.u32 %v9722, 7
    %v9724 = vsub.s32 %v9721, %v9723
    %v9725 = vrot.slane %v9709, %v9724
    %v9727 = vunpack.c.l.s4 1966171168
    %v9728 = vunpack.c.0.s8 %v9727
    %v9729 = vlaneseq
    %v9730 = vshrl.u32 %v9729, 7
    %v9731 = vsub.s32 %v9728, %v9730
    %v9732 = vrot.slane %v9710, %v9731
    %v9734 = vunpack.c.l.s4 1966171168
    %v9735 = vunpack.c.0.s8 %v9734
    %v9736 = vlaneseq
    %v9737 = vshrl.u32 %v9736, 7
    %v9738 = vsub.s32 %v9735, %v9737
    %v9739 = vrot.slane %v9711, %v9738
    %v9740 = vcombine.high %v9718, %v9718
    %v9741 = vcombine.high %v9725, %v9725
    %v9742 = vcombine.high %v9732, %v9732
    %v9743 = vcombine.high %v9739, %v9739
    %v9744 = vlaneseq
    %v9745 = vshrl.u32 %v9744, 7
    %v9746 = vsub.s32 0, %v9745
    %v9747 = vrot.slane %v9571, %v9746
    %v9748 = vlaneseq
    %v9749 = vshrl.u32 %v9748, 7
    %v9750 = vsub.s32 0, %v9749
    %v9751 = vrot.slane %v9585, %v9750
    %v9752 = vlaneseq
    %v9753 = vshrl.u32 %v9752, 7
    %v9754 = vsub.s32 0, %v9753
    %v9755 = vrot.slane %v9593, %v9754
    %v9756 = vlaneseq
    %v9757 = vshrl.u32 %v9756, 7
    %v9758 = vsub.s32 0, %v9757
    %v9759 = vrot.slane %v9595, %v9758
    %v9760 = vlaneseq
    %v9761 = vshrl.u32 %v9760, 7
    %v9762 = vsub.s32 0, %v9761
    %v9763 = vrot.slane %v9578, %v9762
    %v9764 = vlaneseq
    %v9765 = vshrl.u32 %v9764, 7
    %v9766 = vsub.s32 0, %v9765
    %v9767 = vrot.slane %v9592, %v9766
    %v9768 = vlaneseq
    %v9769 = vshrl.u32 %v9768, 7
    %v9770 = vsub.s32 0, %v9769
    %v9771 = vrot.slane %v9594, %v9770
    %v9772 = vlaneseq
    %v9773 = vshrl.u32 %v9772, 7
    %v9774 = vsub.s32 0, %v9773
    %v9775 = vrot.slane %v9596, %v9774
    %v9776 = vlaneseq
    %v9777 = vshrl.u32 %v9776, 7
    %v9778 = vsub.s32 0, %v9777
    %v9779 = vrot.slane %v9620, %v9778
    %v9780 = vlaneseq
    %v9781 = vshrl.u32 %v9780, 7
    %v9782 = vsub.s32 0, %v9781
    %v9783 = vrot.slane %v9634, %v9782
    %v9784 = vlaneseq
    %v9785 = vshrl.u32 %v9784, 7
    %v9786 = vsub.s32 0, %v9785
    %v9787 = vrot.slane %v9642, %v9786
    %v9788 = vlaneseq
    %v9789 = vshrl.u32 %v9788, 7
    %v9790 = vsub.s32 0, %v9789
    %v9791 = vrot.slane %v9644, %v9790
    %v9792 = vlaneseq
    %v9793 = vshrl.u32 %v9792, 7
    %v9794 = vsub.s32 0, %v9793
    %v9795 = vrot.slane %v9627, %v9794
    %v9796 = vlaneseq
    %v9797 = vshrl.u32 %v9796, 7
    %v9798 = vsub.s32 0, %v9797
    %v9799 = vrot.slane %v9641, %v9798
    %v9800 = vlaneseq
    %v9801 = vshrl.u32 %v9800, 7
    %v9802 = vsub.s32 0, %v9801
    %v9803 = vrot.slane %v9643, %v9802
    %v9804 = vlaneseq
    %v9805 = vshrl.u32 %v9804, 7
    %v9806 = vsub.s32 0, %v9805
    %v9807 = vrot.slane %v9645, %v9806
    %v9808 = vlaneseq
    %v9809 = vshrl.u32 %v9808, 7
    %v9810 = vsub.s32 0, %v9809
    %v9811 = vrot.slane %v9669, %v9810
    %v9812 = vlaneseq
    %v9813 = vshrl.u32 %v9812, 7
    %v9814 = vsub.s32 0, %v9813
    %v9815 = vrot.slane %v9683, %v9814
    %v9816 = vlaneseq
    %v9817 = vshrl.u32 %v9816, 7
    %v9818 = vsub.s32 0, %v9817
    %v9819 = vrot.slane %v9691, %v9818
    %v9820 = vlaneseq
    %v9821 = vshrl.u32 %v9820, 7
    %v9822 = vsub.s32 0, %v9821
    %v9823 = vrot.slane %v9693, %v9822
    %v9824 = vlaneseq
    %v9825 = vshrl.u32 %v9824, 7
    %v9826 = vsub.s32 0, %v9825
    %v9827 = vrot.slane %v9676, %v9826
    %v9828 = vlaneseq
    %v9829 = vshrl.u32 %v9828, 7
    %v9830 = vsub.s32 0, %v9829
    %v9831 = vrot.slane %v9690, %v9830
    %v9832 = vlaneseq
    %v9833 = vshrl.u32 %v9832, 7
    %v9834 = vsub.s32 0, %v9833
    %v9835 = vrot.slane %v9692, %v9834
    %v9836 = vlaneseq
    %v9837 = vshrl.u32 %v9836, 7
    %v9838 = vsub.s32 0, %v9837
    %v9839 = vrot.slane %v9694, %v9838
    %v9840 = vlaneseq
    %v9841 = vshrl.u32 %v9840, 7
    %v9842 = vsub.s32 0, %v9841
    %v9843 = vrot.slane %v9718, %v9842
    %v9844 = vlaneseq
    %v9845 = vshrl.u32 %v9844, 7
    %v9846 = vsub.s32 0, %v9845
    %v9847 = vrot.slane %v9732, %v9846
    %v9848 = vlaneseq
    %v9849 = vshrl.u32 %v9848, 7
    %v9850 = vsub.s32 0, %v9849
    %v9851 = vrot.slane %v9740, %v9850
    %v9852 = vlaneseq
    %v9853 = vshrl.u32 %v9852, 7
    %v9854 = vsub.s32 0, %v9853
    %v9855 = vrot.slane %v9742, %v9854
    %v9856 = vlaneseq
    %v9857 = vshrl.u32 %v9856, 7
    %v9858 = vsub.s32 0, %v9857
    %v9859 = vrot.slane %v9725, %v9858
    %v9860 = vlaneseq
    %v9861 = vshrl.u32 %v9860, 7
    %v9862 = vsub.s32 0, %v9861
    %v9863 = vrot.slane %v9739, %v9862
    %v9864 = vlaneseq
    %v9865 = vshrl.u32 %v9864, 7
    %v9866 = vsub.s32 0, %v9865
    %v9867 = vrot.slane %v9741, %v9866
    %v9868 = vlaneseq
    %v9869 = vshrl.u32 %v9868, 7
    %v9870 = vsub.s32 0, %v9869
    %v9871 = vrot.slane %v9743, %v9870
    %v9904 = vsel %vm6186, %v9339, %v9747
    %v9905 = vsel %vm6186, %v9353, %v9751
    %v9906 = vsel %vm6186, %v9361, %v9755
    %v9907 = vsel %vm6186, %v9363, %v9759
    %v9908 = vsel %vm6186, %v9346, %v9763
    %v9909 = vsel %vm6186, %v9360, %v9767
    %v9910 = vsel %vm6186, %v9362, %v9771
    %v9911 = vsel %vm6186, %v9364, %v9775
    %v9912 = vsel %vm6186, %v9388, %v9779
    %v9913 = vsel %vm6186, %v9402, %v9783
    %v9914 = vsel %vm6186, %v9410, %v9787
    %v9915 = vsel %vm6186, %v9412, %v9791
    %v9916 = vsel %vm6186, %v9395, %v9795
    %v9917 = vsel %vm6186, %v9409, %v9799
    %v9918 = vsel %vm6186, %v9411, %v9803
    %v9919 = vsel %vm6186, %v9413, %v9807
    %v9920 = vsel %vm6186, %v9437, %v9811
    %v9921 = vsel %vm6186, %v9451, %v9815
    %v9922 = vsel %vm6186, %v9459, %v9819
    %v9923 = vsel %vm6186, %v9461, %v9823
    %v9924 = vsel %vm6186, %v9444, %v9827
    %v9925 = vsel %vm6186, %v9458, %v9831
    %v9926 = vsel %vm6186, %v9460, %v9835
    %v9927 = vsel %vm6186, %v9462, %v9839
    %v9928 = vsel %vm6186, %v9486, %v9843
    %v9929 = vsel %vm6186, %v9500, %v9847
    %v9930 = vsel %vm6186, %v9508, %v9851
    %v9931 = vsel %vm6186, %v9510, %v9855
    %v9932 = vsel %vm6186, %v9493, %v9859
    %v9933 = vsel %vm6186, %v9507, %v9863
    %v9934 = vsel %vm6186, %v9509, %v9867
    %v9935 = vsel %vm6186, %v9511, %v9871
    %v9968 = vcombine.low %v9904, %v9905
    %v9969 = vcombine.low %v9906, %v9907
    %v9971 = vunpack.c.l.s4 1983009808
    %v9972 = vunpack.c.0.s8 %v9971
    %v9973 = vlaneseq
    %v9974 = vshrl.u32 %v9973, 7
    %v9975 = vsub.s32 %v9972, %v9974
    %v9976 = vrot.slane %v9968, %v9975
    %v9978 = vunpack.c.l.s4 1983009808
    %v9979 = vunpack.c.0.s8 %v9978
    %v9980 = vlaneseq
    %v9981 = vshrl.u32 %v9980, 7
    %v9982 = vsub.s32 %v9979, %v9981
    %v9983 = vrot.slane %v9969, %v9982
    %v9984 = vcombine.low %v9976, %v9983
    %v9985 = vcombine.low %v9908, %v9909
    %v9986 = vcombine.low %v9910, %v9911
    %v9988 = vunpack.c.l.s4 1983009808
    %v9989 = vunpack.c.0.s8 %v9988
    %v9990 = vlaneseq
    %v9991 = vshrl.u32 %v9990, 7
    %v9992 = vsub.s32 %v9989, %v9991
    %v9993 = vrot.slane %v9985, %v9992
    %v9995 = vunpack.c.l.s4 1983009808
    %v9996 = vunpack.c.0.s8 %v9995
    %v9997 = vlaneseq
    %v9998 = vshrl.u32 %v9997, 7
    %v9999 = vsub.s32 %v9996, %v9998
    %v10000 = vrot.slane %v9986, %v9999
    %v10001 = vcombine.low %v9993, %v10000
    %v10002 = vcombine.low %v9912, %v9913
    %v10003 = vcombine.low %v9914, %v9915
    %v10005 = vunpack.c.l.s4 1983009808
    %v10006 = vunpack.c.0.s8 %v10005
    %v10007 = vlaneseq
    %v10008 = vshrl.u32 %v10007, 7
    %v10009 = vsub.s32 %v10006, %v10008
    %v10010 = vrot.slane %v10002, %v10009
    %v10012 = vunpack.c.l.s4 1983009808
    %v10013 = vunpack.c.0.s8 %v10012
    %v10014 = vlaneseq
    %v10015 = vshrl.u32 %v10014, 7
    %v10016 = vsub.s32 %v10013, %v10015
    %v10017 = vrot.slane %v10003, %v10016
    %v10018 = vcombine.low %v10010, %v10017
    %v10019 = vcombine.low %v9916, %v9917
    %v10020 = vcombine.low %v9918, %v9919
    %v10022 = vunpack.c.l.s4 1983009808
    %v10023 = vunpack.c.0.s8 %v10022
    %v10024 = vlaneseq
    %v10025 = vshrl.u32 %v10024, 7
    %v10026 = vsub.s32 %v10023, %v10025
    %v10027 = vrot.slane %v10019, %v10026
    %v10029 = vunpack.c.l.s4 1983009808
    %v10030 = vunpack.c.0.s8 %v10029
    %v10031 = vlaneseq
    %v10032 = vshrl.u32 %v10031, 7
    %v10033 = vsub.s32 %v10030, %v10032
    %v10034 = vrot.slane %v10020, %v10033
    %v10035 = vcombine.low %v10027, %v10034
    %v10036 = vcombine.low %v9920, %v9921
    %v10037 = vcombine.low %v9922, %v9923
    %v10039 = vunpack.c.l.s4 1983009808
    %v10040 = vunpack.c.0.s8 %v10039
    %v10041 = vlaneseq
    %v10042 = vshrl.u32 %v10041, 7
    %v10043 = vsub.s32 %v10040, %v10042
    %v10044 = vrot.slane %v10036, %v10043
    %v10046 = vunpack.c.l.s4 1983009808
    %v10047 = vunpack.c.0.s8 %v10046
    %v10048 = vlaneseq
    %v10049 = vshrl.u32 %v10048, 7
    %v10050 = vsub.s32 %v10047, %v10049
    %v10051 = vrot.slane %v10037, %v10050
    %v10052 = vcombine.low %v10044, %v10051
    %v10053 = vcombine.low %v9924, %v9925
    %v10054 = vcombine.low %v9926, %v9927
    %v10056 = vunpack.c.l.s4 1983009808
    %v10057 = vunpack.c.0.s8 %v10056
    %v10058 = vlaneseq
    %v10059 = vshrl.u32 %v10058, 7
    %v10060 = vsub.s32 %v10057, %v10059
    %v10061 = vrot.slane %v10053, %v10060
    %v10063 = vunpack.c.l.s4 1983009808
    %v10064 = vunpack.c.0.s8 %v10063
    %v10065 = vlaneseq
    %v10066 = vshrl.u32 %v10065, 7
    %v10067 = vsub.s32 %v10064, %v10066
    %v10068 = vrot.slane %v10054, %v10067
    %v10069 = vcombine.low %v10061, %v10068
    %v10070 = vcombine.low %v9928, %v9929
    %v10071 = vcombine.low %v9930, %v9931
    %v10073 = vunpack.c.l.s4 1983009808
    %v10074 = vunpack.c.0.s8 %v10073
    %v10075 = vlaneseq
    %v10076 = vshrl.u32 %v10075, 7
    %v10077 = vsub.s32 %v10074, %v10076
    %v10078 = vrot.slane %v10070, %v10077
    %v10080 = vunpack.c.l.s4 1983009808
    %v10081 = vunpack.c.0.s8 %v10080
    %v10082 = vlaneseq
    %v10083 = vshrl.u32 %v10082, 7
    %v10084 = vsub.s32 %v10081, %v10083
    %v10085 = vrot.slane %v10071, %v10084
    %v10086 = vcombine.low %v10078, %v10085
    %v10087 = vcombine.low %v9932, %v9933
    %v10088 = vcombine.low %v9934, %v9935
    %v10090 = vunpack.c.l.s4 1983009808
    %v10091 = vunpack.c.0.s8 %v10090
    %v10092 = vlaneseq
    %v10093 = vshrl.u32 %v10092, 7
    %v10094 = vsub.s32 %v10091, %v10093
    %v10095 = vrot.slane %v10087, %v10094
    %v10097 = vunpack.c.l.s4 1983009808
    %v10098 = vunpack.c.0.s8 %v10097
    %v10099 = vlaneseq
    %v10100 = vshrl.u32 %v10099, 7
    %v10101 = vsub.s32 %v10098, %v10100
    %v10102 = vrot.slane %v10088, %v10101
    %v10103 = vcombine.low %v10095, %v10102
    %10112 = vst [vmem:[%s16] sm:$0xff] %v9984
    %10113 = vst [vmem:[%s16 + $0x8] sm:$0xff] %v10001
    %10114 = vst [vmem:[%s16 + $0x10] sm:$0xff] %v10018
    %10115 = vst [vmem:[%s16 + $0x18] sm:$0xff] %v10035
    %10116 = vst [vmem:[%s16 + $0x20] sm:$0xff] %v10052
    %10117 = vst [vmem:[%s16 + $0x28] sm:$0xff] %v10069
    %10118 = vst [vmem:[%s16 + $0x30] sm:$0xff] %v10086
    %10119 = vst [vmem:[%s16 + $0x38] sm:$0xff] %v10103
    // Predicated region
    $region98: #{forward_pallas.1} parent=1 // pred_check
      _
    $region99: #{forward_pallas.1} parent=1 // pred_check_branch
      %10121 = sbr.rel (0) target = $region101
    $region100: #{forward_pallas.1} parent=1 // pred_region
      _
    $region101: #{forward_pallas.1} parent=1 // pred_fallthru
      _
    // Predicated region
    $region102: #{forward_pallas.1} parent=1 // pred_check
      _
    $region103: #{forward_pallas.1} parent=1 // pred_check_branch
      %10123 = sbr.rel (0) target = $region105
    $region104: #{forward_pallas.1} parent=1 // pred_region
      _
    $region105: #{forward_pallas.1} parent=1 // pred_fallthru
      _
    %10124 = vsyncpa [#allocation8], 1
    %10125 = vsyncpa [#allocation10], 1
    %10126 = vsyncpa [#allocation13], 1
    %10127 = vsyncpa [#allocation16], 1
    %10128 = vsyncpa [#allocation19], 1

</llo_original>
